<compile_context>
chip_gen: v6e
topology: v6e:2x2x1
jax: 0.10.0
libtpu: 0.0.40
codegen_flags: <defaults>
</compile_context>

<pallas_src>
import functools
import math

import jax
import jax.numpy as jnp
import numpy as np
from jax.experimental import pallas as pl
from jax.experimental.pallas import tpu as pltpu

# ----------------------------- model config (small, consistent with the module) ---
D_MODEL = 32
D_INNER = 64
N_SOURCE_LAYERS = 2            # Decoder1 layers (source encoder)
N_TARGET_LAYERS = 1            # Encoder1 layers (target encoder)
N_HEAD = 4
D_K = 8
D_V = 8
SCALE_EMB = False

PAD = 0                        # SemanticElementType.PAD
N_TYPES = 16                   # SemanticElementType.MAX (synthetic)
N_STAVES = 8                   # staff embedding table size (synthetic)
LN_EPS = 1e-6

# MHA order: [enc0.self, dec0.self, dec0.enc, dec1.self, dec1.enc]
N_MHA = N_TARGET_LAYERS + 2 * N_SOURCE_LAYERS        # 5
# FFN order: [enc0, dec0, dec1]
N_FFN = N_TARGET_LAYERS + N_SOURCE_LAYERS            # 3
EMB_COLS = 32                  # 16 type one-hot + 8 staff one-hot + 2 position + 6 zero pad


# ------------------------- vector-parameter slab layout ---------------------------
def _build_vec_layout():
    layout, row = {}, 0

    def add(name, width):
        nonlocal row
        layout[name] = (row, width)
        row += 1

    for i in range(N_MHA):
        add(f"mha{i}_bo", D_MODEL)
        add(f"mha{i}_g", D_MODEL)
        add(f"mha{i}_b", D_MODEL)
    for j in range(N_FFN):
        add(f"ffn{j}_b1", D_INNER)
        add(f"ffn{j}_b2", D_MODEL)
        add(f"ffn{j}_g", D_MODEL)
        add(f"ffn{j}_b", D_MODEL)
    for e in range(2):
        add(f"emb{e}_b", D_MODEL)
    for name in ("enc_g", "enc_b", "dec_g", "dec_b"):
        add(name, D_MODEL)
    return layout, row


VEC_LAYOUT, VEC_ROWS = _build_vec_layout()
VEC_WIDTH = D_INNER            # widest row (FFN b1)


# ================================ fused Pallas kernel ==============================
def _fused_kernel(emb_in_ref, kbias_ref, wqkv_ref, bqkv_ref, wo_ref,
                  w1_ref, w2_ref, embw_ref, vec_ref, out_ref, *, S, vec_layout):
    """Whole TransformJointerH_ED forward for one batch element (grid step)."""
    f32, bf16 = jnp.float32, jnp.bfloat16
    H3 = 3 * N_HEAD

    def vrow(name):
        # Use-site load of one bias / LayerNorm row from the packed vector slab.
        r, w = vec_layout[name]
        return vec_ref[r:r + 1, :w]                       # (1, w) f32

    def layer_norm(x, gname, bname):
        mu = jnp.mean(x, axis=-1, keepdims=True)
        xc = x - mu
        var = jnp.mean(xc * xc, axis=-1, keepdims=True)
        return xc * jax.lax.rsqrt(var + LN_EPS) * vrow(gname) + vrow(bname)

    emb_x = emb_in_ref[0].astype(bf16)                    # (S, 32): [type-oh | staff-oh | xy | 0]
    kbias = kbias_ref[...]                                # (1, 1, S): 0 valid key, -1e9 PAD key

    def embed(e):
        # TODO(synk): starry Embedder reconstructed as type_emb + staff_emb + Linear(xy).
        x = jnp.dot(emb_x, embw_ref[e], preferred_element_type=f32)      # (S, D)
        x = x + vrow(f"emb{e}_b")
        if SCALE_EMB:
            x = x * math.sqrt(D_MODEL)
        return x

    def mha(i, x_q, x_kv, self_attn):
        """Head-batched MHA + output proj + residual + post-LN (dropout = eval no-op)."""
        w3 = wqkv_ref[i]                                  # (3H, dk, D) bf16, 1/sqrt(dk) in Q
        b3 = bqkv_ref[i]                                  # (3H, 1, dk) f32
        if self_attn:
            xb = jnp.broadcast_to(x_q.astype(bf16), (H3, S, D_MODEL))
            qkv = jnp.einsum("hnd,hkd->hnk", xb, w3, preferred_element_type=f32) + b3
            q, k, v = qkv[:N_HEAD], qkv[N_HEAD:2 * N_HEAD], qkv[2 * N_HEAD:]
        else:
            qb = jnp.broadcast_to(x_q.astype(bf16), (N_HEAD, S, D_MODEL))
            kvb = jnp.broadcast_to(x_kv.astype(bf16), (2 * N_HEAD, S, D_MODEL))
            q = jnp.einsum("hnd,hkd->hnk", qb, w3[:N_HEAD],
                           preferred_element_type=f32) + b3[:N_HEAD]
            kv = jnp.einsum("hnd,hkd->hnk", kvb, w3[N_HEAD:],
                            preferred_element_type=f32) + b3[N_HEAD:]
            k, v = kv[:N_HEAD], kv[N_HEAD:]

        s = jnp.einsum("hqd,hkd->hqk", q.astype(bf16), k.astype(bf16),
                       preferred_element_type=f32)        # (H, S, S), scale already folded in
        s = s + kbias                                     # additive pad-key bias (masked_fill)
        s = s - jnp.max(s, axis=-1, keepdims=True)
        e = jnp.exp(s)
        p = e * pl.reciprocal(jnp.sum(e, axis=-1, keepdims=True), approx=True)
        ctx = jnp.einsum("hqk,hkd->hqd", p.astype(bf16), v.astype(bf16),
                         preferred_element_type=f32)      # (H, S, dv)
        proj = jnp.sum(jnp.einsum("hqd,hdm->hqm", ctx.astype(bf16), wo_ref[i],
                                  preferred_element_type=f32), axis=0)   # (S, D)
        proj = proj + vrow(f"mha{i}_bo")
        return layer_norm(proj + x_q, f"mha{i}_g", f"mha{i}_b")          # residual + post-LN

    def ffn(j, x):
        h = jnp.dot(x.astype(bf16), w1_ref[j], preferred_element_type=f32) + vrow(f"ffn{j}_b1")
        h = jnp.maximum(h, 0.0)                                          # ReLU
        y = jnp.dot(h.astype(bf16), w2_ref[j], preferred_element_type=f32) + vrow(f"ffn{j}_b2")
        return layer_norm(y + x, f"ffn{j}_g", f"ffn{j}_b")               # residual + post-LN

    # Encoder1 (target): embed -> LN -> [self-attn -> FFN]
    tgt = layer_norm(embed(0), "enc_g", "enc_b")
    tgt = ffn(0, mha(0, tgt, tgt, True))

    # Decoder1 (source): embed -> LN -> [self-attn -> enc-attn -> FFN] x 2
    src = layer_norm(embed(1), "dec_g", "dec_b")
    src = ffn(1, mha(2, mha(1, src, src, True), tgt, False))
    src = ffn(2, mha(4, mha(3, src, src, True), tgt, False))

    # Jointer: sigmoid(source @ target^T), f32 operands for output fidelity.
    # TODO(synk): with_temperature=True (learned temperature scaling) variant not included.
    logits = jax.lax.dot_general(src, tgt, (((1,), (1,)), ((), ())),
                                 preferred_element_type=f32)
    out_ref[0] = jax.nn.sigmoid(logits)


# ================================ wrapper ==========================================
def transform_jointer_forward(packed, seq_id, seq_position):
    """Returns dense (B, S, S) sigmoid similarity; ragged mask extraction is host glue."""
    B, S, _ = seq_id.shape
    seq_type = seq_id[:, :, 0]
    seq_staff = seq_id[:, :, 1]

    # Cheap XLA glue: fused embedding input (one in-kernel matmul) and the additive
    # pad-key bias (O(S) per sample, replaces the old dense (B*S, B*S) mask).
    emb_in = jnp.concatenate(
        [jax.nn.one_hot(seq_type, N_TYPES, dtype=jnp.float32),
         jax.nn.one_hot(seq_staff, N_STAVES, dtype=jnp.float32),
         seq_position.astype(jnp.float32),
         jnp.zeros((B, S, EMB_COLS - N_TYPES - N_STAVES - 2), jnp.float32)],
        axis=-1)                                                         # (B, S, 32)
    key_bias = jnp.where(seq_type == PAD, -1e9, 0.0).astype(jnp.float32)[:, None, :]  # (B,1,S)

    kernel = functools.partial(_fused_kernel, S=S, vec_layout=VEC_LAYOUT)

    def full(a):   # weight slab: full-array block, constant index -> stays VMEM-resident
        return pl.BlockSpec(a.shape, lambda b, _nd=a.ndim: (0,) * _nd)

    return pl.pallas_call(
        kernel,
        grid=(B,),
        in_specs=[
            pl.BlockSpec((1, S, EMB_COLS), lambda b: (b, 0, 0)),
            pl.BlockSpec((1, 1, S), lambda b: (b, 0, 0)),
            full(packed["wqkv"]), full(packed["bqkv"]), full(packed["wo"]),
            full(packed["w1"]), full(packed["w2"]), full(packed["embw"]), full(packed["vec"]),
        ],
        out_specs=pl.BlockSpec((1, S, S), lambda b: (b, 0, 0)),
        out_shape=jax.ShapeDtypeStruct((B, S, S), jnp.float32),
        compiler_params=pltpu.CompilerParams(dimension_semantics=("parallel",)),
    )(emb_in, key_bias, packed["wqkv"], packed["bqkv"], packed["wo"],
      packed["w1"], packed["w2"], packed["embw"], packed["vec"])


# ============================== parameter init / packing ==========================
def init_params(key):
    keys = iter(jax.random.split(key, 256))

    def dense(shape, scale=0.02):
        return (scale * jax.random.normal(next(keys), shape)).astype(jnp.float32)

    def mha_p():
        return dict(
            wq=dense((D_MODEL, N_HEAD * D_K)), bq=jnp.zeros((N_HEAD * D_K,), jnp.float32),
            wk=dense((D_MODEL, N_HEAD * D_K)), bk=jnp.zeros((N_HEAD * D_K,), jnp.float32),
            wv=dense((D_MODEL, N_HEAD * D_V)), bv=jnp.zeros((N_HEAD * D_V,), jnp.float32),
            wo=dense((N_HEAD * D_V, D_MODEL)), bo=jnp.zeros((D_MODEL,), jnp.float32),
            ln_g=jnp.ones((D_MODEL,), jnp.float32), ln_b=jnp.zeros((D_MODEL,), jnp.float32))

    def ffn_p():
        return dict(
            w1=dense((D_MODEL, D_INNER)), b1=jnp.zeros((D_INNER,), jnp.float32),
            w2=dense((D_INNER, D_MODEL)), b2=jnp.zeros((D_MODEL,), jnp.float32),
            ln_g=jnp.ones((D_MODEL,), jnp.float32), ln_b=jnp.zeros((D_MODEL,), jnp.float32))

    def emb_p():
        type_emb = dense((N_TYPES, D_MODEL), 0.1).at[PAD].set(0.0)       # padding_idx = PAD
        return dict(type_emb=type_emb, staff_emb=dense((N_STAVES, D_MODEL), 0.1),
                    pos_w=dense((2, D_MODEL)), pos_b=jnp.zeros((D_MODEL,), jnp.float32))

    def stack(n_layers, is_decoder):
        layers = []
        for _ in range(n_layers):
            lp = dict(slf_attn=mha_p(), ffn=ffn_p())
            if is_decoder:
                lp["enc_attn"] = mha_p()
            layers.append(lp)
        return dict(emb=emb_p(),
                    ln_g=jnp.ones((D_MODEL,), jnp.float32),
                    ln_b=jnp.zeros((D_MODEL,), jnp.float32),
                    layers=layers)

    return dict(target_encoder=stack(N_TARGET_LAYERS, False),            # Encoder1
                source_encoder=stack(N_SOURCE_LAYERS, True))             # Decoder1


def pack_params(params):
    """Host-side packing of ~50 tiny tensors into 7 slabs (few entry DMAs, bf16 MXU weights)."""
    inv_sqrt_dk = 1.0 / math.sqrt(D_K)
    tgt, src = params["target_encoder"], params["source_encoder"]

    mhas = [tgt["layers"][0]["slf_attn"]]
    for lp in src["layers"]:
        mhas += [lp["slf_attn"], lp["enc_attn"]]
    ffns = [tgt["layers"][0]["ffn"]] + [lp["ffn"] for lp in src["layers"]]
    embs = [tgt["emb"], src["emb"]]

    def per_head_t(w, scale=1.0):
        # (D, H*dh) -> (H, dh, D); last dim is the contraction (lane) axis in-kernel.
        dh = w.shape[1] // N_HEAD
        return jnp.transpose(w.reshape(D_MODEL, N_HEAD, dh), (1, 2, 0)) * scale

    wqkv = jnp.stack([
        jnp.concatenate([per_head_t(m["wq"], inv_sqrt_dk),
                         per_head_t(m["wk"]),
                         per_head_t(m["wv"])], axis=0)
        for m in mhas]).astype(jnp.bfloat16)                             # (5, 3H, dk, D)
    bqkv = jnp.stack([
        jnp.concatenate([m["bq"].reshape(N_HEAD, D_K) * inv_sqrt_dk,
                         m["bk"].reshape(N_HEAD, D_K),
                         m["bv"].reshape(N_HEAD, D_V)], axis=0)[:, None, :]
        for m in mhas]).astype(jnp.float32)                              # (5, 3H, 1, dk)
    wo = jnp.stack([m["wo"].reshape(N_HEAD, D_V, D_MODEL) for m in mhas]
                   ).astype(jnp.bfloat16)                                # (5, H, dv, D)
    w1 = jnp.stack([f["w1"] for f in ffns]).astype(jnp.bfloat16)         # (3, D, D_INNER)
    w2 = jnp.stack([f["w2"] for f in ffns]).astype(jnp.bfloat16)         # (3, D_INNER, D)
    embw = jnp.stack([
        jnp.concatenate([e["type_emb"], e["staff_emb"], e["pos_w"],
                         jnp.zeros((EMB_COLS - N_TYPES - N_STAVES - 2, D_MODEL),
                                   jnp.float32)], axis=0)
        for e in embs]).astype(jnp.bfloat16)                             # (2, EMB_COLS, D)

    vec = jnp.zeros((VEC_ROWS, VEC_WIDTH), jnp.float32)

    def put(v, name, val):
        r, w = VEC_LAYOUT[name]
        return v.at[r, :w].set(val.reshape(-1).astype(jnp.float32))

    for i, m in enumerate(mhas):
        vec = put(vec, f"mha{i}_bo", m["bo"])
        vec = put(vec, f"mha{i}_g", m["ln_g"])
        vec = put(vec, f"mha{i}_b", m["ln_b"])
    for j, f in enumerate(ffns):
        vec = put(vec, f"ffn{j}_b1", f["b1"])
        vec = put(vec, f"ffn{j}_b2", f["b2"])
        vec = put(vec, f"ffn{j}_g", f["ln_g"])
        vec = put(vec, f"ffn{j}_b", f["ln_b"])
    for e, em in enumerate(embs):
        vec = put(vec, f"emb{e}_b", em["pos_b"])
    vec = put(vec, "enc_g", tgt["ln_g"])
    vec = put(vec, "enc_b", tgt["ln_b"])
    vec = put(vec, "dec_g", src["ln_g"])
    vec = put(vec, "dec_b", src["ln_b"])

    return dict(wqkv=wqkv, bqkv=bqkv, wo=wo, w1=w1, w2=w2, embw=embw, vec=vec)


# ==================================== main ========================================
if __name__ == "__main__":
    B, S = 2, 8

    packed = pack_params(init_params(jax.random.PRNGKey(42)))

    key = jax.random.PRNGKey(0)
    k1, k2, k3, k4 = jax.random.split(key, 4)
    seq_type = jax.random.randint(k1, (B, S), 1, N_TYPES)
    seq_type = seq_type.at[:, -2:].set(PAD)                  # some PAD elements exercise the mask
    seq_staff = jax.random.randint(k2, (B, S), 0, N_STAVES)
    seq_id = jnp.stack([seq_type, seq_staff], axis=-1).astype(jnp.int32)   # (B, S, 2)
    seq_position = jax.random.uniform(k3, (B, S, 2), dtype=jnp.float32)    # (B, S, 2)
    mask = jax.random.bernoulli(k4, 0.6, (B, 2, S))                        # (B, 2, S) bool

    probs = jax.jit(transform_jointer_forward)(packed, seq_id, seq_position)
    probs = jax.block_until_ready(probs)

    # Jointer: ragged per-sample extraction (variable-length boolean indexing) done in numpy.
    probs_np = np.asarray(probs)
    mask_np = np.asarray(mask)
    results = [probs_np[i][mask_np[i, 0]][:, mask_np[i, 1]] for i in range(B)]

    assert probs_np.shape == (B, S, S)
    assert all(np.isfinite(r).all() for r in results)
    assert all(((r >= 0.0) & (r <= 1.0)).all() for r in results)
    print("KERNEL_OK")
</pallas_src>

<mosaic_0001>
module attributes {stable_mosaic.version = 11 : i64} {
  func.func @_fused_kernel(%arg0: i32, %arg1: memref<1x8x32xf32, #tpu.memory_space<vmem>>, %arg2: memref<1x1x8xf32, #tpu.memory_space<vmem>>, %arg3: memref<5x12x8x32xbf16, #tpu.memory_space<vmem>>, %arg4: memref<5x12x1x8xf32, #tpu.memory_space<vmem>>, %arg5: memref<5x4x8x32xbf16, #tpu.memory_space<vmem>>, %arg6: memref<3x32x64xbf16, #tpu.memory_space<vmem>>, %arg7: memref<3x64x32xbf16, #tpu.memory_space<vmem>>, %arg8: memref<2x32x32xbf16, #tpu.memory_space<vmem>>, %arg9: memref<33x64xf32, #tpu.memory_space<vmem>>, %arg10: memref<1x8x8xf32, #tpu.memory_space<vmem>>) attributes {dimension_semantics = [#tpu.dimension_semantics<parallel>], iteration_bounds = array<i64: 2>, scalar_prefetch = 0 : i64, scratch_operands = 0 : i64, tpu.core_type = #tpu.core_type<tc>, window_params = [{transform_indices = @transform_0, window_bounds = array<i64: 1, 8, 32>}, {transform_indices = @transform_1, window_bounds = array<i64: 1, 1, 8>}, {pipeline_mode = #tpu.pipeline_mode<synchronous>, transform_indices = @transform_2, window_bounds = array<i64: 5, 12, 8, 32>}, {pipeline_mode = #tpu.pipeline_mode<synchronous>, transform_indices = @transform_3, window_bounds = array<i64: 5, 12, 1, 8>}, {pipeline_mode = #tpu.pipeline_mode<synchronous>, transform_indices = @transform_4, window_bounds = array<i64: 5, 4, 8, 32>}, {pipeline_mode = #tpu.pipeline_mode<synchronous>, transform_indices = @transform_5, window_bounds = array<i64: 3, 32, 64>}, {pipeline_mode = #tpu.pipeline_mode<synchronous>, transform_indices = @transform_6, window_bounds = array<i64: 3, 64, 32>}, {pipeline_mode = #tpu.pipeline_mode<synchronous>, transform_indices = @transform_7, window_bounds = array<i64: 2, 32, 32>}, {pipeline_mode = #tpu.pipeline_mode<synchronous>, transform_indices = @transform_8, window_bounds = array<i64: 33, 64>}, {transform_indices = @transform_9, window_bounds = array<i64: 1, 8, 8>}]} {
    %c0 = arith.constant 0 : index
    %c0_0 = arith.constant 0 : index
    %c0_1 = arith.constant 0 : index
    %0 = vector.load %arg1[%c0, %c0_0, %c0_1] : memref<1x8x32xf32, #tpu.memory_space<vmem>>, vector<1x8x32xf32>
    %1 = vector.shape_cast %0 : vector<1x8x32xf32> to vector<8x32xf32>
    %2 = arith.truncf %1 : vector<8x32xf32> to vector<8x32xbf16>
    %c0_2 = arith.constant 0 : index
    %c0_3 = arith.constant 0 : index
    %c0_4 = arith.constant 0 : index
    %3 = vector.load %arg2[%c0_2, %c0_3, %c0_4] : memref<1x1x8xf32, #tpu.memory_space<vmem>>, vector<1x1x8xf32>
    %c0_5 = arith.constant 0 : index
    %c0_6 = arith.constant 0 : index
    %c0_7 = arith.constant 0 : index
    %4 = vector.load %arg8[%c0_5, %c0_6, %c0_7] : memref<2x32x32xbf16, #tpu.memory_space<vmem>>, vector<1x32x32xbf16>
    %5 = vector.shape_cast %4 : vector<1x32x32xbf16> to vector<32x32xbf16>
    %cst = arith.constant dense<0.000000e+00> : vector<8x32xf32>
    %6 = tpu.matmul %2, %5, %cst {dimension_numbers = #tpu.dot_dimension_numbers<[1], [0], [0], [1], [0, 0, 1, 1], [], []>} : vector<8x32xbf16>, vector<32x32xbf16>, vector<8x32xf32> -> vector<8x32xf32>
    %c27 = arith.constant 27 : index
    %c0_8 = arith.constant 0 : index
    %7 = vector.load %arg9[%c27, %c0_8] : memref<33x64xf32, #tpu.memory_space<vmem>>, vector<1x32xf32>
    %8 = vector.broadcast %7 : vector<1x32xf32> to vector<8x32xf32>
    %9 = arith.addf %6, %8 : vector<8x32xf32>
    %cst_9 = arith.constant dense<0.000000e+00> : vector<8xf32>
    %10 = vector.multi_reduction <add>, %9, %cst_9 [1] : vector<8x32xf32> to vector<8xf32>
    %11 = vector.shape_cast %10 : vector<8xf32> to vector<8x1xf32>
    %cst_10 = arith.constant 3.200000e+01 : f32
    %12 = vector.broadcast %cst_10 : f32 to vector<8x1xf32>
    %13 = arith.divf %11, %12 : vector<8x1xf32>
    %14 = vector.broadcast %13 : vector<8x1xf32> to vector<8x32xf32>
    %15 = arith.subf %9, %14 : vector<8x32xf32>
    %16 = arith.mulf %15, %15 : vector<8x32xf32>
    %cst_11 = arith.constant dense<0.000000e+00> : vector<8xf32>
    %17 = vector.multi_reduction <add>, %16, %cst_11 [1] : vector<8x32xf32> to vector<8xf32>
    %18 = vector.shape_cast %17 : vector<8xf32> to vector<8x1xf32>
    %cst_12 = arith.constant 3.200000e+01 : f32
    %19 = vector.broadcast %cst_12 : f32 to vector<8x1xf32>
    %20 = arith.divf %18, %19 : vector<8x1xf32>
    %cst_13 = arith.constant 9.99999997E-7 : f32
    %21 = vector.broadcast %cst_13 : f32 to vector<8x1xf32>
    %22 = arith.addf %20, %21 : vector<8x1xf32>
    %23 = math.rsqrt %22 : vector<8x1xf32>
    %24 = vector.broadcast %23 : vector<8x1xf32> to vector<8x32xf32>
    %25 = arith.mulf %15, %24 : vector<8x32xf32>
    %c29 = arith.constant 29 : index
    %c0_14 = arith.constant 0 : index
    %26 = vector.load %arg9[%c29, %c0_14] : memref<33x64xf32, #tpu.memory_space<vmem>>, vector<1x32xf32>
    %27 = vector.broadcast %26 : vector<1x32xf32> to vector<8x32xf32>
    %28 = arith.mulf %25, %27 : vector<8x32xf32>
    %c30 = arith.constant 30 : index
    %c0_15 = arith.constant 0 : index
    %29 = vector.load %arg9[%c30, %c0_15] : memref<33x64xf32, #tpu.memory_space<vmem>>, vector<1x32xf32>
    %30 = vector.broadcast %29 : vector<1x32xf32> to vector<8x32xf32>
    %31 = arith.addf %28, %30 : vector<8x32xf32>
    %c0_16 = arith.constant 0 : index
    %c0_17 = arith.constant 0 : index
    %c0_18 = arith.constant 0 : index
    %c0_19 = arith.constant 0 : index
    %32 = vector.load %arg3[%c0_16, %c0_17, %c0_18, %c0_19] : memref<5x12x8x32xbf16, #tpu.memory_space<vmem>>, vector<1x12x8x32xbf16>
    %33 = vector.shape_cast %32 : vector<1x12x8x32xbf16> to vector<12x8x32xbf16>
    %c0_20 = arith.constant 0 : index
    %c0_21 = arith.constant 0 : index
    %c0_22 = arith.constant 0 : index
    %c0_23 = arith.constant 0 : index
    %34 = vector.load %arg4[%c0_20, %c0_21, %c0_22, %c0_23] : memref<5x12x1x8xf32, #tpu.memory_space<vmem>>, vector<1x12x1x8xf32>
    %35 = vector.shape_cast %34 : vector<1x12x1x8xf32> to vector<12x1x8xf32>
    %36 = arith.truncf %31 : vector<8x32xf32> to vector<8x32xbf16>
    %37 = vector.shape_cast %36 : vector<8x32xbf16> to vector<1x8x32xbf16>
    %38 = vector.broadcast %37 : vector<1x8x32xbf16> to vector<12x8x32xbf16>
    "tpu.trace_start"() <{level = 10 : i32, message = "hnd,hkd->hnk"}> : () -> ()
    %cst_24 = arith.constant dense<0.000000e+00> : vector<12x8x8xf32>
    %39 = tpu.matmul %38, %33, %cst_24 {dimension_numbers = #tpu.dot_dimension_numbers<[2], [2], [1], [1], [0, 0, 0, 1, 1, 1], [0], [0]>} : vector<12x8x32xbf16>, vector<12x8x32xbf16>, vector<12x8x8xf32> -> vector<12x8x8xf32>
    "tpu.trace_stop"() : () -> ()
    %40 = vector.broadcast %35 : vector<12x1x8xf32> to vector<12x8x8xf32>
    %41 = arith.addf %39, %40 : vector<12x8x8xf32>
    %42 = vector.extract_strided_slice %41 {offsets = [0, 0, 0], sizes = [4, 8, 8], strides = [1, 1, 1]} : vector<12x8x8xf32> to vector<4x8x8xf32>
    %43 = vector.extract_strided_slice %41 {offsets = [4, 0, 0], sizes = [4, 8, 8], strides = [1, 1, 1]} : vector<12x8x8xf32> to vector<4x8x8xf32>
    %44 = vector.extract_strided_slice %41 {offsets = [8, 0, 0], sizes = [4, 8, 8], strides = [1, 1, 1]} : vector<12x8x8xf32> to vector<4x8x8xf32>
    %45 = arith.truncf %42 : vector<4x8x8xf32> to vector<4x8x8xbf16>
    %46 = arith.truncf %43 : vector<4x8x8xf32> to vector<4x8x8xbf16>
    "tpu.trace_start"() <{level = 10 : i32, message = "hqd,hkd->hqk"}> : () -> ()
    %cst_25 = arith.constant dense<0.000000e+00> : vector<4x8x8xf32>
    %47 = tpu.matmul %45, %46, %cst_25 {dimension_numbers = #tpu.dot_dimension_numbers<[2], [2], [1], [1], [0, 0, 0, 1, 1, 1], [0], [0]>} : vector<4x8x8xbf16>, vector<4x8x8xbf16>, vector<4x8x8xf32> -> vector<4x8x8xf32>
    "tpu.trace_stop"() : () -> ()
    %48 = vector.broadcast %3 : vector<1x1x8xf32> to vector<4x8x8xf32>
    %49 = arith.addf %47, %48 : vector<4x8x8xf32>
    %cst_26 = arith.constant dense<0xFF800000> : vector<4x8xf32>
    %50 = vector.multi_reduction <maximumf>, %49, %cst_26 [2] : vector<4x8x8xf32> to vector<4x8xf32>
    %51 = vector.shape_cast %50 : vector<4x8xf32> to vector<4x8x1xf32>
    %52 = vector.broadcast %51 : vector<4x8x1xf32> to vector<4x8x8xf32>
    %53 = arith.subf %49, %52 : vector<4x8x8xf32>
    %54 = math.exp %53 : vector<4x8x8xf32>
    %cst_27 = arith.constant dense<0.000000e+00> : vector<4x8xf32>
    %55 = vector.multi_reduction <add>, %54, %cst_27 [2] : vector<4x8x8xf32> to vector<4x8xf32>
    %56 = vector.shape_cast %55 : vector<4x8xf32> to vector<4x8x1xf32>
    %57 = tpu.reciprocal %56 {approx = true} : vector<4x8x1xf32> -> vector<4x8x1xf32>
    %58 = vector.broadcast %57 : vector<4x8x1xf32> to vector<4x8x8xf32>
    %59 = arith.mulf %54, %58 : vector<4x8x8xf32>
    %60 = arith.truncf %59 : vector<4x8x8xf32> to vector<4x8x8xbf16>
    %61 = arith.truncf %44 : vector<4x8x8xf32> to vector<4x8x8xbf16>
    "tpu.trace_start"() <{level = 10 : i32, message = "hqk,hkd->hqd"}> : () -> ()
    %cst_28 = arith.constant dense<0.000000e+00> : vector<4x8x8xf32>
    %62 = tpu.matmul %60, %61, %cst_28 {dimension_numbers = #tpu.dot_dimension_numbers<[2], [1], [1], [2], [0, 0, 0, 1, 1, 2], [0], [0]>} : vector<4x8x8xbf16>, vector<4x8x8xbf16>, vector<4x8x8xf32> -> vector<4x8x8xf32>
    "tpu.trace_stop"() : () -> ()
    %63 = arith.truncf %62 : vector<4x8x8xf32> to vector<4x8x8xbf16>
    %c0_29 = arith.constant 0 : index
    %c0_30 = arith.constant 0 : index
    %c0_31 = arith.constant 0 : index
    %c0_32 = arith.constant 0 : index
    %64 = vector.load %arg5[%c0_29, %c0_30, %c0_31, %c0_32] : memref<5x4x8x32xbf16, #tpu.memory_space<vmem>>, vector<1x4x8x32xbf16>
    %65 = vector.shape_cast %64 : vector<1x4x8x32xbf16> to vector<4x8x32xbf16>
    "tpu.trace_start"() <{level = 10 : i32, message = "hqd,hdm->hqm"}> : () -> ()
    %cst_33 = arith.constant dense<0.000000e+00> : vector<4x8x32xf32>
    %66 = tpu.matmul %63, %65, %cst_33 {dimension_numbers = #tpu.dot_dimension_numbers<[2], [1], [1], [2], [0, 0, 0, 1, 1, 2], [0], [0]>} : vector<4x8x8xbf16>, vector<4x8x32xbf16>, vector<4x8x32xf32> -> vector<4x8x32xf32>
    "tpu.trace_stop"() : () -> ()
    %cst_34 = arith.constant dense<0.000000e+00> : vector<8x32xf32>
    %67 = vector.multi_reduction <add>, %66, %cst_34 [0] : vector<4x8x32xf32> to vector<8x32xf32>
    %c0_35 = arith.constant 0 : index
    %c0_36 = arith.constant 0 : index
    %68 = vector.load %arg9[%c0_35, %c0_36] : memref<33x64xf32, #tpu.memory_space<vmem>>, vector<1x32xf32>
    %69 = vector.broadcast %68 : vector<1x32xf32> to vector<8x32xf32>
    %70 = arith.addf %67, %69 : vector<8x32xf32>
    %71 = arith.addf %70, %31 : vector<8x32xf32>
    %cst_37 = arith.constant dense<0.000000e+00> : vector<8xf32>
    %72 = vector.multi_reduction <add>, %71, %cst_37 [1] : vector<8x32xf32> to vector<8xf32>
    %73 = vector.shape_cast %72 : vector<8xf32> to vector<8x1xf32>
    %cst_38 = arith.constant 3.200000e+01 : f32
    %74 = vector.broadcast %cst_38 : f32 to vector<8x1xf32>
    %75 = arith.divf %73, %74 : vector<8x1xf32>
    %76 = vector.broadcast %75 : vector<8x1xf32> to vector<8x32xf32>
    %77 = arith.subf %71, %76 : vector<8x32xf32>
    %78 = arith.mulf %77, %77 : vector<8x32xf32>
    %cst_39 = arith.constant dense<0.000000e+00> : vector<8xf32>
    %79 = vector.multi_reduction <add>, %78, %cst_39 [1] : vector<8x32xf32> to vector<8xf32>
    %80 = vector.shape_cast %79 : vector<8xf32> to vector<8x1xf32>
    %cst_40 = arith.constant 3.200000e+01 : f32
    %81 = vector.broadcast %cst_40 : f32 to vector<8x1xf32>
    %82 = arith.divf %80, %81 : vector<8x1xf32>
    %cst_41 = arith.constant 9.99999997E-7 : f32
    %83 = vector.broadcast %cst_41 : f32 to vector<8x1xf32>
    %84 = arith.addf %82, %83 : vector<8x1xf32>
    %85 = math.rsqrt %84 : vector<8x1xf32>
    %86 = vector.broadcast %85 : vector<8x1xf32> to vector<8x32xf32>
    %87 = arith.mulf %77, %86 : vector<8x32xf32>
    %c1 = arith.constant 1 : index
    %c0_42 = arith.constant 0 : index
    %88 = vector.load %arg9[%c1, %c0_42] : memref<33x64xf32, #tpu.memory_space<vmem>>, vector<1x32xf32>
    %89 = vector.broadcast %88 : vector<1x32xf32> to vector<8x32xf32>
    %90 = arith.mulf %87, %89 : vector<8x32xf32>
    %c2 = arith.constant 2 : index
    %c0_43 = arith.constant 0 : index
    %91 = vector.load %arg9[%c2, %c0_43] : memref<33x64xf32, #tpu.memory_space<vmem>>, vector<1x32xf32>
    %92 = vector.broadcast %91 : vector<1x32xf32> to vector<8x32xf32>
    %93 = arith.addf %90, %92 : vector<8x32xf32>
    %94 = arith.truncf %93 : vector<8x32xf32> to vector<8x32xbf16>
    %c0_44 = arith.constant 0 : index
    %c0_45 = arith.constant 0 : index
    %c0_46 = arith.constant 0 : index
    %95 = vector.load %arg6[%c0_44, %c0_45, %c0_46] : memref<3x32x64xbf16, #tpu.memory_space<vmem>>, vector<1x32x64xbf16>
    %96 = vector.shape_cast %95 : vector<1x32x64xbf16> to vector<32x64xbf16>
    %cst_47 = arith.constant dense<0.000000e+00> : vector<8x64xf32>
    %97 = tpu.matmul %94, %96, %cst_47 {dimension_numbers = #tpu.dot_dimension_numbers<[1], [0], [0], [1], [0, 0, 1, 1], [], []>} : vector<8x32xbf16>, vector<32x64xbf16>, vector<8x64xf32> -> vector<8x64xf32>
    %c15 = arith.constant 15 : index
    %c0_48 = arith.constant 0 : index
    %98 = vector.load %arg9[%c15, %c0_48] : memref<33x64xf32, #tpu.memory_space<vmem>>, vector<1x64xf32>
    %99 = vector.broadcast %98 : vector<1x64xf32> to vector<8x64xf32>
    %100 = arith.addf %97, %99 : vector<8x64xf32>
    %cst_49 = arith.constant 0.000000e+00 : f32
    %101 = vector.broadcast %cst_49 : f32 to vector<8x64xf32>
    %102 = arith.maximumf %100, %101 : vector<8x64xf32>
    %103 = arith.truncf %102 : vector<8x64xf32> to vector<8x64xbf16>
    %c0_50 = arith.constant 0 : index
    %c0_51 = arith.constant 0 : index
    %c0_52 = arith.constant 0 : index
    %104 = vector.load %arg7[%c0_50, %c0_51, %c0_52] : memref<3x64x32xbf16, #tpu.memory_space<vmem>>, vector<1x64x32xbf16>
    %105 = vector.shape_cast %104 : vector<1x64x32xbf16> to vector<64x32xbf16>
    %cst_53 = arith.constant dense<0.000000e+00> : vector<8x32xf32>
    %106 = tpu.matmul %103, %105, %cst_53 {dimension_numbers = #tpu.dot_dimension_numbers<[1], [0], [0], [1], [0, 0, 1, 1], [], []>} : vector<8x64xbf16>, vector<64x32xbf16>, vector<8x32xf32> -> vector<8x32xf32>
    %c16 = arith.constant 16 : index
    %c0_54 = arith.constant 0 : index
    %107 = vector.load %arg9[%c16, %c0_54] : memref<33x64xf32, #tpu.memory_space<vmem>>, vector<1x32xf32>
    %108 = vector.broadcast %107 : vector<1x32xf32> to vector<8x32xf32>
    %109 = arith.addf %106, %108 : vector<8x32xf32>
    %110 = arith.addf %109, %93 : vector<8x32xf32>
    %cst_55 = arith.constant dense<0.000000e+00> : vector<8xf32>
    %111 = vector.multi_reduction <add>, %110, %cst_55 [1] : vector<8x32xf32> to vector<8xf32>
    %112 = vector.shape_cast %111 : vector<8xf32> to vector<8x1xf32>
    %cst_56 = arith.constant 3.200000e+01 : f32
    %113 = vector.broadcast %cst_56 : f32 to vector<8x1xf32>
    %114 = arith.divf %112, %113 : vector<8x1xf32>
    %115 = vector.broadcast %114 : vector<8x1xf32> to vector<8x32xf32>
    %116 = arith.subf %110, %115 : vector<8x32xf32>
    %117 = arith.mulf %116, %116 : vector<8x32xf32>
    %cst_57 = arith.constant dense<0.000000e+00> : vector<8xf32>
    %118 = vector.multi_reduction <add>, %117, %cst_57 [1] : vector<8x32xf32> to vector<8xf32>
    %119 = vector.shape_cast %118 : vector<8xf32> to vector<8x1xf32>
    %cst_58 = arith.constant 3.200000e+01 : f32
    %120 = vector.broadcast %cst_58 : f32 to vector<8x1xf32>
    %121 = arith.divf %119, %120 : vector<8x1xf32>
    %cst_59 = arith.constant 9.99999997E-7 : f32
    %122 = vector.broadcast %cst_59 : f32 to vector<8x1xf32>
    %123 = arith.addf %121, %122 : vector<8x1xf32>
    %124 = math.rsqrt %123 : vector<8x1xf32>
    %125 = vector.broadcast %124 : vector<8x1xf32> to vector<8x32xf32>
    %126 = arith.mulf %116, %125 : vector<8x32xf32>
    %c17 = arith.constant 17 : index
    %c0_60 = arith.constant 0 : index
    %127 = vector.load %arg9[%c17, %c0_60] : memref<33x64xf32, #tpu.memory_space<vmem>>, vector<1x32xf32>
    %128 = vector.broadcast %127 : vector<1x32xf32> to vector<8x32xf32>
    %129 = arith.mulf %126, %128 : vector<8x32xf32>
    %c18 = arith.constant 18 : index
    %c0_61 = arith.constant 0 : index
    %130 = vector.load %arg9[%c18, %c0_61] : memref<33x64xf32, #tpu.memory_space<vmem>>, vector<1x32xf32>
    %131 = vector.broadcast %130 : vector<1x32xf32> to vector<8x32xf32>
    %132 = arith.addf %129, %131 : vector<8x32xf32>
    %c1_62 = arith.constant 1 : index
    %c0_63 = arith.constant 0 : index
    %c0_64 = arith.constant 0 : index
    %133 = vector.load %arg8[%c1_62, %c0_63, %c0_64] : memref<2x32x32xbf16, #tpu.memory_space<vmem>>, vector<1x32x32xbf16>
    %134 = vector.shape_cast %133 : vector<1x32x32xbf16> to vector<32x32xbf16>
    %cst_65 = arith.constant dense<0.000000e+00> : vector<8x32xf32>
    %135 = tpu.matmul %2, %134, %cst_65 {dimension_numbers = #tpu.dot_dimension_numbers<[1], [0], [0], [1], [0, 0, 1, 1], [], []>} : vector<8x32xbf16>, vector<32x32xbf16>, vector<8x32xf32> -> vector<8x32xf32>
    %c28 = arith.constant 28 : index
    %c0_66 = arith.constant 0 : index
    %136 = vector.load %arg9[%c28, %c0_66] : memref<33x64xf32, #tpu.memory_space<vmem>>, vector<1x32xf32>
    %137 = vector.broadcast %136 : vector<1x32xf32> to vector<8x32xf32>
    %138 = arith.addf %135, %137 : vector<8x32xf32>
    %cst_67 = arith.constant dense<0.000000e+00> : vector<8xf32>
    %139 = vector.multi_reduction <add>, %138, %cst_67 [1] : vector<8x32xf32> to vector<8xf32>
    %140 = vector.shape_cast %139 : vector<8xf32> to vector<8x1xf32>
    %cst_68 = arith.constant 3.200000e+01 : f32
    %141 = vector.broadcast %cst_68 : f32 to vector<8x1xf32>
    %142 = arith.divf %140, %141 : vector<8x1xf32>
    %143 = vector.broadcast %142 : vector<8x1xf32> to vector<8x32xf32>
    %144 = arith.subf %138, %143 : vector<8x32xf32>
    %145 = arith.mulf %144, %144 : vector<8x32xf32>
    %cst_69 = arith.constant dense<0.000000e+00> : vector<8xf32>
    %146 = vector.multi_reduction <add>, %145, %cst_69 [1] : vector<8x32xf32> to vector<8xf32>
    %147 = vector.shape_cast %146 : vector<8xf32> to vector<8x1xf32>
    %cst_70 = arith.constant 3.200000e+01 : f32
    %148 = vector.broadcast %cst_70 : f32 to vector<8x1xf32>
    %149 = arith.divf %147, %148 : vector<8x1xf32>
    %cst_71 = arith.constant 9.99999997E-7 : f32
    %150 = vector.broadcast %cst_71 : f32 to vector<8x1xf32>
    %151 = arith.addf %149, %150 : vector<8x1xf32>
    %152 = math.rsqrt %151 : vector<8x1xf32>
    %153 = vector.broadcast %152 : vector<8x1xf32> to vector<8x32xf32>
    %154 = arith.mulf %144, %153 : vector<8x32xf32>
    %c31 = arith.constant 31 : index
    %c0_72 = arith.constant 0 : index
    %155 = vector.load %arg9[%c31, %c0_72] : memref<33x64xf32, #tpu.memory_space<vmem>>, vector<1x32xf32>
    %156 = vector.broadcast %155 : vector<1x32xf32> to vector<8x32xf32>
    %157 = arith.mulf %154, %156 : vector<8x32xf32>
    %c32 = arith.constant 32 : index
    %c0_73 = arith.constant 0 : index
    %158 = vector.load %arg9[%c32, %c0_73] : memref<33x64xf32, #tpu.memory_space<vmem>>, vector<1x32xf32>
    %159 = vector.broadcast %158 : vector<1x32xf32> to vector<8x32xf32>
    %160 = arith.addf %157, %159 : vector<8x32xf32>
    %c1_74 = arith.constant 1 : index
    %c0_75 = arith.constant 0 : index
    %c0_76 = arith.constant 0 : index
    %c0_77 = arith.constant 0 : index
    %161 = vector.load %arg3[%c1_74, %c0_75, %c0_76, %c0_77] : memref<5x12x8x32xbf16, #tpu.memory_space<vmem>>, vector<1x12x8x32xbf16>
    %162 = vector.shape_cast %161 : vector<1x12x8x32xbf16> to vector<12x8x32xbf16>
    %c1_78 = arith.constant 1 : index
    %c0_79 = arith.constant 0 : index
    %c0_80 = arith.constant 0 : index
    %c0_81 = arith.constant 0 : index
    %163 = vector.load %arg4[%c1_78, %c0_79, %c0_80, %c0_81] : memref<5x12x1x8xf32, #tpu.memory_space<vmem>>, vector<1x12x1x8xf32>
    %164 = vector.shape_cast %163 : vector<1x12x1x8xf32> to vector<12x1x8xf32>
    %165 = arith.truncf %160 : vector<8x32xf32> to vector<8x32xbf16>
    %166 = vector.shape_cast %165 : vector<8x32xbf16> to vector<1x8x32xbf16>
    %167 = vector.broadcast %166 : vector<1x8x32xbf16> to vector<12x8x32xbf16>
    "tpu.trace_start"() <{level = 10 : i32, message = "hnd,hkd->hnk"}> : () -> ()
    %cst_82 = arith.constant dense<0.000000e+00> : vector<12x8x8xf32>
    %168 = tpu.matmul %167, %162, %cst_82 {dimension_numbers = #tpu.dot_dimension_numbers<[2], [2], [1], [1], [0, 0, 0, 1, 1, 1], [0], [0]>} : vector<12x8x32xbf16>, vector<12x8x32xbf16>, vector<12x8x8xf32> -> vector<12x8x8xf32>
    "tpu.trace_stop"() : () -> ()
    %169 = vector.broadcast %164 : vector<12x1x8xf32> to vector<12x8x8xf32>
    %170 = arith.addf %168, %169 : vector<12x8x8xf32>
    %171 = vector.extract_strided_slice %170 {offsets = [0, 0, 0], sizes = [4, 8, 8], strides = [1, 1, 1]} : vector<12x8x8xf32> to vector<4x8x8xf32>
    %172 = vector.extract_strided_slice %170 {offsets = [4, 0, 0], sizes = [4, 8, 8], strides = [1, 1, 1]} : vector<12x8x8xf32> to vector<4x8x8xf32>
    %173 = vector.extract_strided_slice %170 {offsets = [8, 0, 0], sizes = [4, 8, 8], strides = [1, 1, 1]} : vector<12x8x8xf32> to vector<4x8x8xf32>
    %174 = arith.truncf %171 : vector<4x8x8xf32> to vector<4x8x8xbf16>
    %175 = arith.truncf %172 : vector<4x8x8xf32> to vector<4x8x8xbf16>
    "tpu.trace_start"() <{level = 10 : i32, message = "hqd,hkd->hqk"}> : () -> ()
    %cst_83 = arith.constant dense<0.000000e+00> : vector<4x8x8xf32>
    %176 = tpu.matmul %174, %175, %cst_83 {dimension_numbers = #tpu.dot_dimension_numbers<[2], [2], [1], [1], [0, 0, 0, 1, 1, 1], [0], [0]>} : vector<4x8x8xbf16>, vector<4x8x8xbf16>, vector<4x8x8xf32> -> vector<4x8x8xf32>
    "tpu.trace_stop"() : () -> ()
    %177 = vector.broadcast %3 : vector<1x1x8xf32> to vector<4x8x8xf32>
    %178 = arith.addf %176, %177 : vector<4x8x8xf32>
    %cst_84 = arith.constant dense<0xFF800000> : vector<4x8xf32>
    %179 = vector.multi_reduction <maximumf>, %178, %cst_84 [2] : vector<4x8x8xf32> to vector<4x8xf32>
    %180 = vector.shape_cast %179 : vector<4x8xf32> to vector<4x8x1xf32>
    %181 = vector.broadcast %180 : vector<4x8x1xf32> to vector<4x8x8xf32>
    %182 = arith.subf %178, %181 : vector<4x8x8xf32>
    %183 = math.exp %182 : vector<4x8x8xf32>
    %cst_85 = arith.constant dense<0.000000e+00> : vector<4x8xf32>
    %184 = vector.multi_reduction <add>, %183, %cst_85 [2] : vector<4x8x8xf32> to vector<4x8xf32>
    %185 = vector.shape_cast %184 : vector<4x8xf32> to vector<4x8x1xf32>
    %186 = tpu.reciprocal %185 {approx = true} : vector<4x8x1xf32> -> vector<4x8x1xf32>
    %187 = vector.broadcast %186 : vector<4x8x1xf32> to vector<4x8x8xf32>
    %188 = arith.mulf %183, %187 : vector<4x8x8xf32>
    %189 = arith.truncf %188 : vector<4x8x8xf32> to vector<4x8x8xbf16>
    %190 = arith.truncf %173 : vector<4x8x8xf32> to vector<4x8x8xbf16>
    "tpu.trace_start"() <{level = 10 : i32, message = "hqk,hkd->hqd"}> : () -> ()
    %cst_86 = arith.constant dense<0.000000e+00> : vector<4x8x8xf32>
    %191 = tpu.matmul %189, %190, %cst_86 {dimension_numbers = #tpu.dot_dimension_numbers<[2], [1], [1], [2], [0, 0, 0, 1, 1, 2], [0], [0]>} : vector<4x8x8xbf16>, vector<4x8x8xbf16>, vector<4x8x8xf32> -> vector<4x8x8xf32>
    "tpu.trace_stop"() : () -> ()
    %192 = arith.truncf %191 : vector<4x8x8xf32> to vector<4x8x8xbf16>
    %c1_87 = arith.constant 1 : index
    %c0_88 = arith.constant 0 : index
    %c0_89 = arith.constant 0 : index
    %c0_90 = arith.constant 0 : index
    %193 = vector.load %arg5[%c1_87, %c0_88, %c0_89, %c0_90] : memref<5x4x8x32xbf16, #tpu.memory_space<vmem>>, vector<1x4x8x32xbf16>
    %194 = vector.shape_cast %193 : vector<1x4x8x32xbf16> to vector<4x8x32xbf16>
    "tpu.trace_start"() <{level = 10 : i32, message = "hqd,hdm->hqm"}> : () -> ()
    %cst_91 = arith.constant dense<0.000000e+00> : vector<4x8x32xf32>
    %195 = tpu.matmul %192, %194, %cst_91 {dimension_numbers = #tpu.dot_dimension_numbers<[2], [1], [1], [2], [0, 0, 0, 1, 1, 2], [0], [0]>} : vector<4x8x8xbf16>, vector<4x8x32xbf16>, vector<4x8x32xf32> -> vector<4x8x32xf32>
    "tpu.trace_stop"() : () -> ()
    %cst_92 = arith.constant dense<0.000000e+00> : vector<8x32xf32>
    %196 = vector.multi_reduction <add>, %195, %cst_92 [0] : vector<4x8x32xf32> to vector<8x32xf32>
    %c3 = arith.constant 3 : index
    %c0_93 = arith.constant 0 : index
    %197 = vector.load %arg9[%c3, %c0_93] : memref<33x64xf32, #tpu.memory_space<vmem>>, vector<1x32xf32>
    %198 = vector.broadcast %197 : vector<1x32xf32> to vector<8x32xf32>
    %199 = arith.addf %196, %198 : vector<8x32xf32>
    %200 = arith.addf %199, %160 : vector<8x32xf32>
    %cst_94 = arith.constant dense<0.000000e+00> : vector<8xf32>
    %201 = vector.multi_reduction <add>, %200, %cst_94 [1] : vector<8x32xf32> to vector<8xf32>
    %202 = vector.shape_cast %201 : vector<8xf32> to vector<8x1xf32>
    %cst_95 = arith.constant 3.200000e+01 : f32
    %203 = vector.broadcast %cst_95 : f32 to vector<8x1xf32>
    %204 = arith.divf %202, %203 : vector<8x1xf32>
    %205 = vector.broadcast %204 : vector<8x1xf32> to vector<8x32xf32>
    %206 = arith.subf %200, %205 : vector<8x32xf32>
    %207 = arith.mulf %206, %206 : vector<8x32xf32>
    %cst_96 = arith.constant dense<0.000000e+00> : vector<8xf32>
    %208 = vector.multi_reduction <add>, %207, %cst_96 [1] : vector<8x32xf32> to vector<8xf32>
    %209 = vector.shape_cast %208 : vector<8xf32> to vector<8x1xf32>
    %cst_97 = arith.constant 3.200000e+01 : f32
    %210 = vector.broadcast %cst_97 : f32 to vector<8x1xf32>
    %211 = arith.divf %209, %210 : vector<8x1xf32>
    %cst_98 = arith.constant 9.99999997E-7 : f32
    %212 = vector.broadcast %cst_98 : f32 to vector<8x1xf32>
    %213 = arith.addf %211, %212 : vector<8x1xf32>
    %214 = math.rsqrt %213 : vector<8x1xf32>
    %215 = vector.broadcast %214 : vector<8x1xf32> to vector<8x32xf32>
    %216 = arith.mulf %206, %215 : vector<8x32xf32>
    %c4 = arith.constant 4 : index
    %c0_99 = arith.constant 0 : index
    %217 = vector.load %arg9[%c4, %c0_99] : memref<33x64xf32, #tpu.memory_space<vmem>>, vector<1x32xf32>
    %218 = vector.broadcast %217 : vector<1x32xf32> to vector<8x32xf32>
    %219 = arith.mulf %216, %218 : vector<8x32xf32>
    %c5 = arith.constant 5 : index
    %c0_100 = arith.constant 0 : index
    %220 = vector.load %arg9[%c5, %c0_100] : memref<33x64xf32, #tpu.memory_space<vmem>>, vector<1x32xf32>
    %221 = vector.broadcast %220 : vector<1x32xf32> to vector<8x32xf32>
    %222 = arith.addf %219, %221 : vector<8x32xf32>
    %c2_101 = arith.constant 2 : index
    %c0_102 = arith.constant 0 : index
    %c0_103 = arith.constant 0 : index
    %c0_104 = arith.constant 0 : index
    %223 = vector.load %arg3[%c2_101, %c0_102, %c0_103, %c0_104] : memref<5x12x8x32xbf16, #tpu.memory_space<vmem>>, vector<1x12x8x32xbf16>
    %224 = vector.shape_cast %223 : vector<1x12x8x32xbf16> to vector<12x8x32xbf16>
    %c2_105 = arith.constant 2 : index
    %c0_106 = arith.constant 0 : index
    %c0_107 = arith.constant 0 : index
    %c0_108 = arith.constant 0 : index
    %225 = vector.load %arg4[%c2_105, %c0_106, %c0_107, %c0_108] : memref<5x12x1x8xf32, #tpu.memory_space<vmem>>, vector<1x12x1x8xf32>
    %226 = vector.shape_cast %225 : vector<1x12x1x8xf32> to vector<12x1x8xf32>
    %227 = arith.truncf %222 : vector<8x32xf32> to vector<8x32xbf16>
    %228 = vector.shape_cast %227 : vector<8x32xbf16> to vector<1x8x32xbf16>
    %229 = vector.broadcast %228 : vector<1x8x32xbf16> to vector<4x8x32xbf16>
    %230 = arith.truncf %132 : vector<8x32xf32> to vector<8x32xbf16>
    %231 = vector.shape_cast %230 : vector<8x32xbf16> to vector<1x8x32xbf16>
    %232 = vector.broadcast %231 : vector<1x8x32xbf16> to vector<8x8x32xbf16>
    %233 = vector.extract_strided_slice %224 {offsets = [0, 0, 0], sizes = [4, 8, 32], strides = [1, 1, 1]} : vector<12x8x32xbf16> to vector<4x8x32xbf16>
    "tpu.trace_start"() <{level = 10 : i32, message = "hnd,hkd->hnk"}> : () -> ()
    %cst_109 = arith.constant dense<0.000000e+00> : vector<4x8x8xf32>
    %234 = tpu.matmul %229, %233, %cst_109 {dimension_numbers = #tpu.dot_dimension_numbers<[2], [2], [1], [1], [0, 0, 0, 1, 1, 1], [0], [0]>} : vector<4x8x32xbf16>, vector<4x8x32xbf16>, vector<4x8x8xf32> -> vector<4x8x8xf32>
    "tpu.trace_stop"() : () -> ()
    %235 = vector.extract_strided_slice %226 {offsets = [0, 0, 0], sizes = [4, 1, 8], strides = [1, 1, 1]} : vector<12x1x8xf32> to vector<4x1x8xf32>
    %236 = vector.broadcast %235 : vector<4x1x8xf32> to vector<4x8x8xf32>
    %237 = arith.addf %234, %236 : vector<4x8x8xf32>
    %238 = vector.extract_strided_slice %224 {offsets = [4, 0, 0], sizes = [8, 8, 32], strides = [1, 1, 1]} : vector<12x8x32xbf16> to vector<8x8x32xbf16>
    "tpu.trace_start"() <{level = 10 : i32, message = "hnd,hkd->hnk"}> : () -> ()
    %cst_110 = arith.constant dense<0.000000e+00> : vector<8x8x8xf32>
    %239 = tpu.matmul %232, %238, %cst_110 {dimension_numbers = #tpu.dot_dimension_numbers<[2], [2], [1], [1], [0, 0, 0, 1, 1, 1], [0], [0]>} : vector<8x8x32xbf16>, vector<8x8x32xbf16>, vector<8x8x8xf32> -> vector<8x8x8xf32>
    "tpu.trace_stop"() : () -> ()
    %240 = vector.extract_strided_slice %226 {offsets = [4, 0, 0], sizes = [8, 1, 8], strides = [1, 1, 1]} : vector<12x1x8xf32> to vector<8x1x8xf32>
    %241 = vector.broadcast %240 : vector<8x1x8xf32> to vector<8x8x8xf32>
    %242 = arith.addf %239, %241 : vector<8x8x8xf32>
    %243 = vector.extract_strided_slice %242 {offsets = [0, 0, 0], sizes = [4, 8, 8], strides = [1, 1, 1]} : vector<8x8x8xf32> to vector<4x8x8xf32>
    %244 = vector.extract_strided_slice %242 {offsets = [4, 0, 0], sizes = [4, 8, 8], strides = [1, 1, 1]} : vector<8x8x8xf32> to vector<4x8x8xf32>
    %245 = arith.truncf %237 : vector<4x8x8xf32> to vector<4x8x8xbf16>
    %246 = arith.truncf %243 : vector<4x8x8xf32> to vector<4x8x8xbf16>
    "tpu.trace_start"() <{level = 10 : i32, message = "hqd,hkd->hqk"}> : () -> ()
    %cst_111 = arith.constant dense<0.000000e+00> : vector<4x8x8xf32>
    %247 = tpu.matmul %245, %246, %cst_111 {dimension_numbers = #tpu.dot_dimension_numbers<[2], [2], [1], [1], [0, 0, 0, 1, 1, 1], [0], [0]>} : vector<4x8x8xbf16>, vector<4x8x8xbf16>, vector<4x8x8xf32> -> vector<4x8x8xf32>
    "tpu.trace_stop"() : () -> ()
    %248 = vector.broadcast %3 : vector<1x1x8xf32> to vector<4x8x8xf32>
    %249 = arith.addf %247, %248 : vector<4x8x8xf32>
    %cst_112 = arith.constant dense<0xFF800000> : vector<4x8xf32>
    %250 = vector.multi_reduction <maximumf>, %249, %cst_112 [2] : vector<4x8x8xf32> to vector<4x8xf32>
    %251 = vector.shape_cast %250 : vector<4x8xf32> to vector<4x8x1xf32>
    %252 = vector.broadcast %251 : vector<4x8x1xf32> to vector<4x8x8xf32>
    %253 = arith.subf %249, %252 : vector<4x8x8xf32>
    %254 = math.exp %253 : vector<4x8x8xf32>
    %cst_113 = arith.constant dense<0.000000e+00> : vector<4x8xf32>
    %255 = vector.multi_reduction <add>, %254, %cst_113 [2] : vector<4x8x8xf32> to vector<4x8xf32>
    %256 = vector.shape_cast %255 : vector<4x8xf32> to vector<4x8x1xf32>
    %257 = tpu.reciprocal %256 {approx = true} : vector<4x8x1xf32> -> vector<4x8x1xf32>
    %258 = vector.broadcast %257 : vector<4x8x1xf32> to vector<4x8x8xf32>
    %259 = arith.mulf %254, %258 : vector<4x8x8xf32>
    %260 = arith.truncf %259 : vector<4x8x8xf32> to vector<4x8x8xbf16>
    %261 = arith.truncf %244 : vector<4x8x8xf32> to vector<4x8x8xbf16>
    "tpu.trace_start"() <{level = 10 : i32, message = "hqk,hkd->hqd"}> : () -> ()
    %cst_114 = arith.constant dense<0.000000e+00> : vector<4x8x8xf32>
    %262 = tpu.matmul %260, %261, %cst_114 {dimension_numbers = #tpu.dot_dimension_numbers<[2], [1], [1], [2], [0, 0, 0, 1, 1, 2], [0], [0]>} : vector<4x8x8xbf16>, vector<4x8x8xbf16>, vector<4x8x8xf32> -> vector<4x8x8xf32>
    "tpu.trace_stop"() : () -> ()
    %263 = arith.truncf %262 : vector<4x8x8xf32> to vector<4x8x8xbf16>
    %c2_115 = arith.constant 2 : index
    %c0_116 = arith.constant 0 : index
    %c0_117 = arith.constant 0 : index
    %c0_118 = arith.constant 0 : index
    %264 = vector.load %arg5[%c2_115, %c0_116, %c0_117, %c0_118] : memref<5x4x8x32xbf16, #tpu.memory_space<vmem>>, vector<1x4x8x32xbf16>
    %265 = vector.shape_cast %264 : vector<1x4x8x32xbf16> to vector<4x8x32xbf16>
    "tpu.trace_start"() <{level = 10 : i32, message = "hqd,hdm->hqm"}> : () -> ()
    %cst_119 = arith.constant dense<0.000000e+00> : vector<4x8x32xf32>
    %266 = tpu.matmul %263, %265, %cst_119 {dimension_numbers = #tpu.dot_dimension_numbers<[2], [1], [1], [2], [0, 0, 0, 1, 1, 2], [0], [0]>} : vector<4x8x8xbf16>, vector<4x8x32xbf16>, vector<4x8x32xf32> -> vector<4x8x32xf32>
    "tpu.trace_stop"() : () -> ()
    %cst_120 = arith.constant dense<0.000000e+00> : vector<8x32xf32>
    %267 = vector.multi_reduction <add>, %266, %cst_120 [0] : vector<4x8x32xf32> to vector<8x32xf32>
    %c6 = arith.constant 6 : index
    %c0_121 = arith.constant 0 : index
    %268 = vector.load %arg9[%c6, %c0_121] : memref<33x64xf32, #tpu.memory_space<vmem>>, vector<1x32xf32>
    %269 = vector.broadcast %268 : vector<1x32xf32> to vector<8x32xf32>
    %270 = arith.addf %267, %269 : vector<8x32xf32>
    %271 = arith.addf %270, %222 : vector<8x32xf32>
    %cst_122 = arith.constant dense<0.000000e+00> : vector<8xf32>
    %272 = vector.multi_reduction <add>, %271, %cst_122 [1] : vector<8x32xf32> to vector<8xf32>
    %273 = vector.shape_cast %272 : vector<8xf32> to vector<8x1xf32>
    %cst_123 = arith.constant 3.200000e+01 : f32
    %274 = vector.broadcast %cst_123 : f32 to vector<8x1xf32>
    %275 = arith.divf %273, %274 : vector<8x1xf32>
    %276 = vector.broadcast %275 : vector<8x1xf32> to vector<8x32xf32>
    %277 = arith.subf %271, %276 : vector<8x32xf32>
    %278 = arith.mulf %277, %277 : vector<8x32xf32>
    %cst_124 = arith.constant dense<0.000000e+00> : vector<8xf32>
    %279 = vector.multi_reduction <add>, %278, %cst_124 [1] : vector<8x32xf32> to vector<8xf32>
    %280 = vector.shape_cast %279 : vector<8xf32> to vector<8x1xf32>
    %cst_125 = arith.constant 3.200000e+01 : f32
    %281 = vector.broadcast %cst_125 : f32 to vector<8x1xf32>
    %282 = arith.divf %280, %281 : vector<8x1xf32>
    %cst_126 = arith.constant 9.99999997E-7 : f32
    %283 = vector.broadcast %cst_126 : f32 to vector<8x1xf32>
    %284 = arith.addf %282, %283 : vector<8x1xf32>
    %285 = math.rsqrt %284 : vector<8x1xf32>
    %286 = vector.broadcast %285 : vector<8x1xf32> to vector<8x32xf32>
    %287 = arith.mulf %277, %286 : vector<8x32xf32>
    %c7 = arith.constant 7 : index
    %c0_127 = arith.constant 0 : index
    %288 = vector.load %arg9[%c7, %c0_127] : memref<33x64xf32, #tpu.memory_space<vmem>>, vector<1x32xf32>
    %289 = vector.broadcast %288 : vector<1x32xf32> to vector<8x32xf32>
    %290 = arith.mulf %287, %289 : vector<8x32xf32>
    %c8 = arith.constant 8 : index
    %c0_128 = arith.constant 0 : index
    %291 = vector.load %arg9[%c8, %c0_128] : memref<33x64xf32, #tpu.memory_space<vmem>>, vector<1x32xf32>
    %292 = vector.broadcast %291 : vector<1x32xf32> to vector<8x32xf32>
    %293 = arith.addf %290, %292 : vector<8x32xf32>
    %294 = arith.truncf %293 : vector<8x32xf32> to vector<8x32xbf16>
    %c1_129 = arith.constant 1 : index
    %c0_130 = arith.constant 0 : index
    %c0_131 = arith.constant 0 : index
    %295 = vector.load %arg6[%c1_129, %c0_130, %c0_131] : memref<3x32x64xbf16, #tpu.memory_space<vmem>>, vector<1x32x64xbf16>
    %296 = vector.shape_cast %295 : vector<1x32x64xbf16> to vector<32x64xbf16>
    %cst_132 = arith.constant dense<0.000000e+00> : vector<8x64xf32>
    %297 = tpu.matmul %294, %296, %cst_132 {dimension_numbers = #tpu.dot_dimension_numbers<[1], [0], [0], [1], [0, 0, 1, 1], [], []>} : vector<8x32xbf16>, vector<32x64xbf16>, vector<8x64xf32> -> vector<8x64xf32>
    %c19 = arith.constant 19 : index
    %c0_133 = arith.constant 0 : index
    %298 = vector.load %arg9[%c19, %c0_133] : memref<33x64xf32, #tpu.memory_space<vmem>>, vector<1x64xf32>
    %299 = vector.broadcast %298 : vector<1x64xf32> to vector<8x64xf32>
    %300 = arith.addf %297, %299 : vector<8x64xf32>
    %cst_134 = arith.constant 0.000000e+00 : f32
    %301 = vector.broadcast %cst_134 : f32 to vector<8x64xf32>
    %302 = arith.maximumf %300, %301 : vector<8x64xf32>
    %303 = arith.truncf %302 : vector<8x64xf32> to vector<8x64xbf16>
    %c1_135 = arith.constant 1 : index
    %c0_136 = arith.constant 0 : index
    %c0_137 = arith.constant 0 : index
    %304 = vector.load %arg7[%c1_135, %c0_136, %c0_137] : memref<3x64x32xbf16, #tpu.memory_space<vmem>>, vector<1x64x32xbf16>
    %305 = vector.shape_cast %304 : vector<1x64x32xbf16> to vector<64x32xbf16>
    %cst_138 = arith.constant dense<0.000000e+00> : vector<8x32xf32>
    %306 = tpu.matmul %303, %305, %cst_138 {dimension_numbers = #tpu.dot_dimension_numbers<[1], [0], [0], [1], [0, 0, 1, 1], [], []>} : vector<8x64xbf16>, vector<64x32xbf16>, vector<8x32xf32> -> vector<8x32xf32>
    %c20 = arith.constant 20 : index
    %c0_139 = arith.constant 0 : index
    %307 = vector.load %arg9[%c20, %c0_139] : memref<33x64xf32, #tpu.memory_space<vmem>>, vector<1x32xf32>
    %308 = vector.broadcast %307 : vector<1x32xf32> to vector<8x32xf32>
    %309 = arith.addf %306, %308 : vector<8x32xf32>
    %310 = arith.addf %309, %293 : vector<8x32xf32>
    %cst_140 = arith.constant dense<0.000000e+00> : vector<8xf32>
    %311 = vector.multi_reduction <add>, %310, %cst_140 [1] : vector<8x32xf32> to vector<8xf32>
    %312 = vector.shape_cast %311 : vector<8xf32> to vector<8x1xf32>
    %cst_141 = arith.constant 3.200000e+01 : f32
    %313 = vector.broadcast %cst_141 : f32 to vector<8x1xf32>
    %314 = arith.divf %312, %313 : vector<8x1xf32>
    %315 = vector.broadcast %314 : vector<8x1xf32> to vector<8x32xf32>
    %316 = arith.subf %310, %315 : vector<8x32xf32>
    %317 = arith.mulf %316, %316 : vector<8x32xf32>
    %cst_142 = arith.constant dense<0.000000e+00> : vector<8xf32>
    %318 = vector.multi_reduction <add>, %317, %cst_142 [1] : vector<8x32xf32> to vector<8xf32>
    %319 = vector.shape_cast %318 : vector<8xf32> to vector<8x1xf32>
    %cst_143 = arith.constant 3.200000e+01 : f32
    %320 = vector.broadcast %cst_143 : f32 to vector<8x1xf32>
    %321 = arith.divf %319, %320 : vector<8x1xf32>
    %cst_144 = arith.constant 9.99999997E-7 : f32
    %322 = vector.broadcast %cst_144 : f32 to vector<8x1xf32>
    %323 = arith.addf %321, %322 : vector<8x1xf32>
    %324 = math.rsqrt %323 : vector<8x1xf32>
    %325 = vector.broadcast %324 : vector<8x1xf32> to vector<8x32xf32>
    %326 = arith.mulf %316, %325 : vector<8x32xf32>
    %c21 = arith.constant 21 : index
    %c0_145 = arith.constant 0 : index
    %327 = vector.load %arg9[%c21, %c0_145] : memref<33x64xf32, #tpu.memory_space<vmem>>, vector<1x32xf32>
    %328 = vector.broadcast %327 : vector<1x32xf32> to vector<8x32xf32>
    %329 = arith.mulf %326, %328 : vector<8x32xf32>
    %c22 = arith.constant 22 : index
    %c0_146 = arith.constant 0 : index
    %330 = vector.load %arg9[%c22, %c0_146] : memref<33x64xf32, #tpu.memory_space<vmem>>, vector<1x32xf32>
    %331 = vector.broadcast %330 : vector<1x32xf32> to vector<8x32xf32>
    %332 = arith.addf %329, %331 : vector<8x32xf32>
    %c3_147 = arith.constant 3 : index
    %c0_148 = arith.constant 0 : index
    %c0_149 = arith.constant 0 : index
    %c0_150 = arith.constant 0 : index
    %333 = vector.load %arg3[%c3_147, %c0_148, %c0_149, %c0_150] : memref<5x12x8x32xbf16, #tpu.memory_space<vmem>>, vector<1x12x8x32xbf16>
    %334 = vector.shape_cast %333 : vector<1x12x8x32xbf16> to vector<12x8x32xbf16>
    %c3_151 = arith.constant 3 : index
    %c0_152 = arith.constant 0 : index
    %c0_153 = arith.constant 0 : index
    %c0_154 = arith.constant 0 : index
    %335 = vector.load %arg4[%c3_151, %c0_152, %c0_153, %c0_154] : memref<5x12x1x8xf32, #tpu.memory_space<vmem>>, vector<1x12x1x8xf32>
    %336 = vector.shape_cast %335 : vector<1x12x1x8xf32> to vector<12x1x8xf32>
    %337 = arith.truncf %332 : vector<8x32xf32> to vector<8x32xbf16>
    %338 = vector.shape_cast %337 : vector<8x32xbf16> to vector<1x8x32xbf16>
    %339 = vector.broadcast %338 : vector<1x8x32xbf16> to vector<12x8x32xbf16>
    "tpu.trace_start"() <{level = 10 : i32, message = "hnd,hkd->hnk"}> : () -> ()
    %cst_155 = arith.constant dense<0.000000e+00> : vector<12x8x8xf32>
    %340 = tpu.matmul %339, %334, %cst_155 {dimension_numbers = #tpu.dot_dimension_numbers<[2], [2], [1], [1], [0, 0, 0, 1, 1, 1], [0], [0]>} : vector<12x8x32xbf16>, vector<12x8x32xbf16>, vector<12x8x8xf32> -> vector<12x8x8xf32>
    "tpu.trace_stop"() : () -> ()
    %341 = vector.broadcast %336 : vector<12x1x8xf32> to vector<12x8x8xf32>
    %342 = arith.addf %340, %341 : vector<12x8x8xf32>
    %343 = vector.extract_strided_slice %342 {offsets = [0, 0, 0], sizes = [4, 8, 8], strides = [1, 1, 1]} : vector<12x8x8xf32> to vector<4x8x8xf32>
    %344 = vector.extract_strided_slice %342 {offsets = [4, 0, 0], sizes = [4, 8, 8], strides = [1, 1, 1]} : vector<12x8x8xf32> to vector<4x8x8xf32>
    %345 = vector.extract_strided_slice %342 {offsets = [8, 0, 0], sizes = [4, 8, 8], strides = [1, 1, 1]} : vector<12x8x8xf32> to vector<4x8x8xf32>
    %346 = arith.truncf %343 : vector<4x8x8xf32> to vector<4x8x8xbf16>
    %347 = arith.truncf %344 : vector<4x8x8xf32> to vector<4x8x8xbf16>
    "tpu.trace_start"() <{level = 10 : i32, message = "hqd,hkd->hqk"}> : () -> ()
    %cst_156 = arith.constant dense<0.000000e+00> : vector<4x8x8xf32>
    %348 = tpu.matmul %346, %347, %cst_156 {dimension_numbers = #tpu.dot_dimension_numbers<[2], [2], [1], [1], [0, 0, 0, 1, 1, 1], [0], [0]>} : vector<4x8x8xbf16>, vector<4x8x8xbf16>, vector<4x8x8xf32> -> vector<4x8x8xf32>
    "tpu.trace_stop"() : () -> ()
    %349 = vector.broadcast %3 : vector<1x1x8xf32> to vector<4x8x8xf32>
    %350 = arith.addf %348, %349 : vector<4x8x8xf32>
    %cst_157 = arith.constant dense<0xFF800000> : vector<4x8xf32>
    %351 = vector.multi_reduction <maximumf>, %350, %cst_157 [2] : vector<4x8x8xf32> to vector<4x8xf32>
    %352 = vector.shape_cast %351 : vector<4x8xf32> to vector<4x8x1xf32>
    %353 = vector.broadcast %352 : vector<4x8x1xf32> to vector<4x8x8xf32>
    %354 = arith.subf %350, %353 : vector<4x8x8xf32>
    %355 = math.exp %354 : vector<4x8x8xf32>
    %cst_158 = arith.constant dense<0.000000e+00> : vector<4x8xf32>
    %356 = vector.multi_reduction <add>, %355, %cst_158 [2] : vector<4x8x8xf32> to vector<4x8xf32>
    %357 = vector.shape_cast %356 : vector<4x8xf32> to vector<4x8x1xf32>
    %358 = tpu.reciprocal %357 {approx = true} : vector<4x8x1xf32> -> vector<4x8x1xf32>
    %359 = vector.broadcast %358 : vector<4x8x1xf32> to vector<4x8x8xf32>
    %360 = arith.mulf %355, %359 : vector<4x8x8xf32>
    %361 = arith.truncf %360 : vector<4x8x8xf32> to vector<4x8x8xbf16>
    %362 = arith.truncf %345 : vector<4x8x8xf32> to vector<4x8x8xbf16>
    "tpu.trace_start"() <{level = 10 : i32, message = "hqk,hkd->hqd"}> : () -> ()
    %cst_159 = arith.constant dense<0.000000e+00> : vector<4x8x8xf32>
    %363 = tpu.matmul %361, %362, %cst_159 {dimension_numbers = #tpu.dot_dimension_numbers<[2], [1], [1], [2], [0, 0, 0, 1, 1, 2], [0], [0]>} : vector<4x8x8xbf16>, vector<4x8x8xbf16>, vector<4x8x8xf32> -> vector<4x8x8xf32>
    "tpu.trace_stop"() : () -> ()
    %364 = arith.truncf %363 : vector<4x8x8xf32> to vector<4x8x8xbf16>
    %c3_160 = arith.constant 3 : index
    %c0_161 = arith.constant 0 : index
    %c0_162 = arith.constant 0 : index
    %c0_163 = arith.constant 0 : index
    %365 = vector.load %arg5[%c3_160, %c0_161, %c0_162, %c0_163] : memref<5x4x8x32xbf16, #tpu.memory_space<vmem>>, vector<1x4x8x32xbf16>
    %366 = vector.shape_cast %365 : vector<1x4x8x32xbf16> to vector<4x8x32xbf16>
    "tpu.trace_start"() <{level = 10 : i32, message = "hqd,hdm->hqm"}> : () -> ()
    %cst_164 = arith.constant dense<0.000000e+00> : vector<4x8x32xf32>
    %367 = tpu.matmul %364, %366, %cst_164 {dimension_numbers = #tpu.dot_dimension_numbers<[2], [1], [1], [2], [0, 0, 0, 1, 1, 2], [0], [0]>} : vector<4x8x8xbf16>, vector<4x8x32xbf16>, vector<4x8x32xf32> -> vector<4x8x32xf32>
    "tpu.trace_stop"() : () -> ()
    %cst_165 = arith.constant dense<0.000000e+00> : vector<8x32xf32>
    %368 = vector.multi_reduction <add>, %367, %cst_165 [0] : vector<4x8x32xf32> to vector<8x32xf32>
    %c9 = arith.constant 9 : index
    %c0_166 = arith.constant 0 : index
    %369 = vector.load %arg9[%c9, %c0_166] : memref<33x64xf32, #tpu.memory_space<vmem>>, vector<1x32xf32>
    %370 = vector.broadcast %369 : vector<1x32xf32> to vector<8x32xf32>
    %371 = arith.addf %368, %370 : vector<8x32xf32>
    %372 = arith.addf %371, %332 : vector<8x32xf32>
    %cst_167 = arith.constant dense<0.000000e+00> : vector<8xf32>
    %373 = vector.multi_reduction <add>, %372, %cst_167 [1] : vector<8x32xf32> to vector<8xf32>
    %374 = vector.shape_cast %373 : vector<8xf32> to vector<8x1xf32>
    %cst_168 = arith.constant 3.200000e+01 : f32
    %375 = vector.broadcast %cst_168 : f32 to vector<8x1xf32>
    %376 = arith.divf %374, %375 : vector<8x1xf32>
    %377 = vector.broadcast %376 : vector<8x1xf32> to vector<8x32xf32>
    %378 = arith.subf %372, %377 : vector<8x32xf32>
    %379 = arith.mulf %378, %378 : vector<8x32xf32>
    %cst_169 = arith.constant dense<0.000000e+00> : vector<8xf32>
    %380 = vector.multi_reduction <add>, %379, %cst_169 [1] : vector<8x32xf32> to vector<8xf32>
    %381 = vector.shape_cast %380 : vector<8xf32> to vector<8x1xf32>
    %cst_170 = arith.constant 3.200000e+01 : f32
    %382 = vector.broadcast %cst_170 : f32 to vector<8x1xf32>
    %383 = arith.divf %381, %382 : vector<8x1xf32>
    %cst_171 = arith.constant 9.99999997E-7 : f32
    %384 = vector.broadcast %cst_171 : f32 to vector<8x1xf32>
    %385 = arith.addf %383, %384 : vector<8x1xf32>
    %386 = math.rsqrt %385 : vector<8x1xf32>
    %387 = vector.broadcast %386 : vector<8x1xf32> to vector<8x32xf32>
    %388 = arith.mulf %378, %387 : vector<8x32xf32>
    %c10 = arith.constant 10 : index
    %c0_172 = arith.constant 0 : index
    %389 = vector.load %arg9[%c10, %c0_172] : memref<33x64xf32, #tpu.memory_space<vmem>>, vector<1x32xf32>
    %390 = vector.broadcast %389 : vector<1x32xf32> to vector<8x32xf32>
    %391 = arith.mulf %388, %390 : vector<8x32xf32>
    %c11 = arith.constant 11 : index
    %c0_173 = arith.constant 0 : index
    %392 = vector.load %arg9[%c11, %c0_173] : memref<33x64xf32, #tpu.memory_space<vmem>>, vector<1x32xf32>
    %393 = vector.broadcast %392 : vector<1x32xf32> to vector<8x32xf32>
    %394 = arith.addf %391, %393 : vector<8x32xf32>
    %c4_174 = arith.constant 4 : index
    %c0_175 = arith.constant 0 : index
    %c0_176 = arith.constant 0 : index
    %c0_177 = arith.constant 0 : index
    %395 = vector.load %arg3[%c4_174, %c0_175, %c0_176, %c0_177] : memref<5x12x8x32xbf16, #tpu.memory_space<vmem>>, vector<1x12x8x32xbf16>
    %396 = vector.shape_cast %395 : vector<1x12x8x32xbf16> to vector<12x8x32xbf16>
    %c4_178 = arith.constant 4 : index
    %c0_179 = arith.constant 0 : index
    %c0_180 = arith.constant 0 : index
    %c0_181 = arith.constant 0 : index
    %397 = vector.load %arg4[%c4_178, %c0_179, %c0_180, %c0_181] : memref<5x12x1x8xf32, #tpu.memory_space<vmem>>, vector<1x12x1x8xf32>
    %398 = vector.shape_cast %397 : vector<1x12x1x8xf32> to vector<12x1x8xf32>
    %399 = arith.truncf %394 : vector<8x32xf32> to vector<8x32xbf16>
    %400 = vector.shape_cast %399 : vector<8x32xbf16> to vector<1x8x32xbf16>
    %401 = vector.broadcast %400 : vector<1x8x32xbf16> to vector<4x8x32xbf16>
    %402 = arith.truncf %132 : vector<8x32xf32> to vector<8x32xbf16>
    %403 = vector.shape_cast %402 : vector<8x32xbf16> to vector<1x8x32xbf16>
    %404 = vector.broadcast %403 : vector<1x8x32xbf16> to vector<8x8x32xbf16>
    %405 = vector.extract_strided_slice %396 {offsets = [0, 0, 0], sizes = [4, 8, 32], strides = [1, 1, 1]} : vector<12x8x32xbf16> to vector<4x8x32xbf16>
    "tpu.trace_start"() <{level = 10 : i32, message = "hnd,hkd->hnk"}> : () -> ()
    %cst_182 = arith.constant dense<0.000000e+00> : vector<4x8x8xf32>
    %406 = tpu.matmul %401, %405, %cst_182 {dimension_numbers = #tpu.dot_dimension_numbers<[2], [2], [1], [1], [0, 0, 0, 1, 1, 1], [0], [0]>} : vector<4x8x32xbf16>, vector<4x8x32xbf16>, vector<4x8x8xf32> -> vector<4x8x8xf32>
    "tpu.trace_stop"() : () -> ()
    %407 = vector.extract_strided_slice %398 {offsets = [0, 0, 0], sizes = [4, 1, 8], strides = [1, 1, 1]} : vector<12x1x8xf32> to vector<4x1x8xf32>
    %408 = vector.broadcast %407 : vector<4x1x8xf32> to vector<4x8x8xf32>
    %409 = arith.addf %406, %408 : vector<4x8x8xf32>
    %410 = vector.extract_strided_slice %396 {offsets = [4, 0, 0], sizes = [8, 8, 32], strides = [1, 1, 1]} : vector<12x8x32xbf16> to vector<8x8x32xbf16>
    "tpu.trace_start"() <{level = 10 : i32, message = "hnd,hkd->hnk"}> : () -> ()
    %cst_183 = arith.constant dense<0.000000e+00> : vector<8x8x8xf32>
    %411 = tpu.matmul %404, %410, %cst_183 {dimension_numbers = #tpu.dot_dimension_numbers<[2], [2], [1], [1], [0, 0, 0, 1, 1, 1], [0], [0]>} : vector<8x8x32xbf16>, vector<8x8x32xbf16>, vector<8x8x8xf32> -> vector<8x8x8xf32>
    "tpu.trace_stop"() : () -> ()
    %412 = vector.extract_strided_slice %398 {offsets = [4, 0, 0], sizes = [8, 1, 8], strides = [1, 1, 1]} : vector<12x1x8xf32> to vector<8x1x8xf32>
    %413 = vector.broadcast %412 : vector<8x1x8xf32> to vector<8x8x8xf32>
    %414 = arith.addf %411, %413 : vector<8x8x8xf32>
    %415 = vector.extract_strided_slice %414 {offsets = [0, 0, 0], sizes = [4, 8, 8], strides = [1, 1, 1]} : vector<8x8x8xf32> to vector<4x8x8xf32>
    %416 = vector.extract_strided_slice %414 {offsets = [4, 0, 0], sizes = [4, 8, 8], strides = [1, 1, 1]} : vector<8x8x8xf32> to vector<4x8x8xf32>
    %417 = arith.truncf %409 : vector<4x8x8xf32> to vector<4x8x8xbf16>
    %418 = arith.truncf %415 : vector<4x8x8xf32> to vector<4x8x8xbf16>
    "tpu.trace_start"() <{level = 10 : i32, message = "hqd,hkd->hqk"}> : () -> ()
    %cst_184 = arith.constant dense<0.000000e+00> : vector<4x8x8xf32>
    %419 = tpu.matmul %417, %418, %cst_184 {dimension_numbers = #tpu.dot_dimension_numbers<[2], [2], [1], [1], [0, 0, 0, 1, 1, 1], [0], [0]>} : vector<4x8x8xbf16>, vector<4x8x8xbf16>, vector<4x8x8xf32> -> vector<4x8x8xf32>
    "tpu.trace_stop"() : () -> ()
    %420 = vector.broadcast %3 : vector<1x1x8xf32> to vector<4x8x8xf32>
    %421 = arith.addf %419, %420 : vector<4x8x8xf32>
    %cst_185 = arith.constant dense<0xFF800000> : vector<4x8xf32>
    %422 = vector.multi_reduction <maximumf>, %421, %cst_185 [2] : vector<4x8x8xf32> to vector<4x8xf32>
    %423 = vector.shape_cast %422 : vector<4x8xf32> to vector<4x8x1xf32>
    %424 = vector.broadcast %423 : vector<4x8x1xf32> to vector<4x8x8xf32>
    %425 = arith.subf %421, %424 : vector<4x8x8xf32>
    %426 = math.exp %425 : vector<4x8x8xf32>
    %cst_186 = arith.constant dense<0.000000e+00> : vector<4x8xf32>
    %427 = vector.multi_reduction <add>, %426, %cst_186 [2] : vector<4x8x8xf32> to vector<4x8xf32>
    %428 = vector.shape_cast %427 : vector<4x8xf32> to vector<4x8x1xf32>
    %429 = tpu.reciprocal %428 {approx = true} : vector<4x8x1xf32> -> vector<4x8x1xf32>
    %430 = vector.broadcast %429 : vector<4x8x1xf32> to vector<4x8x8xf32>
    %431 = arith.mulf %426, %430 : vector<4x8x8xf32>
    %432 = arith.truncf %431 : vector<4x8x8xf32> to vector<4x8x8xbf16>
    %433 = arith.truncf %416 : vector<4x8x8xf32> to vector<4x8x8xbf16>
    "tpu.trace_start"() <{level = 10 : i32, message = "hqk,hkd->hqd"}> : () -> ()
    %cst_187 = arith.constant dense<0.000000e+00> : vector<4x8x8xf32>
    %434 = tpu.matmul %432, %433, %cst_187 {dimension_numbers = #tpu.dot_dimension_numbers<[2], [1], [1], [2], [0, 0, 0, 1, 1, 2], [0], [0]>} : vector<4x8x8xbf16>, vector<4x8x8xbf16>, vector<4x8x8xf32> -> vector<4x8x8xf32>
    "tpu.trace_stop"() : () -> ()
    %435 = arith.truncf %434 : vector<4x8x8xf32> to vector<4x8x8xbf16>
    %c4_188 = arith.constant 4 : index
    %c0_189 = arith.constant 0 : index
    %c0_190 = arith.constant 0 : index
    %c0_191 = arith.constant 0 : index
    %436 = vector.load %arg5[%c4_188, %c0_189, %c0_190, %c0_191] : memref<5x4x8x32xbf16, #tpu.memory_space<vmem>>, vector<1x4x8x32xbf16>
    %437 = vector.shape_cast %436 : vector<1x4x8x32xbf16> to vector<4x8x32xbf16>
    "tpu.trace_start"() <{level = 10 : i32, message = "hqd,hdm->hqm"}> : () -> ()
    %cst_192 = arith.constant dense<0.000000e+00> : vector<4x8x32xf32>
    %438 = tpu.matmul %435, %437, %cst_192 {dimension_numbers = #tpu.dot_dimension_numbers<[2], [1], [1], [2], [0, 0, 0, 1, 1, 2], [0], [0]>} : vector<4x8x8xbf16>, vector<4x8x32xbf16>, vector<4x8x32xf32> -> vector<4x8x32xf32>
    "tpu.trace_stop"() : () -> ()
    %cst_193 = arith.constant dense<0.000000e+00> : vector<8x32xf32>
    %439 = vector.multi_reduction <add>, %438, %cst_193 [0] : vector<4x8x32xf32> to vector<8x32xf32>
    %c12 = arith.constant 12 : index
    %c0_194 = arith.constant 0 : index
    %440 = vector.load %arg9[%c12, %c0_194] : memref<33x64xf32, #tpu.memory_space<vmem>>, vector<1x32xf32>
    %441 = vector.broadcast %440 : vector<1x32xf32> to vector<8x32xf32>
    %442 = arith.addf %439, %441 : vector<8x32xf32>
    %443 = arith.addf %442, %394 : vector<8x32xf32>
    %cst_195 = arith.constant dense<0.000000e+00> : vector<8xf32>
    %444 = vector.multi_reduction <add>, %443, %cst_195 [1] : vector<8x32xf32> to vector<8xf32>
    %445 = vector.shape_cast %444 : vector<8xf32> to vector<8x1xf32>
    %cst_196 = arith.constant 3.200000e+01 : f32
    %446 = vector.broadcast %cst_196 : f32 to vector<8x1xf32>
    %447 = arith.divf %445, %446 : vector<8x1xf32>
    %448 = vector.broadcast %447 : vector<8x1xf32> to vector<8x32xf32>
    %449 = arith.subf %443, %448 : vector<8x32xf32>
    %450 = arith.mulf %449, %449 : vector<8x32xf32>
    %cst_197 = arith.constant dense<0.000000e+00> : vector<8xf32>
    %451 = vector.multi_reduction <add>, %450, %cst_197 [1] : vector<8x32xf32> to vector<8xf32>
    %452 = vector.shape_cast %451 : vector<8xf32> to vector<8x1xf32>
    %cst_198 = arith.constant 3.200000e+01 : f32
    %453 = vector.broadcast %cst_198 : f32 to vector<8x1xf32>
    %454 = arith.divf %452, %453 : vector<8x1xf32>
    %cst_199 = arith.constant 9.99999997E-7 : f32
    %455 = vector.broadcast %cst_199 : f32 to vector<8x1xf32>
    %456 = arith.addf %454, %455 : vector<8x1xf32>
    %457 = math.rsqrt %456 : vector<8x1xf32>
    %458 = vector.broadcast %457 : vector<8x1xf32> to vector<8x32xf32>
    %459 = arith.mulf %449, %458 : vector<8x32xf32>
    %c13 = arith.constant 13 : index
    %c0_200 = arith.constant 0 : index
    %460 = vector.load %arg9[%c13, %c0_200] : memref<33x64xf32, #tpu.memory_space<vmem>>, vector<1x32xf32>
    %461 = vector.broadcast %460 : vector<1x32xf32> to vector<8x32xf32>
    %462 = arith.mulf %459, %461 : vector<8x32xf32>
    %c14 = arith.constant 14 : index
    %c0_201 = arith.constant 0 : index
    %463 = vector.load %arg9[%c14, %c0_201] : memref<33x64xf32, #tpu.memory_space<vmem>>, vector<1x32xf32>
    %464 = vector.broadcast %463 : vector<1x32xf32> to vector<8x32xf32>
    %465 = arith.addf %462, %464 : vector<8x32xf32>
    %466 = arith.truncf %465 : vector<8x32xf32> to vector<8x32xbf16>
    %c2_202 = arith.constant 2 : index
    %c0_203 = arith.constant 0 : index
    %c0_204 = arith.constant 0 : index
    %467 = vector.load %arg6[%c2_202, %c0_203, %c0_204] : memref<3x32x64xbf16, #tpu.memory_space<vmem>>, vector<1x32x64xbf16>
    %468 = vector.shape_cast %467 : vector<1x32x64xbf16> to vector<32x64xbf16>
    %cst_205 = arith.constant dense<0.000000e+00> : vector<8x64xf32>
    %469 = tpu.matmul %466, %468, %cst_205 {dimension_numbers = #tpu.dot_dimension_numbers<[1], [0], [0], [1], [0, 0, 1, 1], [], []>} : vector<8x32xbf16>, vector<32x64xbf16>, vector<8x64xf32> -> vector<8x64xf32>
    %c23 = arith.constant 23 : index
    %c0_206 = arith.constant 0 : index
    %470 = vector.load %arg9[%c23, %c0_206] : memref<33x64xf32, #tpu.memory_space<vmem>>, vector<1x64xf32>
    %471 = vector.broadcast %470 : vector<1x64xf32> to vector<8x64xf32>
    %472 = arith.addf %469, %471 : vector<8x64xf32>
    %cst_207 = arith.constant 0.000000e+00 : f32
    %473 = vector.broadcast %cst_207 : f32 to vector<8x64xf32>
    %474 = arith.maximumf %472, %473 : vector<8x64xf32>
    %475 = arith.truncf %474 : vector<8x64xf32> to vector<8x64xbf16>
    %c2_208 = arith.constant 2 : index
    %c0_209 = arith.constant 0 : index
    %c0_210 = arith.constant 0 : index
    %476 = vector.load %arg7[%c2_208, %c0_209, %c0_210] : memref<3x64x32xbf16, #tpu.memory_space<vmem>>, vector<1x64x32xbf16>
    %477 = vector.shape_cast %476 : vector<1x64x32xbf16> to vector<64x32xbf16>
    %cst_211 = arith.constant dense<0.000000e+00> : vector<8x32xf32>
    %478 = tpu.matmul %475, %477, %cst_211 {dimension_numbers = #tpu.dot_dimension_numbers<[1], [0], [0], [1], [0, 0, 1, 1], [], []>} : vector<8x64xbf16>, vector<64x32xbf16>, vector<8x32xf32> -> vector<8x32xf32>
    %c24 = arith.constant 24 : index
    %c0_212 = arith.constant 0 : index
    %479 = vector.load %arg9[%c24, %c0_212] : memref<33x64xf32, #tpu.memory_space<vmem>>, vector<1x32xf32>
    %480 = vector.broadcast %479 : vector<1x32xf32> to vector<8x32xf32>
    %481 = arith.addf %478, %480 : vector<8x32xf32>
    %482 = arith.addf %481, %465 : vector<8x32xf32>
    %cst_213 = arith.constant dense<0.000000e+00> : vector<8xf32>
    %483 = vector.multi_reduction <add>, %482, %cst_213 [1] : vector<8x32xf32> to vector<8xf32>
    %484 = vector.shape_cast %483 : vector<8xf32> to vector<8x1xf32>
    %cst_214 = arith.constant 3.200000e+01 : f32
    %485 = vector.broadcast %cst_214 : f32 to vector<8x1xf32>
    %486 = arith.divf %484, %485 : vector<8x1xf32>
    %487 = vector.broadcast %486 : vector<8x1xf32> to vector<8x32xf32>
    %488 = arith.subf %482, %487 : vector<8x32xf32>
    %489 = arith.mulf %488, %488 : vector<8x32xf32>
    %cst_215 = arith.constant dense<0.000000e+00> : vector<8xf32>
    %490 = vector.multi_reduction <add>, %489, %cst_215 [1] : vector<8x32xf32> to vector<8xf32>
    %491 = vector.shape_cast %490 : vector<8xf32> to vector<8x1xf32>
    %cst_216 = arith.constant 3.200000e+01 : f32
    %492 = vector.broadcast %cst_216 : f32 to vector<8x1xf32>
    %493 = arith.divf %491, %492 : vector<8x1xf32>
    %cst_217 = arith.constant 9.99999997E-7 : f32
    %494 = vector.broadcast %cst_217 : f32 to vector<8x1xf32>
    %495 = arith.addf %493, %494 : vector<8x1xf32>
    %496 = math.rsqrt %495 : vector<8x1xf32>
    %497 = vector.broadcast %496 : vector<8x1xf32> to vector<8x32xf32>
    %498 = arith.mulf %488, %497 : vector<8x32xf32>
    %c25 = arith.constant 25 : index
    %c0_218 = arith.constant 0 : index
    %499 = vector.load %arg9[%c25, %c0_218] : memref<33x64xf32, #tpu.memory_space<vmem>>, vector<1x32xf32>
    %500 = vector.broadcast %499 : vector<1x32xf32> to vector<8x32xf32>
    %501 = arith.mulf %498, %500 : vector<8x32xf32>
    %c26 = arith.constant 26 : index
    %c0_219 = arith.constant 0 : index
    %502 = vector.load %arg9[%c26, %c0_219] : memref<33x64xf32, #tpu.memory_space<vmem>>, vector<1x32xf32>
    %503 = vector.broadcast %502 : vector<1x32xf32> to vector<8x32xf32>
    %504 = arith.addf %501, %503 : vector<8x32xf32>
    %cst_220 = arith.constant dense<0.000000e+00> : vector<8x8xf32>
    %505 = tpu.matmul %504, %132, %cst_220 {dimension_numbers = #tpu.dot_dimension_numbers<[1], [1], [0], [0], [0, 0, 1, 0], [], []>} : vector<8x32xf32>, vector<8x32xf32>, vector<8x8xf32> -> vector<8x8xf32>
    %506 = arith.negf %505 : vector<8x8xf32>
    %507 = math.exp %506 : vector<8x8xf32>
    %cst_221 = arith.constant 1.000000e+00 : f32
    %508 = vector.broadcast %cst_221 : f32 to vector<8x8xf32>
    %509 = arith.addf %508, %507 : vector<8x8xf32>
    %510 = arith.divf %508, %509 : vector<8x8xf32>
    %c0_222 = arith.constant 0 : index
    %c0_223 = arith.constant 0 : index
    %c0_224 = arith.constant 0 : index
    %511 = vector.load %arg10[%c0_222, %c0_223, %c0_224] : memref<1x8x8xf32, #tpu.memory_space<vmem>>, vector<1x8x8xf32>
    %512 = vector.shape_cast %511 : vector<1x8x8xf32> to vector<8x8xf32>
    %513 = vector.shape_cast %510 : vector<8x8xf32> to vector<1x8x8xf32>
    tpu.vector_store %arg10[%c0_222, %c0_223, %c0_224], %513 {strides = array<i32>} : memref<1x8x8xf32, #tpu.memory_space<vmem>>, vector<1x8x8xf32>,
    return
  }
  func.func @transform_0(%arg0: i32) -> (i32, i32, i32) {
    %c0_i32 = arith.constant 0 : i32
    %c0_i32_0 = arith.constant 0 : i32
    %c0_i32_1 = arith.constant 0 : i32
    return %arg0, %c0_i32, %c0_i32_0 : i32, i32, i32
  }
  func.func @transform_1(%arg0: i32) -> (i32, i32, i32) {
    %c0_i32 = arith.constant 0 : i32
    %c0_i32_0 = arith.constant 0 : i32
    %c0_i32_1 = arith.constant 0 : i32
    return %arg0, %c0_i32, %c0_i32_0 : i32, i32, i32
  }
  func.func @transform_2(%arg0: i32) -> (i32, i32, i32, i32) {
    %c0_i32 = arith.constant 0 : i32
    %c0_i32_0 = arith.constant 0 : i32
    %c0_i32_1 = arith.constant 0 : i32
    %c0_i32_2 = arith.constant 0 : i32
    %c0_i32_3 = arith.constant 0 : i32
    return %c0_i32, %c0_i32_0, %c0_i32_1, %c0_i32_2 : i32, i32, i32, i32
  }
  func.func @transform_3(%arg0: i32) -> (i32, i32, i32, i32) {
    %c0_i32 = arith.constant 0 : i32
    %c0_i32_0 = arith.constant 0 : i32
    %c0_i32_1 = arith.constant 0 : i32
    %c0_i32_2 = arith.constant 0 : i32
    %c0_i32_3 = arith.constant 0 : i32
    return %c0_i32, %c0_i32_0, %c0_i32_1, %c0_i32_2 : i32, i32, i32, i32
  }
  func.func @transform_4(%arg0: i32) -> (i32, i32, i32, i32) {
    %c0_i32 = arith.constant 0 : i32
    %c0_i32_0 = arith.constant 0 : i32
    %c0_i32_1 = arith.constant 0 : i32
    %c0_i32_2 = arith.constant 0 : i32
    %c0_i32_3 = arith.constant 0 : i32
    return %c0_i32, %c0_i32_0, %c0_i32_1, %c0_i32_2 : i32, i32, i32, i32
  }
  func.func @transform_5(%arg0: i32) -> (i32, i32, i32) {
    %c0_i32 = arith.constant 0 : i32
    %c0_i32_0 = arith.constant 0 : i32
    %c0_i32_1 = arith.constant 0 : i32
    %c0_i32_2 = arith.constant 0 : i32
    return %c0_i32, %c0_i32_0, %c0_i32_1 : i32, i32, i32
  }
  func.func @transform_6(%arg0: i32) -> (i32, i32, i32) {
    %c0_i32 = arith.constant 0 : i32
    %c0_i32_0 = arith.constant 0 : i32
    %c0_i32_1 = arith.constant 0 : i32
    %c0_i32_2 = arith.constant 0 : i32
    return %c0_i32, %c0_i32_0, %c0_i32_1 : i32, i32, i32
  }
  func.func @transform_7(%arg0: i32) -> (i32, i32, i32) {
    %c0_i32 = arith.constant 0 : i32
    %c0_i32_0 = arith.constant 0 : i32
    %c0_i32_1 = arith.constant 0 : i32
    %c0_i32_2 = arith.constant 0 : i32
    return %c0_i32, %c0_i32_0, %c0_i32_1 : i32, i32, i32
  }
  func.func @transform_8(%arg0: i32) -> (i32, i32) {
    %c0_i32 = arith.constant 0 : i32
    %c0_i32_0 = arith.constant 0 : i32
    %c0_i32_1 = arith.constant 0 : i32
    return %c0_i32, %c0_i32_0 : i32, i32
  }
  func.func @transform_9(%arg0: i32) -> (i32, i32, i32) {
    %c0_i32 = arith.constant 0 : i32
    %c0_i32_0 = arith.constant 0 : i32
    %c0_i32_1 = arith.constant 0 : i32
    return %arg0, %c0_i32, %c0_i32_0 : i32, i32, i32
  }
}

</mosaic_0001>

<llo_original>
// kernel: transform_jointer_forward.1
$region0: #{transform_jointer_forward.1}
  #allocation0 [shape = 'u32[]', space=smem, size = 0x4, offset = 0x4, fixed_abs, tag = 'smem constant byte address 0x4 - core index']
  #allocation1 [shape = 'u32[144,128]{1,0:T(1,128)}', space=vmem, size = 0x12000, scoped, tag = 'internal scratch']
  %s0 = inlined_call_operand.vmem [shape: f32[2,8,32], index: 0, kind: input, shape index: {}]
  %s1 = inlined_call_operand.vmem [shape: f32[2,1,8], index: 1, kind: input, shape index: {}]
  %s2 = inlined_call_operand.vmem [shape: bf16[5,12,8,32], index: 2, kind: input, shape index: {}]
  %s3 = inlined_call_operand.vmem [shape: f32[5,12,1,8], index: 3, kind: input, shape index: {}]
  %s4 = inlined_call_operand.vmem [shape: bf16[5,4,8,32], index: 4, kind: input, shape index: {}]
  %s5 = inlined_call_operand.vmem [shape: bf16[3,32,64], index: 5, kind: input, shape index: {}]
  %s6 = inlined_call_operand.vmem [shape: bf16[3,64,32], index: 6, kind: input, shape index: {}]
  %s7 = inlined_call_operand.vmem [shape: bf16[2,32,32], index: 7, kind: input, shape index: {}]
  %s8 = inlined_call_operand.hbm [shape: f32[33,64], index: 8, kind: input, shape index: {}]
  %s9 = inlined_call_operand.hbm [shape: f32[2,8,8], index: 9, kind: output, shape index: {}]
  %s10 = sld [smem:[#allocation0]]
  $region73: #{transform_jointer_forward.1} parent=0
    _
  %s12 = ssub.s32 1, %s10
  %s13 = scalar_select 0, %s12, %s10
  $region1: #{transform_jointer_forward.1} parent=0
    #allocation2 [shape = 'u8[20480]{0}', space=vmem, size = 0x5000, scoped, tag = 'input window, operand 8, single buffered']
    #allocation3 [shape = 's32[2]{0}', space=sflag, size = 0x8, scoped, tag = 'scoped memory for transform_jointer_forward.1']
    #allocation4 [shape = 's32[2]{0}', space=sflag, size = 0x8, scoped, tag = 'scoped memory for transform_jointer_forward.1']
    #allocation5 [shape = 'u8[8192]{0}', space=vmem, size = 0x2000, scoped, tag = 'output window, operand 0']
    %14 = vsyncpa [#allocation3], 0
    %15 = vsyncpa [#allocation4], 0
    %s16 = scalar_lea.sflag [#allocation4], 1
    %17 = vsyncpa %s16, 0
    loop: start=0, step=1, limit=4
    $region2: #{transform_jointer_forward.1} parent=1 // loop_pre_header
      _
    $region3: #{transform_jointer_forward.1} parent=1 // loop_header
      %s19 = sphi 0, %s23
      %p20 = scmp.ge.s32.totalorder %s19, 4
      %s29 = sphi 0, %s31
      %s32 = sphi 0, %s29
      %s33 = sphi 0, %s32
      %s49 = sphi 0, %s33
      %s55 = sphi 0, %s57
      %s58 = sphi 0, %s55
      %s59 = sphi 0, %s58
      %s75 = sphi 0, %s59
      %s79 = sphi 0, %s79
      %s81 = sphi 0, %s79
      %s82 = sphi 0, %s81
      %s96 = sphi 0, %s82
      %s100 = sphi 0, %s100
      %s102 = sphi 0, %s100
      %s103 = sphi 0, %s102
      %s117 = sphi 0, %s103
      %s121 = sphi 0, %s121
      %s123 = sphi 0, %s121
      %s124 = sphi 0, %s123
      %s138 = sphi 0, %s124
      %s142 = sphi 0, %s142
      %s144 = sphi 0, %s142
      %s145 = sphi 0, %s144
      %s159 = sphi 0, %s145
      %s163 = sphi 0, %s163
      %s165 = sphi 0, %s163
      %s166 = sphi 0, %s165
      %s180 = sphi 0, %s166
      %s184 = sphi 0, %s184
      %s186 = sphi 0, %s184
      %s187 = sphi 0, %s186
      %s201 = sphi 0, %s187
      %s205 = sphi 0, %s205
      %s207 = sphi 0, %s205
      %s208 = sphi 0, %s207
      %s222 = sphi 0, %s208
      %s228 = sphi 0, %s230
      %s231 = sphi 0, %s228
      %s232 = sphi 0, %s231
      %s248 = sphi 0, %s232
    $region4: #{transform_jointer_forward.1} parent=1 // loop_header_branch
      %22 = sbr.rel (%p20) target = $region8
    $region5: #{transform_jointer_forward.1} parent=1 // loop_body
      %s24 = ssub.s32 %s19, 1
      %s25 = ssub.s32 %s19, 2
      %s26 = sadd.s32 %s19, 1
      %s27 = ssub.s32 %s19, %s26
      %p28 = scmp.eq.s32.totalorder %s27, 0
      %s30 = sadd.s32 %s29, 1
      %s31 = scalar_select %p28, %s29, %s30
      %p34 = pneg %p28
      %p35 = scmp.eq.s32.totalorder %s19, 1
      %p36 = por %p34, %p35
      %p37 = scmp.ne.s32.totalorder %s29, %s32
      %p38 = scmp.eq.s32.totalorder %s19, 0
      %p39 = por %p37, %p38
      %p40 = scmp.ne.s32.totalorder %s29, %s32
      %p41 = scmp.eq.s32.totalorder %s24, 1
      %p42 = por %p40, %p41
      %p43 = scmp.ne.s32.totalorder %s32, %s33
      %p44 = scmp.eq.s32.totalorder %s24, 0
      %p45 = por %p43, %p44
      %p46 = scmp.ne.s32.totalorder %s32, %s33
      %p47 = scmp.eq.s32.totalorder %s25, 1
      %p48 = por %p46, %p47
      %p50 = scmp.ne.s32.totalorder %s33, %s49
      %p51 = scmp.eq.s32.totalorder %s25, 0
      %p52 = por %p50, %p51
      %s53 = ssub.s32 %s19, %s26
      %p54 = scmp.eq.s32.totalorder %s53, 0
      %s56 = sadd.s32 %s55, 1
      %s57 = scalar_select %p54, %s55, %s56
      %p60 = pneg %p54
      %p61 = scmp.eq.s32.totalorder %s19, 1
      %p62 = por %p60, %p61
      %p63 = scmp.ne.s32.totalorder %s55, %s58
      %p64 = scmp.eq.s32.totalorder %s19, 0
      %p65 = por %p63, %p64
      %p66 = scmp.ne.s32.totalorder %s55, %s58
      %p67 = scmp.eq.s32.totalorder %s24, 1
      %p68 = por %p66, %p67
      %p69 = scmp.ne.s32.totalorder %s58, %s59
      %p70 = scmp.eq.s32.totalorder %s24, 0
      %p71 = por %p69, %p70
      %p72 = scmp.ne.s32.totalorder %s58, %s59
      %p73 = scmp.eq.s32.totalorder %s25, 1
      %p74 = por %p72, %p73
      %p76 = scmp.ne.s32.totalorder %s59, %s75
      %p77 = scmp.eq.s32.totalorder %s25, 0
      %p78 = por %p76, %p77
      %s80 = sadd.s32 %s79, 1
      %p83 = scmp.eq.s32.totalorder %s19, 1
      %p84 = scmp.ne.s32.totalorder %s79, %s81
      %p85 = scmp.eq.s32.totalorder %s19, 0
      %p86 = por %p84, %p85
      %p87 = scmp.ne.s32.totalorder %s79, %s81
      %p88 = scmp.eq.s32.totalorder %s24, 1
      %p89 = por %p87, %p88
      %p90 = scmp.ne.s32.totalorder %s81, %s82
      %p91 = scmp.eq.s32.totalorder %s24, 0
      %p92 = por %p90, %p91
      %p93 = scmp.ne.s32.totalorder %s81, %s82
      %p94 = scmp.eq.s32.totalorder %s25, 1
      %p95 = por %p93, %p94
      %p97 = scmp.ne.s32.totalorder %s82, %s96
      %p98 = scmp.eq.s32.totalorder %s25, 0
      %p99 = por %p97, %p98
      %s101 = sadd.s32 %s100, 1
      %p104 = scmp.eq.s32.totalorder %s19, 1
      %p105 = scmp.ne.s32.totalorder %s100, %s102
      %p106 = scmp.eq.s32.totalorder %s19, 0
      %p107 = por %p105, %p106
      %p108 = scmp.ne.s32.totalorder %s100, %s102
      %p109 = scmp.eq.s32.totalorder %s24, 1
      %p110 = por %p108, %p109
      %p111 = scmp.ne.s32.totalorder %s102, %s103
      %p112 = scmp.eq.s32.totalorder %s24, 0
      %p113 = por %p111, %p112
      %p114 = scmp.ne.s32.totalorder %s102, %s103
      %p115 = scmp.eq.s32.totalorder %s25, 1
      %p116 = por %p114, %p115
      %p118 = scmp.ne.s32.totalorder %s103, %s117
      %p119 = scmp.eq.s32.totalorder %s25, 0
      %p120 = por %p118, %p119
      %s122 = sadd.s32 %s121, 1
      %p125 = scmp.eq.s32.totalorder %s19, 1
      %p126 = scmp.ne.s32.totalorder %s121, %s123
      %p127 = scmp.eq.s32.totalorder %s19, 0
      %p128 = por %p126, %p127
      %p129 = scmp.ne.s32.totalorder %s121, %s123
      %p130 = scmp.eq.s32.totalorder %s24, 1
      %p131 = por %p129, %p130
      %p132 = scmp.ne.s32.totalorder %s123, %s124
      %p133 = scmp.eq.s32.totalorder %s24, 0
      %p134 = por %p132, %p133
      %p135 = scmp.ne.s32.totalorder %s123, %s124
      %p136 = scmp.eq.s32.totalorder %s25, 1
      %p137 = por %p135, %p136
      %p139 = scmp.ne.s32.totalorder %s124, %s138
      %p140 = scmp.eq.s32.totalorder %s25, 0
      %p141 = por %p139, %p140
      %s143 = sadd.s32 %s142, 1
      %p146 = scmp.eq.s32.totalorder %s19, 1
      %p147 = scmp.ne.s32.totalorder %s142, %s144
      %p148 = scmp.eq.s32.totalorder %s19, 0
      %p149 = por %p147, %p148
      %p150 = scmp.ne.s32.totalorder %s142, %s144
      %p151 = scmp.eq.s32.totalorder %s24, 1
      %p152 = por %p150, %p151
      %p153 = scmp.ne.s32.totalorder %s144, %s145
      %p154 = scmp.eq.s32.totalorder %s24, 0
      %p155 = por %p153, %p154
      %p156 = scmp.ne.s32.totalorder %s144, %s145
      %p157 = scmp.eq.s32.totalorder %s25, 1
      %p158 = por %p156, %p157
      %p160 = scmp.ne.s32.totalorder %s145, %s159
      %p161 = scmp.eq.s32.totalorder %s25, 0
      %p162 = por %p160, %p161
      %s164 = sadd.s32 %s163, 1
      %p167 = scmp.eq.s32.totalorder %s19, 1
      %p168 = scmp.ne.s32.totalorder %s163, %s165
      %p169 = scmp.eq.s32.totalorder %s19, 0
      %p170 = por %p168, %p169
      %p171 = scmp.ne.s32.totalorder %s163, %s165
      %p172 = scmp.eq.s32.totalorder %s24, 1
      %p173 = por %p171, %p172
      %p174 = scmp.ne.s32.totalorder %s165, %s166
      %p175 = scmp.eq.s32.totalorder %s24, 0
      %p176 = por %p174, %p175
      %p177 = scmp.ne.s32.totalorder %s165, %s166
      %p178 = scmp.eq.s32.totalorder %s25, 1
      %p179 = por %p177, %p178
      %p181 = scmp.ne.s32.totalorder %s166, %s180
      %p182 = scmp.eq.s32.totalorder %s25, 0
      %p183 = por %p181, %p182
      %s185 = sadd.s32 %s184, 1
      %p188 = scmp.eq.s32.totalorder %s19, 1
      %p189 = scmp.ne.s32.totalorder %s184, %s186
      %p190 = scmp.eq.s32.totalorder %s19, 0
      %p191 = por %p189, %p190
      %p192 = scmp.ne.s32.totalorder %s184, %s186
      %p193 = scmp.eq.s32.totalorder %s24, 1
      %p194 = por %p192, %p193
      %p195 = scmp.ne.s32.totalorder %s186, %s187
      %p196 = scmp.eq.s32.totalorder %s24, 0
      %p197 = por %p195, %p196
      %p198 = scmp.ne.s32.totalorder %s186, %s187
      %p199 = scmp.eq.s32.totalorder %s25, 1
      %p200 = por %p198, %p199
      %p202 = scmp.ne.s32.totalorder %s187, %s201
      %p203 = scmp.eq.s32.totalorder %s25, 0
      %p204 = por %p202, %p203
      %s206 = sadd.s32 %s205, 1
      %p209 = scmp.eq.s32.totalorder %s19, 1
      %p210 = scmp.ne.s32.totalorder %s205, %s207
      %p211 = scmp.eq.s32.totalorder %s19, 0
      %p212 = por %p210, %p211
      %p213 = scmp.ne.s32.totalorder %s205, %s207
      %p214 = scmp.eq.s32.totalorder %s24, 1
      %p215 = por %p213, %p214
      %p216 = scmp.ne.s32.totalorder %s207, %s208
      %p217 = scmp.eq.s32.totalorder %s24, 0
      %p218 = por %p216, %p217
      %p219 = scmp.ne.s32.totalorder %s207, %s208
      %p220 = scmp.eq.s32.totalorder %s25, 1
      %p221 = por %p219, %p220
      %p223 = scmp.ne.s32.totalorder %s208, %s222
      %p224 = scmp.eq.s32.totalorder %s25, 0
      %p225 = por %p223, %p224
      %s226 = ssub.s32 %s19, %s26
      %p227 = scmp.eq.s32.totalorder %s226, 0
      %s229 = sadd.s32 %s228, 1
      %s230 = scalar_select %p227, %s228, %s229
      %p233 = pneg %p227
      %p234 = scmp.eq.s32.totalorder %s19, 1
      %p235 = por %p233, %p234
      %p236 = scmp.ne.s32.totalorder %s228, %s231
      %p237 = scmp.eq.s32.totalorder %s19, 0
      %p238 = por %p236, %p237
      %p239 = scmp.ne.s32.totalorder %s228, %s231
      %p240 = scmp.eq.s32.totalorder %s24, 1
      %p241 = por %p239, %p240
      %p242 = scmp.ne.s32.totalorder %s231, %s232
      %p243 = scmp.eq.s32.totalorder %s24, 0
      %p244 = por %p242, %p243
      %p245 = scmp.ne.s32.totalorder %s231, %s232
      %p246 = scmp.eq.s32.totalorder %s25, 1
      %p247 = por %p245, %p246
      %p249 = scmp.ne.s32.totalorder %s232, %s248
      %p250 = scmp.eq.s32.totalorder %s25, 0
      %p251 = por %p249, %p250
      %p252 = scmp.le.s32.totalorder 1, %s19
      %p253 = scmp.lt.s32.totalorder %s19, 3
      %p254 = pnand %p252, %p253
      %p255 = pneg %p254
      // Predicated region
      $region9: #{transform_jointer_forward.1} parent=5 // pred_check
        _
      $region10: #{transform_jointer_forward.1} parent=5 // pred_check_branch
        %257 = sbr.rel (%p254) target = $region12
      $region11: #{transform_jointer_forward.1} parent=5 // pred_region
        %s258 = ssub.s32 %s19, 1
        // Predicated region
        $region13: #{transform_jointer_forward.1} parent=11 // pred_check
          %p259 = pneg %p92
        $region14: #{transform_jointer_forward.1} parent=11 // pred_check_branch
          %261 = sbr.rel (%p259) target = $region16
        $region15: #{transform_jointer_forward.1} parent=11 // pred_region
          _
        $region16: #{transform_jointer_forward.1} parent=11 // pred_fallthru
          _
        // Predicated region
        $region17: #{transform_jointer_forward.1} parent=11 // pred_check
          %p262 = pneg %p113
        $region18: #{transform_jointer_forward.1} parent=11 // pred_check_branch
          %264 = sbr.rel (%p262) target = $region20
        $region19: #{transform_jointer_forward.1} parent=11 // pred_region
          _
        $region20: #{transform_jointer_forward.1} parent=11 // pred_fallthru
          _
        // Predicated region
        $region21: #{transform_jointer_forward.1} parent=11 // pred_check
          %p265 = pneg %p134
        $region22: #{transform_jointer_forward.1} parent=11 // pred_check_branch
          %267 = sbr.rel (%p265) target = $region24
        $region23: #{transform_jointer_forward.1} parent=11 // pred_region
          _
        $region24: #{transform_jointer_forward.1} parent=11 // pred_fallthru
          _
        // Predicated region
        $region25: #{transform_jointer_forward.1} parent=11 // pred_check
          %p268 = pneg %p155
        $region26: #{transform_jointer_forward.1} parent=11 // pred_check_branch
          %270 = sbr.rel (%p268) target = $region28
        $region27: #{transform_jointer_forward.1} parent=11 // pred_region
          _
        $region28: #{transform_jointer_forward.1} parent=11 // pred_fallthru
          _
        // Predicated region
        $region29: #{transform_jointer_forward.1} parent=11 // pred_check
          %p271 = pneg %p176
        $region30: #{transform_jointer_forward.1} parent=11 // pred_check_branch
          %273 = sbr.rel (%p271) target = $region32
        $region31: #{transform_jointer_forward.1} parent=11 // pred_region
          _
        $region32: #{transform_jointer_forward.1} parent=11 // pred_fallthru
          _
        // Predicated region
        $region33: #{transform_jointer_forward.1} parent=11 // pred_check
          %p274 = pneg %p197
        $region34: #{transform_jointer_forward.1} parent=11 // pred_check_branch
          %276 = sbr.rel (%p274) target = $region36
        $region35: #{transform_jointer_forward.1} parent=11 // pred_region
          _
        $region36: #{transform_jointer_forward.1} parent=11 // pred_fallthru
          _
        // Predicated region
        $region37: #{transform_jointer_forward.1} parent=11 // pred_check
          %p277 = pneg %p218
        $region38: #{transform_jointer_forward.1} parent=11 // pred_check_branch
          %279 = sbr.rel (%p277) target = $region40
        $region39: #{transform_jointer_forward.1} parent=11 // pred_region
          %s281 = ssub.s32 640, 640
          %282 = vsyncadd [#allocation3], %s281
          %s283 = sshll.u32 [#allocation2], 4
          %s284 = int_to_ptr.vmem [resolvable:$true] %s283
          %289 = dma.hbm_to_vmem [thread:$0]  %s8, 640, %s284, [#allocation3], 128, 128, 8
        $region40: #{transform_jointer_forward.1} parent=11 // pred_fallthru
          _
      $region12: #{transform_jointer_forward.1} parent=5 // pred_fallthru
        _
      %p290 = scmp.lt.s32.totalorder %s19, 2
      // Predicated region
      $region41: #{transform_jointer_forward.1} parent=5 // pred_check
        %p291 = pneg %p290
      $region42: #{transform_jointer_forward.1} parent=5 // pred_check_branch
        %293 = sbr.rel (%p291) target = $region44
      $region43: #{transform_jointer_forward.1} parent=5 // pred_region
        // Predicated region
        $region45: #{transform_jointer_forward.1} parent=43 // pred_check
          %p294 = pneg %p39
        $region46: #{transform_jointer_forward.1} parent=43 // pred_check_branch
          %296 = sbr.rel (%p294) target = $region48
        $region47: #{transform_jointer_forward.1} parent=43 // pred_region
          %p297 = scmp.lt.s32.totalorder %s19, 1
          %s298 = scalar_select %p297, %s19, 1
          %s299 = smul.addr %s298, 8
          %s300 = scalar_lea.vmem %s0, %s299
        $region48: #{transform_jointer_forward.1} parent=43 // pred_fallthru
          _
        // Predicated region
        $region49: #{transform_jointer_forward.1} parent=43 // pred_check
          %p301 = pneg %p65
        $region50: #{transform_jointer_forward.1} parent=43 // pred_check_branch
          %303 = sbr.rel (%p301) target = $region52
        $region51: #{transform_jointer_forward.1} parent=43 // pred_region
          %p304 = scmp.lt.s32.totalorder %s19, 1
          %s305 = scalar_select %p304, %s19, 1
          %s306 = scalar_lea.vmem %s1, %s305
        $region52: #{transform_jointer_forward.1} parent=43 // pred_fallthru
          _
      $region44: #{transform_jointer_forward.1} parent=5 // pred_fallthru
        _
      %p307 = scmp.le.s32.totalorder 1, %s19
      %p308 = scmp.lt.s32.totalorder %s19, 3
      %p309 = pnand %p307, %p308
      %p310 = pneg %p309
      // Predicated region
      $region53: #{transform_jointer_forward.1} parent=5 // pred_check
        _
      $region54: #{transform_jointer_forward.1} parent=5 // pred_check_branch
        %312 = sbr.rel (%p309) target = $region56
      $region55: #{transform_jointer_forward.1} parent=5 // pred_region
        %s313 = ssub.s32 %s19, 1
        // Predicated region
        $region57: #{transform_jointer_forward.1} parent=55 // pred_check
          %p314 = pneg %p218
        $region58: #{transform_jointer_forward.1} parent=55 // pred_check_branch
          %316 = sbr.rel (%p314) target = $region60
        $region59: #{transform_jointer_forward.1} parent=55 // pred_region
          %317 = dma.done [#allocation3], 640
        $region60: #{transform_jointer_forward.1} parent=55 // pred_fallthru
          _
        %p318 = scmp.lt.s32.totalorder %s24, 1
        %s319 = scalar_select %p318, %s24, 1
        %s320 = smul.addr %s319, 8
        %s321 = scalar_lea.vmem %s0, %s320
        %p322 = pneg %p45
        %p323 = pneg %p42
        %p324 = scmp.lt.s32.totalorder %s24, 1
        %s325 = scalar_select %p324, %s24, 1
        %s326 = scalar_lea.vmem %s1, %s325
        %p327 = pneg %p71
        %p328 = pneg %p68
        %p329 = pneg %p92
        %p330 = pneg %p89
        %p331 = pneg %p113
        %p332 = pneg %p110
        %p333 = pneg %p134
        %p334 = pneg %p131
        %p335 = pneg %p155
        %p336 = pneg %p152
        %p337 = pneg %p176
        %p338 = pneg %p173
        %p339 = pneg %p197
        %p340 = pneg %p194
        %p341 = pneg %p218
        %p342 = pneg %p215
        %p343 = pneg %p244
        %p344 = pneg %p241
        %s345 = sand.u32 %s231, 1
        %s346 = scalar_lea.sflag [#allocation4], %s345
        %s347 = sand.u32 %s231, 1
        %s348 = smul.addr %s347, 8
        %s349 = scalar_lea.vmem [#allocation5], %s348
        %p350 = scmp.lt.s32.totalorder %s24, 1
        %s351 = scalar_select %p350, %s24, 1
        %s352 = smul.addr %s351, 8
        %s353 = scalar_lea.vmem %s0, %s352
        %p354 = scmp.lt.s32.totalorder %s24, 1
        %s355 = scalar_select %p354, %s24, 1
        %s356 = scalar_lea.vmem %s1, %s355
        %v358 = vld [vmem:[%s353] sm:$0xff]
        %v359 = vpack.c.bf16 %v358, %v358
        %v360 = vld [vmem:[%s356] sm:$0x1]
        %v361 = vld [vmem:[%s7] sm:$0xf]
        %v362 = vld [vmem:[%s7 + $0x4] sm:$0xf]
        %v363 = vld [vmem:[%s7 + $0x8] sm:$0xf]
        %v364 = vld [vmem:[%s7 + $0xc] sm:$0xf]
        %v365 = vld [vmem:[#allocation2 + $0x1b] sm:$0x1]
        %v366 = vlaneseq
        %v367 = vshrl.u32 %v366, 7
        %v368 = vsub.s32 0, %v367
        %v369 = vrot.slane %v365, %v368
        %v374 = vunpack.c.l.b16 %v361
        %v375 = vunpack.c.l.b16 %v362
        %v376 = vunpack.c.l.b16 %v363
        %v377 = vunpack.c.l.b16 %v364
        %v378 = vpack.c.b16 %v375, %v374
        %v379 = vpack.c.b16 %v377, %v376
        %vm382 = vcmask 261120
        %v384 = vsel %vm382, %v359, 0
        %386 = vmatprep.subr.bf16.mxu0 0
        %387 = vmatpush1.bf16.msra.mxu0 0
        %388 = vmatprep.subr.bf16.mxu0 0
        %389 = vmatpush1.bf16.msra.mxu0 0
        %390 = vmatprep.subr.bf16.mxu0 0
        %391 = vmatpush1.bf16.msra.mxu0 0
        %392 = vmatprep.subr.bf16.mxu0 0
        %393 = vmatpush1.bf16.msra.mxu0 0
        %394 = vmatprep.subr.bf16.mxu0 0
        %395 = vmatpush1.bf16.msra.mxu0 0
        %396 = vmatprep.subr.bf16.mxu0 0
        %397 = vmatpush1.bf16.msra.mxu0 0
        %398 = vmatprep.subr.bf16.mxu0 0
        %399 = vmatpush1.bf16.msra.mxu0 %v379
        %400 = vmatprep.subr.bf16.mxu0 0
        %401 = vmatpush1.bf16.msra.mxu0 %v378
        %402 = vmatprep.subr.bf16.mxu0 0
        %403 = vmatpush2.bf16.msra.mxu0 0
        %404 = vmatprep.subr.bf16.mxu0 0
        %405 = vmatpush2.bf16.msra.mxu0 0
        %406 = vmatprep.subr.bf16.mxu0 0
        %407 = vmatpush2.bf16.msra.mxu0 0
        %408 = vmatprep.subr.bf16.mxu0 0
        %409 = vmatpush2.bf16.msra.mxu0 0
        %410 = vmatprep.subr.bf16.mxu0 0
        %411 = vmatpush2.bf16.msra.mxu0 0
        %412 = vmatprep.subr.bf16.mxu0 0
        %413 = vmatpush2.bf16.msra.mxu0 0
        %414 = vmatprep.subr.bf16.mxu0 0
        %415 = vmatpush2.bf16.msra.mxu0 0
        %416 = vmatprep.subr.bf16.mxu0 0
        %417 = vmatpush2.bf16.msra.mxu0 0
        %418 = vmatprep.mubr.bf16.mxu0 0
        %419 = vmatmul.mubr.bf16.gmra.mxu0 %v384
        %v420 = vpop.f32.mrf.mxu0
        %v421 = vadd.f32 %v369, %v420
        %v422 = vpop.f32.mrf.mxu0
        %v423 = vpop.f32.mrf.mxu0
        %v424 = vpop.f32.mrf.mxu0
        %425 = vdwg.mxu0
        %v426 = vsel %vm382, %v421, 0.0
        %427 = vadd.xlane.f32.xlu0 %v426
        %v428 = vpop.xlane.xlu0 %427
        %v429 = vrcp.pop 32.0
        %v430 = vmul.f32 %v428, %v429
        %v431 = vsub.f32 %v421, %v430
        %v432 = vmul.f32 %v431, %v431
        %v433 = vsel %vm382, %v432, 0.0
        %434 = vadd.xlane.f32.xlu0 %v433
        %v435 = vpop.xlane.xlu0 %434
        %v436 = vmul.f32 %v435, %v429
        %v437 = vadd.f32 %v436, 1e-06
        %v438 = vrsqrt.pop %v437
        %v439 = vmul.f32 %v431, %v438
        %v440 = vld [vmem:[#allocation2 + $0x1d] sm:$0x1]
        %v441 = vlaneseq
        %v442 = vshrl.u32 %v441, 7
        %v443 = vsub.s32 0, %v442
        %v444 = vrot.slane %v440, %v443
        %v445 = vmul.f32 %v439, %v444
        %v446 = vld [vmem:[#allocation2 + $0x1e] sm:$0x1]
        %v447 = vlaneseq
        %v448 = vshrl.u32 %v447, 7
        %v449 = vsub.s32 0, %v448
        %v450 = vrot.slane %v446, %v449
        %v451 = vadd.f32 %v445, %v450
        %v452 = vld [vmem:[%s2] sm:$0xf]
        %v453 = vld [vmem:[%s2 + $0x4] sm:$0xf]
        %v454 = vld [vmem:[%s2 + $0x8] sm:$0xf]
        %v455 = vld [vmem:[%s2 + $0xc] sm:$0xf]
        %v456 = vld [vmem:[%s2 + $0x10] sm:$0xf]
        %v457 = vld [vmem:[%s2 + $0x14] sm:$0xf]
        %v458 = vld [vmem:[%s2 + $0x18] sm:$0xf]
        %v459 = vld [vmem:[%s2 + $0x1c] sm:$0xf]
        %v460 = vld [vmem:[%s2 + $0x20] sm:$0xf]
        %v461 = vld [vmem:[%s2 + $0x24] sm:$0xf]
        %v462 = vld [vmem:[%s2 + $0x28] sm:$0xf]
        %v463 = vld [vmem:[%s2 + $0x2c] sm:$0xf]
        %v464 = vld [vmem:[%s3] sm:$0x1]
        %v465 = vld [vmem:[%s3 + $0x1] sm:$0x1]
        %v466 = vld [vmem:[%s3 + $0x2] sm:$0x1]
        %v467 = vld [vmem:[%s3 + $0x3] sm:$0x1]
        %v468 = vld [vmem:[%s3 + $0x4] sm:$0x1]
        %v469 = vld [vmem:[%s3 + $0x5] sm:$0x1]
        %v470 = vld [vmem:[%s3 + $0x6] sm:$0x1]
        %v471 = vld [vmem:[%s3 + $0x7] sm:$0x1]
        %v472 = vld [vmem:[%s3 + $0x8] sm:$0x1]
        %v473 = vld [vmem:[%s3 + $0x9] sm:$0x1]
        %v474 = vld [vmem:[%s3 + $0xa] sm:$0x1]
        %v475 = vld [vmem:[%s3 + $0xb] sm:$0x1]
        %v476 = vpack.c.bf16 %v451, %v451
        %v489 = vlaneseq
        %v490 = vshrl.u32 %v489, 7
        %v491 = vsub.s32 0, %v490
        %v492 = vrot.slane %v464, %v491
        %v493 = vlaneseq
        %v494 = vshrl.u32 %v493, 7
        %v495 = vsub.s32 0, %v494
        %v496 = vrot.slane %v465, %v495
        %v497 = vlaneseq
        %v498 = vshrl.u32 %v497, 7
        %v499 = vsub.s32 0, %v498
        %v500 = vrot.slane %v466, %v499
        %v501 = vlaneseq
        %v502 = vshrl.u32 %v501, 7
        %v503 = vsub.s32 0, %v502
        %v504 = vrot.slane %v467, %v503
        %v505 = vlaneseq
        %v506 = vshrl.u32 %v505, 7
        %v507 = vsub.s32 0, %v506
        %v508 = vrot.slane %v468, %v507
        %v509 = vlaneseq
        %v510 = vshrl.u32 %v509, 7
        %v511 = vsub.s32 0, %v510
        %v512 = vrot.slane %v469, %v511
        %v513 = vlaneseq
        %v514 = vshrl.u32 %v513, 7
        %v515 = vsub.s32 0, %v514
        %v516 = vrot.slane %v470, %v515
        %v517 = vlaneseq
        %v518 = vshrl.u32 %v517, 7
        %v519 = vsub.s32 0, %v518
        %v520 = vrot.slane %v471, %v519
        %v521 = vlaneseq
        %v522 = vshrl.u32 %v521, 7
        %v523 = vsub.s32 0, %v522
        %v524 = vrot.slane %v472, %v523
        %v525 = vlaneseq
        %v526 = vshrl.u32 %v525, 7
        %v527 = vsub.s32 0, %v526
        %v528 = vrot.slane %v473, %v527
        %v529 = vlaneseq
        %v530 = vshrl.u32 %v529, 7
        %v531 = vsub.s32 0, %v530
        %v532 = vrot.slane %v474, %v531
        %v533 = vlaneseq
        %v534 = vshrl.u32 %v533, 7
        %v535 = vsub.s32 0, %v534
        %v536 = vrot.slane %v475, %v535
        %v550 = vsel %vm382, %v476, 0
        %v553 = vsel %vm382, %v452, 0
        %555 = vmatprep.subr.bf16.mxu0 0
        %556 = vmatpush1.bf16.xpose.msra.mxu0 0
        %557 = vmatprep.subr.bf16.mxu0 0
        %558 = vmatpush1.bf16.xpose.msra.mxu0 0
        %559 = vmatprep.subr.bf16.mxu0 0
        %560 = vmatpush1.bf16.xpose.msra.mxu0 0
        %561 = vmatprep.subr.bf16.mxu0 0
        %562 = vmatpush1.bf16.xpose.msra.mxu0 0
        %563 = vmatprep.subr.bf16.mxu0 0
        %564 = vmatpush1.bf16.xpose.msra.mxu0 0
        %565 = vmatprep.subr.bf16.mxu0 0
        %566 = vmatpush1.bf16.xpose.msra.mxu0 0
        %567 = vmatprep.subr.bf16.mxu0 0
        %568 = vmatpush1.bf16.xpose.msra.mxu0 0
        %569 = vmatprep.subr.bf16.mxu0 0
        %570 = vmatpush1.bf16.xpose.msra.mxu0 %v553
        %571 = vmatprep.subr.bf16.mxu0 0
        %572 = vmatpush2.bf16.xpose.msra.mxu0 0
        %573 = vmatprep.subr.bf16.mxu0 0
        %574 = vmatpush2.bf16.xpose.msra.mxu0 0
        %575 = vmatprep.subr.bf16.mxu0 0
        %576 = vmatpush2.bf16.xpose.msra.mxu0 0
        %577 = vmatprep.subr.bf16.mxu0 0
        %578 = vmatpush2.bf16.xpose.msra.mxu0 0
        %579 = vmatprep.subr.bf16.mxu0 0
        %580 = vmatpush2.bf16.xpose.msra.mxu0 0
        %581 = vmatprep.subr.bf16.mxu0 0
        %582 = vmatpush2.bf16.xpose.msra.mxu0 0
        %583 = vmatprep.subr.bf16.mxu0 0
        %584 = vmatpush2.bf16.xpose.msra.mxu0 0
        %585 = vmatprep.subr.bf16.mxu0 0
        %586 = vmatpush2.bf16.xpose.msra.mxu0 0
        %587 = vmatprep.mubr.bf16.mxu0 0
        %588 = vmatmul.mubr.bf16.gmra.mxu0 %v550
        %v589 = vpop.f32.mrf.mxu0
        %v590 = vadd.f32 %v492, %v589
        %v591 = vpop.f32.mrf.mxu0
        %v592 = vpop.f32.mrf.mxu0
        %v593 = vpop.f32.mrf.mxu0
        %594 = vdwg.mxu0
        %v596 = vsel %vm382, %v453, 0
        %598 = vmatprep.subr.bf16.mxu0 0
        %599 = vmatpush1.bf16.xpose.msra.mxu0 0
        %600 = vmatprep.subr.bf16.mxu0 0
        %601 = vmatpush1.bf16.xpose.msra.mxu0 0
        %602 = vmatprep.subr.bf16.mxu0 0
        %603 = vmatpush1.bf16.xpose.msra.mxu0 0
        %604 = vmatprep.subr.bf16.mxu0 0
        %605 = vmatpush1.bf16.xpose.msra.mxu0 0
        %606 = vmatprep.subr.bf16.mxu0 0
        %607 = vmatpush1.bf16.xpose.msra.mxu0 0
        %608 = vmatprep.subr.bf16.mxu0 0
        %609 = vmatpush1.bf16.xpose.msra.mxu0 0
        %610 = vmatprep.subr.bf16.mxu0 0
        %611 = vmatpush1.bf16.xpose.msra.mxu0 0
        %612 = vmatprep.subr.bf16.mxu0 0
        %613 = vmatpush1.bf16.xpose.msra.mxu0 %v596
        %614 = vmatprep.subr.bf16.mxu0 0
        %615 = vmatpush2.bf16.xpose.msra.mxu0 0
        %616 = vmatprep.subr.bf16.mxu0 0
        %617 = vmatpush2.bf16.xpose.msra.mxu0 0
        %618 = vmatprep.subr.bf16.mxu0 0
        %619 = vmatpush2.bf16.xpose.msra.mxu0 0
        %620 = vmatprep.subr.bf16.mxu0 0
        %621 = vmatpush2.bf16.xpose.msra.mxu0 0
        %622 = vmatprep.subr.bf16.mxu0 0
        %623 = vmatpush2.bf16.xpose.msra.mxu0 0
        %624 = vmatprep.subr.bf16.mxu0 0
        %625 = vmatpush2.bf16.xpose.msra.mxu0 0
        %626 = vmatprep.subr.bf16.mxu0 0
        %627 = vmatpush2.bf16.xpose.msra.mxu0 0
        %628 = vmatprep.subr.bf16.mxu0 0
        %629 = vmatpush2.bf16.xpose.msra.mxu0 0
        %630 = vmatprep.mubr.bf16.mxu0 0
        %631 = vmatmul.mubr.bf16.gmra.mxu0 %v550
        %v632 = vpop.f32.mrf.mxu0
        %v633 = vadd.f32 %v496, %v632
        %v634 = vpop.f32.mrf.mxu0
        %v635 = vpop.f32.mrf.mxu0
        %v636 = vpop.f32.mrf.mxu0
        %637 = vdwg.mxu0
        %v639 = vsel %vm382, %v454, 0
        %641 = vmatprep.subr.bf16.mxu0 0
        %642 = vmatpush1.bf16.xpose.msra.mxu0 0
        %643 = vmatprep.subr.bf16.mxu0 0
        %644 = vmatpush1.bf16.xpose.msra.mxu0 0
        %645 = vmatprep.subr.bf16.mxu0 0
        %646 = vmatpush1.bf16.xpose.msra.mxu0 0
        %647 = vmatprep.subr.bf16.mxu0 0
        %648 = vmatpush1.bf16.xpose.msra.mxu0 0
        %649 = vmatprep.subr.bf16.mxu0 0
        %650 = vmatpush1.bf16.xpose.msra.mxu0 0
        %651 = vmatprep.subr.bf16.mxu0 0
        %652 = vmatpush1.bf16.xpose.msra.mxu0 0
        %653 = vmatprep.subr.bf16.mxu0 0
        %654 = vmatpush1.bf16.xpose.msra.mxu0 0
        %655 = vmatprep.subr.bf16.mxu0 0
        %656 = vmatpush1.bf16.xpose.msra.mxu0 %v639
        %657 = vmatprep.subr.bf16.mxu0 0
        %658 = vmatpush2.bf16.xpose.msra.mxu0 0
        %659 = vmatprep.subr.bf16.mxu0 0
        %660 = vmatpush2.bf16.xpose.msra.mxu0 0
        %661 = vmatprep.subr.bf16.mxu0 0
        %662 = vmatpush2.bf16.xpose.msra.mxu0 0
        %663 = vmatprep.subr.bf16.mxu0 0
        %664 = vmatpush2.bf16.xpose.msra.mxu0 0
        %665 = vmatprep.subr.bf16.mxu0 0
        %666 = vmatpush2.bf16.xpose.msra.mxu0 0
        %667 = vmatprep.subr.bf16.mxu0 0
        %668 = vmatpush2.bf16.xpose.msra.mxu0 0
        %669 = vmatprep.subr.bf16.mxu0 0
        %670 = vmatpush2.bf16.xpose.msra.mxu0 0
        %671 = vmatprep.subr.bf16.mxu0 0
        %672 = vmatpush2.bf16.xpose.msra.mxu0 0
        %673 = vmatprep.mubr.bf16.mxu0 0
        %674 = vmatmul.mubr.bf16.gmra.mxu0 %v550
        %v675 = vpop.f32.mrf.mxu0
        %v676 = vadd.f32 %v500, %v675
        %v677 = vpop.f32.mrf.mxu0
        %v678 = vpop.f32.mrf.mxu0
        %v679 = vpop.f32.mrf.mxu0
        %680 = vdwg.mxu0
        %v682 = vsel %vm382, %v455, 0
        %684 = vmatprep.subr.bf16.mxu0 0
        %685 = vmatpush1.bf16.xpose.msra.mxu0 0
        %686 = vmatprep.subr.bf16.mxu0 0
        %687 = vmatpush1.bf16.xpose.msra.mxu0 0
        %688 = vmatprep.subr.bf16.mxu0 0
        %689 = vmatpush1.bf16.xpose.msra.mxu0 0
        %690 = vmatprep.subr.bf16.mxu0 0
        %691 = vmatpush1.bf16.xpose.msra.mxu0 0
        %692 = vmatprep.subr.bf16.mxu0 0
        %693 = vmatpush1.bf16.xpose.msra.mxu0 0
        %694 = vmatprep.subr.bf16.mxu0 0
        %695 = vmatpush1.bf16.xpose.msra.mxu0 0
        %696 = vmatprep.subr.bf16.mxu0 0
        %697 = vmatpush1.bf16.xpose.msra.mxu0 0
        %698 = vmatprep.subr.bf16.mxu0 0
        %699 = vmatpush1.bf16.xpose.msra.mxu0 %v682
        %700 = vmatprep.subr.bf16.mxu0 0
        %701 = vmatpush2.bf16.xpose.msra.mxu0 0
        %702 = vmatprep.subr.bf16.mxu0 0
        %703 = vmatpush2.bf16.xpose.msra.mxu0 0
        %704 = vmatprep.subr.bf16.mxu0 0
        %705 = vmatpush2.bf16.xpose.msra.mxu0 0
        %706 = vmatprep.subr.bf16.mxu0 0
        %707 = vmatpush2.bf16.xpose.msra.mxu0 0
        %708 = vmatprep.subr.bf16.mxu0 0
        %709 = vmatpush2.bf16.xpose.msra.mxu0 0
        %710 = vmatprep.subr.bf16.mxu0 0
        %711 = vmatpush2.bf16.xpose.msra.mxu0 0
        %712 = vmatprep.subr.bf16.mxu0 0
        %713 = vmatpush2.bf16.xpose.msra.mxu0 0
        %714 = vmatprep.subr.bf16.mxu0 0
        %715 = vmatpush2.bf16.xpose.msra.mxu0 0
        %716 = vmatprep.mubr.bf16.mxu0 0
        %717 = vmatmul.mubr.bf16.gmra.mxu0 %v550
        %v718 = vpop.f32.mrf.mxu0
        %v719 = vadd.f32 %v504, %v718
        %v720 = vpop.f32.mrf.mxu0
        %v721 = vpop.f32.mrf.mxu0
        %v722 = vpop.f32.mrf.mxu0
        %723 = vdwg.mxu0
        %v725 = vsel %vm382, %v456, 0
        %727 = vmatprep.subr.bf16.mxu0 0
        %728 = vmatpush1.bf16.xpose.msra.mxu0 0
        %729 = vmatprep.subr.bf16.mxu0 0
        %730 = vmatpush1.bf16.xpose.msra.mxu0 0
        %731 = vmatprep.subr.bf16.mxu0 0
        %732 = vmatpush1.bf16.xpose.msra.mxu0 0
        %733 = vmatprep.subr.bf16.mxu0 0
        %734 = vmatpush1.bf16.xpose.msra.mxu0 0
        %735 = vmatprep.subr.bf16.mxu0 0
        %736 = vmatpush1.bf16.xpose.msra.mxu0 0
        %737 = vmatprep.subr.bf16.mxu0 0
        %738 = vmatpush1.bf16.xpose.msra.mxu0 0
        %739 = vmatprep.subr.bf16.mxu0 0
        %740 = vmatpush1.bf16.xpose.msra.mxu0 0
        %741 = vmatprep.subr.bf16.mxu0 0
        %742 = vmatpush1.bf16.xpose.msra.mxu0 %v725
        %743 = vmatprep.subr.bf16.mxu0 0
        %744 = vmatpush2.bf16.xpose.msra.mxu0 0
        %745 = vmatprep.subr.bf16.mxu0 0
        %746 = vmatpush2.bf16.xpose.msra.mxu0 0
        %747 = vmatprep.subr.bf16.mxu0 0
        %748 = vmatpush2.bf16.xpose.msra.mxu0 0
        %749 = vmatprep.subr.bf16.mxu0 0
        %750 = vmatpush2.bf16.xpose.msra.mxu0 0
        %751 = vmatprep.subr.bf16.mxu0 0
        %752 = vmatpush2.bf16.xpose.msra.mxu0 0
        %753 = vmatprep.subr.bf16.mxu0 0
        %754 = vmatpush2.bf16.xpose.msra.mxu0 0
        %755 = vmatprep.subr.bf16.mxu0 0
        %756 = vmatpush2.bf16.xpose.msra.mxu0 0
        %757 = vmatprep.subr.bf16.mxu0 0
        %758 = vmatpush2.bf16.xpose.msra.mxu0 0
        %759 = vmatprep.mubr.bf16.mxu0 0
        %760 = vmatmul.mubr.bf16.gmra.mxu0 %v550
        %v761 = vpop.f32.mrf.mxu0
        %v762 = vadd.f32 %v508, %v761
        %v763 = vpop.f32.mrf.mxu0
        %v764 = vpop.f32.mrf.mxu0
        %v765 = vpop.f32.mrf.mxu0
        %766 = vdwg.mxu0
        %v768 = vsel %vm382, %v457, 0
        %770 = vmatprep.subr.bf16.mxu0 0
        %771 = vmatpush1.bf16.xpose.msra.mxu0 0
        %772 = vmatprep.subr.bf16.mxu0 0
        %773 = vmatpush1.bf16.xpose.msra.mxu0 0
        %774 = vmatprep.subr.bf16.mxu0 0
        %775 = vmatpush1.bf16.xpose.msra.mxu0 0
        %776 = vmatprep.subr.bf16.mxu0 0
        %777 = vmatpush1.bf16.xpose.msra.mxu0 0
        %778 = vmatprep.subr.bf16.mxu0 0
        %779 = vmatpush1.bf16.xpose.msra.mxu0 0
        %780 = vmatprep.subr.bf16.mxu0 0
        %781 = vmatpush1.bf16.xpose.msra.mxu0 0
        %782 = vmatprep.subr.bf16.mxu0 0
        %783 = vmatpush1.bf16.xpose.msra.mxu0 0
        %784 = vmatprep.subr.bf16.mxu0 0
        %785 = vmatpush1.bf16.xpose.msra.mxu0 %v768
        %786 = vmatprep.subr.bf16.mxu0 0
        %787 = vmatpush2.bf16.xpose.msra.mxu0 0
        %788 = vmatprep.subr.bf16.mxu0 0
        %789 = vmatpush2.bf16.xpose.msra.mxu0 0
        %790 = vmatprep.subr.bf16.mxu0 0
        %791 = vmatpush2.bf16.xpose.msra.mxu0 0
        %792 = vmatprep.subr.bf16.mxu0 0
        %793 = vmatpush2.bf16.xpose.msra.mxu0 0
        %794 = vmatprep.subr.bf16.mxu0 0
        %795 = vmatpush2.bf16.xpose.msra.mxu0 0
        %796 = vmatprep.subr.bf16.mxu0 0
        %797 = vmatpush2.bf16.xpose.msra.mxu0 0
        %798 = vmatprep.subr.bf16.mxu0 0
        %799 = vmatpush2.bf16.xpose.msra.mxu0 0
        %800 = vmatprep.subr.bf16.mxu0 0
        %801 = vmatpush2.bf16.xpose.msra.mxu0 0
        %802 = vmatprep.mubr.bf16.mxu0 0
        %803 = vmatmul.mubr.bf16.gmra.mxu0 %v550
        %v804 = vpop.f32.mrf.mxu0
        %v805 = vadd.f32 %v512, %v804
        %v806 = vpop.f32.mrf.mxu0
        %v807 = vpop.f32.mrf.mxu0
        %v808 = vpop.f32.mrf.mxu0
        %809 = vdwg.mxu0
        %v811 = vsel %vm382, %v458, 0
        %813 = vmatprep.subr.bf16.mxu0 0
        %814 = vmatpush1.bf16.xpose.msra.mxu0 0
        %815 = vmatprep.subr.bf16.mxu0 0
        %816 = vmatpush1.bf16.xpose.msra.mxu0 0
        %817 = vmatprep.subr.bf16.mxu0 0
        %818 = vmatpush1.bf16.xpose.msra.mxu0 0
        %819 = vmatprep.subr.bf16.mxu0 0
        %820 = vmatpush1.bf16.xpose.msra.mxu0 0
        %821 = vmatprep.subr.bf16.mxu0 0
        %822 = vmatpush1.bf16.xpose.msra.mxu0 0
        %823 = vmatprep.subr.bf16.mxu0 0
        %824 = vmatpush1.bf16.xpose.msra.mxu0 0
        %825 = vmatprep.subr.bf16.mxu0 0
        %826 = vmatpush1.bf16.xpose.msra.mxu0 0
        %827 = vmatprep.subr.bf16.mxu0 0
        %828 = vmatpush1.bf16.xpose.msra.mxu0 %v811
        %829 = vmatprep.subr.bf16.mxu0 0
        %830 = vmatpush2.bf16.xpose.msra.mxu0 0
        %831 = vmatprep.subr.bf16.mxu0 0
        %832 = vmatpush2.bf16.xpose.msra.mxu0 0
        %833 = vmatprep.subr.bf16.mxu0 0
        %834 = vmatpush2.bf16.xpose.msra.mxu0 0
        %835 = vmatprep.subr.bf16.mxu0 0
        %836 = vmatpush2.bf16.xpose.msra.mxu0 0
        %837 = vmatprep.subr.bf16.mxu0 0
        %838 = vmatpush2.bf16.xpose.msra.mxu0 0
        %839 = vmatprep.subr.bf16.mxu0 0
        %840 = vmatpush2.bf16.xpose.msra.mxu0 0
        %841 = vmatprep.subr.bf16.mxu0 0
        %842 = vmatpush2.bf16.xpose.msra.mxu0 0
        %843 = vmatprep.subr.bf16.mxu0 0
        %844 = vmatpush2.bf16.xpose.msra.mxu0 0
        %845 = vmatprep.mubr.bf16.mxu0 0
        %846 = vmatmul.mubr.bf16.gmra.mxu0 %v550
        %v847 = vpop.f32.mrf.mxu0
        %v848 = vadd.f32 %v516, %v847
        %v849 = vpop.f32.mrf.mxu0
        %v850 = vpop.f32.mrf.mxu0
        %v851 = vpop.f32.mrf.mxu0
        %852 = vdwg.mxu0
        %v854 = vsel %vm382, %v459, 0
        %856 = vmatprep.subr.bf16.mxu0 0
        %857 = vmatpush1.bf16.xpose.msra.mxu0 0
        %858 = vmatprep.subr.bf16.mxu0 0
        %859 = vmatpush1.bf16.xpose.msra.mxu0 0
        %860 = vmatprep.subr.bf16.mxu0 0
        %861 = vmatpush1.bf16.xpose.msra.mxu0 0
        %862 = vmatprep.subr.bf16.mxu0 0
        %863 = vmatpush1.bf16.xpose.msra.mxu0 0
        %864 = vmatprep.subr.bf16.mxu0 0
        %865 = vmatpush1.bf16.xpose.msra.mxu0 0
        %866 = vmatprep.subr.bf16.mxu0 0
        %867 = vmatpush1.bf16.xpose.msra.mxu0 0
        %868 = vmatprep.subr.bf16.mxu0 0
        %869 = vmatpush1.bf16.xpose.msra.mxu0 0
        %870 = vmatprep.subr.bf16.mxu0 0
        %871 = vmatpush1.bf16.xpose.msra.mxu0 %v854
        %872 = vmatprep.subr.bf16.mxu0 0
        %873 = vmatpush2.bf16.xpose.msra.mxu0 0
        %874 = vmatprep.subr.bf16.mxu0 0
        %875 = vmatpush2.bf16.xpose.msra.mxu0 0
        %876 = vmatprep.subr.bf16.mxu0 0
        %877 = vmatpush2.bf16.xpose.msra.mxu0 0
        %878 = vmatprep.subr.bf16.mxu0 0
        %879 = vmatpush2.bf16.xpose.msra.mxu0 0
        %880 = vmatprep.subr.bf16.mxu0 0
        %881 = vmatpush2.bf16.xpose.msra.mxu0 0
        %882 = vmatprep.subr.bf16.mxu0 0
        %883 = vmatpush2.bf16.xpose.msra.mxu0 0
        %884 = vmatprep.subr.bf16.mxu0 0
        %885 = vmatpush2.bf16.xpose.msra.mxu0 0
        %886 = vmatprep.subr.bf16.mxu0 0
        %887 = vmatpush2.bf16.xpose.msra.mxu0 0
        %888 = vmatprep.mubr.bf16.mxu0 0
        %889 = vmatmul.mubr.bf16.gmra.mxu0 %v550
        %v890 = vpop.f32.mrf.mxu0
        %v891 = vadd.f32 %v520, %v890
        %v892 = vpop.f32.mrf.mxu0
        %v893 = vpop.f32.mrf.mxu0
        %v894 = vpop.f32.mrf.mxu0
        %895 = vdwg.mxu0
        %v897 = vsel %vm382, %v460, 0
        %899 = vmatprep.subr.bf16.mxu0 0
        %900 = vmatpush1.bf16.xpose.msra.mxu0 0
        %901 = vmatprep.subr.bf16.mxu0 0
        %902 = vmatpush1.bf16.xpose.msra.mxu0 0
        %903 = vmatprep.subr.bf16.mxu0 0
        %904 = vmatpush1.bf16.xpose.msra.mxu0 0
        %905 = vmatprep.subr.bf16.mxu0 0
        %906 = vmatpush1.bf16.xpose.msra.mxu0 0
        %907 = vmatprep.subr.bf16.mxu0 0
        %908 = vmatpush1.bf16.xpose.msra.mxu0 0
        %909 = vmatprep.subr.bf16.mxu0 0
        %910 = vmatpush1.bf16.xpose.msra.mxu0 0
        %911 = vmatprep.subr.bf16.mxu0 0
        %912 = vmatpush1.bf16.xpose.msra.mxu0 0
        %913 = vmatprep.subr.bf16.mxu0 0
        %914 = vmatpush1.bf16.xpose.msra.mxu0 %v897
        %915 = vmatprep.subr.bf16.mxu0 0
        %916 = vmatpush2.bf16.xpose.msra.mxu0 0
        %917 = vmatprep.subr.bf16.mxu0 0
        %918 = vmatpush2.bf16.xpose.msra.mxu0 0
        %919 = vmatprep.subr.bf16.mxu0 0
        %920 = vmatpush2.bf16.xpose.msra.mxu0 0
        %921 = vmatprep.subr.bf16.mxu0 0
        %922 = vmatpush2.bf16.xpose.msra.mxu0 0
        %923 = vmatprep.subr.bf16.mxu0 0
        %924 = vmatpush2.bf16.xpose.msra.mxu0 0
        %925 = vmatprep.subr.bf16.mxu0 0
        %926 = vmatpush2.bf16.xpose.msra.mxu0 0
        %927 = vmatprep.subr.bf16.mxu0 0
        %928 = vmatpush2.bf16.xpose.msra.mxu0 0
        %929 = vmatprep.subr.bf16.mxu0 0
        %930 = vmatpush2.bf16.xpose.msra.mxu0 0
        %931 = vmatprep.mubr.bf16.mxu0 0
        %932 = vmatmul.mubr.bf16.gmra.mxu0 %v550
        %v933 = vpop.f32.mrf.mxu0
        %v934 = vadd.f32 %v524, %v933
        %v935 = vpop.f32.mrf.mxu0
        %v936 = vpop.f32.mrf.mxu0
        %v937 = vpop.f32.mrf.mxu0
        %938 = vdwg.mxu0
        %v940 = vsel %vm382, %v461, 0
        %942 = vmatprep.subr.bf16.mxu0 0
        %943 = vmatpush1.bf16.xpose.msra.mxu0 0
        %944 = vmatprep.subr.bf16.mxu0 0
        %945 = vmatpush1.bf16.xpose.msra.mxu0 0
        %946 = vmatprep.subr.bf16.mxu0 0
        %947 = vmatpush1.bf16.xpose.msra.mxu0 0
        %948 = vmatprep.subr.bf16.mxu0 0
        %949 = vmatpush1.bf16.xpose.msra.mxu0 0
        %950 = vmatprep.subr.bf16.mxu0 0
        %951 = vmatpush1.bf16.xpose.msra.mxu0 0
        %952 = vmatprep.subr.bf16.mxu0 0
        %953 = vmatpush1.bf16.xpose.msra.mxu0 0
        %954 = vmatprep.subr.bf16.mxu0 0
        %955 = vmatpush1.bf16.xpose.msra.mxu0 0
        %956 = vmatprep.subr.bf16.mxu0 0
        %957 = vmatpush1.bf16.xpose.msra.mxu0 %v940
        %958 = vmatprep.subr.bf16.mxu0 0
        %959 = vmatpush2.bf16.xpose.msra.mxu0 0
        %960 = vmatprep.subr.bf16.mxu0 0
        %961 = vmatpush2.bf16.xpose.msra.mxu0 0
        %962 = vmatprep.subr.bf16.mxu0 0
        %963 = vmatpush2.bf16.xpose.msra.mxu0 0
        %964 = vmatprep.subr.bf16.mxu0 0
        %965 = vmatpush2.bf16.xpose.msra.mxu0 0
        %966 = vmatprep.subr.bf16.mxu0 0
        %967 = vmatpush2.bf16.xpose.msra.mxu0 0
        %968 = vmatprep.subr.bf16.mxu0 0
        %969 = vmatpush2.bf16.xpose.msra.mxu0 0
        %970 = vmatprep.subr.bf16.mxu0 0
        %971 = vmatpush2.bf16.xpose.msra.mxu0 0
        %972 = vmatprep.subr.bf16.mxu0 0
        %973 = vmatpush2.bf16.xpose.msra.mxu0 0
        %974 = vmatprep.mubr.bf16.mxu0 0
        %975 = vmatmul.mubr.bf16.gmra.mxu0 %v550
        %v976 = vpop.f32.mrf.mxu0
        %v977 = vadd.f32 %v528, %v976
        %v978 = vpop.f32.mrf.mxu0
        %v979 = vpop.f32.mrf.mxu0
        %v980 = vpop.f32.mrf.mxu0
        %981 = vdwg.mxu0
        %v983 = vsel %vm382, %v462, 0
        %985 = vmatprep.subr.bf16.mxu0 0
        %986 = vmatpush1.bf16.xpose.msra.mxu0 0
        %987 = vmatprep.subr.bf16.mxu0 0
        %988 = vmatpush1.bf16.xpose.msra.mxu0 0
        %989 = vmatprep.subr.bf16.mxu0 0
        %990 = vmatpush1.bf16.xpose.msra.mxu0 0
        %991 = vmatprep.subr.bf16.mxu0 0
        %992 = vmatpush1.bf16.xpose.msra.mxu0 0
        %993 = vmatprep.subr.bf16.mxu0 0
        %994 = vmatpush1.bf16.xpose.msra.mxu0 0
        %995 = vmatprep.subr.bf16.mxu0 0
        %996 = vmatpush1.bf16.xpose.msra.mxu0 0
        %997 = vmatprep.subr.bf16.mxu0 0
        %998 = vmatpush1.bf16.xpose.msra.mxu0 0
        %999 = vmatprep.subr.bf16.mxu0 0
        %1000 = vmatpush1.bf16.xpose.msra.mxu0 %v983
        %1001 = vmatprep.subr.bf16.mxu0 0
        %1002 = vmatpush2.bf16.xpose.msra.mxu0 0
        %1003 = vmatprep.subr.bf16.mxu0 0
        %1004 = vmatpush2.bf16.xpose.msra.mxu0 0
        %1005 = vmatprep.subr.bf16.mxu0 0
        %1006 = vmatpush2.bf16.xpose.msra.mxu0 0
        %1007 = vmatprep.subr.bf16.mxu0 0
        %1008 = vmatpush2.bf16.xpose.msra.mxu0 0
        %1009 = vmatprep.subr.bf16.mxu0 0
        %1010 = vmatpush2.bf16.xpose.msra.mxu0 0
        %1011 = vmatprep.subr.bf16.mxu0 0
        %1012 = vmatpush2.bf16.xpose.msra.mxu0 0
        %1013 = vmatprep.subr.bf16.mxu0 0
        %1014 = vmatpush2.bf16.xpose.msra.mxu0 0
        %1015 = vmatprep.subr.bf16.mxu0 0
        %1016 = vmatpush2.bf16.xpose.msra.mxu0 0
        %1017 = vmatprep.mubr.bf16.mxu0 0
        %1018 = vmatmul.mubr.bf16.gmra.mxu0 %v550
        %v1019 = vpop.f32.mrf.mxu0
        %v1020 = vadd.f32 %v532, %v1019
        %v1021 = vpop.f32.mrf.mxu0
        %v1022 = vpop.f32.mrf.mxu0
        %v1023 = vpop.f32.mrf.mxu0
        %1024 = vdwg.mxu0
        %v1026 = vsel %vm382, %v463, 0
        %1028 = vmatprep.subr.bf16.mxu0 0
        %1029 = vmatpush1.bf16.xpose.msra.mxu0 0
        %1030 = vmatprep.subr.bf16.mxu0 0
        %1031 = vmatpush1.bf16.xpose.msra.mxu0 0
        %1032 = vmatprep.subr.bf16.mxu0 0
        %1033 = vmatpush1.bf16.xpose.msra.mxu0 0
        %1034 = vmatprep.subr.bf16.mxu0 0
        %1035 = vmatpush1.bf16.xpose.msra.mxu0 0
        %1036 = vmatprep.subr.bf16.mxu0 0
        %1037 = vmatpush1.bf16.xpose.msra.mxu0 0
        %1038 = vmatprep.subr.bf16.mxu0 0
        %1039 = vmatpush1.bf16.xpose.msra.mxu0 0
        %1040 = vmatprep.subr.bf16.mxu0 0
        %1041 = vmatpush1.bf16.xpose.msra.mxu0 0
        %1042 = vmatprep.subr.bf16.mxu0 0
        %1043 = vmatpush1.bf16.xpose.msra.mxu0 %v1026
        %1044 = vmatprep.subr.bf16.mxu0 0
        %1045 = vmatpush2.bf16.xpose.msra.mxu0 0
        %1046 = vmatprep.subr.bf16.mxu0 0
        %1047 = vmatpush2.bf16.xpose.msra.mxu0 0
        %1048 = vmatprep.subr.bf16.mxu0 0
        %1049 = vmatpush2.bf16.xpose.msra.mxu0 0
        %1050 = vmatprep.subr.bf16.mxu0 0
        %1051 = vmatpush2.bf16.xpose.msra.mxu0 0
        %1052 = vmatprep.subr.bf16.mxu0 0
        %1053 = vmatpush2.bf16.xpose.msra.mxu0 0
        %1054 = vmatprep.subr.bf16.mxu0 0
        %1055 = vmatpush2.bf16.xpose.msra.mxu0 0
        %1056 = vmatprep.subr.bf16.mxu0 0
        %1057 = vmatpush2.bf16.xpose.msra.mxu0 0
        %1058 = vmatprep.subr.bf16.mxu0 0
        %1059 = vmatpush2.bf16.xpose.msra.mxu0 0
        %1060 = vmatprep.mubr.bf16.mxu0 0
        %1061 = vmatmul.mubr.bf16.gmra.mxu0 %v550
        %v1062 = vpop.f32.mrf.mxu0
        %v1063 = vadd.f32 %v536, %v1062
        %v1064 = vpop.f32.mrf.mxu0
        %v1065 = vpop.f32.mrf.mxu0
        %v1066 = vpop.f32.mrf.mxu0
        %1067 = vdwg.mxu0
        %v1068 = vpack.c.bf16 %v590, %v590
        %v1069 = vpack.c.bf16 %v633, %v633
        %v1070 = vpack.c.bf16 %v676, %v676
        %v1071 = vpack.c.bf16 %v719, %v719
        %v1072 = vpack.c.bf16 %v762, %v762
        %v1073 = vpack.c.bf16 %v805, %v805
        %v1074 = vpack.c.bf16 %v848, %v848
        %v1075 = vpack.c.bf16 %v891, %v891
        %v1077 = vlaneseq
        %v1078 = vshrl.u32 %v1077, 7
        %v1079 = vsub.s32 0, %v1078
        %v1080 = vrot.slane %v360, %v1079
        %vm1082 = vcmask 64512
        %v1084 = vsel %vm1082, %v1068, 0
        %v1087 = vsel %vm1082, %v1072, 0
        %1089 = vmatprep.subr.bf16.mxu0 0
        %1090 = vmatpush1.bf16.xpose.msra.mxu0 0
        %1091 = vmatprep.subr.bf16.mxu0 0
        %1092 = vmatpush1.bf16.xpose.msra.mxu0 0
        %1093 = vmatprep.subr.bf16.mxu0 0
        %1094 = vmatpush1.bf16.xpose.msra.mxu0 0
        %1095 = vmatprep.subr.bf16.mxu0 0
        %1096 = vmatpush1.bf16.xpose.msra.mxu0 0
        %1097 = vmatprep.subr.bf16.mxu0 0
        %1098 = vmatpush1.bf16.xpose.msra.mxu0 0
        %1099 = vmatprep.subr.bf16.mxu0 0
        %1100 = vmatpush1.bf16.xpose.msra.mxu0 0
        %1101 = vmatprep.subr.bf16.mxu0 0
        %1102 = vmatpush1.bf16.xpose.msra.mxu0 0
        %1103 = vmatprep.subr.bf16.mxu0 0
        %1104 = vmatpush1.bf16.xpose.msra.mxu0 %v1087
        %1105 = vmatprep.subr.bf16.mxu0 0
        %1106 = vmatpush2.bf16.xpose.msra.mxu0 0
        %1107 = vmatprep.subr.bf16.mxu0 0
        %1108 = vmatpush2.bf16.xpose.msra.mxu0 0
        %1109 = vmatprep.subr.bf16.mxu0 0
        %1110 = vmatpush2.bf16.xpose.msra.mxu0 0
        %1111 = vmatprep.subr.bf16.mxu0 0
        %1112 = vmatpush2.bf16.xpose.msra.mxu0 0
        %1113 = vmatprep.subr.bf16.mxu0 0
        %1114 = vmatpush2.bf16.xpose.msra.mxu0 0
        %1115 = vmatprep.subr.bf16.mxu0 0
        %1116 = vmatpush2.bf16.xpose.msra.mxu0 0
        %1117 = vmatprep.subr.bf16.mxu0 0
        %1118 = vmatpush2.bf16.xpose.msra.mxu0 0
        %1119 = vmatprep.subr.bf16.mxu0 0
        %1120 = vmatpush2.bf16.xpose.msra.mxu0 0
        %1121 = vmatprep.mubr.bf16.mxu0 0
        %1122 = vmatmul.mubr.bf16.gmra.mxu0 %v1084
        %v1123 = vpop.f32.mrf.mxu0
        %v1124 = vadd.f32 %v1080, %v1123
        %v1125 = vpop.f32.mrf.mxu0
        %v1126 = vpop.f32.mrf.mxu0
        %v1127 = vpop.f32.mrf.mxu0
        %1128 = vdwg.mxu0
        %v1130 = vsel %vm1082, %v1069, 0
        %v1133 = vsel %vm1082, %v1073, 0
        %1135 = vmatprep.subr.bf16.mxu0 0
        %1136 = vmatpush1.bf16.xpose.msra.mxu0 0
        %1137 = vmatprep.subr.bf16.mxu0 0
        %1138 = vmatpush1.bf16.xpose.msra.mxu0 0
        %1139 = vmatprep.subr.bf16.mxu0 0
        %1140 = vmatpush1.bf16.xpose.msra.mxu0 0
        %1141 = vmatprep.subr.bf16.mxu0 0
        %1142 = vmatpush1.bf16.xpose.msra.mxu0 0
        %1143 = vmatprep.subr.bf16.mxu0 0
        %1144 = vmatpush1.bf16.xpose.msra.mxu0 0
        %1145 = vmatprep.subr.bf16.mxu0 0
        %1146 = vmatpush1.bf16.xpose.msra.mxu0 0
        %1147 = vmatprep.subr.bf16.mxu0 0
        %1148 = vmatpush1.bf16.xpose.msra.mxu0 0
        %1149 = vmatprep.subr.bf16.mxu0 0
        %1150 = vmatpush1.bf16.xpose.msra.mxu0 %v1133
        %1151 = vmatprep.subr.bf16.mxu0 0
        %1152 = vmatpush2.bf16.xpose.msra.mxu0 0
        %1153 = vmatprep.subr.bf16.mxu0 0
        %1154 = vmatpush2.bf16.xpose.msra.mxu0 0
        %1155 = vmatprep.subr.bf16.mxu0 0
        %1156 = vmatpush2.bf16.xpose.msra.mxu0 0
        %1157 = vmatprep.subr.bf16.mxu0 0
        %1158 = vmatpush2.bf16.xpose.msra.mxu0 0
        %1159 = vmatprep.subr.bf16.mxu0 0
        %1160 = vmatpush2.bf16.xpose.msra.mxu0 0
        %1161 = vmatprep.subr.bf16.mxu0 0
        %1162 = vmatpush2.bf16.xpose.msra.mxu0 0
        %1163 = vmatprep.subr.bf16.mxu0 0
        %1164 = vmatpush2.bf16.xpose.msra.mxu0 0
        %1165 = vmatprep.subr.bf16.mxu0 0
        %1166 = vmatpush2.bf16.xpose.msra.mxu0 0
        %1167 = vmatprep.mubr.bf16.mxu0 0
        %1168 = vmatmul.mubr.bf16.gmra.mxu0 %v1130
        %v1169 = vpop.f32.mrf.mxu0
        %v1170 = vadd.f32 %v1080, %v1169
        %v1171 = vpop.f32.mrf.mxu0
        %v1172 = vpop.f32.mrf.mxu0
        %v1173 = vpop.f32.mrf.mxu0
        %1174 = vdwg.mxu0
        %v1176 = vsel %vm1082, %v1070, 0
        %v1179 = vsel %vm1082, %v1074, 0
        %1181 = vmatprep.subr.bf16.mxu0 0
        %1182 = vmatpush1.bf16.xpose.msra.mxu0 0
        %1183 = vmatprep.subr.bf16.mxu0 0
        %1184 = vmatpush1.bf16.xpose.msra.mxu0 0
        %1185 = vmatprep.subr.bf16.mxu0 0
        %1186 = vmatpush1.bf16.xpose.msra.mxu0 0
        %1187 = vmatprep.subr.bf16.mxu0 0
        %1188 = vmatpush1.bf16.xpose.msra.mxu0 0
        %1189 = vmatprep.subr.bf16.mxu0 0
        %1190 = vmatpush1.bf16.xpose.msra.mxu0 0
        %1191 = vmatprep.subr.bf16.mxu0 0
        %1192 = vmatpush1.bf16.xpose.msra.mxu0 0
        %1193 = vmatprep.subr.bf16.mxu0 0
        %1194 = vmatpush1.bf16.xpose.msra.mxu0 0
        %1195 = vmatprep.subr.bf16.mxu0 0
        %1196 = vmatpush1.bf16.xpose.msra.mxu0 %v1179
        %1197 = vmatprep.subr.bf16.mxu0 0
        %1198 = vmatpush2.bf16.xpose.msra.mxu0 0
        %1199 = vmatprep.subr.bf16.mxu0 0
        %1200 = vmatpush2.bf16.xpose.msra.mxu0 0
        %1201 = vmatprep.subr.bf16.mxu0 0
        %1202 = vmatpush2.bf16.xpose.msra.mxu0 0
        %1203 = vmatprep.subr.bf16.mxu0 0
        %1204 = vmatpush2.bf16.xpose.msra.mxu0 0
        %1205 = vmatprep.subr.bf16.mxu0 0
        %1206 = vmatpush2.bf16.xpose.msra.mxu0 0
        %1207 = vmatprep.subr.bf16.mxu0 0
        %1208 = vmatpush2.bf16.xpose.msra.mxu0 0
        %1209 = vmatprep.subr.bf16.mxu0 0
        %1210 = vmatpush2.bf16.xpose.msra.mxu0 0
        %1211 = vmatprep.subr.bf16.mxu0 0
        %1212 = vmatpush2.bf16.xpose.msra.mxu0 0
        %1213 = vmatprep.mubr.bf16.mxu0 0
        %1214 = vmatmul.mubr.bf16.gmra.mxu0 %v1176
        %v1215 = vpop.f32.mrf.mxu0
        %v1216 = vadd.f32 %v1080, %v1215
        %v1217 = vpop.f32.mrf.mxu0
        %v1218 = vpop.f32.mrf.mxu0
        %v1219 = vpop.f32.mrf.mxu0
        %1220 = vdwg.mxu0
        %v1222 = vsel %vm1082, %v1071, 0
        %v1225 = vsel %vm1082, %v1075, 0
        %1227 = vmatprep.subr.bf16.mxu0 0
        %1228 = vmatpush1.bf16.xpose.msra.mxu0 0
        %1229 = vmatprep.subr.bf16.mxu0 0
        %1230 = vmatpush1.bf16.xpose.msra.mxu0 0
        %1231 = vmatprep.subr.bf16.mxu0 0
        %1232 = vmatpush1.bf16.xpose.msra.mxu0 0
        %1233 = vmatprep.subr.bf16.mxu0 0
        %1234 = vmatpush1.bf16.xpose.msra.mxu0 0
        %1235 = vmatprep.subr.bf16.mxu0 0
        %1236 = vmatpush1.bf16.xpose.msra.mxu0 0
        %1237 = vmatprep.subr.bf16.mxu0 0
        %1238 = vmatpush1.bf16.xpose.msra.mxu0 0
        %1239 = vmatprep.subr.bf16.mxu0 0
        %1240 = vmatpush1.bf16.xpose.msra.mxu0 0
        %1241 = vmatprep.subr.bf16.mxu0 0
        %1242 = vmatpush1.bf16.xpose.msra.mxu0 %v1225
        %1243 = vmatprep.subr.bf16.mxu0 0
        %1244 = vmatpush2.bf16.xpose.msra.mxu0 0
        %1245 = vmatprep.subr.bf16.mxu0 0
        %1246 = vmatpush2.bf16.xpose.msra.mxu0 0
        %1247 = vmatprep.subr.bf16.mxu0 0
        %1248 = vmatpush2.bf16.xpose.msra.mxu0 0
        %1249 = vmatprep.subr.bf16.mxu0 0
        %1250 = vmatpush2.bf16.xpose.msra.mxu0 0
        %1251 = vmatprep.subr.bf16.mxu0 0
        %1252 = vmatpush2.bf16.xpose.msra.mxu0 0
        %1253 = vmatprep.subr.bf16.mxu0 0
        %1254 = vmatpush2.bf16.xpose.msra.mxu0 0
        %1255 = vmatprep.subr.bf16.mxu0 0
        %1256 = vmatpush2.bf16.xpose.msra.mxu0 0
        %1257 = vmatprep.subr.bf16.mxu0 0
        %1258 = vmatpush2.bf16.xpose.msra.mxu0 0
        %1259 = vmatprep.mubr.bf16.mxu0 0
        %1260 = vmatmul.mubr.bf16.gmra.mxu0 %v1222
        %v1261 = vpop.f32.mrf.mxu0
        %v1262 = vadd.f32 %v1080, %v1261
        %v1263 = vpop.f32.mrf.mxu0
        %v1264 = vpop.f32.mrf.mxu0
        %v1265 = vpop.f32.mrf.mxu0
        %1266 = vdwg.mxu0
        %v1267 = vsel %vm1082, %v1124, -inf
        %1268 = vmax.xlane.f32.xlu0 %v1267
        %v1269 = vpop.xlane.xlu0 %1268
        %v1270 = vsel %vm1082, %v1170, -inf
        %1271 = vmax.xlane.f32.xlu0 %v1270
        %v1272 = vpop.xlane.xlu0 %1271
        %v1273 = vsel %vm1082, %v1216, -inf
        %1274 = vmax.xlane.f32.xlu0 %v1273
        %v1275 = vpop.xlane.xlu0 %1274
        %v1276 = vsel %vm1082, %v1262, -inf
        %1277 = vmax.xlane.f32.xlu0 %v1276
        %v1278 = vpop.xlane.xlu0 %1277
        %v1279 = vsub.f32 %v1124, %v1269
        %v1280 = vsub.f32 %v1170, %v1272
        %v1281 = vsub.f32 %v1216, %v1275
        %v1282 = vsub.f32 %v1262, %v1278
        %v1283 = vmul.f32 %v1279, 1.442695
        %v1284 = vpow.pop %v1283
        %v1285 = vmul.f32 %v1280, 1.442695
        %v1286 = vpow.pop %v1285
        %v1287 = vmul.f32 %v1281, 1.442695
        %v1288 = vpow.pop %v1287
        %v1289 = vmul.f32 %v1282, 1.442695
        %v1290 = vpow.pop %v1289
        %v1291 = vsel %vm1082, %v1284, 0.0
        %1292 = vadd.xlane.f32.xlu0 %v1291
        %v1293 = vpop.xlane.xlu0 %1292
        %v1294 = vsel %vm1082, %v1286, 0.0
        %1295 = vadd.xlane.f32.xlu0 %v1294
        %v1296 = vpop.xlane.xlu0 %1295
        %v1297 = vsel %vm1082, %v1288, 0.0
        %1298 = vadd.xlane.f32.xlu0 %v1297
        %v1299 = vpop.xlane.xlu0 %1298
        %v1300 = vsel %vm1082, %v1290, 0.0
        %1301 = vadd.xlane.f32.xlu0 %v1300
        %v1302 = vpop.xlane.xlu0 %1301
        %v1303 = vrcp.pop %v1293
        %v1304 = vrcp.pop %v1296
        %v1305 = vrcp.pop %v1299
        %v1306 = vrcp.pop %v1302
        %v1307 = vmul.f32 %v1284, %v1303
        %v1308 = vmul.f32 %v1286, %v1304
        %v1309 = vmul.f32 %v1288, %v1305
        %v1310 = vmul.f32 %v1290, %v1306
        %v1311 = vpack.c.bf16 %v1307, %v1307
        %v1312 = vpack.c.bf16 %v1308, %v1308
        %v1313 = vpack.c.bf16 %v1309, %v1309
        %v1314 = vpack.c.bf16 %v1310, %v1310
        %v1315 = vpack.c.bf16 %v934, %v934
        %v1316 = vpack.c.bf16 %v977, %v977
        %v1317 = vpack.c.bf16 %v1020, %v1020
        %v1318 = vpack.c.bf16 %v1063, %v1063
        %v1320 = vsel %vm1082, %v1311, 0
        %vm1322 = vcmask 1043456
        %v1324 = vsel %vm1322, %v1315, 0
        %1326 = vmatprep.subr.bf16.mxu0 0
        %1327 = vmatpush1.bf16.msra.mxu0 0
        %1328 = vmatprep.subr.bf16.mxu0 0
        %1329 = vmatpush1.bf16.msra.mxu0 0
        %1330 = vmatprep.subr.bf16.mxu0 0
        %1331 = vmatpush1.bf16.msra.mxu0 0
        %1332 = vmatprep.subr.bf16.mxu0 0
        %1333 = vmatpush1.bf16.msra.mxu0 0
        %1334 = vmatprep.subr.bf16.mxu0 0
        %1335 = vmatpush1.bf16.msra.mxu0 0
        %1336 = vmatprep.subr.bf16.mxu0 0
        %1337 = vmatpush1.bf16.msra.mxu0 0
        %1338 = vmatprep.subr.bf16.mxu0 0
        %1339 = vmatpush1.bf16.msra.mxu0 0
        %1340 = vmatprep.subr.bf16.mxu0 0
        %1341 = vmatpush1.bf16.msra.mxu0 %v1324
        %1342 = vmatprep.subr.bf16.mxu0 0
        %1343 = vmatpush2.bf16.msra.mxu0 0
        %1344 = vmatprep.subr.bf16.mxu0 0
        %1345 = vmatpush2.bf16.msra.mxu0 0
        %1346 = vmatprep.subr.bf16.mxu0 0
        %1347 = vmatpush2.bf16.msra.mxu0 0
        %1348 = vmatprep.subr.bf16.mxu0 0
        %1349 = vmatpush2.bf16.msra.mxu0 0
        %1350 = vmatprep.subr.bf16.mxu0 0
        %1351 = vmatpush2.bf16.msra.mxu0 0
        %1352 = vmatprep.subr.bf16.mxu0 0
        %1353 = vmatpush2.bf16.msra.mxu0 0
        %1354 = vmatprep.subr.bf16.mxu0 0
        %1355 = vmatpush2.bf16.msra.mxu0 0
        %1356 = vmatprep.subr.bf16.mxu0 0
        %1357 = vmatpush2.bf16.msra.mxu0 0
        %1358 = vmatprep.mubr.bf16.mxu0 0
        %1359 = vmatmul.mubr.bf16.gmra.mxu0 %v1320
        %v1360 = vpop.f32.mrf.mxu0
        %v1361 = vadd.f32 0.0, %v1360
        %v1362 = vpop.f32.mrf.mxu0
        %v1363 = vpop.f32.mrf.mxu0
        %v1364 = vpop.f32.mrf.mxu0
        %1365 = vdwg.mxu0
        %v1367 = vsel %vm1082, %v1312, 0
        %v1370 = vsel %vm1322, %v1316, 0
        %1372 = vmatprep.subr.bf16.mxu0 0
        %1373 = vmatpush1.bf16.msra.mxu0 0
        %1374 = vmatprep.subr.bf16.mxu0 0
        %1375 = vmatpush1.bf16.msra.mxu0 0
        %1376 = vmatprep.subr.bf16.mxu0 0
        %1377 = vmatpush1.bf16.msra.mxu0 0
        %1378 = vmatprep.subr.bf16.mxu0 0
        %1379 = vmatpush1.bf16.msra.mxu0 0
        %1380 = vmatprep.subr.bf16.mxu0 0
        %1381 = vmatpush1.bf16.msra.mxu0 0
        %1382 = vmatprep.subr.bf16.mxu0 0
        %1383 = vmatpush1.bf16.msra.mxu0 0
        %1384 = vmatprep.subr.bf16.mxu0 0
        %1385 = vmatpush1.bf16.msra.mxu0 0
        %1386 = vmatprep.subr.bf16.mxu0 0
        %1387 = vmatpush1.bf16.msra.mxu0 %v1370
        %1388 = vmatprep.subr.bf16.mxu0 0
        %1389 = vmatpush2.bf16.msra.mxu0 0
        %1390 = vmatprep.subr.bf16.mxu0 0
        %1391 = vmatpush2.bf16.msra.mxu0 0
        %1392 = vmatprep.subr.bf16.mxu0 0
        %1393 = vmatpush2.bf16.msra.mxu0 0
        %1394 = vmatprep.subr.bf16.mxu0 0
        %1395 = vmatpush2.bf16.msra.mxu0 0
        %1396 = vmatprep.subr.bf16.mxu0 0
        %1397 = vmatpush2.bf16.msra.mxu0 0
        %1398 = vmatprep.subr.bf16.mxu0 0
        %1399 = vmatpush2.bf16.msra.mxu0 0
        %1400 = vmatprep.subr.bf16.mxu0 0
        %1401 = vmatpush2.bf16.msra.mxu0 0
        %1402 = vmatprep.subr.bf16.mxu0 0
        %1403 = vmatpush2.bf16.msra.mxu0 0
        %1404 = vmatprep.mubr.bf16.mxu0 0
        %1405 = vmatmul.mubr.bf16.gmra.mxu0 %v1367
        %v1406 = vpop.f32.mrf.mxu0
        %v1407 = vadd.f32 0.0, %v1406
        %v1408 = vpop.f32.mrf.mxu0
        %v1409 = vpop.f32.mrf.mxu0
        %v1410 = vpop.f32.mrf.mxu0
        %1411 = vdwg.mxu0
        %v1413 = vsel %vm1082, %v1313, 0
        %v1416 = vsel %vm1322, %v1317, 0
        %1418 = vmatprep.subr.bf16.mxu0 0
        %1419 = vmatpush1.bf16.msra.mxu0 0
        %1420 = vmatprep.subr.bf16.mxu0 0
        %1421 = vmatpush1.bf16.msra.mxu0 0
        %1422 = vmatprep.subr.bf16.mxu0 0
        %1423 = vmatpush1.bf16.msra.mxu0 0
        %1424 = vmatprep.subr.bf16.mxu0 0
        %1425 = vmatpush1.bf16.msra.mxu0 0
        %1426 = vmatprep.subr.bf16.mxu0 0
        %1427 = vmatpush1.bf16.msra.mxu0 0
        %1428 = vmatprep.subr.bf16.mxu0 0
        %1429 = vmatpush1.bf16.msra.mxu0 0
        %1430 = vmatprep.subr.bf16.mxu0 0
        %1431 = vmatpush1.bf16.msra.mxu0 0
        %1432 = vmatprep.subr.bf16.mxu0 0
        %1433 = vmatpush1.bf16.msra.mxu0 %v1416
        %1434 = vmatprep.subr.bf16.mxu0 0
        %1435 = vmatpush2.bf16.msra.mxu0 0
        %1436 = vmatprep.subr.bf16.mxu0 0
        %1437 = vmatpush2.bf16.msra.mxu0 0
        %1438 = vmatprep.subr.bf16.mxu0 0
        %1439 = vmatpush2.bf16.msra.mxu0 0
        %1440 = vmatprep.subr.bf16.mxu0 0
        %1441 = vmatpush2.bf16.msra.mxu0 0
        %1442 = vmatprep.subr.bf16.mxu0 0
        %1443 = vmatpush2.bf16.msra.mxu0 0
        %1444 = vmatprep.subr.bf16.mxu0 0
        %1445 = vmatpush2.bf16.msra.mxu0 0
        %1446 = vmatprep.subr.bf16.mxu0 0
        %1447 = vmatpush2.bf16.msra.mxu0 0
        %1448 = vmatprep.subr.bf16.mxu0 0
        %1449 = vmatpush2.bf16.msra.mxu0 0
        %1450 = vmatprep.mubr.bf16.mxu0 0
        %1451 = vmatmul.mubr.bf16.gmra.mxu0 %v1413
        %v1452 = vpop.f32.mrf.mxu0
        %v1453 = vadd.f32 0.0, %v1452
        %v1454 = vpop.f32.mrf.mxu0
        %v1455 = vpop.f32.mrf.mxu0
        %v1456 = vpop.f32.mrf.mxu0
        %1457 = vdwg.mxu0
        %v1459 = vsel %vm1082, %v1314, 0
        %v1462 = vsel %vm1322, %v1318, 0
        %1464 = vmatprep.subr.bf16.mxu0 0
        %1465 = vmatpush1.bf16.msra.mxu0 0
        %1466 = vmatprep.subr.bf16.mxu0 0
        %1467 = vmatpush1.bf16.msra.mxu0 0
        %1468 = vmatprep.subr.bf16.mxu0 0
        %1469 = vmatpush1.bf16.msra.mxu0 0
        %1470 = vmatprep.subr.bf16.mxu0 0
        %1471 = vmatpush1.bf16.msra.mxu0 0
        %1472 = vmatprep.subr.bf16.mxu0 0
        %1473 = vmatpush1.bf16.msra.mxu0 0
        %1474 = vmatprep.subr.bf16.mxu0 0
        %1475 = vmatpush1.bf16.msra.mxu0 0
        %1476 = vmatprep.subr.bf16.mxu0 0
        %1477 = vmatpush1.bf16.msra.mxu0 0
        %1478 = vmatprep.subr.bf16.mxu0 0
        %1479 = vmatpush1.bf16.msra.mxu0 %v1462
        %1480 = vmatprep.subr.bf16.mxu0 0
        %1481 = vmatpush2.bf16.msra.mxu0 0
        %1482 = vmatprep.subr.bf16.mxu0 0
        %1483 = vmatpush2.bf16.msra.mxu0 0
        %1484 = vmatprep.subr.bf16.mxu0 0
        %1485 = vmatpush2.bf16.msra.mxu0 0
        %1486 = vmatprep.subr.bf16.mxu0 0
        %1487 = vmatpush2.bf16.msra.mxu0 0
        %1488 = vmatprep.subr.bf16.mxu0 0
        %1489 = vmatpush2.bf16.msra.mxu0 0
        %1490 = vmatprep.subr.bf16.mxu0 0
        %1491 = vmatpush2.bf16.msra.mxu0 0
        %1492 = vmatprep.subr.bf16.mxu0 0
        %1493 = vmatpush2.bf16.msra.mxu0 0
        %1494 = vmatprep.subr.bf16.mxu0 0
        %1495 = vmatpush2.bf16.msra.mxu0 0
        %1496 = vmatprep.mubr.bf16.mxu0 0
        %1497 = vmatmul.mubr.bf16.gmra.mxu0 %v1459
        %v1498 = vpop.f32.mrf.mxu0
        %v1499 = vadd.f32 0.0, %v1498
        %v1500 = vpop.f32.mrf.mxu0
        %v1501 = vpop.f32.mrf.mxu0
        %v1502 = vpop.f32.mrf.mxu0
        %1503 = vdwg.mxu0
        %v1504 = vpack.c.bf16 %v1361, %v1361
        %v1505 = vpack.c.bf16 %v1407, %v1407
        %v1506 = vpack.c.bf16 %v1453, %v1453
        %v1507 = vpack.c.bf16 %v1499, %v1499
        %v1508 = vld [vmem:[%s4] sm:$0xf]
        %v1509 = vld [vmem:[%s4 + $0x4] sm:$0xf]
        %v1510 = vld [vmem:[%s4 + $0x8] sm:$0xf]
        %v1511 = vld [vmem:[%s4 + $0xc] sm:$0xf]
        %v1513 = vsel %vm1082, %v1504, 0
        %v1516 = vsel %vm1322, %v1508, 0
        %1518 = vmatprep.subr.bf16.mxu0 0
        %1519 = vmatpush1.bf16.msra.mxu0 0
        %1520 = vmatprep.subr.bf16.mxu0 0
        %1521 = vmatpush1.bf16.msra.mxu0 0
        %1522 = vmatprep.subr.bf16.mxu0 0
        %1523 = vmatpush1.bf16.msra.mxu0 0
        %1524 = vmatprep.subr.bf16.mxu0 0
        %1525 = vmatpush1.bf16.msra.mxu0 0
        %1526 = vmatprep.subr.bf16.mxu0 0
        %1527 = vmatpush1.bf16.msra.mxu0 0
        %1528 = vmatprep.subr.bf16.mxu0 0
        %1529 = vmatpush1.bf16.msra.mxu0 0
        %1530 = vmatprep.subr.bf16.mxu0 0
        %1531 = vmatpush1.bf16.msra.mxu0 0
        %1532 = vmatprep.subr.bf16.mxu0 0
        %1533 = vmatpush1.bf16.msra.mxu0 %v1516
        %1534 = vmatprep.subr.bf16.mxu0 0
        %1535 = vmatpush2.bf16.msra.mxu0 0
        %1536 = vmatprep.subr.bf16.mxu0 0
        %1537 = vmatpush2.bf16.msra.mxu0 0
        %1538 = vmatprep.subr.bf16.mxu0 0
        %1539 = vmatpush2.bf16.msra.mxu0 0
        %1540 = vmatprep.subr.bf16.mxu0 0
        %1541 = vmatpush2.bf16.msra.mxu0 0
        %1542 = vmatprep.subr.bf16.mxu0 0
        %1543 = vmatpush2.bf16.msra.mxu0 0
        %1544 = vmatprep.subr.bf16.mxu0 0
        %1545 = vmatpush2.bf16.msra.mxu0 0
        %1546 = vmatprep.subr.bf16.mxu0 0
        %1547 = vmatpush2.bf16.msra.mxu0 0
        %1548 = vmatprep.subr.bf16.mxu0 0
        %1549 = vmatpush2.bf16.msra.mxu0 0
        %1550 = vmatprep.mubr.bf16.mxu0 0
        %1551 = vmatmul.mubr.bf16.gmra.mxu0 %v1513
        %v1552 = vpop.f32.mrf.mxu0
        %v1553 = vadd.f32 0.0, %v1552
        %v1554 = vpop.f32.mrf.mxu0
        %v1555 = vpop.f32.mrf.mxu0
        %v1556 = vpop.f32.mrf.mxu0
        %1557 = vdwg.mxu0
        %v1559 = vsel %vm1082, %v1505, 0
        %v1562 = vsel %vm1322, %v1509, 0
        %1564 = vmatprep.subr.bf16.mxu0 0
        %1565 = vmatpush1.bf16.msra.mxu0 0
        %1566 = vmatprep.subr.bf16.mxu0 0
        %1567 = vmatpush1.bf16.msra.mxu0 0
        %1568 = vmatprep.subr.bf16.mxu0 0
        %1569 = vmatpush1.bf16.msra.mxu0 0
        %1570 = vmatprep.subr.bf16.mxu0 0
        %1571 = vmatpush1.bf16.msra.mxu0 0
        %1572 = vmatprep.subr.bf16.mxu0 0
        %1573 = vmatpush1.bf16.msra.mxu0 0
        %1574 = vmatprep.subr.bf16.mxu0 0
        %1575 = vmatpush1.bf16.msra.mxu0 0
        %1576 = vmatprep.subr.bf16.mxu0 0
        %1577 = vmatpush1.bf16.msra.mxu0 0
        %1578 = vmatprep.subr.bf16.mxu0 0
        %1579 = vmatpush1.bf16.msra.mxu0 %v1562
        %1580 = vmatprep.subr.bf16.mxu0 0
        %1581 = vmatpush2.bf16.msra.mxu0 0
        %1582 = vmatprep.subr.bf16.mxu0 0
        %1583 = vmatpush2.bf16.msra.mxu0 0
        %1584 = vmatprep.subr.bf16.mxu0 0
        %1585 = vmatpush2.bf16.msra.mxu0 0
        %1586 = vmatprep.subr.bf16.mxu0 0
        %1587 = vmatpush2.bf16.msra.mxu0 0
        %1588 = vmatprep.subr.bf16.mxu0 0
        %1589 = vmatpush2.bf16.msra.mxu0 0
        %1590 = vmatprep.subr.bf16.mxu0 0
        %1591 = vmatpush2.bf16.msra.mxu0 0
        %1592 = vmatprep.subr.bf16.mxu0 0
        %1593 = vmatpush2.bf16.msra.mxu0 0
        %1594 = vmatprep.subr.bf16.mxu0 0
        %1595 = vmatpush2.bf16.msra.mxu0 0
        %1596 = vmatprep.mubr.bf16.mxu0 0
        %1597 = vmatmul.mubr.bf16.gmra.mxu0 %v1559
        %v1598 = vpop.f32.mrf.mxu0
        %v1599 = vadd.f32 0.0, %v1598
        %v1600 = vpop.f32.mrf.mxu0
        %v1601 = vpop.f32.mrf.mxu0
        %v1602 = vpop.f32.mrf.mxu0
        %1603 = vdwg.mxu0
        %v1605 = vsel %vm1082, %v1506, 0
        %v1608 = vsel %vm1322, %v1510, 0
        %1610 = vmatprep.subr.bf16.mxu0 0
        %1611 = vmatpush1.bf16.msra.mxu0 0
        %1612 = vmatprep.subr.bf16.mxu0 0
        %1613 = vmatpush1.bf16.msra.mxu0 0
        %1614 = vmatprep.subr.bf16.mxu0 0
        %1615 = vmatpush1.bf16.msra.mxu0 0
        %1616 = vmatprep.subr.bf16.mxu0 0
        %1617 = vmatpush1.bf16.msra.mxu0 0
        %1618 = vmatprep.subr.bf16.mxu0 0
        %1619 = vmatpush1.bf16.msra.mxu0 0
        %1620 = vmatprep.subr.bf16.mxu0 0
        %1621 = vmatpush1.bf16.msra.mxu0 0
        %1622 = vmatprep.subr.bf16.mxu0 0
        %1623 = vmatpush1.bf16.msra.mxu0 0
        %1624 = vmatprep.subr.bf16.mxu0 0
        %1625 = vmatpush1.bf16.msra.mxu0 %v1608
        %1626 = vmatprep.subr.bf16.mxu0 0
        %1627 = vmatpush2.bf16.msra.mxu0 0
        %1628 = vmatprep.subr.bf16.mxu0 0
        %1629 = vmatpush2.bf16.msra.mxu0 0
        %1630 = vmatprep.subr.bf16.mxu0 0
        %1631 = vmatpush2.bf16.msra.mxu0 0
        %1632 = vmatprep.subr.bf16.mxu0 0
        %1633 = vmatpush2.bf16.msra.mxu0 0
        %1634 = vmatprep.subr.bf16.mxu0 0
        %1635 = vmatpush2.bf16.msra.mxu0 0
        %1636 = vmatprep.subr.bf16.mxu0 0
        %1637 = vmatpush2.bf16.msra.mxu0 0
        %1638 = vmatprep.subr.bf16.mxu0 0
        %1639 = vmatpush2.bf16.msra.mxu0 0
        %1640 = vmatprep.subr.bf16.mxu0 0
        %1641 = vmatpush2.bf16.msra.mxu0 0
        %1642 = vmatprep.mubr.bf16.mxu0 0
        %1643 = vmatmul.mubr.bf16.gmra.mxu0 %v1605
        %v1644 = vpop.f32.mrf.mxu0
        %v1645 = vadd.f32 0.0, %v1644
        %v1646 = vpop.f32.mrf.mxu0
        %v1647 = vpop.f32.mrf.mxu0
        %v1648 = vpop.f32.mrf.mxu0
        %1649 = vdwg.mxu0
        %v1651 = vsel %vm1082, %v1507, 0
        %v1654 = vsel %vm1322, %v1511, 0
        %1656 = vmatprep.subr.bf16.mxu0 0
        %1657 = vmatpush1.bf16.msra.mxu0 0
        %1658 = vmatprep.subr.bf16.mxu0 0
        %1659 = vmatpush1.bf16.msra.mxu0 0
        %1660 = vmatprep.subr.bf16.mxu0 0
        %1661 = vmatpush1.bf16.msra.mxu0 0
        %1662 = vmatprep.subr.bf16.mxu0 0
        %1663 = vmatpush1.bf16.msra.mxu0 0
        %1664 = vmatprep.subr.bf16.mxu0 0
        %1665 = vmatpush1.bf16.msra.mxu0 0
        %1666 = vmatprep.subr.bf16.mxu0 0
        %1667 = vmatpush1.bf16.msra.mxu0 0
        %1668 = vmatprep.subr.bf16.mxu0 0
        %1669 = vmatpush1.bf16.msra.mxu0 0
        %1670 = vmatprep.subr.bf16.mxu0 0
        %1671 = vmatpush1.bf16.msra.mxu0 %v1654
        %1672 = vmatprep.subr.bf16.mxu0 0
        %1673 = vmatpush2.bf16.msra.mxu0 0
        %1674 = vmatprep.subr.bf16.mxu0 0
        %1675 = vmatpush2.bf16.msra.mxu0 0
        %1676 = vmatprep.subr.bf16.mxu0 0
        %1677 = vmatpush2.bf16.msra.mxu0 0
        %1678 = vmatprep.subr.bf16.mxu0 0
        %1679 = vmatpush2.bf16.msra.mxu0 0
        %1680 = vmatprep.subr.bf16.mxu0 0
        %1681 = vmatpush2.bf16.msra.mxu0 0
        %1682 = vmatprep.subr.bf16.mxu0 0
        %1683 = vmatpush2.bf16.msra.mxu0 0
        %1684 = vmatprep.subr.bf16.mxu0 0
        %1685 = vmatpush2.bf16.msra.mxu0 0
        %1686 = vmatprep.subr.bf16.mxu0 0
        %1687 = vmatpush2.bf16.msra.mxu0 0
        %1688 = vmatprep.mubr.bf16.mxu0 0
        %1689 = vmatmul.mubr.bf16.gmra.mxu0 %v1651
        %v1690 = vpop.f32.mrf.mxu0
        %v1691 = vadd.f32 0.0, %v1690
        %v1692 = vpop.f32.mrf.mxu0
        %v1693 = vpop.f32.mrf.mxu0
        %v1694 = vpop.f32.mrf.mxu0
        %1695 = vdwg.mxu0
        %v1696 = vsel %vm382, %v1553, 0.0
        %v1697 = vsel %vm382, %v1599, 0.0
        %v1698 = vadd.f32 %v1696, %v1697
        %v1699 = vsel %vm382, %v1645, 0.0
        %v1700 = vadd.f32 %v1698, %v1699
        %v1701 = vsel %vm382, %v1691, 0.0
        %v1702 = vadd.f32 %v1700, %v1701
        %v1703 = vld [vmem:[#allocation2] sm:$0x1]
        %v1704 = vlaneseq
        %v1705 = vshrl.u32 %v1704, 7
        %v1706 = vsub.s32 0, %v1705
        %v1707 = vrot.slane %v1703, %v1706
        %v1708 = vadd.f32 %v1702, %v1707
        %v1709 = vadd.f32 %v1708, %v451
        %v1710 = vsel %vm382, %v1709, 0.0
        %1711 = vadd.xlane.f32.xlu0 %v1710
        %v1712 = vpop.xlane.xlu0 %1711
        %v1713 = vmul.f32 %v1712, %v429
        %v1714 = vsub.f32 %v1709, %v1713
        %v1715 = vmul.f32 %v1714, %v1714
        %v1716 = vsel %vm382, %v1715, 0.0
        %1717 = vadd.xlane.f32.xlu0 %v1716
        %v1718 = vpop.xlane.xlu0 %1717
        %v1719 = vmul.f32 %v1718, %v429
        %v1720 = vadd.f32 %v1719, 1e-06
        %v1721 = vrsqrt.pop %v1720
        %v1722 = vmul.f32 %v1714, %v1721
        %v1723 = vld [vmem:[#allocation2 + $0x1] sm:$0x1]
        %v1724 = vlaneseq
        %v1725 = vshrl.u32 %v1724, 7
        %v1726 = vsub.s32 0, %v1725
        %v1727 = vrot.slane %v1723, %v1726
        %v1728 = vmul.f32 %v1722, %v1727
        %v1729 = vld [vmem:[#allocation2 + $0x2] sm:$0x1]
        %v1730 = vlaneseq
        %v1731 = vshrl.u32 %v1730, 7
        %v1732 = vsub.s32 0, %v1731
        %v1733 = vrot.slane %v1729, %v1732
        %v1734 = vadd.f32 %v1728, %v1733
        %v1735 = vpack.c.bf16 %v1734, %v1734
        %v1736 = vld [vmem:[%s5] sm:$0xf]
        %v1737 = vld [vmem:[%s5 + $0x4] sm:$0xf]
        %v1738 = vld [vmem:[%s5 + $0x8] sm:$0xf]
        %v1739 = vld [vmem:[%s5 + $0xc] sm:$0xf]
        %v1740 = vld [vmem:[#allocation2 + $0xf] sm:$0x1]
        %v1741 = vlaneseq
        %v1742 = vshrl.u32 %v1741, 7
        %v1743 = vsub.s32 0, %v1742
        %v1744 = vrot.slane %v1740, %v1743
        %v1749 = vunpack.c.l.b16 %v1736
        %v1750 = vunpack.c.l.b16 %v1737
        %v1751 = vunpack.c.l.b16 %v1738
        %v1752 = vunpack.c.l.b16 %v1739
        %v1753 = vpack.c.b16 %v1750, %v1749
        %v1754 = vpack.c.b16 %v1752, %v1751
        %v1758 = vsel %vm382, %v1735, 0
        %1760 = vmatprep.subr.bf16.mxu0 0
        %1761 = vmatpush1.bf16.msra.mxu0 0
        %1762 = vmatprep.subr.bf16.mxu0 0
        %1763 = vmatpush1.bf16.msra.mxu0 0
        %1764 = vmatprep.subr.bf16.mxu0 0
        %1765 = vmatpush1.bf16.msra.mxu0 0
        %1766 = vmatprep.subr.bf16.mxu0 0
        %1767 = vmatpush1.bf16.msra.mxu0 0
        %1768 = vmatprep.subr.bf16.mxu0 0
        %1769 = vmatpush1.bf16.msra.mxu0 0
        %1770 = vmatprep.subr.bf16.mxu0 0
        %1771 = vmatpush1.bf16.msra.mxu0 0
        %1772 = vmatprep.subr.bf16.mxu0 0
        %1773 = vmatpush1.bf16.msra.mxu0 %v1754
        %1774 = vmatprep.subr.bf16.mxu0 0
        %1775 = vmatpush1.bf16.msra.mxu0 %v1753
        %1776 = vmatprep.subr.bf16.mxu0 0
        %1777 = vmatpush2.bf16.msra.mxu0 0
        %1778 = vmatprep.subr.bf16.mxu0 0
        %1779 = vmatpush2.bf16.msra.mxu0 0
        %1780 = vmatprep.subr.bf16.mxu0 0
        %1781 = vmatpush2.bf16.msra.mxu0 0
        %1782 = vmatprep.subr.bf16.mxu0 0
        %1783 = vmatpush2.bf16.msra.mxu0 0
        %1784 = vmatprep.subr.bf16.mxu0 0
        %1785 = vmatpush2.bf16.msra.mxu0 0
        %1786 = vmatprep.subr.bf16.mxu0 0
        %1787 = vmatpush2.bf16.msra.mxu0 0
        %1788 = vmatprep.subr.bf16.mxu0 0
        %1789 = vmatpush2.bf16.msra.mxu0 0
        %1790 = vmatprep.subr.bf16.mxu0 0
        %1791 = vmatpush2.bf16.msra.mxu0 0
        %1792 = vmatprep.mubr.bf16.mxu0 0
        %1793 = vmatmul.mubr.bf16.gmra.mxu0 %v1758
        %v1794 = vpop.f32.mrf.mxu0
        %v1795 = vadd.f32 %v1744, %v1794
        %v1796 = vpop.f32.mrf.mxu0
        %v1797 = vpop.f32.mrf.mxu0
        %v1798 = vpop.f32.mrf.mxu0
        %1799 = vdwg.mxu0
        %v1800 = vmax.f32 %v1795, 0.0
        %v1801 = vpack.c.bf16 %v1800, %v1800
        %v1802 = vld [vmem:[%s6] sm:$0xf]
        %v1803 = vld [vmem:[%s6 + $0x4] sm:$0xf]
        %v1804 = vld [vmem:[%s6 + $0x8] sm:$0xf]
        %v1805 = vld [vmem:[%s6 + $0xc] sm:$0xf]
        %v1806 = vld [vmem:[%s6 + $0x10] sm:$0xf]
        %v1807 = vld [vmem:[%s6 + $0x14] sm:$0xf]
        %v1808 = vld [vmem:[%s6 + $0x18] sm:$0xf]
        %v1809 = vld [vmem:[%s6 + $0x1c] sm:$0xf]
        %v1810 = vld [vmem:[#allocation2 + $0x10] sm:$0x1]
        %v1811 = vlaneseq
        %v1812 = vshrl.u32 %v1811, 7
        %v1813 = vsub.s32 0, %v1812
        %v1814 = vrot.slane %v1810, %v1813
        %v1823 = vunpack.c.l.b16 %v1802
        %v1824 = vunpack.c.l.b16 %v1803
        %v1825 = vunpack.c.l.b16 %v1804
        %v1826 = vunpack.c.l.b16 %v1805
        %v1827 = vunpack.c.l.b16 %v1806
        %v1828 = vunpack.c.l.b16 %v1807
        %v1829 = vunpack.c.l.b16 %v1808
        %v1830 = vunpack.c.l.b16 %v1809
        %v1831 = vpack.c.b16 %v1824, %v1823
        %v1832 = vpack.c.b16 %v1826, %v1825
        %v1833 = vpack.c.b16 %v1828, %v1827
        %v1834 = vpack.c.b16 %v1830, %v1829
        %vm1839 = vcmask 523264
        %v1841 = vsel %vm1839, %v1801, 0
        %1843 = vmatprep.subr.bf16.mxu0 0
        %1844 = vmatpush1.bf16.msra.mxu0 0
        %1845 = vmatprep.subr.bf16.mxu0 0
        %1846 = vmatpush1.bf16.msra.mxu0 0
        %1847 = vmatprep.subr.bf16.mxu0 0
        %1848 = vmatpush1.bf16.msra.mxu0 0
        %1849 = vmatprep.subr.bf16.mxu0 0
        %1850 = vmatpush1.bf16.msra.mxu0 0
        %1851 = vmatprep.subr.bf16.mxu0 0
        %1852 = vmatpush1.bf16.msra.mxu0 %v1834
        %1853 = vmatprep.subr.bf16.mxu0 0
        %1854 = vmatpush1.bf16.msra.mxu0 %v1833
        %1855 = vmatprep.subr.bf16.mxu0 0
        %1856 = vmatpush1.bf16.msra.mxu0 %v1832
        %1857 = vmatprep.subr.bf16.mxu0 0
        %1858 = vmatpush1.bf16.msra.mxu0 %v1831
        %1859 = vmatprep.subr.bf16.mxu0 0
        %1860 = vmatpush2.bf16.msra.mxu0 0
        %1861 = vmatprep.subr.bf16.mxu0 0
        %1862 = vmatpush2.bf16.msra.mxu0 0
        %1863 = vmatprep.subr.bf16.mxu0 0
        %1864 = vmatpush2.bf16.msra.mxu0 0
        %1865 = vmatprep.subr.bf16.mxu0 0
        %1866 = vmatpush2.bf16.msra.mxu0 0
        %1867 = vmatprep.subr.bf16.mxu0 0
        %1868 = vmatpush2.bf16.msra.mxu0 0
        %1869 = vmatprep.subr.bf16.mxu0 0
        %1870 = vmatpush2.bf16.msra.mxu0 0
        %1871 = vmatprep.subr.bf16.mxu0 0
        %1872 = vmatpush2.bf16.msra.mxu0 0
        %1873 = vmatprep.subr.bf16.mxu0 0
        %1874 = vmatpush2.bf16.msra.mxu0 0
        %1875 = vmatprep.mubr.bf16.mxu0 0
        %1876 = vmatmul.mubr.bf16.gmra.mxu0 %v1841
        %v1877 = vpop.f32.mrf.mxu0
        %v1878 = vadd.f32 %v1814, %v1877
        %v1879 = vpop.f32.mrf.mxu0
        %v1880 = vpop.f32.mrf.mxu0
        %v1881 = vpop.f32.mrf.mxu0
        %1882 = vdwg.mxu0
        %v1883 = vadd.f32 %v1878, %v1734
        %v1884 = vsel %vm382, %v1883, 0.0
        %1885 = vadd.xlane.f32.xlu0 %v1884
        %v1886 = vpop.xlane.xlu0 %1885
        %v1887 = vmul.f32 %v1886, %v429
        %v1888 = vsub.f32 %v1883, %v1887
        %v1889 = vmul.f32 %v1888, %v1888
        %v1890 = vsel %vm382, %v1889, 0.0
        %1891 = vadd.xlane.f32.xlu0 %v1890
        %v1892 = vpop.xlane.xlu0 %1891
        %v1893 = vmul.f32 %v1892, %v429
        %v1894 = vadd.f32 %v1893, 1e-06
        %v1895 = vrsqrt.pop %v1894
        %v1896 = vmul.f32 %v1888, %v1895
        %v1897 = vld [vmem:[#allocation2 + $0x11] sm:$0x1]
        %v1898 = vlaneseq
        %v1899 = vshrl.u32 %v1898, 7
        %v1900 = vsub.s32 0, %v1899
        %v1901 = vrot.slane %v1897, %v1900
        %v1902 = vmul.f32 %v1896, %v1901
        %v1903 = vld [vmem:[#allocation2 + $0x12] sm:$0x1]
        %v1904 = vlaneseq
        %v1905 = vshrl.u32 %v1904, 7
        %v1906 = vsub.s32 0, %v1905
        %v1907 = vrot.slane %v1903, %v1906
        %v1908 = vadd.f32 %v1902, %v1907
        %s1909 = scalar_lea.vmem %s7, 16
        %v1910 = vld [vmem:[%s1909] sm:$0xf]
        %v1911 = vld [vmem:[%s1909 + $0x4] sm:$0xf]
        %v1912 = vld [vmem:[%s1909 + $0x8] sm:$0xf]
        %v1913 = vld [vmem:[%s1909 + $0xc] sm:$0xf]
        %v1914 = vld [vmem:[#allocation2 + $0x1c] sm:$0x1]
        %v1915 = vlaneseq
        %v1916 = vshrl.u32 %v1915, 7
        %v1917 = vsub.s32 0, %v1916
        %v1918 = vrot.slane %v1914, %v1917
        %v1923 = vunpack.c.l.b16 %v1910
        %v1924 = vunpack.c.l.b16 %v1911
        %v1925 = vunpack.c.l.b16 %v1912
        %v1926 = vunpack.c.l.b16 %v1913
        %v1927 = vpack.c.b16 %v1924, %v1923
        %v1928 = vpack.c.b16 %v1926, %v1925
        %1931 = vmatprep.subr.bf16.mxu0 0
        %1932 = vmatpush1.bf16.msra.mxu0 0
        %1933 = vmatprep.subr.bf16.mxu0 0
        %1934 = vmatpush1.bf16.msra.mxu0 0
        %1935 = vmatprep.subr.bf16.mxu0 0
        %1936 = vmatpush1.bf16.msra.mxu0 0
        %1937 = vmatprep.subr.bf16.mxu0 0
        %1938 = vmatpush1.bf16.msra.mxu0 0
        %1939 = vmatprep.subr.bf16.mxu0 0
        %1940 = vmatpush1.bf16.msra.mxu0 0
        %1941 = vmatprep.subr.bf16.mxu0 0
        %1942 = vmatpush1.bf16.msra.mxu0 0
        %1943 = vmatprep.subr.bf16.mxu0 0
        %1944 = vmatpush1.bf16.msra.mxu0 %v1928
        %1945 = vmatprep.subr.bf16.mxu0 0
        %1946 = vmatpush1.bf16.msra.mxu0 %v1927
        %1947 = vmatprep.subr.bf16.mxu0 0
        %1948 = vmatpush2.bf16.msra.mxu0 0
        %1949 = vmatprep.subr.bf16.mxu0 0
        %1950 = vmatpush2.bf16.msra.mxu0 0
        %1951 = vmatprep.subr.bf16.mxu0 0
        %1952 = vmatpush2.bf16.msra.mxu0 0
        %1953 = vmatprep.subr.bf16.mxu0 0
        %1954 = vmatpush2.bf16.msra.mxu0 0
        %1955 = vmatprep.subr.bf16.mxu0 0
        %1956 = vmatpush2.bf16.msra.mxu0 0
        %1957 = vmatprep.subr.bf16.mxu0 0
        %1958 = vmatpush2.bf16.msra.mxu0 0
        %1959 = vmatprep.subr.bf16.mxu0 0
        %1960 = vmatpush2.bf16.msra.mxu0 0
        %1961 = vmatprep.subr.bf16.mxu0 0
        %1962 = vmatpush2.bf16.msra.mxu0 0
        %1963 = vmatprep.mubr.bf16.mxu0 0
        %1964 = vmatmul.mubr.bf16.gmra.mxu0 %v384
        %v1965 = vpop.f32.mrf.mxu0
        %v1966 = vadd.f32 %v1918, %v1965
        %v1967 = vpop.f32.mrf.mxu0
        %v1968 = vpop.f32.mrf.mxu0
        %v1969 = vpop.f32.mrf.mxu0
        %1970 = vdwg.mxu0
        %v1971 = vsel %vm382, %v1966, 0.0
        %1972 = vadd.xlane.f32.xlu0 %v1971
        %v1973 = vpop.xlane.xlu0 %1972
        %v1974 = vmul.f32 %v1973, %v429
        %v1975 = vsub.f32 %v1966, %v1974
        %v1976 = vmul.f32 %v1975, %v1975
        %v1977 = vsel %vm382, %v1976, 0.0
        %1978 = vadd.xlane.f32.xlu0 %v1977
        %v1979 = vpop.xlane.xlu0 %1978
        %v1980 = vmul.f32 %v1979, %v429
        %v1981 = vadd.f32 %v1980, 1e-06
        %v1982 = vrsqrt.pop %v1981
        %v1983 = vmul.f32 %v1975, %v1982
        %v1984 = vld [vmem:[#allocation2 + $0x1f] sm:$0x1]
        %v1985 = vlaneseq
        %v1986 = vshrl.u32 %v1985, 7
        %v1987 = vsub.s32 0, %v1986
        %v1988 = vrot.slane %v1984, %v1987
        %v1989 = vmul.f32 %v1983, %v1988
        %v1990 = vld [vmem:[#allocation2 + $0x20] sm:$0x1]
        %v1991 = vlaneseq
        %v1992 = vshrl.u32 %v1991, 7
        %v1993 = vsub.s32 0, %v1992
        %v1994 = vrot.slane %v1990, %v1993
        %v1995 = vadd.f32 %v1989, %v1994
        %s1996 = scalar_lea.vmem %s2, 48
        %v1997 = vld [vmem:[%s1996] sm:$0xf]
        %v1998 = vld [vmem:[%s1996 + $0x4] sm:$0xf]
        %v1999 = vld [vmem:[%s1996 + $0x8] sm:$0xf]
        %v2000 = vld [vmem:[%s1996 + $0xc] sm:$0xf]
        %v2001 = vld [vmem:[%s1996 + $0x10] sm:$0xf]
        %v2002 = vld [vmem:[%s1996 + $0x14] sm:$0xf]
        %v2003 = vld [vmem:[%s1996 + $0x18] sm:$0xf]
        %v2004 = vld [vmem:[%s1996 + $0x1c] sm:$0xf]
        %v2005 = vld [vmem:[%s1996 + $0x20] sm:$0xf]
        %v2006 = vld [vmem:[%s1996 + $0x24] sm:$0xf]
        %v2007 = vld [vmem:[%s1996 + $0x28] sm:$0xf]
        %v2008 = vld [vmem:[%s1996 + $0x2c] sm:$0xf]
        %s2009 = scalar_lea.vmem %s3, 12
        %v2010 = vld [vmem:[%s2009] sm:$0x1]
        %v2011 = vld [vmem:[%s2009 + $0x1] sm:$0x1]
        %v2012 = vld [vmem:[%s2009 + $0x2] sm:$0x1]
        %v2013 = vld [vmem:[%s2009 + $0x3] sm:$0x1]
        %v2014 = vld [vmem:[%s2009 + $0x4] sm:$0x1]
        %v2015 = vld [vmem:[%s2009 + $0x5] sm:$0x1]
        %v2016 = vld [vmem:[%s2009 + $0x6] sm:$0x1]
        %v2017 = vld [vmem:[%s2009 + $0x7] sm:$0x1]
        %v2018 = vld [vmem:[%s2009 + $0x8] sm:$0x1]
        %v2019 = vld [vmem:[%s2009 + $0x9] sm:$0x1]
        %v2020 = vld [vmem:[%s2009 + $0xa] sm:$0x1]
        %v2021 = vld [vmem:[%s2009 + $0xb] sm:$0x1]
        %v2022 = vpack.c.bf16 %v1995, %v1995
        %v2035 = vlaneseq
        %v2036 = vshrl.u32 %v2035, 7
        %v2037 = vsub.s32 0, %v2036
        %v2038 = vrot.slane %v2010, %v2037
        %v2039 = vlaneseq
        %v2040 = vshrl.u32 %v2039, 7
        %v2041 = vsub.s32 0, %v2040
        %v2042 = vrot.slane %v2011, %v2041
        %v2043 = vlaneseq
        %v2044 = vshrl.u32 %v2043, 7
        %v2045 = vsub.s32 0, %v2044
        %v2046 = vrot.slane %v2012, %v2045
        %v2047 = vlaneseq
        %v2048 = vshrl.u32 %v2047, 7
        %v2049 = vsub.s32 0, %v2048
        %v2050 = vrot.slane %v2013, %v2049
        %v2051 = vlaneseq
        %v2052 = vshrl.u32 %v2051, 7
        %v2053 = vsub.s32 0, %v2052
        %v2054 = vrot.slane %v2014, %v2053
        %v2055 = vlaneseq
        %v2056 = vshrl.u32 %v2055, 7
        %v2057 = vsub.s32 0, %v2056
        %v2058 = vrot.slane %v2015, %v2057
        %v2059 = vlaneseq
        %v2060 = vshrl.u32 %v2059, 7
        %v2061 = vsub.s32 0, %v2060
        %v2062 = vrot.slane %v2016, %v2061
        %v2063 = vlaneseq
        %v2064 = vshrl.u32 %v2063, 7
        %v2065 = vsub.s32 0, %v2064
        %v2066 = vrot.slane %v2017, %v2065
        %v2067 = vlaneseq
        %v2068 = vshrl.u32 %v2067, 7
        %v2069 = vsub.s32 0, %v2068
        %v2070 = vrot.slane %v2018, %v2069
        %v2071 = vlaneseq
        %v2072 = vshrl.u32 %v2071, 7
        %v2073 = vsub.s32 0, %v2072
        %v2074 = vrot.slane %v2019, %v2073
        %v2075 = vlaneseq
        %v2076 = vshrl.u32 %v2075, 7
        %v2077 = vsub.s32 0, %v2076
        %v2078 = vrot.slane %v2020, %v2077
        %v2079 = vlaneseq
        %v2080 = vshrl.u32 %v2079, 7
        %v2081 = vsub.s32 0, %v2080
        %v2082 = vrot.slane %v2021, %v2081
        %v2096 = vsel %vm382, %v2022, 0
        %v2099 = vsel %vm382, %v1997, 0
        %2101 = vmatprep.subr.bf16.mxu0 0
        %2102 = vmatpush1.bf16.xpose.msra.mxu0 0
        %2103 = vmatprep.subr.bf16.mxu0 0
        %2104 = vmatpush1.bf16.xpose.msra.mxu0 0
        %2105 = vmatprep.subr.bf16.mxu0 0
        %2106 = vmatpush1.bf16.xpose.msra.mxu0 0
        %2107 = vmatprep.subr.bf16.mxu0 0
        %2108 = vmatpush1.bf16.xpose.msra.mxu0 0
        %2109 = vmatprep.subr.bf16.mxu0 0
        %2110 = vmatpush1.bf16.xpose.msra.mxu0 0
        %2111 = vmatprep.subr.bf16.mxu0 0
        %2112 = vmatpush1.bf16.xpose.msra.mxu0 0
        %2113 = vmatprep.subr.bf16.mxu0 0
        %2114 = vmatpush1.bf16.xpose.msra.mxu0 0
        %2115 = vmatprep.subr.bf16.mxu0 0
        %2116 = vmatpush1.bf16.xpose.msra.mxu0 %v2099
        %2117 = vmatprep.subr.bf16.mxu0 0
        %2118 = vmatpush2.bf16.xpose.msra.mxu0 0
        %2119 = vmatprep.subr.bf16.mxu0 0
        %2120 = vmatpush2.bf16.xpose.msra.mxu0 0
        %2121 = vmatprep.subr.bf16.mxu0 0
        %2122 = vmatpush2.bf16.xpose.msra.mxu0 0
        %2123 = vmatprep.subr.bf16.mxu0 0
        %2124 = vmatpush2.bf16.xpose.msra.mxu0 0
        %2125 = vmatprep.subr.bf16.mxu0 0
        %2126 = vmatpush2.bf16.xpose.msra.mxu0 0
        %2127 = vmatprep.subr.bf16.mxu0 0
        %2128 = vmatpush2.bf16.xpose.msra.mxu0 0
        %2129 = vmatprep.subr.bf16.mxu0 0
        %2130 = vmatpush2.bf16.xpose.msra.mxu0 0
        %2131 = vmatprep.subr.bf16.mxu0 0
        %2132 = vmatpush2.bf16.xpose.msra.mxu0 0
        %2133 = vmatprep.mubr.bf16.mxu0 0
        %2134 = vmatmul.mubr.bf16.gmra.mxu0 %v2096
        %v2135 = vpop.f32.mrf.mxu0
        %v2136 = vadd.f32 %v2038, %v2135
        %v2137 = vpop.f32.mrf.mxu0
        %v2138 = vpop.f32.mrf.mxu0
        %v2139 = vpop.f32.mrf.mxu0
        %2140 = vdwg.mxu0
        %v2142 = vsel %vm382, %v1998, 0
        %2144 = vmatprep.subr.bf16.mxu0 0
        %2145 = vmatpush1.bf16.xpose.msra.mxu0 0
        %2146 = vmatprep.subr.bf16.mxu0 0
        %2147 = vmatpush1.bf16.xpose.msra.mxu0 0
        %2148 = vmatprep.subr.bf16.mxu0 0
        %2149 = vmatpush1.bf16.xpose.msra.mxu0 0
        %2150 = vmatprep.subr.bf16.mxu0 0
        %2151 = vmatpush1.bf16.xpose.msra.mxu0 0
        %2152 = vmatprep.subr.bf16.mxu0 0
        %2153 = vmatpush1.bf16.xpose.msra.mxu0 0
        %2154 = vmatprep.subr.bf16.mxu0 0
        %2155 = vmatpush1.bf16.xpose.msra.mxu0 0
        %2156 = vmatprep.subr.bf16.mxu0 0
        %2157 = vmatpush1.bf16.xpose.msra.mxu0 0
        %2158 = vmatprep.subr.bf16.mxu0 0
        %2159 = vmatpush1.bf16.xpose.msra.mxu0 %v2142
        %2160 = vmatprep.subr.bf16.mxu0 0
        %2161 = vmatpush2.bf16.xpose.msra.mxu0 0
        %2162 = vmatprep.subr.bf16.mxu0 0
        %2163 = vmatpush2.bf16.xpose.msra.mxu0 0
        %2164 = vmatprep.subr.bf16.mxu0 0
        %2165 = vmatpush2.bf16.xpose.msra.mxu0 0
        %2166 = vmatprep.subr.bf16.mxu0 0
        %2167 = vmatpush2.bf16.xpose.msra.mxu0 0
        %2168 = vmatprep.subr.bf16.mxu0 0
        %2169 = vmatpush2.bf16.xpose.msra.mxu0 0
        %2170 = vmatprep.subr.bf16.mxu0 0
        %2171 = vmatpush2.bf16.xpose.msra.mxu0 0
        %2172 = vmatprep.subr.bf16.mxu0 0
        %2173 = vmatpush2.bf16.xpose.msra.mxu0 0
        %2174 = vmatprep.subr.bf16.mxu0 0
        %2175 = vmatpush2.bf16.xpose.msra.mxu0 0
        %2176 = vmatprep.mubr.bf16.mxu0 0
        %2177 = vmatmul.mubr.bf16.gmra.mxu0 %v2096
        %v2178 = vpop.f32.mrf.mxu0
        %v2179 = vadd.f32 %v2042, %v2178
        %v2180 = vpop.f32.mrf.mxu0
        %v2181 = vpop.f32.mrf.mxu0
        %v2182 = vpop.f32.mrf.mxu0
        %2183 = vdwg.mxu0
        %v2185 = vsel %vm382, %v1999, 0
        %2187 = vmatprep.subr.bf16.mxu0 0
        %2188 = vmatpush1.bf16.xpose.msra.mxu0 0
        %2189 = vmatprep.subr.bf16.mxu0 0
        %2190 = vmatpush1.bf16.xpose.msra.mxu0 0
        %2191 = vmatprep.subr.bf16.mxu0 0
        %2192 = vmatpush1.bf16.xpose.msra.mxu0 0
        %2193 = vmatprep.subr.bf16.mxu0 0
        %2194 = vmatpush1.bf16.xpose.msra.mxu0 0
        %2195 = vmatprep.subr.bf16.mxu0 0
        %2196 = vmatpush1.bf16.xpose.msra.mxu0 0
        %2197 = vmatprep.subr.bf16.mxu0 0
        %2198 = vmatpush1.bf16.xpose.msra.mxu0 0
        %2199 = vmatprep.subr.bf16.mxu0 0
        %2200 = vmatpush1.bf16.xpose.msra.mxu0 0
        %2201 = vmatprep.subr.bf16.mxu0 0
        %2202 = vmatpush1.bf16.xpose.msra.mxu0 %v2185
        %2203 = vmatprep.subr.bf16.mxu0 0
        %2204 = vmatpush2.bf16.xpose.msra.mxu0 0
        %2205 = vmatprep.subr.bf16.mxu0 0
        %2206 = vmatpush2.bf16.xpose.msra.mxu0 0
        %2207 = vmatprep.subr.bf16.mxu0 0
        %2208 = vmatpush2.bf16.xpose.msra.mxu0 0
        %2209 = vmatprep.subr.bf16.mxu0 0
        %2210 = vmatpush2.bf16.xpose.msra.mxu0 0
        %2211 = vmatprep.subr.bf16.mxu0 0
        %2212 = vmatpush2.bf16.xpose.msra.mxu0 0
        %2213 = vmatprep.subr.bf16.mxu0 0
        %2214 = vmatpush2.bf16.xpose.msra.mxu0 0
        %2215 = vmatprep.subr.bf16.mxu0 0
        %2216 = vmatpush2.bf16.xpose.msra.mxu0 0
        %2217 = vmatprep.subr.bf16.mxu0 0
        %2218 = vmatpush2.bf16.xpose.msra.mxu0 0
        %2219 = vmatprep.mubr.bf16.mxu0 0
        %2220 = vmatmul.mubr.bf16.gmra.mxu0 %v2096
        %v2221 = vpop.f32.mrf.mxu0
        %v2222 = vadd.f32 %v2046, %v2221
        %v2223 = vpop.f32.mrf.mxu0
        %v2224 = vpop.f32.mrf.mxu0
        %v2225 = vpop.f32.mrf.mxu0
        %2226 = vdwg.mxu0
        %v2228 = vsel %vm382, %v2000, 0
        %2230 = vmatprep.subr.bf16.mxu0 0
        %2231 = vmatpush1.bf16.xpose.msra.mxu0 0
        %2232 = vmatprep.subr.bf16.mxu0 0
        %2233 = vmatpush1.bf16.xpose.msra.mxu0 0
        %2234 = vmatprep.subr.bf16.mxu0 0
        %2235 = vmatpush1.bf16.xpose.msra.mxu0 0
        %2236 = vmatprep.subr.bf16.mxu0 0
        %2237 = vmatpush1.bf16.xpose.msra.mxu0 0
        %2238 = vmatprep.subr.bf16.mxu0 0
        %2239 = vmatpush1.bf16.xpose.msra.mxu0 0
        %2240 = vmatprep.subr.bf16.mxu0 0
        %2241 = vmatpush1.bf16.xpose.msra.mxu0 0
        %2242 = vmatprep.subr.bf16.mxu0 0
        %2243 = vmatpush1.bf16.xpose.msra.mxu0 0
        %2244 = vmatprep.subr.bf16.mxu0 0
        %2245 = vmatpush1.bf16.xpose.msra.mxu0 %v2228
        %2246 = vmatprep.subr.bf16.mxu0 0
        %2247 = vmatpush2.bf16.xpose.msra.mxu0 0
        %2248 = vmatprep.subr.bf16.mxu0 0
        %2249 = vmatpush2.bf16.xpose.msra.mxu0 0
        %2250 = vmatprep.subr.bf16.mxu0 0
        %2251 = vmatpush2.bf16.xpose.msra.mxu0 0
        %2252 = vmatprep.subr.bf16.mxu0 0
        %2253 = vmatpush2.bf16.xpose.msra.mxu0 0
        %2254 = vmatprep.subr.bf16.mxu0 0
        %2255 = vmatpush2.bf16.xpose.msra.mxu0 0
        %2256 = vmatprep.subr.bf16.mxu0 0
        %2257 = vmatpush2.bf16.xpose.msra.mxu0 0
        %2258 = vmatprep.subr.bf16.mxu0 0
        %2259 = vmatpush2.bf16.xpose.msra.mxu0 0
        %2260 = vmatprep.subr.bf16.mxu0 0
        %2261 = vmatpush2.bf16.xpose.msra.mxu0 0
        %2262 = vmatprep.mubr.bf16.mxu0 0
        %2263 = vmatmul.mubr.bf16.gmra.mxu0 %v2096
        %v2264 = vpop.f32.mrf.mxu0
        %v2265 = vadd.f32 %v2050, %v2264
        %v2266 = vpop.f32.mrf.mxu0
        %v2267 = vpop.f32.mrf.mxu0
        %v2268 = vpop.f32.mrf.mxu0
        %2269 = vdwg.mxu0
        %v2271 = vsel %vm382, %v2001, 0
        %2273 = vmatprep.subr.bf16.mxu0 0
        %2274 = vmatpush1.bf16.xpose.msra.mxu0 0
        %2275 = vmatprep.subr.bf16.mxu0 0
        %2276 = vmatpush1.bf16.xpose.msra.mxu0 0
        %2277 = vmatprep.subr.bf16.mxu0 0
        %2278 = vmatpush1.bf16.xpose.msra.mxu0 0
        %2279 = vmatprep.subr.bf16.mxu0 0
        %2280 = vmatpush1.bf16.xpose.msra.mxu0 0
        %2281 = vmatprep.subr.bf16.mxu0 0
        %2282 = vmatpush1.bf16.xpose.msra.mxu0 0
        %2283 = vmatprep.subr.bf16.mxu0 0
        %2284 = vmatpush1.bf16.xpose.msra.mxu0 0
        %2285 = vmatprep.subr.bf16.mxu0 0
        %2286 = vmatpush1.bf16.xpose.msra.mxu0 0
        %2287 = vmatprep.subr.bf16.mxu0 0
        %2288 = vmatpush1.bf16.xpose.msra.mxu0 %v2271
        %2289 = vmatprep.subr.bf16.mxu0 0
        %2290 = vmatpush2.bf16.xpose.msra.mxu0 0
        %2291 = vmatprep.subr.bf16.mxu0 0
        %2292 = vmatpush2.bf16.xpose.msra.mxu0 0
        %2293 = vmatprep.subr.bf16.mxu0 0
        %2294 = vmatpush2.bf16.xpose.msra.mxu0 0
        %2295 = vmatprep.subr.bf16.mxu0 0
        %2296 = vmatpush2.bf16.xpose.msra.mxu0 0
        %2297 = vmatprep.subr.bf16.mxu0 0
        %2298 = vmatpush2.bf16.xpose.msra.mxu0 0
        %2299 = vmatprep.subr.bf16.mxu0 0
        %2300 = vmatpush2.bf16.xpose.msra.mxu0 0
        %2301 = vmatprep.subr.bf16.mxu0 0
        %2302 = vmatpush2.bf16.xpose.msra.mxu0 0
        %2303 = vmatprep.subr.bf16.mxu0 0
        %2304 = vmatpush2.bf16.xpose.msra.mxu0 0
        %2305 = vmatprep.mubr.bf16.mxu0 0
        %2306 = vmatmul.mubr.bf16.gmra.mxu0 %v2096
        %v2307 = vpop.f32.mrf.mxu0
        %v2308 = vadd.f32 %v2054, %v2307
        %v2309 = vpop.f32.mrf.mxu0
        %v2310 = vpop.f32.mrf.mxu0
        %v2311 = vpop.f32.mrf.mxu0
        %2312 = vdwg.mxu0
        %v2314 = vsel %vm382, %v2002, 0
        %2316 = vmatprep.subr.bf16.mxu0 0
        %2317 = vmatpush1.bf16.xpose.msra.mxu0 0
        %2318 = vmatprep.subr.bf16.mxu0 0
        %2319 = vmatpush1.bf16.xpose.msra.mxu0 0
        %2320 = vmatprep.subr.bf16.mxu0 0
        %2321 = vmatpush1.bf16.xpose.msra.mxu0 0
        %2322 = vmatprep.subr.bf16.mxu0 0
        %2323 = vmatpush1.bf16.xpose.msra.mxu0 0
        %2324 = vmatprep.subr.bf16.mxu0 0
        %2325 = vmatpush1.bf16.xpose.msra.mxu0 0
        %2326 = vmatprep.subr.bf16.mxu0 0
        %2327 = vmatpush1.bf16.xpose.msra.mxu0 0
        %2328 = vmatprep.subr.bf16.mxu0 0
        %2329 = vmatpush1.bf16.xpose.msra.mxu0 0
        %2330 = vmatprep.subr.bf16.mxu0 0
        %2331 = vmatpush1.bf16.xpose.msra.mxu0 %v2314
        %2332 = vmatprep.subr.bf16.mxu0 0
        %2333 = vmatpush2.bf16.xpose.msra.mxu0 0
        %2334 = vmatprep.subr.bf16.mxu0 0
        %2335 = vmatpush2.bf16.xpose.msra.mxu0 0
        %2336 = vmatprep.subr.bf16.mxu0 0
        %2337 = vmatpush2.bf16.xpose.msra.mxu0 0
        %2338 = vmatprep.subr.bf16.mxu0 0
        %2339 = vmatpush2.bf16.xpose.msra.mxu0 0
        %2340 = vmatprep.subr.bf16.mxu0 0
        %2341 = vmatpush2.bf16.xpose.msra.mxu0 0
        %2342 = vmatprep.subr.bf16.mxu0 0
        %2343 = vmatpush2.bf16.xpose.msra.mxu0 0
        %2344 = vmatprep.subr.bf16.mxu0 0
        %2345 = vmatpush2.bf16.xpose.msra.mxu0 0
        %2346 = vmatprep.subr.bf16.mxu0 0
        %2347 = vmatpush2.bf16.xpose.msra.mxu0 0
        %2348 = vmatprep.mubr.bf16.mxu0 0
        %2349 = vmatmul.mubr.bf16.gmra.mxu0 %v2096
        %v2350 = vpop.f32.mrf.mxu0
        %v2351 = vadd.f32 %v2058, %v2350
        %v2352 = vpop.f32.mrf.mxu0
        %v2353 = vpop.f32.mrf.mxu0
        %v2354 = vpop.f32.mrf.mxu0
        %2355 = vdwg.mxu0
        %v2357 = vsel %vm382, %v2003, 0
        %2359 = vmatprep.subr.bf16.mxu0 0
        %2360 = vmatpush1.bf16.xpose.msra.mxu0 0
        %2361 = vmatprep.subr.bf16.mxu0 0
        %2362 = vmatpush1.bf16.xpose.msra.mxu0 0
        %2363 = vmatprep.subr.bf16.mxu0 0
        %2364 = vmatpush1.bf16.xpose.msra.mxu0 0
        %2365 = vmatprep.subr.bf16.mxu0 0
        %2366 = vmatpush1.bf16.xpose.msra.mxu0 0
        %2367 = vmatprep.subr.bf16.mxu0 0
        %2368 = vmatpush1.bf16.xpose.msra.mxu0 0
        %2369 = vmatprep.subr.bf16.mxu0 0
        %2370 = vmatpush1.bf16.xpose.msra.mxu0 0
        %2371 = vmatprep.subr.bf16.mxu0 0
        %2372 = vmatpush1.bf16.xpose.msra.mxu0 0
        %2373 = vmatprep.subr.bf16.mxu0 0
        %2374 = vmatpush1.bf16.xpose.msra.mxu0 %v2357
        %2375 = vmatprep.subr.bf16.mxu0 0
        %2376 = vmatpush2.bf16.xpose.msra.mxu0 0
        %2377 = vmatprep.subr.bf16.mxu0 0
        %2378 = vmatpush2.bf16.xpose.msra.mxu0 0
        %2379 = vmatprep.subr.bf16.mxu0 0
        %2380 = vmatpush2.bf16.xpose.msra.mxu0 0
        %2381 = vmatprep.subr.bf16.mxu0 0
        %2382 = vmatpush2.bf16.xpose.msra.mxu0 0
        %2383 = vmatprep.subr.bf16.mxu0 0
        %2384 = vmatpush2.bf16.xpose.msra.mxu0 0
        %2385 = vmatprep.subr.bf16.mxu0 0
        %2386 = vmatpush2.bf16.xpose.msra.mxu0 0
        %2387 = vmatprep.subr.bf16.mxu0 0
        %2388 = vmatpush2.bf16.xpose.msra.mxu0 0
        %2389 = vmatprep.subr.bf16.mxu0 0
        %2390 = vmatpush2.bf16.xpose.msra.mxu0 0
        %2391 = vmatprep.mubr.bf16.mxu0 0
        %2392 = vmatmul.mubr.bf16.gmra.mxu0 %v2096
        %v2393 = vpop.f32.mrf.mxu0
        %v2394 = vadd.f32 %v2062, %v2393
        %v2395 = vpop.f32.mrf.mxu0
        %v2396 = vpop.f32.mrf.mxu0
        %v2397 = vpop.f32.mrf.mxu0
        %2398 = vdwg.mxu0
        %v2400 = vsel %vm382, %v2004, 0
        %2402 = vmatprep.subr.bf16.mxu0 0
        %2403 = vmatpush1.bf16.xpose.msra.mxu0 0
        %2404 = vmatprep.subr.bf16.mxu0 0
        %2405 = vmatpush1.bf16.xpose.msra.mxu0 0
        %2406 = vmatprep.subr.bf16.mxu0 0
        %2407 = vmatpush1.bf16.xpose.msra.mxu0 0
        %2408 = vmatprep.subr.bf16.mxu0 0
        %2409 = vmatpush1.bf16.xpose.msra.mxu0 0
        %2410 = vmatprep.subr.bf16.mxu0 0
        %2411 = vmatpush1.bf16.xpose.msra.mxu0 0
        %2412 = vmatprep.subr.bf16.mxu0 0
        %2413 = vmatpush1.bf16.xpose.msra.mxu0 0
        %2414 = vmatprep.subr.bf16.mxu0 0
        %2415 = vmatpush1.bf16.xpose.msra.mxu0 0
        %2416 = vmatprep.subr.bf16.mxu0 0
        %2417 = vmatpush1.bf16.xpose.msra.mxu0 %v2400
        %2418 = vmatprep.subr.bf16.mxu0 0
        %2419 = vmatpush2.bf16.xpose.msra.mxu0 0
        %2420 = vmatprep.subr.bf16.mxu0 0
        %2421 = vmatpush2.bf16.xpose.msra.mxu0 0
        %2422 = vmatprep.subr.bf16.mxu0 0
        %2423 = vmatpush2.bf16.xpose.msra.mxu0 0
        %2424 = vmatprep.subr.bf16.mxu0 0
        %2425 = vmatpush2.bf16.xpose.msra.mxu0 0
        %2426 = vmatprep.subr.bf16.mxu0 0
        %2427 = vmatpush2.bf16.xpose.msra.mxu0 0
        %2428 = vmatprep.subr.bf16.mxu0 0
        %2429 = vmatpush2.bf16.xpose.msra.mxu0 0
        %2430 = vmatprep.subr.bf16.mxu0 0
        %2431 = vmatpush2.bf16.xpose.msra.mxu0 0
        %2432 = vmatprep.subr.bf16.mxu0 0
        %2433 = vmatpush2.bf16.xpose.msra.mxu0 0
        %2434 = vmatprep.mubr.bf16.mxu0 0
        %2435 = vmatmul.mubr.bf16.gmra.mxu0 %v2096
        %v2436 = vpop.f32.mrf.mxu0
        %v2437 = vadd.f32 %v2066, %v2436
        %v2438 = vpop.f32.mrf.mxu0
        %v2439 = vpop.f32.mrf.mxu0
        %v2440 = vpop.f32.mrf.mxu0
        %2441 = vdwg.mxu0
        %v2443 = vsel %vm382, %v2005, 0
        %2445 = vmatprep.subr.bf16.mxu0 0
        %2446 = vmatpush1.bf16.xpose.msra.mxu0 0
        %2447 = vmatprep.subr.bf16.mxu0 0
        %2448 = vmatpush1.bf16.xpose.msra.mxu0 0
        %2449 = vmatprep.subr.bf16.mxu0 0
        %2450 = vmatpush1.bf16.xpose.msra.mxu0 0
        %2451 = vmatprep.subr.bf16.mxu0 0
        %2452 = vmatpush1.bf16.xpose.msra.mxu0 0
        %2453 = vmatprep.subr.bf16.mxu0 0
        %2454 = vmatpush1.bf16.xpose.msra.mxu0 0
        %2455 = vmatprep.subr.bf16.mxu0 0
        %2456 = vmatpush1.bf16.xpose.msra.mxu0 0
        %2457 = vmatprep.subr.bf16.mxu0 0
        %2458 = vmatpush1.bf16.xpose.msra.mxu0 0
        %2459 = vmatprep.subr.bf16.mxu0 0
        %2460 = vmatpush1.bf16.xpose.msra.mxu0 %v2443
        %2461 = vmatprep.subr.bf16.mxu0 0
        %2462 = vmatpush2.bf16.xpose.msra.mxu0 0
        %2463 = vmatprep.subr.bf16.mxu0 0
        %2464 = vmatpush2.bf16.xpose.msra.mxu0 0
        %2465 = vmatprep.subr.bf16.mxu0 0
        %2466 = vmatpush2.bf16.xpose.msra.mxu0 0
        %2467 = vmatprep.subr.bf16.mxu0 0
        %2468 = vmatpush2.bf16.xpose.msra.mxu0 0
        %2469 = vmatprep.subr.bf16.mxu0 0
        %2470 = vmatpush2.bf16.xpose.msra.mxu0 0
        %2471 = vmatprep.subr.bf16.mxu0 0
        %2472 = vmatpush2.bf16.xpose.msra.mxu0 0
        %2473 = vmatprep.subr.bf16.mxu0 0
        %2474 = vmatpush2.bf16.xpose.msra.mxu0 0
        %2475 = vmatprep.subr.bf16.mxu0 0
        %2476 = vmatpush2.bf16.xpose.msra.mxu0 0
        %2477 = vmatprep.mubr.bf16.mxu0 0
        %2478 = vmatmul.mubr.bf16.gmra.mxu0 %v2096
        %v2479 = vpop.f32.mrf.mxu0
        %v2480 = vadd.f32 %v2070, %v2479
        %v2481 = vpop.f32.mrf.mxu0
        %v2482 = vpop.f32.mrf.mxu0
        %v2483 = vpop.f32.mrf.mxu0
        %2484 = vdwg.mxu0
        %v2486 = vsel %vm382, %v2006, 0
        %2488 = vmatprep.subr.bf16.mxu0 0
        %2489 = vmatpush1.bf16.xpose.msra.mxu0 0
        %2490 = vmatprep.subr.bf16.mxu0 0
        %2491 = vmatpush1.bf16.xpose.msra.mxu0 0
        %2492 = vmatprep.subr.bf16.mxu0 0
        %2493 = vmatpush1.bf16.xpose.msra.mxu0 0
        %2494 = vmatprep.subr.bf16.mxu0 0
        %2495 = vmatpush1.bf16.xpose.msra.mxu0 0
        %2496 = vmatprep.subr.bf16.mxu0 0
        %2497 = vmatpush1.bf16.xpose.msra.mxu0 0
        %2498 = vmatprep.subr.bf16.mxu0 0
        %2499 = vmatpush1.bf16.xpose.msra.mxu0 0
        %2500 = vmatprep.subr.bf16.mxu0 0
        %2501 = vmatpush1.bf16.xpose.msra.mxu0 0
        %2502 = vmatprep.subr.bf16.mxu0 0
        %2503 = vmatpush1.bf16.xpose.msra.mxu0 %v2486
        %2504 = vmatprep.subr.bf16.mxu0 0
        %2505 = vmatpush2.bf16.xpose.msra.mxu0 0
        %2506 = vmatprep.subr.bf16.mxu0 0
        %2507 = vmatpush2.bf16.xpose.msra.mxu0 0
        %2508 = vmatprep.subr.bf16.mxu0 0
        %2509 = vmatpush2.bf16.xpose.msra.mxu0 0
        %2510 = vmatprep.subr.bf16.mxu0 0
        %2511 = vmatpush2.bf16.xpose.msra.mxu0 0
        %2512 = vmatprep.subr.bf16.mxu0 0
        %2513 = vmatpush2.bf16.xpose.msra.mxu0 0
        %2514 = vmatprep.subr.bf16.mxu0 0
        %2515 = vmatpush2.bf16.xpose.msra.mxu0 0
        %2516 = vmatprep.subr.bf16.mxu0 0
        %2517 = vmatpush2.bf16.xpose.msra.mxu0 0
        %2518 = vmatprep.subr.bf16.mxu0 0
        %2519 = vmatpush2.bf16.xpose.msra.mxu0 0
        %2520 = vmatprep.mubr.bf16.mxu0 0
        %2521 = vmatmul.mubr.bf16.gmra.mxu0 %v2096
        %v2522 = vpop.f32.mrf.mxu0
        %v2523 = vadd.f32 %v2074, %v2522
        %v2524 = vpop.f32.mrf.mxu0
        %v2525 = vpop.f32.mrf.mxu0
        %v2526 = vpop.f32.mrf.mxu0
        %2527 = vdwg.mxu0
        %v2529 = vsel %vm382, %v2007, 0
        %2531 = vmatprep.subr.bf16.mxu0 0
        %2532 = vmatpush1.bf16.xpose.msra.mxu0 0
        %2533 = vmatprep.subr.bf16.mxu0 0
        %2534 = vmatpush1.bf16.xpose.msra.mxu0 0
        %2535 = vmatprep.subr.bf16.mxu0 0
        %2536 = vmatpush1.bf16.xpose.msra.mxu0 0
        %2537 = vmatprep.subr.bf16.mxu0 0
        %2538 = vmatpush1.bf16.xpose.msra.mxu0 0
        %2539 = vmatprep.subr.bf16.mxu0 0
        %2540 = vmatpush1.bf16.xpose.msra.mxu0 0
        %2541 = vmatprep.subr.bf16.mxu0 0
        %2542 = vmatpush1.bf16.xpose.msra.mxu0 0
        %2543 = vmatprep.subr.bf16.mxu0 0
        %2544 = vmatpush1.bf16.xpose.msra.mxu0 0
        %2545 = vmatprep.subr.bf16.mxu0 0
        %2546 = vmatpush1.bf16.xpose.msra.mxu0 %v2529
        %2547 = vmatprep.subr.bf16.mxu0 0
        %2548 = vmatpush2.bf16.xpose.msra.mxu0 0
        %2549 = vmatprep.subr.bf16.mxu0 0
        %2550 = vmatpush2.bf16.xpose.msra.mxu0 0
        %2551 = vmatprep.subr.bf16.mxu0 0
        %2552 = vmatpush2.bf16.xpose.msra.mxu0 0
        %2553 = vmatprep.subr.bf16.mxu0 0
        %2554 = vmatpush2.bf16.xpose.msra.mxu0 0
        %2555 = vmatprep.subr.bf16.mxu0 0
        %2556 = vmatpush2.bf16.xpose.msra.mxu0 0
        %2557 = vmatprep.subr.bf16.mxu0 0
        %2558 = vmatpush2.bf16.xpose.msra.mxu0 0
        %2559 = vmatprep.subr.bf16.mxu0 0
        %2560 = vmatpush2.bf16.xpose.msra.mxu0 0
        %2561 = vmatprep.subr.bf16.mxu0 0
        %2562 = vmatpush2.bf16.xpose.msra.mxu0 0
        %2563 = vmatprep.mubr.bf16.mxu0 0
        %2564 = vmatmul.mubr.bf16.gmra.mxu0 %v2096
        %v2565 = vpop.f32.mrf.mxu0
        %v2566 = vadd.f32 %v2078, %v2565
        %v2567 = vpop.f32.mrf.mxu0
        %v2568 = vpop.f32.mrf.mxu0
        %v2569 = vpop.f32.mrf.mxu0
        %2570 = vdwg.mxu0
        %v2572 = vsel %vm382, %v2008, 0
        %2574 = vmatprep.subr.bf16.mxu0 0
        %2575 = vmatpush1.bf16.xpose.msra.mxu0 0
        %2576 = vmatprep.subr.bf16.mxu0 0
        %2577 = vmatpush1.bf16.xpose.msra.mxu0 0
        %2578 = vmatprep.subr.bf16.mxu0 0
        %2579 = vmatpush1.bf16.xpose.msra.mxu0 0
        %2580 = vmatprep.subr.bf16.mxu0 0
        %2581 = vmatpush1.bf16.xpose.msra.mxu0 0
        %2582 = vmatprep.subr.bf16.mxu0 0
        %2583 = vmatpush1.bf16.xpose.msra.mxu0 0
        %2584 = vmatprep.subr.bf16.mxu0 0
        %2585 = vmatpush1.bf16.xpose.msra.mxu0 0
        %2586 = vmatprep.subr.bf16.mxu0 0
        %2587 = vmatpush1.bf16.xpose.msra.mxu0 0
        %2588 = vmatprep.subr.bf16.mxu0 0
        %2589 = vmatpush1.bf16.xpose.msra.mxu0 %v2572
        %2590 = vmatprep.subr.bf16.mxu0 0
        %2591 = vmatpush2.bf16.xpose.msra.mxu0 0
        %2592 = vmatprep.subr.bf16.mxu0 0
        %2593 = vmatpush2.bf16.xpose.msra.mxu0 0
        %2594 = vmatprep.subr.bf16.mxu0 0
        %2595 = vmatpush2.bf16.xpose.msra.mxu0 0
        %2596 = vmatprep.subr.bf16.mxu0 0
        %2597 = vmatpush2.bf16.xpose.msra.mxu0 0
        %2598 = vmatprep.subr.bf16.mxu0 0
        %2599 = vmatpush2.bf16.xpose.msra.mxu0 0
        %2600 = vmatprep.subr.bf16.mxu0 0
        %2601 = vmatpush2.bf16.xpose.msra.mxu0 0
        %2602 = vmatprep.subr.bf16.mxu0 0
        %2603 = vmatpush2.bf16.xpose.msra.mxu0 0
        %2604 = vmatprep.subr.bf16.mxu0 0
        %2605 = vmatpush2.bf16.xpose.msra.mxu0 0
        %2606 = vmatprep.mubr.bf16.mxu0 0
        %2607 = vmatmul.mubr.bf16.gmra.mxu0 %v2096
        %v2608 = vpop.f32.mrf.mxu0
        %v2609 = vadd.f32 %v2082, %v2608
        %v2610 = vpop.f32.mrf.mxu0
        %v2611 = vpop.f32.mrf.mxu0
        %v2612 = vpop.f32.mrf.mxu0
        %2613 = vdwg.mxu0
        %v2614 = vpack.c.bf16 %v2136, %v2136
        %v2615 = vpack.c.bf16 %v2179, %v2179
        %v2616 = vpack.c.bf16 %v2222, %v2222
        %v2617 = vpack.c.bf16 %v2265, %v2265
        %v2618 = vpack.c.bf16 %v2308, %v2308
        %v2619 = vpack.c.bf16 %v2351, %v2351
        %v2620 = vpack.c.bf16 %v2394, %v2394
        %v2621 = vpack.c.bf16 %v2437, %v2437
        %v2623 = vsel %vm1082, %v2614, 0
        %v2626 = vsel %vm1082, %v2618, 0
        %2628 = vmatprep.subr.bf16.mxu0 0
        %2629 = vmatpush1.bf16.xpose.msra.mxu0 0
        %2630 = vmatprep.subr.bf16.mxu0 0
        %2631 = vmatpush1.bf16.xpose.msra.mxu0 0
        %2632 = vmatprep.subr.bf16.mxu0 0
        %2633 = vmatpush1.bf16.xpose.msra.mxu0 0
        %2634 = vmatprep.subr.bf16.mxu0 0
        %2635 = vmatpush1.bf16.xpose.msra.mxu0 0
        %2636 = vmatprep.subr.bf16.mxu0 0
        %2637 = vmatpush1.bf16.xpose.msra.mxu0 0
        %2638 = vmatprep.subr.bf16.mxu0 0
        %2639 = vmatpush1.bf16.xpose.msra.mxu0 0
        %2640 = vmatprep.subr.bf16.mxu0 0
        %2641 = vmatpush1.bf16.xpose.msra.mxu0 0
        %2642 = vmatprep.subr.bf16.mxu0 0
        %2643 = vmatpush1.bf16.xpose.msra.mxu0 %v2626
        %2644 = vmatprep.subr.bf16.mxu0 0
        %2645 = vmatpush2.bf16.xpose.msra.mxu0 0
        %2646 = vmatprep.subr.bf16.mxu0 0
        %2647 = vmatpush2.bf16.xpose.msra.mxu0 0
        %2648 = vmatprep.subr.bf16.mxu0 0
        %2649 = vmatpush2.bf16.xpose.msra.mxu0 0
        %2650 = vmatprep.subr.bf16.mxu0 0
        %2651 = vmatpush2.bf16.xpose.msra.mxu0 0
        %2652 = vmatprep.subr.bf16.mxu0 0
        %2653 = vmatpush2.bf16.xpose.msra.mxu0 0
        %2654 = vmatprep.subr.bf16.mxu0 0
        %2655 = vmatpush2.bf16.xpose.msra.mxu0 0
        %2656 = vmatprep.subr.bf16.mxu0 0
        %2657 = vmatpush2.bf16.xpose.msra.mxu0 0
        %2658 = vmatprep.subr.bf16.mxu0 0
        %2659 = vmatpush2.bf16.xpose.msra.mxu0 0
        %2660 = vmatprep.mubr.bf16.mxu0 0
        %2661 = vmatmul.mubr.bf16.gmra.mxu0 %v2623
        %v2662 = vpop.f32.mrf.mxu0
        %v2663 = vadd.f32 %v1080, %v2662
        %v2664 = vpop.f32.mrf.mxu0
        %v2665 = vpop.f32.mrf.mxu0
        %v2666 = vpop.f32.mrf.mxu0
        %2667 = vdwg.mxu0
        %v2669 = vsel %vm1082, %v2615, 0
        %v2672 = vsel %vm1082, %v2619, 0
        %2674 = vmatprep.subr.bf16.mxu0 0
        %2675 = vmatpush1.bf16.xpose.msra.mxu0 0
        %2676 = vmatprep.subr.bf16.mxu0 0
        %2677 = vmatpush1.bf16.xpose.msra.mxu0 0
        %2678 = vmatprep.subr.bf16.mxu0 0
        %2679 = vmatpush1.bf16.xpose.msra.mxu0 0
        %2680 = vmatprep.subr.bf16.mxu0 0
        %2681 = vmatpush1.bf16.xpose.msra.mxu0 0
        %2682 = vmatprep.subr.bf16.mxu0 0
        %2683 = vmatpush1.bf16.xpose.msra.mxu0 0
        %2684 = vmatprep.subr.bf16.mxu0 0
        %2685 = vmatpush1.bf16.xpose.msra.mxu0 0
        %2686 = vmatprep.subr.bf16.mxu0 0
        %2687 = vmatpush1.bf16.xpose.msra.mxu0 0
        %2688 = vmatprep.subr.bf16.mxu0 0
        %2689 = vmatpush1.bf16.xpose.msra.mxu0 %v2672
        %2690 = vmatprep.subr.bf16.mxu0 0
        %2691 = vmatpush2.bf16.xpose.msra.mxu0 0
        %2692 = vmatprep.subr.bf16.mxu0 0
        %2693 = vmatpush2.bf16.xpose.msra.mxu0 0
        %2694 = vmatprep.subr.bf16.mxu0 0
        %2695 = vmatpush2.bf16.xpose.msra.mxu0 0
        %2696 = vmatprep.subr.bf16.mxu0 0
        %2697 = vmatpush2.bf16.xpose.msra.mxu0 0
        %2698 = vmatprep.subr.bf16.mxu0 0
        %2699 = vmatpush2.bf16.xpose.msra.mxu0 0
        %2700 = vmatprep.subr.bf16.mxu0 0
        %2701 = vmatpush2.bf16.xpose.msra.mxu0 0
        %2702 = vmatprep.subr.bf16.mxu0 0
        %2703 = vmatpush2.bf16.xpose.msra.mxu0 0
        %2704 = vmatprep.subr.bf16.mxu0 0
        %2705 = vmatpush2.bf16.xpose.msra.mxu0 0
        %2706 = vmatprep.mubr.bf16.mxu0 0
        %2707 = vmatmul.mubr.bf16.gmra.mxu0 %v2669
        %v2708 = vpop.f32.mrf.mxu0
        %v2709 = vadd.f32 %v1080, %v2708
        %v2710 = vpop.f32.mrf.mxu0
        %v2711 = vpop.f32.mrf.mxu0
        %v2712 = vpop.f32.mrf.mxu0
        %2713 = vdwg.mxu0
        %v2715 = vsel %vm1082, %v2616, 0
        %v2718 = vsel %vm1082, %v2620, 0
        %2720 = vmatprep.subr.bf16.mxu0 0
        %2721 = vmatpush1.bf16.xpose.msra.mxu0 0
        %2722 = vmatprep.subr.bf16.mxu0 0
        %2723 = vmatpush1.bf16.xpose.msra.mxu0 0
        %2724 = vmatprep.subr.bf16.mxu0 0
        %2725 = vmatpush1.bf16.xpose.msra.mxu0 0
        %2726 = vmatprep.subr.bf16.mxu0 0
        %2727 = vmatpush1.bf16.xpose.msra.mxu0 0
        %2728 = vmatprep.subr.bf16.mxu0 0
        %2729 = vmatpush1.bf16.xpose.msra.mxu0 0
        %2730 = vmatprep.subr.bf16.mxu0 0
        %2731 = vmatpush1.bf16.xpose.msra.mxu0 0
        %2732 = vmatprep.subr.bf16.mxu0 0
        %2733 = vmatpush1.bf16.xpose.msra.mxu0 0
        %2734 = vmatprep.subr.bf16.mxu0 0
        %2735 = vmatpush1.bf16.xpose.msra.mxu0 %v2718
        %2736 = vmatprep.subr.bf16.mxu0 0
        %2737 = vmatpush2.bf16.xpose.msra.mxu0 0
        %2738 = vmatprep.subr.bf16.mxu0 0
        %2739 = vmatpush2.bf16.xpose.msra.mxu0 0
        %2740 = vmatprep.subr.bf16.mxu0 0
        %2741 = vmatpush2.bf16.xpose.msra.mxu0 0
        %2742 = vmatprep.subr.bf16.mxu0 0
        %2743 = vmatpush2.bf16.xpose.msra.mxu0 0
        %2744 = vmatprep.subr.bf16.mxu0 0
        %2745 = vmatpush2.bf16.xpose.msra.mxu0 0
        %2746 = vmatprep.subr.bf16.mxu0 0
        %2747 = vmatpush2.bf16.xpose.msra.mxu0 0
        %2748 = vmatprep.subr.bf16.mxu0 0
        %2749 = vmatpush2.bf16.xpose.msra.mxu0 0
        %2750 = vmatprep.subr.bf16.mxu0 0
        %2751 = vmatpush2.bf16.xpose.msra.mxu0 0
        %2752 = vmatprep.mubr.bf16.mxu0 0
        %2753 = vmatmul.mubr.bf16.gmra.mxu0 %v2715
        %v2754 = vpop.f32.mrf.mxu0
        %v2755 = vadd.f32 %v1080, %v2754
        %v2756 = vpop.f32.mrf.mxu0
        %v2757 = vpop.f32.mrf.mxu0
        %v2758 = vpop.f32.mrf.mxu0
        %2759 = vdwg.mxu0
        %v2761 = vsel %vm1082, %v2617, 0
        %v2764 = vsel %vm1082, %v2621, 0
        %2766 = vmatprep.subr.bf16.mxu0 0
        %2767 = vmatpush1.bf16.xpose.msra.mxu0 0
        %2768 = vmatprep.subr.bf16.mxu0 0
        %2769 = vmatpush1.bf16.xpose.msra.mxu0 0
        %2770 = vmatprep.subr.bf16.mxu0 0
        %2771 = vmatpush1.bf16.xpose.msra.mxu0 0
        %2772 = vmatprep.subr.bf16.mxu0 0
        %2773 = vmatpush1.bf16.xpose.msra.mxu0 0
        %2774 = vmatprep.subr.bf16.mxu0 0
        %2775 = vmatpush1.bf16.xpose.msra.mxu0 0
        %2776 = vmatprep.subr.bf16.mxu0 0
        %2777 = vmatpush1.bf16.xpose.msra.mxu0 0
        %2778 = vmatprep.subr.bf16.mxu0 0
        %2779 = vmatpush1.bf16.xpose.msra.mxu0 0
        %2780 = vmatprep.subr.bf16.mxu0 0
        %2781 = vmatpush1.bf16.xpose.msra.mxu0 %v2764
        %2782 = vmatprep.subr.bf16.mxu0 0
        %2783 = vmatpush2.bf16.xpose.msra.mxu0 0
        %2784 = vmatprep.subr.bf16.mxu0 0
        %2785 = vmatpush2.bf16.xpose.msra.mxu0 0
        %2786 = vmatprep.subr.bf16.mxu0 0
        %2787 = vmatpush2.bf16.xpose.msra.mxu0 0
        %2788 = vmatprep.subr.bf16.mxu0 0
        %2789 = vmatpush2.bf16.xpose.msra.mxu0 0
        %2790 = vmatprep.subr.bf16.mxu0 0
        %2791 = vmatpush2.bf16.xpose.msra.mxu0 0
        %2792 = vmatprep.subr.bf16.mxu0 0
        %2793 = vmatpush2.bf16.xpose.msra.mxu0 0
        %2794 = vmatprep.subr.bf16.mxu0 0
        %2795 = vmatpush2.bf16.xpose.msra.mxu0 0
        %2796 = vmatprep.subr.bf16.mxu0 0
        %2797 = vmatpush2.bf16.xpose.msra.mxu0 0
        %2798 = vmatprep.mubr.bf16.mxu0 0
        %2799 = vmatmul.mubr.bf16.gmra.mxu0 %v2761
        %v2800 = vpop.f32.mrf.mxu0
        %v2801 = vadd.f32 %v1080, %v2800
        %v2802 = vpop.f32.mrf.mxu0
        %v2803 = vpop.f32.mrf.mxu0
        %v2804 = vpop.f32.mrf.mxu0
        %2805 = vdwg.mxu0
        %v2806 = vsel %vm1082, %v2663, -inf
        %2807 = vmax.xlane.f32.xlu0 %v2806
        %v2808 = vpop.xlane.xlu0 %2807
        %v2809 = vsel %vm1082, %v2709, -inf
        %2810 = vmax.xlane.f32.xlu0 %v2809
        %v2811 = vpop.xlane.xlu0 %2810
        %v2812 = vsel %vm1082, %v2755, -inf
        %2813 = vmax.xlane.f32.xlu0 %v2812
        %v2814 = vpop.xlane.xlu0 %2813
        %v2815 = vsel %vm1082, %v2801, -inf
        %2816 = vmax.xlane.f32.xlu0 %v2815
        %v2817 = vpop.xlane.xlu0 %2816
        %v2818 = vsub.f32 %v2663, %v2808
        %v2819 = vsub.f32 %v2709, %v2811
        %v2820 = vsub.f32 %v2755, %v2814
        %v2821 = vsub.f32 %v2801, %v2817
        %v2822 = vmul.f32 %v2818, 1.442695
        %v2823 = vpow.pop %v2822
        %v2824 = vmul.f32 %v2819, 1.442695
        %v2825 = vpow.pop %v2824
        %v2826 = vmul.f32 %v2820, 1.442695
        %v2827 = vpow.pop %v2826
        %v2828 = vmul.f32 %v2821, 1.442695
        %v2829 = vpow.pop %v2828
        %v2830 = vsel %vm1082, %v2823, 0.0
        %2831 = vadd.xlane.f32.xlu0 %v2830
        %v2832 = vpop.xlane.xlu0 %2831
        %v2833 = vsel %vm1082, %v2825, 0.0
        %2834 = vadd.xlane.f32.xlu0 %v2833
        %v2835 = vpop.xlane.xlu0 %2834
        %v2836 = vsel %vm1082, %v2827, 0.0
        %2837 = vadd.xlane.f32.xlu0 %v2836
        %v2838 = vpop.xlane.xlu0 %2837
        %v2839 = vsel %vm1082, %v2829, 0.0
        %2840 = vadd.xlane.f32.xlu0 %v2839
        %v2841 = vpop.xlane.xlu0 %2840
        %v2842 = vrcp.pop %v2832
        %v2843 = vrcp.pop %v2835
        %v2844 = vrcp.pop %v2838
        %v2845 = vrcp.pop %v2841
        %v2846 = vmul.f32 %v2823, %v2842
        %v2847 = vmul.f32 %v2825, %v2843
        %v2848 = vmul.f32 %v2827, %v2844
        %v2849 = vmul.f32 %v2829, %v2845
        %v2850 = vpack.c.bf16 %v2846, %v2846
        %v2851 = vpack.c.bf16 %v2847, %v2847
        %v2852 = vpack.c.bf16 %v2848, %v2848
        %v2853 = vpack.c.bf16 %v2849, %v2849
        %v2854 = vpack.c.bf16 %v2480, %v2480
        %v2855 = vpack.c.bf16 %v2523, %v2523
        %v2856 = vpack.c.bf16 %v2566, %v2566
        %v2857 = vpack.c.bf16 %v2609, %v2609
        %v2859 = vsel %vm1082, %v2850, 0
        %v2862 = vsel %vm1322, %v2854, 0
        %2864 = vmatprep.subr.bf16.mxu0 0
        %2865 = vmatpush1.bf16.msra.mxu0 0
        %2866 = vmatprep.subr.bf16.mxu0 0
        %2867 = vmatpush1.bf16.msra.mxu0 0
        %2868 = vmatprep.subr.bf16.mxu0 0
        %2869 = vmatpush1.bf16.msra.mxu0 0
        %2870 = vmatprep.subr.bf16.mxu0 0
        %2871 = vmatpush1.bf16.msra.mxu0 0
        %2872 = vmatprep.subr.bf16.mxu0 0
        %2873 = vmatpush1.bf16.msra.mxu0 0
        %2874 = vmatprep.subr.bf16.mxu0 0
        %2875 = vmatpush1.bf16.msra.mxu0 0
        %2876 = vmatprep.subr.bf16.mxu0 0
        %2877 = vmatpush1.bf16.msra.mxu0 0
        %2878 = vmatprep.subr.bf16.mxu0 0
        %2879 = vmatpush1.bf16.msra.mxu0 %v2862
        %2880 = vmatprep.subr.bf16.mxu0 0
        %2881 = vmatpush2.bf16.msra.mxu0 0
        %2882 = vmatprep.subr.bf16.mxu0 0
        %2883 = vmatpush2.bf16.msra.mxu0 0
        %2884 = vmatprep.subr.bf16.mxu0 0
        %2885 = vmatpush2.bf16.msra.mxu0 0
        %2886 = vmatprep.subr.bf16.mxu0 0
        %2887 = vmatpush2.bf16.msra.mxu0 0
        %2888 = vmatprep.subr.bf16.mxu0 0
        %2889 = vmatpush2.bf16.msra.mxu0 0
        %2890 = vmatprep.subr.bf16.mxu0 0
        %2891 = vmatpush2.bf16.msra.mxu0 0
        %2892 = vmatprep.subr.bf16.mxu0 0
        %2893 = vmatpush2.bf16.msra.mxu0 0
        %2894 = vmatprep.subr.bf16.mxu0 0
        %2895 = vmatpush2.bf16.msra.mxu0 0
        %2896 = vmatprep.mubr.bf16.mxu0 0
        %2897 = vmatmul.mubr.bf16.gmra.mxu0 %v2859
        %v2898 = vpop.f32.mrf.mxu0
        %v2899 = vadd.f32 0.0, %v2898
        %v2900 = vpop.f32.mrf.mxu0
        %v2901 = vpop.f32.mrf.mxu0
        %v2902 = vpop.f32.mrf.mxu0
        %2903 = vdwg.mxu0
        %v2905 = vsel %vm1082, %v2851, 0
        %v2908 = vsel %vm1322, %v2855, 0
        %2910 = vmatprep.subr.bf16.mxu0 0
        %2911 = vmatpush1.bf16.msra.mxu0 0
        %2912 = vmatprep.subr.bf16.mxu0 0
        %2913 = vmatpush1.bf16.msra.mxu0 0
        %2914 = vmatprep.subr.bf16.mxu0 0
        %2915 = vmatpush1.bf16.msra.mxu0 0
        %2916 = vmatprep.subr.bf16.mxu0 0
        %2917 = vmatpush1.bf16.msra.mxu0 0
        %2918 = vmatprep.subr.bf16.mxu0 0
        %2919 = vmatpush1.bf16.msra.mxu0 0
        %2920 = vmatprep.subr.bf16.mxu0 0
        %2921 = vmatpush1.bf16.msra.mxu0 0
        %2922 = vmatprep.subr.bf16.mxu0 0
        %2923 = vmatpush1.bf16.msra.mxu0 0
        %2924 = vmatprep.subr.bf16.mxu0 0
        %2925 = vmatpush1.bf16.msra.mxu0 %v2908
        %2926 = vmatprep.subr.bf16.mxu0 0
        %2927 = vmatpush2.bf16.msra.mxu0 0
        %2928 = vmatprep.subr.bf16.mxu0 0
        %2929 = vmatpush2.bf16.msra.mxu0 0
        %2930 = vmatprep.subr.bf16.mxu0 0
        %2931 = vmatpush2.bf16.msra.mxu0 0
        %2932 = vmatprep.subr.bf16.mxu0 0
        %2933 = vmatpush2.bf16.msra.mxu0 0
        %2934 = vmatprep.subr.bf16.mxu0 0
        %2935 = vmatpush2.bf16.msra.mxu0 0
        %2936 = vmatprep.subr.bf16.mxu0 0
        %2937 = vmatpush2.bf16.msra.mxu0 0
        %2938 = vmatprep.subr.bf16.mxu0 0
        %2939 = vmatpush2.bf16.msra.mxu0 0
        %2940 = vmatprep.subr.bf16.mxu0 0
        %2941 = vmatpush2.bf16.msra.mxu0 0
        %2942 = vmatprep.mubr.bf16.mxu0 0
        %2943 = vmatmul.mubr.bf16.gmra.mxu0 %v2905
        %v2944 = vpop.f32.mrf.mxu0
        %v2945 = vadd.f32 0.0, %v2944
        %v2946 = vpop.f32.mrf.mxu0
        %v2947 = vpop.f32.mrf.mxu0
        %v2948 = vpop.f32.mrf.mxu0
        %2949 = vdwg.mxu0
        %v2951 = vsel %vm1082, %v2852, 0
        %v2954 = vsel %vm1322, %v2856, 0
        %2956 = vmatprep.subr.bf16.mxu0 0
        %2957 = vmatpush1.bf16.msra.mxu0 0
        %2958 = vmatprep.subr.bf16.mxu0 0
        %2959 = vmatpush1.bf16.msra.mxu0 0
        %2960 = vmatprep.subr.bf16.mxu0 0
        %2961 = vmatpush1.bf16.msra.mxu0 0
        %2962 = vmatprep.subr.bf16.mxu0 0
        %2963 = vmatpush1.bf16.msra.mxu0 0
        %2964 = vmatprep.subr.bf16.mxu0 0
        %2965 = vmatpush1.bf16.msra.mxu0 0
        %2966 = vmatprep.subr.bf16.mxu0 0
        %2967 = vmatpush1.bf16.msra.mxu0 0
        %2968 = vmatprep.subr.bf16.mxu0 0
        %2969 = vmatpush1.bf16.msra.mxu0 0
        %2970 = vmatprep.subr.bf16.mxu0 0
        %2971 = vmatpush1.bf16.msra.mxu0 %v2954
        %2972 = vmatprep.subr.bf16.mxu0 0
        %2973 = vmatpush2.bf16.msra.mxu0 0
        %2974 = vmatprep.subr.bf16.mxu0 0
        %2975 = vmatpush2.bf16.msra.mxu0 0
        %2976 = vmatprep.subr.bf16.mxu0 0
        %2977 = vmatpush2.bf16.msra.mxu0 0
        %2978 = vmatprep.subr.bf16.mxu0 0
        %2979 = vmatpush2.bf16.msra.mxu0 0
        %2980 = vmatprep.subr.bf16.mxu0 0
        %2981 = vmatpush2.bf16.msra.mxu0 0
        %2982 = vmatprep.subr.bf16.mxu0 0
        %2983 = vmatpush2.bf16.msra.mxu0 0
        %2984 = vmatprep.subr.bf16.mxu0 0
        %2985 = vmatpush2.bf16.msra.mxu0 0
        %2986 = vmatprep.subr.bf16.mxu0 0
        %2987 = vmatpush2.bf16.msra.mxu0 0
        %2988 = vmatprep.mubr.bf16.mxu0 0
        %2989 = vmatmul.mubr.bf16.gmra.mxu0 %v2951
        %v2990 = vpop.f32.mrf.mxu0
        %v2991 = vadd.f32 0.0, %v2990
        %v2992 = vpop.f32.mrf.mxu0
        %v2993 = vpop.f32.mrf.mxu0
        %v2994 = vpop.f32.mrf.mxu0
        %2995 = vdwg.mxu0
        %v2997 = vsel %vm1082, %v2853, 0
        %v3000 = vsel %vm1322, %v2857, 0
        %3002 = vmatprep.subr.bf16.mxu0 0
        %3003 = vmatpush1.bf16.msra.mxu0 0
        %3004 = vmatprep.subr.bf16.mxu0 0
        %3005 = vmatpush1.bf16.msra.mxu0 0
        %3006 = vmatprep.subr.bf16.mxu0 0
        %3007 = vmatpush1.bf16.msra.mxu0 0
        %3008 = vmatprep.subr.bf16.mxu0 0
        %3009 = vmatpush1.bf16.msra.mxu0 0
        %3010 = vmatprep.subr.bf16.mxu0 0
        %3011 = vmatpush1.bf16.msra.mxu0 0
        %3012 = vmatprep.subr.bf16.mxu0 0
        %3013 = vmatpush1.bf16.msra.mxu0 0
        %3014 = vmatprep.subr.bf16.mxu0 0
        %3015 = vmatpush1.bf16.msra.mxu0 0
        %3016 = vmatprep.subr.bf16.mxu0 0
        %3017 = vmatpush1.bf16.msra.mxu0 %v3000
        %3018 = vmatprep.subr.bf16.mxu0 0
        %3019 = vmatpush2.bf16.msra.mxu0 0
        %3020 = vmatprep.subr.bf16.mxu0 0
        %3021 = vmatpush2.bf16.msra.mxu0 0
        %3022 = vmatprep.subr.bf16.mxu0 0
        %3023 = vmatpush2.bf16.msra.mxu0 0
        %3024 = vmatprep.subr.bf16.mxu0 0
        %3025 = vmatpush2.bf16.msra.mxu0 0
        %3026 = vmatprep.subr.bf16.mxu0 0
        %3027 = vmatpush2.bf16.msra.mxu0 0
        %3028 = vmatprep.subr.bf16.mxu0 0
        %3029 = vmatpush2.bf16.msra.mxu0 0
        %3030 = vmatprep.subr.bf16.mxu0 0
        %3031 = vmatpush2.bf16.msra.mxu0 0
        %3032 = vmatprep.subr.bf16.mxu0 0
        %3033 = vmatpush2.bf16.msra.mxu0 0
        %3034 = vmatprep.mubr.bf16.mxu0 0
        %3035 = vmatmul.mubr.bf16.gmra.mxu0 %v2997
        %v3036 = vpop.f32.mrf.mxu0
        %v3037 = vadd.f32 0.0, %v3036
        %v3038 = vpop.f32.mrf.mxu0
        %v3039 = vpop.f32.mrf.mxu0
        %v3040 = vpop.f32.mrf.mxu0
        %3041 = vdwg.mxu0
        %v3042 = vpack.c.bf16 %v2899, %v2899
        %v3043 = vpack.c.bf16 %v2945, %v2945
        %v3044 = vpack.c.bf16 %v2991, %v2991
        %v3045 = vpack.c.bf16 %v3037, %v3037
        %s3046 = scalar_lea.vmem %s4, 16
        %v3047 = vld [vmem:[%s3046] sm:$0xf]
        %v3048 = vld [vmem:[%s3046 + $0x4] sm:$0xf]
        %v3049 = vld [vmem:[%s3046 + $0x8] sm:$0xf]
        %v3050 = vld [vmem:[%s3046 + $0xc] sm:$0xf]
        %v3052 = vsel %vm1082, %v3042, 0
        %v3055 = vsel %vm1322, %v3047, 0
        %3057 = vmatprep.subr.bf16.mxu0 0
        %3058 = vmatpush1.bf16.msra.mxu0 0
        %3059 = vmatprep.subr.bf16.mxu0 0
        %3060 = vmatpush1.bf16.msra.mxu0 0
        %3061 = vmatprep.subr.bf16.mxu0 0
        %3062 = vmatpush1.bf16.msra.mxu0 0
        %3063 = vmatprep.subr.bf16.mxu0 0
        %3064 = vmatpush1.bf16.msra.mxu0 0
        %3065 = vmatprep.subr.bf16.mxu0 0
        %3066 = vmatpush1.bf16.msra.mxu0 0
        %3067 = vmatprep.subr.bf16.mxu0 0
        %3068 = vmatpush1.bf16.msra.mxu0 0
        %3069 = vmatprep.subr.bf16.mxu0 0
        %3070 = vmatpush1.bf16.msra.mxu0 0
        %3071 = vmatprep.subr.bf16.mxu0 0
        %3072 = vmatpush1.bf16.msra.mxu0 %v3055
        %3073 = vmatprep.subr.bf16.mxu0 0
        %3074 = vmatpush2.bf16.msra.mxu0 0
        %3075 = vmatprep.subr.bf16.mxu0 0
        %3076 = vmatpush2.bf16.msra.mxu0 0
        %3077 = vmatprep.subr.bf16.mxu0 0
        %3078 = vmatpush2.bf16.msra.mxu0 0
        %3079 = vmatprep.subr.bf16.mxu0 0
        %3080 = vmatpush2.bf16.msra.mxu0 0
        %3081 = vmatprep.subr.bf16.mxu0 0
        %3082 = vmatpush2.bf16.msra.mxu0 0
        %3083 = vmatprep.subr.bf16.mxu0 0
        %3084 = vmatpush2.bf16.msra.mxu0 0
        %3085 = vmatprep.subr.bf16.mxu0 0
        %3086 = vmatpush2.bf16.msra.mxu0 0
        %3087 = vmatprep.subr.bf16.mxu0 0
        %3088 = vmatpush2.bf16.msra.mxu0 0
        %3089 = vmatprep.mubr.bf16.mxu0 0
        %3090 = vmatmul.mubr.bf16.gmra.mxu0 %v3052
        %v3091 = vpop.f32.mrf.mxu0
        %v3092 = vadd.f32 0.0, %v3091
        %v3093 = vpop.f32.mrf.mxu0
        %v3094 = vpop.f32.mrf.mxu0
        %v3095 = vpop.f32.mrf.mxu0
        %3096 = vdwg.mxu0
        %v3098 = vsel %vm1082, %v3043, 0
        %v3101 = vsel %vm1322, %v3048, 0
        %3103 = vmatprep.subr.bf16.mxu0 0
        %3104 = vmatpush1.bf16.msra.mxu0 0
        %3105 = vmatprep.subr.bf16.mxu0 0
        %3106 = vmatpush1.bf16.msra.mxu0 0
        %3107 = vmatprep.subr.bf16.mxu0 0
        %3108 = vmatpush1.bf16.msra.mxu0 0
        %3109 = vmatprep.subr.bf16.mxu0 0
        %3110 = vmatpush1.bf16.msra.mxu0 0
        %3111 = vmatprep.subr.bf16.mxu0 0
        %3112 = vmatpush1.bf16.msra.mxu0 0
        %3113 = vmatprep.subr.bf16.mxu0 0
        %3114 = vmatpush1.bf16.msra.mxu0 0
        %3115 = vmatprep.subr.bf16.mxu0 0
        %3116 = vmatpush1.bf16.msra.mxu0 0
        %3117 = vmatprep.subr.bf16.mxu0 0
        %3118 = vmatpush1.bf16.msra.mxu0 %v3101
        %3119 = vmatprep.subr.bf16.mxu0 0
        %3120 = vmatpush2.bf16.msra.mxu0 0
        %3121 = vmatprep.subr.bf16.mxu0 0
        %3122 = vmatpush2.bf16.msra.mxu0 0
        %3123 = vmatprep.subr.bf16.mxu0 0
        %3124 = vmatpush2.bf16.msra.mxu0 0
        %3125 = vmatprep.subr.bf16.mxu0 0
        %3126 = vmatpush2.bf16.msra.mxu0 0
        %3127 = vmatprep.subr.bf16.mxu0 0
        %3128 = vmatpush2.bf16.msra.mxu0 0
        %3129 = vmatprep.subr.bf16.mxu0 0
        %3130 = vmatpush2.bf16.msra.mxu0 0
        %3131 = vmatprep.subr.bf16.mxu0 0
        %3132 = vmatpush2.bf16.msra.mxu0 0
        %3133 = vmatprep.subr.bf16.mxu0 0
        %3134 = vmatpush2.bf16.msra.mxu0 0
        %3135 = vmatprep.mubr.bf16.mxu0 0
        %3136 = vmatmul.mubr.bf16.gmra.mxu0 %v3098
        %v3137 = vpop.f32.mrf.mxu0
        %v3138 = vadd.f32 0.0, %v3137
        %v3139 = vpop.f32.mrf.mxu0
        %v3140 = vpop.f32.mrf.mxu0
        %v3141 = vpop.f32.mrf.mxu0
        %3142 = vdwg.mxu0
        %v3144 = vsel %vm1082, %v3044, 0
        %v3147 = vsel %vm1322, %v3049, 0
        %3149 = vmatprep.subr.bf16.mxu0 0
        %3150 = vmatpush1.bf16.msra.mxu0 0
        %3151 = vmatprep.subr.bf16.mxu0 0
        %3152 = vmatpush1.bf16.msra.mxu0 0
        %3153 = vmatprep.subr.bf16.mxu0 0
        %3154 = vmatpush1.bf16.msra.mxu0 0
        %3155 = vmatprep.subr.bf16.mxu0 0
        %3156 = vmatpush1.bf16.msra.mxu0 0
        %3157 = vmatprep.subr.bf16.mxu0 0
        %3158 = vmatpush1.bf16.msra.mxu0 0
        %3159 = vmatprep.subr.bf16.mxu0 0
        %3160 = vmatpush1.bf16.msra.mxu0 0
        %3161 = vmatprep.subr.bf16.mxu0 0
        %3162 = vmatpush1.bf16.msra.mxu0 0
        %3163 = vmatprep.subr.bf16.mxu0 0
        %3164 = vmatpush1.bf16.msra.mxu0 %v3147
        %3165 = vmatprep.subr.bf16.mxu0 0
        %3166 = vmatpush2.bf16.msra.mxu0 0
        %3167 = vmatprep.subr.bf16.mxu0 0
        %3168 = vmatpush2.bf16.msra.mxu0 0
        %3169 = vmatprep.subr.bf16.mxu0 0
        %3170 = vmatpush2.bf16.msra.mxu0 0
        %3171 = vmatprep.subr.bf16.mxu0 0
        %3172 = vmatpush2.bf16.msra.mxu0 0
        %3173 = vmatprep.subr.bf16.mxu0 0
        %3174 = vmatpush2.bf16.msra.mxu0 0
        %3175 = vmatprep.subr.bf16.mxu0 0
        %3176 = vmatpush2.bf16.msra.mxu0 0
        %3177 = vmatprep.subr.bf16.mxu0 0
        %3178 = vmatpush2.bf16.msra.mxu0 0
        %3179 = vmatprep.subr.bf16.mxu0 0
        %3180 = vmatpush2.bf16.msra.mxu0 0
        %3181 = vmatprep.mubr.bf16.mxu0 0
        %3182 = vmatmul.mubr.bf16.gmra.mxu0 %v3144
        %v3183 = vpop.f32.mrf.mxu0
        %v3184 = vadd.f32 0.0, %v3183
        %v3185 = vpop.f32.mrf.mxu0
        %v3186 = vpop.f32.mrf.mxu0
        %v3187 = vpop.f32.mrf.mxu0
        %3188 = vdwg.mxu0
        %v3190 = vsel %vm1082, %v3045, 0
        %v3193 = vsel %vm1322, %v3050, 0
        %3195 = vmatprep.subr.bf16.mxu0 0
        %3196 = vmatpush1.bf16.msra.mxu0 0
        %3197 = vmatprep.subr.bf16.mxu0 0
        %3198 = vmatpush1.bf16.msra.mxu0 0
        %3199 = vmatprep.subr.bf16.mxu0 0
        %3200 = vmatpush1.bf16.msra.mxu0 0
        %3201 = vmatprep.subr.bf16.mxu0 0
        %3202 = vmatpush1.bf16.msra.mxu0 0
        %3203 = vmatprep.subr.bf16.mxu0 0
        %3204 = vmatpush1.bf16.msra.mxu0 0
        %3205 = vmatprep.subr.bf16.mxu0 0
        %3206 = vmatpush1.bf16.msra.mxu0 0
        %3207 = vmatprep.subr.bf16.mxu0 0
        %3208 = vmatpush1.bf16.msra.mxu0 0
        %3209 = vmatprep.subr.bf16.mxu0 0
        %3210 = vmatpush1.bf16.msra.mxu0 %v3193
        %3211 = vmatprep.subr.bf16.mxu0 0
        %3212 = vmatpush2.bf16.msra.mxu0 0
        %3213 = vmatprep.subr.bf16.mxu0 0
        %3214 = vmatpush2.bf16.msra.mxu0 0
        %3215 = vmatprep.subr.bf16.mxu0 0
        %3216 = vmatpush2.bf16.msra.mxu0 0
        %3217 = vmatprep.subr.bf16.mxu0 0
        %3218 = vmatpush2.bf16.msra.mxu0 0
        %3219 = vmatprep.subr.bf16.mxu0 0
        %3220 = vmatpush2.bf16.msra.mxu0 0
        %3221 = vmatprep.subr.bf16.mxu0 0
        %3222 = vmatpush2.bf16.msra.mxu0 0
        %3223 = vmatprep.subr.bf16.mxu0 0
        %3224 = vmatpush2.bf16.msra.mxu0 0
        %3225 = vmatprep.subr.bf16.mxu0 0
        %3226 = vmatpush2.bf16.msra.mxu0 0
        %3227 = vmatprep.mubr.bf16.mxu0 0
        %3228 = vmatmul.mubr.bf16.gmra.mxu0 %v3190
        %v3229 = vpop.f32.mrf.mxu0
        %v3230 = vadd.f32 0.0, %v3229
        %v3231 = vpop.f32.mrf.mxu0
        %v3232 = vpop.f32.mrf.mxu0
        %v3233 = vpop.f32.mrf.mxu0
        %3234 = vdwg.mxu0
        %v3235 = vsel %vm382, %v3092, 0.0
        %v3236 = vsel %vm382, %v3138, 0.0
        %v3237 = vadd.f32 %v3235, %v3236
        %v3238 = vsel %vm382, %v3184, 0.0
        %v3239 = vadd.f32 %v3237, %v3238
        %v3240 = vsel %vm382, %v3230, 0.0
        %v3241 = vadd.f32 %v3239, %v3240
        %v3242 = vld [vmem:[#allocation2 + $0x3] sm:$0x1]
        %v3243 = vlaneseq
        %v3244 = vshrl.u32 %v3243, 7
        %v3245 = vsub.s32 0, %v3244
        %v3246 = vrot.slane %v3242, %v3245
        %v3247 = vadd.f32 %v3241, %v3246
        %v3248 = vadd.f32 %v3247, %v1995
        %v3249 = vsel %vm382, %v3248, 0.0
        %3250 = vadd.xlane.f32.xlu0 %v3249
        %v3251 = vpop.xlane.xlu0 %3250
        %v3252 = vmul.f32 %v3251, %v429
        %v3253 = vsub.f32 %v3248, %v3252
        %v3254 = vmul.f32 %v3253, %v3253
        %v3255 = vsel %vm382, %v3254, 0.0
        %3256 = vadd.xlane.f32.xlu0 %v3255
        %v3257 = vpop.xlane.xlu0 %3256
        %v3258 = vmul.f32 %v3257, %v429
        %v3259 = vadd.f32 %v3258, 1e-06
        %v3260 = vrsqrt.pop %v3259
        %v3261 = vmul.f32 %v3253, %v3260
        %v3262 = vld [vmem:[#allocation2 + $0x4] sm:$0x1]
        %v3263 = vlaneseq
        %v3264 = vshrl.u32 %v3263, 7
        %v3265 = vsub.s32 0, %v3264
        %v3266 = vrot.slane %v3262, %v3265
        %v3267 = vmul.f32 %v3261, %v3266
        %v3268 = vld [vmem:[#allocation2 + $0x5] sm:$0x1]
        %v3269 = vlaneseq
        %v3270 = vshrl.u32 %v3269, 7
        %v3271 = vsub.s32 0, %v3270
        %v3272 = vrot.slane %v3268, %v3271
        %v3273 = vadd.f32 %v3267, %v3272
        %s3274 = scalar_lea.vmem %s2, 96
        %v3275 = vld [vmem:[%s3274] sm:$0xf]
        %v3276 = vld [vmem:[%s3274 + $0x4] sm:$0xf]
        %v3277 = vld [vmem:[%s3274 + $0x8] sm:$0xf]
        %v3278 = vld [vmem:[%s3274 + $0xc] sm:$0xf]
        %v3279 = vld [vmem:[%s3274 + $0x10] sm:$0xf]
        %v3280 = vld [vmem:[%s3274 + $0x14] sm:$0xf]
        %v3281 = vld [vmem:[%s3274 + $0x18] sm:$0xf]
        %v3282 = vld [vmem:[%s3274 + $0x1c] sm:$0xf]
        %v3283 = vld [vmem:[%s3274 + $0x20] sm:$0xf]
        %v3284 = vld [vmem:[%s3274 + $0x24] sm:$0xf]
        %v3285 = vld [vmem:[%s3274 + $0x28] sm:$0xf]
        %v3286 = vld [vmem:[%s3274 + $0x2c] sm:$0xf]
        %s3287 = scalar_lea.vmem %s3, 24
        %v3288 = vld [vmem:[%s3287] sm:$0x1]
        %v3289 = vld [vmem:[%s3287 + $0x1] sm:$0x1]
        %v3290 = vld [vmem:[%s3287 + $0x2] sm:$0x1]
        %v3291 = vld [vmem:[%s3287 + $0x3] sm:$0x1]
        %v3292 = vld [vmem:[%s3287 + $0x4] sm:$0x1]
        %v3293 = vld [vmem:[%s3287 + $0x5] sm:$0x1]
        %v3294 = vld [vmem:[%s3287 + $0x6] sm:$0x1]
        %v3295 = vld [vmem:[%s3287 + $0x7] sm:$0x1]
        %v3296 = vld [vmem:[%s3287 + $0x8] sm:$0x1]
        %v3297 = vld [vmem:[%s3287 + $0x9] sm:$0x1]
        %v3298 = vld [vmem:[%s3287 + $0xa] sm:$0x1]
        %v3299 = vld [vmem:[%s3287 + $0xb] sm:$0x1]
        %v3300 = vpack.c.bf16 %v3273, %v3273
        %v3301 = vpack.c.bf16 %v1908, %v1908
        %v3306 = vlaneseq
        %v3307 = vshrl.u32 %v3306, 7
        %v3308 = vsub.s32 0, %v3307
        %v3309 = vrot.slane %v3288, %v3308
        %v3310 = vlaneseq
        %v3311 = vshrl.u32 %v3310, 7
        %v3312 = vsub.s32 0, %v3311
        %v3313 = vrot.slane %v3289, %v3312
        %v3314 = vlaneseq
        %v3315 = vshrl.u32 %v3314, 7
        %v3316 = vsub.s32 0, %v3315
        %v3317 = vrot.slane %v3290, %v3316
        %v3318 = vlaneseq
        %v3319 = vshrl.u32 %v3318, 7
        %v3320 = vsub.s32 0, %v3319
        %v3321 = vrot.slane %v3291, %v3320
        %v3327 = vsel %vm382, %v3300, 0
        %v3330 = vsel %vm382, %v3275, 0
        %3332 = vmatprep.subr.bf16.mxu0 0
        %3333 = vmatpush1.bf16.xpose.msra.mxu0 0
        %3334 = vmatprep.subr.bf16.mxu0 0
        %3335 = vmatpush1.bf16.xpose.msra.mxu0 0
        %3336 = vmatprep.subr.bf16.mxu0 0
        %3337 = vmatpush1.bf16.xpose.msra.mxu0 0
        %3338 = vmatprep.subr.bf16.mxu0 0
        %3339 = vmatpush1.bf16.xpose.msra.mxu0 0
        %3340 = vmatprep.subr.bf16.mxu0 0
        %3341 = vmatpush1.bf16.xpose.msra.mxu0 0
        %3342 = vmatprep.subr.bf16.mxu0 0
        %3343 = vmatpush1.bf16.xpose.msra.mxu0 0
        %3344 = vmatprep.subr.bf16.mxu0 0
        %3345 = vmatpush1.bf16.xpose.msra.mxu0 0
        %3346 = vmatprep.subr.bf16.mxu0 0
        %3347 = vmatpush1.bf16.xpose.msra.mxu0 %v3330
        %3348 = vmatprep.subr.bf16.mxu0 0
        %3349 = vmatpush2.bf16.xpose.msra.mxu0 0
        %3350 = vmatprep.subr.bf16.mxu0 0
        %3351 = vmatpush2.bf16.xpose.msra.mxu0 0
        %3352 = vmatprep.subr.bf16.mxu0 0
        %3353 = vmatpush2.bf16.xpose.msra.mxu0 0
        %3354 = vmatprep.subr.bf16.mxu0 0
        %3355 = vmatpush2.bf16.xpose.msra.mxu0 0
        %3356 = vmatprep.subr.bf16.mxu0 0
        %3357 = vmatpush2.bf16.xpose.msra.mxu0 0
        %3358 = vmatprep.subr.bf16.mxu0 0
        %3359 = vmatpush2.bf16.xpose.msra.mxu0 0
        %3360 = vmatprep.subr.bf16.mxu0 0
        %3361 = vmatpush2.bf16.xpose.msra.mxu0 0
        %3362 = vmatprep.subr.bf16.mxu0 0
        %3363 = vmatpush2.bf16.xpose.msra.mxu0 0
        %3364 = vmatprep.mubr.bf16.mxu0 0
        %3365 = vmatmul.mubr.bf16.gmra.mxu0 %v3327
        %v3366 = vpop.f32.mrf.mxu0
        %v3367 = vadd.f32 %v3309, %v3366
        %v3368 = vpop.f32.mrf.mxu0
        %v3369 = vpop.f32.mrf.mxu0
        %v3370 = vpop.f32.mrf.mxu0
        %3371 = vdwg.mxu0
        %v3373 = vsel %vm382, %v3276, 0
        %3375 = vmatprep.subr.bf16.mxu0 0
        %3376 = vmatpush1.bf16.xpose.msra.mxu0 0
        %3377 = vmatprep.subr.bf16.mxu0 0
        %3378 = vmatpush1.bf16.xpose.msra.mxu0 0
        %3379 = vmatprep.subr.bf16.mxu0 0
        %3380 = vmatpush1.bf16.xpose.msra.mxu0 0
        %3381 = vmatprep.subr.bf16.mxu0 0
        %3382 = vmatpush1.bf16.xpose.msra.mxu0 0
        %3383 = vmatprep.subr.bf16.mxu0 0
        %3384 = vmatpush1.bf16.xpose.msra.mxu0 0
        %3385 = vmatprep.subr.bf16.mxu0 0
        %3386 = vmatpush1.bf16.xpose.msra.mxu0 0
        %3387 = vmatprep.subr.bf16.mxu0 0
        %3388 = vmatpush1.bf16.xpose.msra.mxu0 0
        %3389 = vmatprep.subr.bf16.mxu0 0
        %3390 = vmatpush1.bf16.xpose.msra.mxu0 %v3373
        %3391 = vmatprep.subr.bf16.mxu0 0
        %3392 = vmatpush2.bf16.xpose.msra.mxu0 0
        %3393 = vmatprep.subr.bf16.mxu0 0
        %3394 = vmatpush2.bf16.xpose.msra.mxu0 0
        %3395 = vmatprep.subr.bf16.mxu0 0
        %3396 = vmatpush2.bf16.xpose.msra.mxu0 0
        %3397 = vmatprep.subr.bf16.mxu0 0
        %3398 = vmatpush2.bf16.xpose.msra.mxu0 0
        %3399 = vmatprep.subr.bf16.mxu0 0
        %3400 = vmatpush2.bf16.xpose.msra.mxu0 0
        %3401 = vmatprep.subr.bf16.mxu0 0
        %3402 = vmatpush2.bf16.xpose.msra.mxu0 0
        %3403 = vmatprep.subr.bf16.mxu0 0
        %3404 = vmatpush2.bf16.xpose.msra.mxu0 0
        %3405 = vmatprep.subr.bf16.mxu0 0
        %3406 = vmatpush2.bf16.xpose.msra.mxu0 0
        %3407 = vmatprep.mubr.bf16.mxu0 0
        %3408 = vmatmul.mubr.bf16.gmra.mxu0 %v3327
        %v3409 = vpop.f32.mrf.mxu0
        %v3410 = vadd.f32 %v3313, %v3409
        %v3411 = vpop.f32.mrf.mxu0
        %v3412 = vpop.f32.mrf.mxu0
        %v3413 = vpop.f32.mrf.mxu0
        %3414 = vdwg.mxu0
        %v3416 = vsel %vm382, %v3277, 0
        %3418 = vmatprep.subr.bf16.mxu0 0
        %3419 = vmatpush1.bf16.xpose.msra.mxu0 0
        %3420 = vmatprep.subr.bf16.mxu0 0
        %3421 = vmatpush1.bf16.xpose.msra.mxu0 0
        %3422 = vmatprep.subr.bf16.mxu0 0
        %3423 = vmatpush1.bf16.xpose.msra.mxu0 0
        %3424 = vmatprep.subr.bf16.mxu0 0
        %3425 = vmatpush1.bf16.xpose.msra.mxu0 0
        %3426 = vmatprep.subr.bf16.mxu0 0
        %3427 = vmatpush1.bf16.xpose.msra.mxu0 0
        %3428 = vmatprep.subr.bf16.mxu0 0
        %3429 = vmatpush1.bf16.xpose.msra.mxu0 0
        %3430 = vmatprep.subr.bf16.mxu0 0
        %3431 = vmatpush1.bf16.xpose.msra.mxu0 0
        %3432 = vmatprep.subr.bf16.mxu0 0
        %3433 = vmatpush1.bf16.xpose.msra.mxu0 %v3416
        %3434 = vmatprep.subr.bf16.mxu0 0
        %3435 = vmatpush2.bf16.xpose.msra.mxu0 0
        %3436 = vmatprep.subr.bf16.mxu0 0
        %3437 = vmatpush2.bf16.xpose.msra.mxu0 0
        %3438 = vmatprep.subr.bf16.mxu0 0
        %3439 = vmatpush2.bf16.xpose.msra.mxu0 0
        %3440 = vmatprep.subr.bf16.mxu0 0
        %3441 = vmatpush2.bf16.xpose.msra.mxu0 0
        %3442 = vmatprep.subr.bf16.mxu0 0
        %3443 = vmatpush2.bf16.xpose.msra.mxu0 0
        %3444 = vmatprep.subr.bf16.mxu0 0
        %3445 = vmatpush2.bf16.xpose.msra.mxu0 0
        %3446 = vmatprep.subr.bf16.mxu0 0
        %3447 = vmatpush2.bf16.xpose.msra.mxu0 0
        %3448 = vmatprep.subr.bf16.mxu0 0
        %3449 = vmatpush2.bf16.xpose.msra.mxu0 0
        %3450 = vmatprep.mubr.bf16.mxu0 0
        %3451 = vmatmul.mubr.bf16.gmra.mxu0 %v3327
        %v3452 = vpop.f32.mrf.mxu0
        %v3453 = vadd.f32 %v3317, %v3452
        %v3454 = vpop.f32.mrf.mxu0
        %v3455 = vpop.f32.mrf.mxu0
        %v3456 = vpop.f32.mrf.mxu0
        %3457 = vdwg.mxu0
        %v3459 = vsel %vm382, %v3278, 0
        %3461 = vmatprep.subr.bf16.mxu0 0
        %3462 = vmatpush1.bf16.xpose.msra.mxu0 0
        %3463 = vmatprep.subr.bf16.mxu0 0
        %3464 = vmatpush1.bf16.xpose.msra.mxu0 0
        %3465 = vmatprep.subr.bf16.mxu0 0
        %3466 = vmatpush1.bf16.xpose.msra.mxu0 0
        %3467 = vmatprep.subr.bf16.mxu0 0
        %3468 = vmatpush1.bf16.xpose.msra.mxu0 0
        %3469 = vmatprep.subr.bf16.mxu0 0
        %3470 = vmatpush1.bf16.xpose.msra.mxu0 0
        %3471 = vmatprep.subr.bf16.mxu0 0
        %3472 = vmatpush1.bf16.xpose.msra.mxu0 0
        %3473 = vmatprep.subr.bf16.mxu0 0
        %3474 = vmatpush1.bf16.xpose.msra.mxu0 0
        %3475 = vmatprep.subr.bf16.mxu0 0
        %3476 = vmatpush1.bf16.xpose.msra.mxu0 %v3459
        %3477 = vmatprep.subr.bf16.mxu0 0
        %3478 = vmatpush2.bf16.xpose.msra.mxu0 0
        %3479 = vmatprep.subr.bf16.mxu0 0
        %3480 = vmatpush2.bf16.xpose.msra.mxu0 0
        %3481 = vmatprep.subr.bf16.mxu0 0
        %3482 = vmatpush2.bf16.xpose.msra.mxu0 0
        %3483 = vmatprep.subr.bf16.mxu0 0
        %3484 = vmatpush2.bf16.xpose.msra.mxu0 0
        %3485 = vmatprep.subr.bf16.mxu0 0
        %3486 = vmatpush2.bf16.xpose.msra.mxu0 0
        %3487 = vmatprep.subr.bf16.mxu0 0
        %3488 = vmatpush2.bf16.xpose.msra.mxu0 0
        %3489 = vmatprep.subr.bf16.mxu0 0
        %3490 = vmatpush2.bf16.xpose.msra.mxu0 0
        %3491 = vmatprep.subr.bf16.mxu0 0
        %3492 = vmatpush2.bf16.xpose.msra.mxu0 0
        %3493 = vmatprep.mubr.bf16.mxu0 0
        %3494 = vmatmul.mubr.bf16.gmra.mxu0 %v3327
        %v3495 = vpop.f32.mrf.mxu0
        %v3496 = vadd.f32 %v3321, %v3495
        %v3497 = vpop.f32.mrf.mxu0
        %v3498 = vpop.f32.mrf.mxu0
        %v3499 = vpop.f32.mrf.mxu0
        %3500 = vdwg.mxu0
        %v3509 = vlaneseq
        %v3510 = vshrl.u32 %v3509, 7
        %v3511 = vsub.s32 0, %v3510
        %v3512 = vrot.slane %v3292, %v3511
        %v3513 = vlaneseq
        %v3514 = vshrl.u32 %v3513, 7
        %v3515 = vsub.s32 0, %v3514
        %v3516 = vrot.slane %v3293, %v3515
        %v3517 = vlaneseq
        %v3518 = vshrl.u32 %v3517, 7
        %v3519 = vsub.s32 0, %v3518
        %v3520 = vrot.slane %v3294, %v3519
        %v3521 = vlaneseq
        %v3522 = vshrl.u32 %v3521, 7
        %v3523 = vsub.s32 0, %v3522
        %v3524 = vrot.slane %v3295, %v3523
        %v3525 = vlaneseq
        %v3526 = vshrl.u32 %v3525, 7
        %v3527 = vsub.s32 0, %v3526
        %v3528 = vrot.slane %v3296, %v3527
        %v3529 = vlaneseq
        %v3530 = vshrl.u32 %v3529, 7
        %v3531 = vsub.s32 0, %v3530
        %v3532 = vrot.slane %v3297, %v3531
        %v3533 = vlaneseq
        %v3534 = vshrl.u32 %v3533, 7
        %v3535 = vsub.s32 0, %v3534
        %v3536 = vrot.slane %v3298, %v3535
        %v3537 = vlaneseq
        %v3538 = vshrl.u32 %v3537, 7
        %v3539 = vsub.s32 0, %v3538
        %v3540 = vrot.slane %v3299, %v3539
        %v3550 = vsel %vm382, %v3301, 0
        %v3553 = vsel %vm382, %v3279, 0
        %3555 = vmatprep.subr.bf16.mxu0 0
        %3556 = vmatpush1.bf16.xpose.msra.mxu0 0
        %3557 = vmatprep.subr.bf16.mxu0 0
        %3558 = vmatpush1.bf16.xpose.msra.mxu0 0
        %3559 = vmatprep.subr.bf16.mxu0 0
        %3560 = vmatpush1.bf16.xpose.msra.mxu0 0
        %3561 = vmatprep.subr.bf16.mxu0 0
        %3562 = vmatpush1.bf16.xpose.msra.mxu0 0
        %3563 = vmatprep.subr.bf16.mxu0 0
        %3564 = vmatpush1.bf16.xpose.msra.mxu0 0
        %3565 = vmatprep.subr.bf16.mxu0 0
        %3566 = vmatpush1.bf16.xpose.msra.mxu0 0
        %3567 = vmatprep.subr.bf16.mxu0 0
        %3568 = vmatpush1.bf16.xpose.msra.mxu0 0
        %3569 = vmatprep.subr.bf16.mxu0 0
        %3570 = vmatpush1.bf16.xpose.msra.mxu0 %v3553
        %3571 = vmatprep.subr.bf16.mxu0 0
        %3572 = vmatpush2.bf16.xpose.msra.mxu0 0
        %3573 = vmatprep.subr.bf16.mxu0 0
        %3574 = vmatpush2.bf16.xpose.msra.mxu0 0
        %3575 = vmatprep.subr.bf16.mxu0 0
        %3576 = vmatpush2.bf16.xpose.msra.mxu0 0
        %3577 = vmatprep.subr.bf16.mxu0 0
        %3578 = vmatpush2.bf16.xpose.msra.mxu0 0
        %3579 = vmatprep.subr.bf16.mxu0 0
        %3580 = vmatpush2.bf16.xpose.msra.mxu0 0
        %3581 = vmatprep.subr.bf16.mxu0 0
        %3582 = vmatpush2.bf16.xpose.msra.mxu0 0
        %3583 = vmatprep.subr.bf16.mxu0 0
        %3584 = vmatpush2.bf16.xpose.msra.mxu0 0
        %3585 = vmatprep.subr.bf16.mxu0 0
        %3586 = vmatpush2.bf16.xpose.msra.mxu0 0
        %3587 = vmatprep.mubr.bf16.mxu0 0
        %3588 = vmatmul.mubr.bf16.gmra.mxu0 %v3550
        %v3589 = vpop.f32.mrf.mxu0
        %v3590 = vadd.f32 %v3512, %v3589
        %v3591 = vpop.f32.mrf.mxu0
        %v3592 = vpop.f32.mrf.mxu0
        %v3593 = vpop.f32.mrf.mxu0
        %3594 = vdwg.mxu0
        %v3596 = vsel %vm382, %v3280, 0
        %3598 = vmatprep.subr.bf16.mxu0 0
        %3599 = vmatpush1.bf16.xpose.msra.mxu0 0
        %3600 = vmatprep.subr.bf16.mxu0 0
        %3601 = vmatpush1.bf16.xpose.msra.mxu0 0
        %3602 = vmatprep.subr.bf16.mxu0 0
        %3603 = vmatpush1.bf16.xpose.msra.mxu0 0
        %3604 = vmatprep.subr.bf16.mxu0 0
        %3605 = vmatpush1.bf16.xpose.msra.mxu0 0
        %3606 = vmatprep.subr.bf16.mxu0 0
        %3607 = vmatpush1.bf16.xpose.msra.mxu0 0
        %3608 = vmatprep.subr.bf16.mxu0 0
        %3609 = vmatpush1.bf16.xpose.msra.mxu0 0
        %3610 = vmatprep.subr.bf16.mxu0 0
        %3611 = vmatpush1.bf16.xpose.msra.mxu0 0
        %3612 = vmatprep.subr.bf16.mxu0 0
        %3613 = vmatpush1.bf16.xpose.msra.mxu0 %v3596
        %3614 = vmatprep.subr.bf16.mxu0 0
        %3615 = vmatpush2.bf16.xpose.msra.mxu0 0
        %3616 = vmatprep.subr.bf16.mxu0 0
        %3617 = vmatpush2.bf16.xpose.msra.mxu0 0
        %3618 = vmatprep.subr.bf16.mxu0 0
        %3619 = vmatpush2.bf16.xpose.msra.mxu0 0
        %3620 = vmatprep.subr.bf16.mxu0 0
        %3621 = vmatpush2.bf16.xpose.msra.mxu0 0
        %3622 = vmatprep.subr.bf16.mxu0 0
        %3623 = vmatpush2.bf16.xpose.msra.mxu0 0
        %3624 = vmatprep.subr.bf16.mxu0 0
        %3625 = vmatpush2.bf16.xpose.msra.mxu0 0
        %3626 = vmatprep.subr.bf16.mxu0 0
        %3627 = vmatpush2.bf16.xpose.msra.mxu0 0
        %3628 = vmatprep.subr.bf16.mxu0 0
        %3629 = vmatpush2.bf16.xpose.msra.mxu0 0
        %3630 = vmatprep.mubr.bf16.mxu0 0
        %3631 = vmatmul.mubr.bf16.gmra.mxu0 %v3550
        %v3632 = vpop.f32.mrf.mxu0
        %v3633 = vadd.f32 %v3516, %v3632
        %v3634 = vpop.f32.mrf.mxu0
        %v3635 = vpop.f32.mrf.mxu0
        %v3636 = vpop.f32.mrf.mxu0
        %3637 = vdwg.mxu0
        %v3639 = vsel %vm382, %v3281, 0
        %3641 = vmatprep.subr.bf16.mxu0 0
        %3642 = vmatpush1.bf16.xpose.msra.mxu0 0
        %3643 = vmatprep.subr.bf16.mxu0 0
        %3644 = vmatpush1.bf16.xpose.msra.mxu0 0
        %3645 = vmatprep.subr.bf16.mxu0 0
        %3646 = vmatpush1.bf16.xpose.msra.mxu0 0
        %3647 = vmatprep.subr.bf16.mxu0 0
        %3648 = vmatpush1.bf16.xpose.msra.mxu0 0
        %3649 = vmatprep.subr.bf16.mxu0 0
        %3650 = vmatpush1.bf16.xpose.msra.mxu0 0
        %3651 = vmatprep.subr.bf16.mxu0 0
        %3652 = vmatpush1.bf16.xpose.msra.mxu0 0
        %3653 = vmatprep.subr.bf16.mxu0 0
        %3654 = vmatpush1.bf16.xpose.msra.mxu0 0
        %3655 = vmatprep.subr.bf16.mxu0 0
        %3656 = vmatpush1.bf16.xpose.msra.mxu0 %v3639
        %3657 = vmatprep.subr.bf16.mxu0 0
        %3658 = vmatpush2.bf16.xpose.msra.mxu0 0
        %3659 = vmatprep.subr.bf16.mxu0 0
        %3660 = vmatpush2.bf16.xpose.msra.mxu0 0
        %3661 = vmatprep.subr.bf16.mxu0 0
        %3662 = vmatpush2.bf16.xpose.msra.mxu0 0
        %3663 = vmatprep.subr.bf16.mxu0 0
        %3664 = vmatpush2.bf16.xpose.msra.mxu0 0
        %3665 = vmatprep.subr.bf16.mxu0 0
        %3666 = vmatpush2.bf16.xpose.msra.mxu0 0
        %3667 = vmatprep.subr.bf16.mxu0 0
        %3668 = vmatpush2.bf16.xpose.msra.mxu0 0
        %3669 = vmatprep.subr.bf16.mxu0 0
        %3670 = vmatpush2.bf16.xpose.msra.mxu0 0
        %3671 = vmatprep.subr.bf16.mxu0 0
        %3672 = vmatpush2.bf16.xpose.msra.mxu0 0
        %3673 = vmatprep.mubr.bf16.mxu0 0
        %3674 = vmatmul.mubr.bf16.gmra.mxu0 %v3550
        %v3675 = vpop.f32.mrf.mxu0
        %v3676 = vadd.f32 %v3520, %v3675
        %v3677 = vpop.f32.mrf.mxu0
        %v3678 = vpop.f32.mrf.mxu0
        %v3679 = vpop.f32.mrf.mxu0
        %3680 = vdwg.mxu0
        %v3682 = vsel %vm382, %v3282, 0
        %3684 = vmatprep.subr.bf16.mxu0 0
        %3685 = vmatpush1.bf16.xpose.msra.mxu0 0
        %3686 = vmatprep.subr.bf16.mxu0 0
        %3687 = vmatpush1.bf16.xpose.msra.mxu0 0
        %3688 = vmatprep.subr.bf16.mxu0 0
        %3689 = vmatpush1.bf16.xpose.msra.mxu0 0
        %3690 = vmatprep.subr.bf16.mxu0 0
        %3691 = vmatpush1.bf16.xpose.msra.mxu0 0
        %3692 = vmatprep.subr.bf16.mxu0 0
        %3693 = vmatpush1.bf16.xpose.msra.mxu0 0
        %3694 = vmatprep.subr.bf16.mxu0 0
        %3695 = vmatpush1.bf16.xpose.msra.mxu0 0
        %3696 = vmatprep.subr.bf16.mxu0 0
        %3697 = vmatpush1.bf16.xpose.msra.mxu0 0
        %3698 = vmatprep.subr.bf16.mxu0 0
        %3699 = vmatpush1.bf16.xpose.msra.mxu0 %v3682
        %3700 = vmatprep.subr.bf16.mxu0 0
        %3701 = vmatpush2.bf16.xpose.msra.mxu0 0
        %3702 = vmatprep.subr.bf16.mxu0 0
        %3703 = vmatpush2.bf16.xpose.msra.mxu0 0
        %3704 = vmatprep.subr.bf16.mxu0 0
        %3705 = vmatpush2.bf16.xpose.msra.mxu0 0
        %3706 = vmatprep.subr.bf16.mxu0 0
        %3707 = vmatpush2.bf16.xpose.msra.mxu0 0
        %3708 = vmatprep.subr.bf16.mxu0 0
        %3709 = vmatpush2.bf16.xpose.msra.mxu0 0
        %3710 = vmatprep.subr.bf16.mxu0 0
        %3711 = vmatpush2.bf16.xpose.msra.mxu0 0
        %3712 = vmatprep.subr.bf16.mxu0 0
        %3713 = vmatpush2.bf16.xpose.msra.mxu0 0
        %3714 = vmatprep.subr.bf16.mxu0 0
        %3715 = vmatpush2.bf16.xpose.msra.mxu0 0
        %3716 = vmatprep.mubr.bf16.mxu0 0
        %3717 = vmatmul.mubr.bf16.gmra.mxu0 %v3550
        %v3718 = vpop.f32.mrf.mxu0
        %v3719 = vadd.f32 %v3524, %v3718
        %v3720 = vpop.f32.mrf.mxu0
        %v3721 = vpop.f32.mrf.mxu0
        %v3722 = vpop.f32.mrf.mxu0
        %3723 = vdwg.mxu0
        %v3725 = vsel %vm382, %v3283, 0
        %3727 = vmatprep.subr.bf16.mxu0 0
        %3728 = vmatpush1.bf16.xpose.msra.mxu0 0
        %3729 = vmatprep.subr.bf16.mxu0 0
        %3730 = vmatpush1.bf16.xpose.msra.mxu0 0
        %3731 = vmatprep.subr.bf16.mxu0 0
        %3732 = vmatpush1.bf16.xpose.msra.mxu0 0
        %3733 = vmatprep.subr.bf16.mxu0 0
        %3734 = vmatpush1.bf16.xpose.msra.mxu0 0
        %3735 = vmatprep.subr.bf16.mxu0 0
        %3736 = vmatpush1.bf16.xpose.msra.mxu0 0
        %3737 = vmatprep.subr.bf16.mxu0 0
        %3738 = vmatpush1.bf16.xpose.msra.mxu0 0
        %3739 = vmatprep.subr.bf16.mxu0 0
        %3740 = vmatpush1.bf16.xpose.msra.mxu0 0
        %3741 = vmatprep.subr.bf16.mxu0 0
        %3742 = vmatpush1.bf16.xpose.msra.mxu0 %v3725
        %3743 = vmatprep.subr.bf16.mxu0 0
        %3744 = vmatpush2.bf16.xpose.msra.mxu0 0
        %3745 = vmatprep.subr.bf16.mxu0 0
        %3746 = vmatpush2.bf16.xpose.msra.mxu0 0
        %3747 = vmatprep.subr.bf16.mxu0 0
        %3748 = vmatpush2.bf16.xpose.msra.mxu0 0
        %3749 = vmatprep.subr.bf16.mxu0 0
        %3750 = vmatpush2.bf16.xpose.msra.mxu0 0
        %3751 = vmatprep.subr.bf16.mxu0 0
        %3752 = vmatpush2.bf16.xpose.msra.mxu0 0
        %3753 = vmatprep.subr.bf16.mxu0 0
        %3754 = vmatpush2.bf16.xpose.msra.mxu0 0
        %3755 = vmatprep.subr.bf16.mxu0 0
        %3756 = vmatpush2.bf16.xpose.msra.mxu0 0
        %3757 = vmatprep.subr.bf16.mxu0 0
        %3758 = vmatpush2.bf16.xpose.msra.mxu0 0
        %3759 = vmatprep.mubr.bf16.mxu0 0
        %3760 = vmatmul.mubr.bf16.gmra.mxu0 %v3550
        %v3761 = vpop.f32.mrf.mxu0
        %v3762 = vadd.f32 %v3528, %v3761
        %v3763 = vpop.f32.mrf.mxu0
        %v3764 = vpop.f32.mrf.mxu0
        %v3765 = vpop.f32.mrf.mxu0
        %3766 = vdwg.mxu0
        %v3768 = vsel %vm382, %v3284, 0
        %3770 = vmatprep.subr.bf16.mxu0 0
        %3771 = vmatpush1.bf16.xpose.msra.mxu0 0
        %3772 = vmatprep.subr.bf16.mxu0 0
        %3773 = vmatpush1.bf16.xpose.msra.mxu0 0
        %3774 = vmatprep.subr.bf16.mxu0 0
        %3775 = vmatpush1.bf16.xpose.msra.mxu0 0
        %3776 = vmatprep.subr.bf16.mxu0 0
        %3777 = vmatpush1.bf16.xpose.msra.mxu0 0
        %3778 = vmatprep.subr.bf16.mxu0 0
        %3779 = vmatpush1.bf16.xpose.msra.mxu0 0
        %3780 = vmatprep.subr.bf16.mxu0 0
        %3781 = vmatpush1.bf16.xpose.msra.mxu0 0
        %3782 = vmatprep.subr.bf16.mxu0 0
        %3783 = vmatpush1.bf16.xpose.msra.mxu0 0
        %3784 = vmatprep.subr.bf16.mxu0 0
        %3785 = vmatpush1.bf16.xpose.msra.mxu0 %v3768
        %3786 = vmatprep.subr.bf16.mxu0 0
        %3787 = vmatpush2.bf16.xpose.msra.mxu0 0
        %3788 = vmatprep.subr.bf16.mxu0 0
        %3789 = vmatpush2.bf16.xpose.msra.mxu0 0
        %3790 = vmatprep.subr.bf16.mxu0 0
        %3791 = vmatpush2.bf16.xpose.msra.mxu0 0
        %3792 = vmatprep.subr.bf16.mxu0 0
        %3793 = vmatpush2.bf16.xpose.msra.mxu0 0
        %3794 = vmatprep.subr.bf16.mxu0 0
        %3795 = vmatpush2.bf16.xpose.msra.mxu0 0
        %3796 = vmatprep.subr.bf16.mxu0 0
        %3797 = vmatpush2.bf16.xpose.msra.mxu0 0
        %3798 = vmatprep.subr.bf16.mxu0 0
        %3799 = vmatpush2.bf16.xpose.msra.mxu0 0
        %3800 = vmatprep.subr.bf16.mxu0 0
        %3801 = vmatpush2.bf16.xpose.msra.mxu0 0
        %3802 = vmatprep.mubr.bf16.mxu0 0
        %3803 = vmatmul.mubr.bf16.gmra.mxu0 %v3550
        %v3804 = vpop.f32.mrf.mxu0
        %v3805 = vadd.f32 %v3532, %v3804
        %v3806 = vpop.f32.mrf.mxu0
        %v3807 = vpop.f32.mrf.mxu0
        %v3808 = vpop.f32.mrf.mxu0
        %3809 = vdwg.mxu0
        %v3811 = vsel %vm382, %v3285, 0
        %3813 = vmatprep.subr.bf16.mxu0 0
        %3814 = vmatpush1.bf16.xpose.msra.mxu0 0
        %3815 = vmatprep.subr.bf16.mxu0 0
        %3816 = vmatpush1.bf16.xpose.msra.mxu0 0
        %3817 = vmatprep.subr.bf16.mxu0 0
        %3818 = vmatpush1.bf16.xpose.msra.mxu0 0
        %3819 = vmatprep.subr.bf16.mxu0 0
        %3820 = vmatpush1.bf16.xpose.msra.mxu0 0
        %3821 = vmatprep.subr.bf16.mxu0 0
        %3822 = vmatpush1.bf16.xpose.msra.mxu0 0
        %3823 = vmatprep.subr.bf16.mxu0 0
        %3824 = vmatpush1.bf16.xpose.msra.mxu0 0
        %3825 = vmatprep.subr.bf16.mxu0 0
        %3826 = vmatpush1.bf16.xpose.msra.mxu0 0
        %3827 = vmatprep.subr.bf16.mxu0 0
        %3828 = vmatpush1.bf16.xpose.msra.mxu0 %v3811
        %3829 = vmatprep.subr.bf16.mxu0 0
        %3830 = vmatpush2.bf16.xpose.msra.mxu0 0
        %3831 = vmatprep.subr.bf16.mxu0 0
        %3832 = vmatpush2.bf16.xpose.msra.mxu0 0
        %3833 = vmatprep.subr.bf16.mxu0 0
        %3834 = vmatpush2.bf16.xpose.msra.mxu0 0
        %3835 = vmatprep.subr.bf16.mxu0 0
        %3836 = vmatpush2.bf16.xpose.msra.mxu0 0
        %3837 = vmatprep.subr.bf16.mxu0 0
        %3838 = vmatpush2.bf16.xpose.msra.mxu0 0
        %3839 = vmatprep.subr.bf16.mxu0 0
        %3840 = vmatpush2.bf16.xpose.msra.mxu0 0
        %3841 = vmatprep.subr.bf16.mxu0 0
        %3842 = vmatpush2.bf16.xpose.msra.mxu0 0
        %3843 = vmatprep.subr.bf16.mxu0 0
        %3844 = vmatpush2.bf16.xpose.msra.mxu0 0
        %3845 = vmatprep.mubr.bf16.mxu0 0
        %3846 = vmatmul.mubr.bf16.gmra.mxu0 %v3550
        %v3847 = vpop.f32.mrf.mxu0
        %v3848 = vadd.f32 %v3536, %v3847
        %v3849 = vpop.f32.mrf.mxu0
        %v3850 = vpop.f32.mrf.mxu0
        %v3851 = vpop.f32.mrf.mxu0
        %3852 = vdwg.mxu0
        %v3854 = vsel %vm382, %v3286, 0
        %3856 = vmatprep.subr.bf16.mxu0 0
        %3857 = vmatpush1.bf16.xpose.msra.mxu0 0
        %3858 = vmatprep.subr.bf16.mxu0 0
        %3859 = vmatpush1.bf16.xpose.msra.mxu0 0
        %3860 = vmatprep.subr.bf16.mxu0 0
        %3861 = vmatpush1.bf16.xpose.msra.mxu0 0
        %3862 = vmatprep.subr.bf16.mxu0 0
        %3863 = vmatpush1.bf16.xpose.msra.mxu0 0
        %3864 = vmatprep.subr.bf16.mxu0 0
        %3865 = vmatpush1.bf16.xpose.msra.mxu0 0
        %3866 = vmatprep.subr.bf16.mxu0 0
        %3867 = vmatpush1.bf16.xpose.msra.mxu0 0
        %3868 = vmatprep.subr.bf16.mxu0 0
        %3869 = vmatpush1.bf16.xpose.msra.mxu0 0
        %3870 = vmatprep.subr.bf16.mxu0 0
        %3871 = vmatpush1.bf16.xpose.msra.mxu0 %v3854
        %3872 = vmatprep.subr.bf16.mxu0 0
        %3873 = vmatpush2.bf16.xpose.msra.mxu0 0
        %3874 = vmatprep.subr.bf16.mxu0 0
        %3875 = vmatpush2.bf16.xpose.msra.mxu0 0
        %3876 = vmatprep.subr.bf16.mxu0 0
        %3877 = vmatpush2.bf16.xpose.msra.mxu0 0
        %3878 = vmatprep.subr.bf16.mxu0 0
        %3879 = vmatpush2.bf16.xpose.msra.mxu0 0
        %3880 = vmatprep.subr.bf16.mxu0 0
        %3881 = vmatpush2.bf16.xpose.msra.mxu0 0
        %3882 = vmatprep.subr.bf16.mxu0 0
        %3883 = vmatpush2.bf16.xpose.msra.mxu0 0
        %3884 = vmatprep.subr.bf16.mxu0 0
        %3885 = vmatpush2.bf16.xpose.msra.mxu0 0
        %3886 = vmatprep.subr.bf16.mxu0 0
        %3887 = vmatpush2.bf16.xpose.msra.mxu0 0
        %3888 = vmatprep.mubr.bf16.mxu0 0
        %3889 = vmatmul.mubr.bf16.gmra.mxu0 %v3550
        %v3890 = vpop.f32.mrf.mxu0
        %v3891 = vadd.f32 %v3540, %v3890
        %v3892 = vpop.f32.mrf.mxu0
        %v3893 = vpop.f32.mrf.mxu0
        %v3894 = vpop.f32.mrf.mxu0
        %3895 = vdwg.mxu0
        %v3896 = vpack.c.bf16 %v3367, %v3367
        %v3897 = vpack.c.bf16 %v3410, %v3410
        %v3898 = vpack.c.bf16 %v3453, %v3453
        %v3899 = vpack.c.bf16 %v3496, %v3496
        %v3900 = vpack.c.bf16 %v3590, %v3590
        %v3901 = vpack.c.bf16 %v3633, %v3633
        %v3902 = vpack.c.bf16 %v3676, %v3676
        %v3903 = vpack.c.bf16 %v3719, %v3719
        %v3905 = vsel %vm1082, %v3896, 0
        %v3908 = vsel %vm1082, %v3900, 0
        %3910 = vmatprep.subr.bf16.mxu0 0
        %3911 = vmatpush1.bf16.xpose.msra.mxu0 0
        %3912 = vmatprep.subr.bf16.mxu0 0
        %3913 = vmatpush1.bf16.xpose.msra.mxu0 0
        %3914 = vmatprep.subr.bf16.mxu0 0
        %3915 = vmatpush1.bf16.xpose.msra.mxu0 0
        %3916 = vmatprep.subr.bf16.mxu0 0
        %3917 = vmatpush1.bf16.xpose.msra.mxu0 0
        %3918 = vmatprep.subr.bf16.mxu0 0
        %3919 = vmatpush1.bf16.xpose.msra.mxu0 0
        %3920 = vmatprep.subr.bf16.mxu0 0
        %3921 = vmatpush1.bf16.xpose.msra.mxu0 0
        %3922 = vmatprep.subr.bf16.mxu0 0
        %3923 = vmatpush1.bf16.xpose.msra.mxu0 0
        %3924 = vmatprep.subr.bf16.mxu0 0
        %3925 = vmatpush1.bf16.xpose.msra.mxu0 %v3908
        %3926 = vmatprep.subr.bf16.mxu0 0
        %3927 = vmatpush2.bf16.xpose.msra.mxu0 0
        %3928 = vmatprep.subr.bf16.mxu0 0
        %3929 = vmatpush2.bf16.xpose.msra.mxu0 0
        %3930 = vmatprep.subr.bf16.mxu0 0
        %3931 = vmatpush2.bf16.xpose.msra.mxu0 0
        %3932 = vmatprep.subr.bf16.mxu0 0
        %3933 = vmatpush2.bf16.xpose.msra.mxu0 0
        %3934 = vmatprep.subr.bf16.mxu0 0
        %3935 = vmatpush2.bf16.xpose.msra.mxu0 0
        %3936 = vmatprep.subr.bf16.mxu0 0
        %3937 = vmatpush2.bf16.xpose.msra.mxu0 0
        %3938 = vmatprep.subr.bf16.mxu0 0
        %3939 = vmatpush2.bf16.xpose.msra.mxu0 0
        %3940 = vmatprep.subr.bf16.mxu0 0
        %3941 = vmatpush2.bf16.xpose.msra.mxu0 0
        %3942 = vmatprep.mubr.bf16.mxu0 0
        %3943 = vmatmul.mubr.bf16.gmra.mxu0 %v3905
        %v3944 = vpop.f32.mrf.mxu0
        %v3945 = vadd.f32 %v1080, %v3944
        %v3946 = vpop.f32.mrf.mxu0
        %v3947 = vpop.f32.mrf.mxu0
        %v3948 = vpop.f32.mrf.mxu0
        %3949 = vdwg.mxu0
        %v3951 = vsel %vm1082, %v3897, 0
        %v3954 = vsel %vm1082, %v3901, 0
        %3956 = vmatprep.subr.bf16.mxu0 0
        %3957 = vmatpush1.bf16.xpose.msra.mxu0 0
        %3958 = vmatprep.subr.bf16.mxu0 0
        %3959 = vmatpush1.bf16.xpose.msra.mxu0 0
        %3960 = vmatprep.subr.bf16.mxu0 0
        %3961 = vmatpush1.bf16.xpose.msra.mxu0 0
        %3962 = vmatprep.subr.bf16.mxu0 0
        %3963 = vmatpush1.bf16.xpose.msra.mxu0 0
        %3964 = vmatprep.subr.bf16.mxu0 0
        %3965 = vmatpush1.bf16.xpose.msra.mxu0 0
        %3966 = vmatprep.subr.bf16.mxu0 0
        %3967 = vmatpush1.bf16.xpose.msra.mxu0 0
        %3968 = vmatprep.subr.bf16.mxu0 0
        %3969 = vmatpush1.bf16.xpose.msra.mxu0 0
        %3970 = vmatprep.subr.bf16.mxu0 0
        %3971 = vmatpush1.bf16.xpose.msra.mxu0 %v3954
        %3972 = vmatprep.subr.bf16.mxu0 0
        %3973 = vmatpush2.bf16.xpose.msra.mxu0 0
        %3974 = vmatprep.subr.bf16.mxu0 0
        %3975 = vmatpush2.bf16.xpose.msra.mxu0 0
        %3976 = vmatprep.subr.bf16.mxu0 0
        %3977 = vmatpush2.bf16.xpose.msra.mxu0 0
        %3978 = vmatprep.subr.bf16.mxu0 0
        %3979 = vmatpush2.bf16.xpose.msra.mxu0 0
        %3980 = vmatprep.subr.bf16.mxu0 0
        %3981 = vmatpush2.bf16.xpose.msra.mxu0 0
        %3982 = vmatprep.subr.bf16.mxu0 0
        %3983 = vmatpush2.bf16.xpose.msra.mxu0 0
        %3984 = vmatprep.subr.bf16.mxu0 0
        %3985 = vmatpush2.bf16.xpose.msra.mxu0 0
        %3986 = vmatprep.subr.bf16.mxu0 0
        %3987 = vmatpush2.bf16.xpose.msra.mxu0 0
        %3988 = vmatprep.mubr.bf16.mxu0 0
        %3989 = vmatmul.mubr.bf16.gmra.mxu0 %v3951
        %v3990 = vpop.f32.mrf.mxu0
        %v3991 = vadd.f32 %v1080, %v3990
        %v3992 = vpop.f32.mrf.mxu0
        %v3993 = vpop.f32.mrf.mxu0
        %v3994 = vpop.f32.mrf.mxu0
        %3995 = vdwg.mxu0
        %v3997 = vsel %vm1082, %v3898, 0
        %v4000 = vsel %vm1082, %v3902, 0
        %4002 = vmatprep.subr.bf16.mxu0 0
        %4003 = vmatpush1.bf16.xpose.msra.mxu0 0
        %4004 = vmatprep.subr.bf16.mxu0 0
        %4005 = vmatpush1.bf16.xpose.msra.mxu0 0
        %4006 = vmatprep.subr.bf16.mxu0 0
        %4007 = vmatpush1.bf16.xpose.msra.mxu0 0
        %4008 = vmatprep.subr.bf16.mxu0 0
        %4009 = vmatpush1.bf16.xpose.msra.mxu0 0
        %4010 = vmatprep.subr.bf16.mxu0 0
        %4011 = vmatpush1.bf16.xpose.msra.mxu0 0
        %4012 = vmatprep.subr.bf16.mxu0 0
        %4013 = vmatpush1.bf16.xpose.msra.mxu0 0
        %4014 = vmatprep.subr.bf16.mxu0 0
        %4015 = vmatpush1.bf16.xpose.msra.mxu0 0
        %4016 = vmatprep.subr.bf16.mxu0 0
        %4017 = vmatpush1.bf16.xpose.msra.mxu0 %v4000
        %4018 = vmatprep.subr.bf16.mxu0 0
        %4019 = vmatpush2.bf16.xpose.msra.mxu0 0
        %4020 = vmatprep.subr.bf16.mxu0 0
        %4021 = vmatpush2.bf16.xpose.msra.mxu0 0
        %4022 = vmatprep.subr.bf16.mxu0 0
        %4023 = vmatpush2.bf16.xpose.msra.mxu0 0
        %4024 = vmatprep.subr.bf16.mxu0 0
        %4025 = vmatpush2.bf16.xpose.msra.mxu0 0
        %4026 = vmatprep.subr.bf16.mxu0 0
        %4027 = vmatpush2.bf16.xpose.msra.mxu0 0
        %4028 = vmatprep.subr.bf16.mxu0 0
        %4029 = vmatpush2.bf16.xpose.msra.mxu0 0
        %4030 = vmatprep.subr.bf16.mxu0 0
        %4031 = vmatpush2.bf16.xpose.msra.mxu0 0
        %4032 = vmatprep.subr.bf16.mxu0 0
        %4033 = vmatpush2.bf16.xpose.msra.mxu0 0
        %4034 = vmatprep.mubr.bf16.mxu0 0
        %4035 = vmatmul.mubr.bf16.gmra.mxu0 %v3997
        %v4036 = vpop.f32.mrf.mxu0
        %v4037 = vadd.f32 %v1080, %v4036
        %v4038 = vpop.f32.mrf.mxu0
        %v4039 = vpop.f32.mrf.mxu0
        %v4040 = vpop.f32.mrf.mxu0
        %4041 = vdwg.mxu0
        %v4043 = vsel %vm1082, %v3899, 0
        %v4046 = vsel %vm1082, %v3903, 0
        %4048 = vmatprep.subr.bf16.mxu0 0
        %4049 = vmatpush1.bf16.xpose.msra.mxu0 0
        %4050 = vmatprep.subr.bf16.mxu0 0
        %4051 = vmatpush1.bf16.xpose.msra.mxu0 0
        %4052 = vmatprep.subr.bf16.mxu0 0
        %4053 = vmatpush1.bf16.xpose.msra.mxu0 0
        %4054 = vmatprep.subr.bf16.mxu0 0
        %4055 = vmatpush1.bf16.xpose.msra.mxu0 0
        %4056 = vmatprep.subr.bf16.mxu0 0
        %4057 = vmatpush1.bf16.xpose.msra.mxu0 0
        %4058 = vmatprep.subr.bf16.mxu0 0
        %4059 = vmatpush1.bf16.xpose.msra.mxu0 0
        %4060 = vmatprep.subr.bf16.mxu0 0
        %4061 = vmatpush1.bf16.xpose.msra.mxu0 0
        %4062 = vmatprep.subr.bf16.mxu0 0
        %4063 = vmatpush1.bf16.xpose.msra.mxu0 %v4046
        %4064 = vmatprep.subr.bf16.mxu0 0
        %4065 = vmatpush2.bf16.xpose.msra.mxu0 0
        %4066 = vmatprep.subr.bf16.mxu0 0
        %4067 = vmatpush2.bf16.xpose.msra.mxu0 0
        %4068 = vmatprep.subr.bf16.mxu0 0
        %4069 = vmatpush2.bf16.xpose.msra.mxu0 0
        %4070 = vmatprep.subr.bf16.mxu0 0
        %4071 = vmatpush2.bf16.xpose.msra.mxu0 0
        %4072 = vmatprep.subr.bf16.mxu0 0
        %4073 = vmatpush2.bf16.xpose.msra.mxu0 0
        %4074 = vmatprep.subr.bf16.mxu0 0
        %4075 = vmatpush2.bf16.xpose.msra.mxu0 0
        %4076 = vmatprep.subr.bf16.mxu0 0
        %4077 = vmatpush2.bf16.xpose.msra.mxu0 0
        %4078 = vmatprep.subr.bf16.mxu0 0
        %4079 = vmatpush2.bf16.xpose.msra.mxu0 0
        %4080 = vmatprep.mubr.bf16.mxu0 0
        %4081 = vmatmul.mubr.bf16.gmra.mxu0 %v4043
        %v4082 = vpop.f32.mrf.mxu0
        %v4083 = vadd.f32 %v1080, %v4082
        %v4084 = vpop.f32.mrf.mxu0
        %v4085 = vpop.f32.mrf.mxu0
        %v4086 = vpop.f32.mrf.mxu0
        %4087 = vdwg.mxu0
        %v4088 = vsel %vm1082, %v3945, -inf
        %4089 = vmax.xlane.f32.xlu0 %v4088
        %v4090 = vpop.xlane.xlu0 %4089
        %v4091 = vsel %vm1082, %v3991, -inf
        %4092 = vmax.xlane.f32.xlu0 %v4091
        %v4093 = vpop.xlane.xlu0 %4092
        %v4094 = vsel %vm1082, %v4037, -inf
        %4095 = vmax.xlane.f32.xlu0 %v4094
        %v4096 = vpop.xlane.xlu0 %4095
        %v4097 = vsel %vm1082, %v4083, -inf
        %4098 = vmax.xlane.f32.xlu0 %v4097
        %v4099 = vpop.xlane.xlu0 %4098
        %v4100 = vsub.f32 %v3945, %v4090
        %v4101 = vsub.f32 %v3991, %v4093
        %v4102 = vsub.f32 %v4037, %v4096
        %v4103 = vsub.f32 %v4083, %v4099
        %v4104 = vmul.f32 %v4100, 1.442695
        %v4105 = vpow.pop %v4104
        %v4106 = vmul.f32 %v4101, 1.442695
        %v4107 = vpow.pop %v4106
        %v4108 = vmul.f32 %v4102, 1.442695
        %v4109 = vpow.pop %v4108
        %v4110 = vmul.f32 %v4103, 1.442695
        %v4111 = vpow.pop %v4110
        %v4112 = vsel %vm1082, %v4105, 0.0
        %4113 = vadd.xlane.f32.xlu0 %v4112
        %v4114 = vpop.xlane.xlu0 %4113
        %v4115 = vsel %vm1082, %v4107, 0.0
        %4116 = vadd.xlane.f32.xlu0 %v4115
        %v4117 = vpop.xlane.xlu0 %4116
        %v4118 = vsel %vm1082, %v4109, 0.0
        %4119 = vadd.xlane.f32.xlu0 %v4118
        %v4120 = vpop.xlane.xlu0 %4119
        %v4121 = vsel %vm1082, %v4111, 0.0
        %4122 = vadd.xlane.f32.xlu0 %v4121
        %v4123 = vpop.xlane.xlu0 %4122
        %v4124 = vrcp.pop %v4114
        %v4125 = vrcp.pop %v4117
        %v4126 = vrcp.pop %v4120
        %v4127 = vrcp.pop %v4123
        %v4128 = vmul.f32 %v4105, %v4124
        %v4129 = vmul.f32 %v4107, %v4125
        %v4130 = vmul.f32 %v4109, %v4126
        %v4131 = vmul.f32 %v4111, %v4127
        %v4132 = vpack.c.bf16 %v4128, %v4128
        %v4133 = vpack.c.bf16 %v4129, %v4129
        %v4134 = vpack.c.bf16 %v4130, %v4130
        %v4135 = vpack.c.bf16 %v4131, %v4131
        %v4136 = vpack.c.bf16 %v3762, %v3762
        %v4137 = vpack.c.bf16 %v3805, %v3805
        %v4138 = vpack.c.bf16 %v3848, %v3848
        %v4139 = vpack.c.bf16 %v3891, %v3891
        %v4141 = vsel %vm1082, %v4132, 0
        %v4144 = vsel %vm1322, %v4136, 0
        %4146 = vmatprep.subr.bf16.mxu0 0
        %4147 = vmatpush1.bf16.msra.mxu0 0
        %4148 = vmatprep.subr.bf16.mxu0 0
        %4149 = vmatpush1.bf16.msra.mxu0 0
        %4150 = vmatprep.subr.bf16.mxu0 0
        %4151 = vmatpush1.bf16.msra.mxu0 0
        %4152 = vmatprep.subr.bf16.mxu0 0
        %4153 = vmatpush1.bf16.msra.mxu0 0
        %4154 = vmatprep.subr.bf16.mxu0 0
        %4155 = vmatpush1.bf16.msra.mxu0 0
        %4156 = vmatprep.subr.bf16.mxu0 0
        %4157 = vmatpush1.bf16.msra.mxu0 0
        %4158 = vmatprep.subr.bf16.mxu0 0
        %4159 = vmatpush1.bf16.msra.mxu0 0
        %4160 = vmatprep.subr.bf16.mxu0 0
        %4161 = vmatpush1.bf16.msra.mxu0 %v4144
        %4162 = vmatprep.subr.bf16.mxu0 0
        %4163 = vmatpush2.bf16.msra.mxu0 0
        %4164 = vmatprep.subr.bf16.mxu0 0
        %4165 = vmatpush2.bf16.msra.mxu0 0
        %4166 = vmatprep.subr.bf16.mxu0 0
        %4167 = vmatpush2.bf16.msra.mxu0 0
        %4168 = vmatprep.subr.bf16.mxu0 0
        %4169 = vmatpush2.bf16.msra.mxu0 0
        %4170 = vmatprep.subr.bf16.mxu0 0
        %4171 = vmatpush2.bf16.msra.mxu0 0
        %4172 = vmatprep.subr.bf16.mxu0 0
        %4173 = vmatpush2.bf16.msra.mxu0 0
        %4174 = vmatprep.subr.bf16.mxu0 0
        %4175 = vmatpush2.bf16.msra.mxu0 0
        %4176 = vmatprep.subr.bf16.mxu0 0
        %4177 = vmatpush2.bf16.msra.mxu0 0
        %4178 = vmatprep.mubr.bf16.mxu0 0
        %4179 = vmatmul.mubr.bf16.gmra.mxu0 %v4141
        %v4180 = vpop.f32.mrf.mxu0
        %v4181 = vadd.f32 0.0, %v4180
        %v4182 = vpop.f32.mrf.mxu0
        %v4183 = vpop.f32.mrf.mxu0
        %v4184 = vpop.f32.mrf.mxu0
        %4185 = vdwg.mxu0
        %v4187 = vsel %vm1082, %v4133, 0
        %v4190 = vsel %vm1322, %v4137, 0
        %4192 = vmatprep.subr.bf16.mxu0 0
        %4193 = vmatpush1.bf16.msra.mxu0 0
        %4194 = vmatprep.subr.bf16.mxu0 0
        %4195 = vmatpush1.bf16.msra.mxu0 0
        %4196 = vmatprep.subr.bf16.mxu0 0
        %4197 = vmatpush1.bf16.msra.mxu0 0
        %4198 = vmatprep.subr.bf16.mxu0 0
        %4199 = vmatpush1.bf16.msra.mxu0 0
        %4200 = vmatprep.subr.bf16.mxu0 0
        %4201 = vmatpush1.bf16.msra.mxu0 0
        %4202 = vmatprep.subr.bf16.mxu0 0
        %4203 = vmatpush1.bf16.msra.mxu0 0
        %4204 = vmatprep.subr.bf16.mxu0 0
        %4205 = vmatpush1.bf16.msra.mxu0 0
        %4206 = vmatprep.subr.bf16.mxu0 0
        %4207 = vmatpush1.bf16.msra.mxu0 %v4190
        %4208 = vmatprep.subr.bf16.mxu0 0
        %4209 = vmatpush2.bf16.msra.mxu0 0
        %4210 = vmatprep.subr.bf16.mxu0 0
        %4211 = vmatpush2.bf16.msra.mxu0 0
        %4212 = vmatprep.subr.bf16.mxu0 0
        %4213 = vmatpush2.bf16.msra.mxu0 0
        %4214 = vmatprep.subr.bf16.mxu0 0
        %4215 = vmatpush2.bf16.msra.mxu0 0
        %4216 = vmatprep.subr.bf16.mxu0 0
        %4217 = vmatpush2.bf16.msra.mxu0 0
        %4218 = vmatprep.subr.bf16.mxu0 0
        %4219 = vmatpush2.bf16.msra.mxu0 0
        %4220 = vmatprep.subr.bf16.mxu0 0
        %4221 = vmatpush2.bf16.msra.mxu0 0
        %4222 = vmatprep.subr.bf16.mxu0 0
        %4223 = vmatpush2.bf16.msra.mxu0 0
        %4224 = vmatprep.mubr.bf16.mxu0 0
        %4225 = vmatmul.mubr.bf16.gmra.mxu0 %v4187
        %v4226 = vpop.f32.mrf.mxu0
        %v4227 = vadd.f32 0.0, %v4226
        %v4228 = vpop.f32.mrf.mxu0
        %v4229 = vpop.f32.mrf.mxu0
        %v4230 = vpop.f32.mrf.mxu0
        %4231 = vdwg.mxu0
        %v4233 = vsel %vm1082, %v4134, 0
        %v4236 = vsel %vm1322, %v4138, 0
        %4238 = vmatprep.subr.bf16.mxu0 0
        %4239 = vmatpush1.bf16.msra.mxu0 0
        %4240 = vmatprep.subr.bf16.mxu0 0
        %4241 = vmatpush1.bf16.msra.mxu0 0
        %4242 = vmatprep.subr.bf16.mxu0 0
        %4243 = vmatpush1.bf16.msra.mxu0 0
        %4244 = vmatprep.subr.bf16.mxu0 0
        %4245 = vmatpush1.bf16.msra.mxu0 0
        %4246 = vmatprep.subr.bf16.mxu0 0
        %4247 = vmatpush1.bf16.msra.mxu0 0
        %4248 = vmatprep.subr.bf16.mxu0 0
        %4249 = vmatpush1.bf16.msra.mxu0 0
        %4250 = vmatprep.subr.bf16.mxu0 0
        %4251 = vmatpush1.bf16.msra.mxu0 0
        %4252 = vmatprep.subr.bf16.mxu0 0
        %4253 = vmatpush1.bf16.msra.mxu0 %v4236
        %4254 = vmatprep.subr.bf16.mxu0 0
        %4255 = vmatpush2.bf16.msra.mxu0 0
        %4256 = vmatprep.subr.bf16.mxu0 0
        %4257 = vmatpush2.bf16.msra.mxu0 0
        %4258 = vmatprep.subr.bf16.mxu0 0
        %4259 = vmatpush2.bf16.msra.mxu0 0
        %4260 = vmatprep.subr.bf16.mxu0 0
        %4261 = vmatpush2.bf16.msra.mxu0 0
        %4262 = vmatprep.subr.bf16.mxu0 0
        %4263 = vmatpush2.bf16.msra.mxu0 0
        %4264 = vmatprep.subr.bf16.mxu0 0
        %4265 = vmatpush2.bf16.msra.mxu0 0
        %4266 = vmatprep.subr.bf16.mxu0 0
        %4267 = vmatpush2.bf16.msra.mxu0 0
        %4268 = vmatprep.subr.bf16.mxu0 0
        %4269 = vmatpush2.bf16.msra.mxu0 0
        %4270 = vmatprep.mubr.bf16.mxu0 0
        %4271 = vmatmul.mubr.bf16.gmra.mxu0 %v4233
        %v4272 = vpop.f32.mrf.mxu0
        %v4273 = vadd.f32 0.0, %v4272
        %v4274 = vpop.f32.mrf.mxu0
        %v4275 = vpop.f32.mrf.mxu0
        %v4276 = vpop.f32.mrf.mxu0
        %4277 = vdwg.mxu0
        %v4279 = vsel %vm1082, %v4135, 0
        %v4282 = vsel %vm1322, %v4139, 0
        %4284 = vmatprep.subr.bf16.mxu0 0
        %4285 = vmatpush1.bf16.msra.mxu0 0
        %4286 = vmatprep.subr.bf16.mxu0 0
        %4287 = vmatpush1.bf16.msra.mxu0 0
        %4288 = vmatprep.subr.bf16.mxu0 0
        %4289 = vmatpush1.bf16.msra.mxu0 0
        %4290 = vmatprep.subr.bf16.mxu0 0
        %4291 = vmatpush1.bf16.msra.mxu0 0
        %4292 = vmatprep.subr.bf16.mxu0 0
        %4293 = vmatpush1.bf16.msra.mxu0 0
        %4294 = vmatprep.subr.bf16.mxu0 0
        %4295 = vmatpush1.bf16.msra.mxu0 0
        %4296 = vmatprep.subr.bf16.mxu0 0
        %4297 = vmatpush1.bf16.msra.mxu0 0
        %4298 = vmatprep.subr.bf16.mxu0 0
        %4299 = vmatpush1.bf16.msra.mxu0 %v4282
        %4300 = vmatprep.subr.bf16.mxu0 0
        %4301 = vmatpush2.bf16.msra.mxu0 0
        %4302 = vmatprep.subr.bf16.mxu0 0
        %4303 = vmatpush2.bf16.msra.mxu0 0
        %4304 = vmatprep.subr.bf16.mxu0 0
        %4305 = vmatpush2.bf16.msra.mxu0 0
        %4306 = vmatprep.subr.bf16.mxu0 0
        %4307 = vmatpush2.bf16.msra.mxu0 0
        %4308 = vmatprep.subr.bf16.mxu0 0
        %4309 = vmatpush2.bf16.msra.mxu0 0
        %4310 = vmatprep.subr.bf16.mxu0 0
        %4311 = vmatpush2.bf16.msra.mxu0 0
        %4312 = vmatprep.subr.bf16.mxu0 0
        %4313 = vmatpush2.bf16.msra.mxu0 0
        %4314 = vmatprep.subr.bf16.mxu0 0
        %4315 = vmatpush2.bf16.msra.mxu0 0
        %4316 = vmatprep.mubr.bf16.mxu0 0
        %4317 = vmatmul.mubr.bf16.gmra.mxu0 %v4279
        %v4318 = vpop.f32.mrf.mxu0
        %v4319 = vadd.f32 0.0, %v4318
        %v4320 = vpop.f32.mrf.mxu0
        %v4321 = vpop.f32.mrf.mxu0
        %v4322 = vpop.f32.mrf.mxu0
        %4323 = vdwg.mxu0
        %v4324 = vpack.c.bf16 %v4181, %v4181
        %v4325 = vpack.c.bf16 %v4227, %v4227
        %v4326 = vpack.c.bf16 %v4273, %v4273
        %v4327 = vpack.c.bf16 %v4319, %v4319
        %s4328 = scalar_lea.vmem %s4, 32
        %v4329 = vld [vmem:[%s4328] sm:$0xf]
        %v4330 = vld [vmem:[%s4328 + $0x4] sm:$0xf]
        %v4331 = vld [vmem:[%s4328 + $0x8] sm:$0xf]
        %v4332 = vld [vmem:[%s4328 + $0xc] sm:$0xf]
        %v4334 = vsel %vm1082, %v4324, 0
        %v4337 = vsel %vm1322, %v4329, 0
        %4339 = vmatprep.subr.bf16.mxu0 0
        %4340 = vmatpush1.bf16.msra.mxu0 0
        %4341 = vmatprep.subr.bf16.mxu0 0
        %4342 = vmatpush1.bf16.msra.mxu0 0
        %4343 = vmatprep.subr.bf16.mxu0 0
        %4344 = vmatpush1.bf16.msra.mxu0 0
        %4345 = vmatprep.subr.bf16.mxu0 0
        %4346 = vmatpush1.bf16.msra.mxu0 0
        %4347 = vmatprep.subr.bf16.mxu0 0
        %4348 = vmatpush1.bf16.msra.mxu0 0
        %4349 = vmatprep.subr.bf16.mxu0 0
        %4350 = vmatpush1.bf16.msra.mxu0 0
        %4351 = vmatprep.subr.bf16.mxu0 0
        %4352 = vmatpush1.bf16.msra.mxu0 0
        %4353 = vmatprep.subr.bf16.mxu0 0
        %4354 = vmatpush1.bf16.msra.mxu0 %v4337
        %4355 = vmatprep.subr.bf16.mxu0 0
        %4356 = vmatpush2.bf16.msra.mxu0 0
        %4357 = vmatprep.subr.bf16.mxu0 0
        %4358 = vmatpush2.bf16.msra.mxu0 0
        %4359 = vmatprep.subr.bf16.mxu0 0
        %4360 = vmatpush2.bf16.msra.mxu0 0
        %4361 = vmatprep.subr.bf16.mxu0 0
        %4362 = vmatpush2.bf16.msra.mxu0 0
        %4363 = vmatprep.subr.bf16.mxu0 0
        %4364 = vmatpush2.bf16.msra.mxu0 0
        %4365 = vmatprep.subr.bf16.mxu0 0
        %4366 = vmatpush2.bf16.msra.mxu0 0
        %4367 = vmatprep.subr.bf16.mxu0 0
        %4368 = vmatpush2.bf16.msra.mxu0 0
        %4369 = vmatprep.subr.bf16.mxu0 0
        %4370 = vmatpush2.bf16.msra.mxu0 0
        %4371 = vmatprep.mubr.bf16.mxu0 0
        %4372 = vmatmul.mubr.bf16.gmra.mxu0 %v4334
        %v4373 = vpop.f32.mrf.mxu0
        %v4374 = vadd.f32 0.0, %v4373
        %v4375 = vpop.f32.mrf.mxu0
        %v4376 = vpop.f32.mrf.mxu0
        %v4377 = vpop.f32.mrf.mxu0
        %4378 = vdwg.mxu0
        %v4380 = vsel %vm1082, %v4325, 0
        %v4383 = vsel %vm1322, %v4330, 0
        %4385 = vmatprep.subr.bf16.mxu0 0
        %4386 = vmatpush1.bf16.msra.mxu0 0
        %4387 = vmatprep.subr.bf16.mxu0 0
        %4388 = vmatpush1.bf16.msra.mxu0 0
        %4389 = vmatprep.subr.bf16.mxu0 0
        %4390 = vmatpush1.bf16.msra.mxu0 0
        %4391 = vmatprep.subr.bf16.mxu0 0
        %4392 = vmatpush1.bf16.msra.mxu0 0
        %4393 = vmatprep.subr.bf16.mxu0 0
        %4394 = vmatpush1.bf16.msra.mxu0 0
        %4395 = vmatprep.subr.bf16.mxu0 0
        %4396 = vmatpush1.bf16.msra.mxu0 0
        %4397 = vmatprep.subr.bf16.mxu0 0
        %4398 = vmatpush1.bf16.msra.mxu0 0
        %4399 = vmatprep.subr.bf16.mxu0 0
        %4400 = vmatpush1.bf16.msra.mxu0 %v4383
        %4401 = vmatprep.subr.bf16.mxu0 0
        %4402 = vmatpush2.bf16.msra.mxu0 0
        %4403 = vmatprep.subr.bf16.mxu0 0
        %4404 = vmatpush2.bf16.msra.mxu0 0
        %4405 = vmatprep.subr.bf16.mxu0 0
        %4406 = vmatpush2.bf16.msra.mxu0 0
        %4407 = vmatprep.subr.bf16.mxu0 0
        %4408 = vmatpush2.bf16.msra.mxu0 0
        %4409 = vmatprep.subr.bf16.mxu0 0
        %4410 = vmatpush2.bf16.msra.mxu0 0
        %4411 = vmatprep.subr.bf16.mxu0 0
        %4412 = vmatpush2.bf16.msra.mxu0 0
        %4413 = vmatprep.subr.bf16.mxu0 0
        %4414 = vmatpush2.bf16.msra.mxu0 0
        %4415 = vmatprep.subr.bf16.mxu0 0
        %4416 = vmatpush2.bf16.msra.mxu0 0
        %4417 = vmatprep.mubr.bf16.mxu0 0
        %4418 = vmatmul.mubr.bf16.gmra.mxu0 %v4380
        %v4419 = vpop.f32.mrf.mxu0
        %v4420 = vadd.f32 0.0, %v4419
        %v4421 = vpop.f32.mrf.mxu0
        %v4422 = vpop.f32.mrf.mxu0
        %v4423 = vpop.f32.mrf.mxu0
        %4424 = vdwg.mxu0
        %v4426 = vsel %vm1082, %v4326, 0
        %v4429 = vsel %vm1322, %v4331, 0
        %4431 = vmatprep.subr.bf16.mxu0 0
        %4432 = vmatpush1.bf16.msra.mxu0 0
        %4433 = vmatprep.subr.bf16.mxu0 0
        %4434 = vmatpush1.bf16.msra.mxu0 0
        %4435 = vmatprep.subr.bf16.mxu0 0
        %4436 = vmatpush1.bf16.msra.mxu0 0
        %4437 = vmatprep.subr.bf16.mxu0 0
        %4438 = vmatpush1.bf16.msra.mxu0 0
        %4439 = vmatprep.subr.bf16.mxu0 0
        %4440 = vmatpush1.bf16.msra.mxu0 0
        %4441 = vmatprep.subr.bf16.mxu0 0
        %4442 = vmatpush1.bf16.msra.mxu0 0
        %4443 = vmatprep.subr.bf16.mxu0 0
        %4444 = vmatpush1.bf16.msra.mxu0 0
        %4445 = vmatprep.subr.bf16.mxu0 0
        %4446 = vmatpush1.bf16.msra.mxu0 %v4429
        %4447 = vmatprep.subr.bf16.mxu0 0
        %4448 = vmatpush2.bf16.msra.mxu0 0
        %4449 = vmatprep.subr.bf16.mxu0 0
        %4450 = vmatpush2.bf16.msra.mxu0 0
        %4451 = vmatprep.subr.bf16.mxu0 0
        %4452 = vmatpush2.bf16.msra.mxu0 0
        %4453 = vmatprep.subr.bf16.mxu0 0
        %4454 = vmatpush2.bf16.msra.mxu0 0
        %4455 = vmatprep.subr.bf16.mxu0 0
        %4456 = vmatpush2.bf16.msra.mxu0 0
        %4457 = vmatprep.subr.bf16.mxu0 0
        %4458 = vmatpush2.bf16.msra.mxu0 0
        %4459 = vmatprep.subr.bf16.mxu0 0
        %4460 = vmatpush2.bf16.msra.mxu0 0
        %4461 = vmatprep.subr.bf16.mxu0 0
        %4462 = vmatpush2.bf16.msra.mxu0 0
        %4463 = vmatprep.mubr.bf16.mxu0 0
        %4464 = vmatmul.mubr.bf16.gmra.mxu0 %v4426
        %v4465 = vpop.f32.mrf.mxu0
        %v4466 = vadd.f32 0.0, %v4465
        %v4467 = vpop.f32.mrf.mxu0
        %v4468 = vpop.f32.mrf.mxu0
        %v4469 = vpop.f32.mrf.mxu0
        %4470 = vdwg.mxu0
        %v4472 = vsel %vm1082, %v4327, 0
        %v4475 = vsel %vm1322, %v4332, 0
        %4477 = vmatprep.subr.bf16.mxu0 0
        %4478 = vmatpush1.bf16.msra.mxu0 0
        %4479 = vmatprep.subr.bf16.mxu0 0
        %4480 = vmatpush1.bf16.msra.mxu0 0
        %4481 = vmatprep.subr.bf16.mxu0 0
        %4482 = vmatpush1.bf16.msra.mxu0 0
        %4483 = vmatprep.subr.bf16.mxu0 0
        %4484 = vmatpush1.bf16.msra.mxu0 0
        %4485 = vmatprep.subr.bf16.mxu0 0
        %4486 = vmatpush1.bf16.msra.mxu0 0
        %4487 = vmatprep.subr.bf16.mxu0 0
        %4488 = vmatpush1.bf16.msra.mxu0 0
        %4489 = vmatprep.subr.bf16.mxu0 0
        %4490 = vmatpush1.bf16.msra.mxu0 0
        %4491 = vmatprep.subr.bf16.mxu0 0
        %4492 = vmatpush1.bf16.msra.mxu0 %v4475
        %4493 = vmatprep.subr.bf16.mxu0 0
        %4494 = vmatpush2.bf16.msra.mxu0 0
        %4495 = vmatprep.subr.bf16.mxu0 0
        %4496 = vmatpush2.bf16.msra.mxu0 0
        %4497 = vmatprep.subr.bf16.mxu0 0
        %4498 = vmatpush2.bf16.msra.mxu0 0
        %4499 = vmatprep.subr.bf16.mxu0 0
        %4500 = vmatpush2.bf16.msra.mxu0 0
        %4501 = vmatprep.subr.bf16.mxu0 0
        %4502 = vmatpush2.bf16.msra.mxu0 0
        %4503 = vmatprep.subr.bf16.mxu0 0
        %4504 = vmatpush2.bf16.msra.mxu0 0
        %4505 = vmatprep.subr.bf16.mxu0 0
        %4506 = vmatpush2.bf16.msra.mxu0 0
        %4507 = vmatprep.subr.bf16.mxu0 0
        %4508 = vmatpush2.bf16.msra.mxu0 0
        %4509 = vmatprep.mubr.bf16.mxu0 0
        %4510 = vmatmul.mubr.bf16.gmra.mxu0 %v4472
        %v4511 = vpop.f32.mrf.mxu0
        %v4512 = vadd.f32 0.0, %v4511
        %v4513 = vpop.f32.mrf.mxu0
        %v4514 = vpop.f32.mrf.mxu0
        %v4515 = vpop.f32.mrf.mxu0
        %4516 = vdwg.mxu0
        %v4517 = vsel %vm382, %v4374, 0.0
        %v4518 = vsel %vm382, %v4420, 0.0
        %v4519 = vadd.f32 %v4517, %v4518
        %v4520 = vsel %vm382, %v4466, 0.0
        %v4521 = vadd.f32 %v4519, %v4520
        %v4522 = vsel %vm382, %v4512, 0.0
        %v4523 = vadd.f32 %v4521, %v4522
        %v4524 = vld [vmem:[#allocation2 + $0x6] sm:$0x1]
        %v4525 = vlaneseq
        %v4526 = vshrl.u32 %v4525, 7
        %v4527 = vsub.s32 0, %v4526
        %v4528 = vrot.slane %v4524, %v4527
        %v4529 = vadd.f32 %v4523, %v4528
        %v4530 = vadd.f32 %v4529, %v3273
        %v4531 = vsel %vm382, %v4530, 0.0
        %4532 = vadd.xlane.f32.xlu0 %v4531
        %v4533 = vpop.xlane.xlu0 %4532
        %v4534 = vmul.f32 %v4533, %v429
        %v4535 = vsub.f32 %v4530, %v4534
        %v4536 = vmul.f32 %v4535, %v4535
        %v4537 = vsel %vm382, %v4536, 0.0
        %4538 = vadd.xlane.f32.xlu0 %v4537
        %v4539 = vpop.xlane.xlu0 %4538
        %v4540 = vmul.f32 %v4539, %v429
        %v4541 = vadd.f32 %v4540, 1e-06
        %v4542 = vrsqrt.pop %v4541
        %v4543 = vmul.f32 %v4535, %v4542
        %v4544 = vld [vmem:[#allocation2 + $0x7] sm:$0x1]
        %v4545 = vlaneseq
        %v4546 = vshrl.u32 %v4545, 7
        %v4547 = vsub.s32 0, %v4546
        %v4548 = vrot.slane %v4544, %v4547
        %v4549 = vmul.f32 %v4543, %v4548
        %v4550 = vld [vmem:[#allocation2 + $0x8] sm:$0x1]
        %v4551 = vlaneseq
        %v4552 = vshrl.u32 %v4551, 7
        %v4553 = vsub.s32 0, %v4552
        %v4554 = vrot.slane %v4550, %v4553
        %v4555 = vadd.f32 %v4549, %v4554
        %v4556 = vpack.c.bf16 %v4555, %v4555
        %s4557 = scalar_lea.vmem %s5, 16
        %v4558 = vld [vmem:[%s4557] sm:$0xf]
        %v4559 = vld [vmem:[%s4557 + $0x4] sm:$0xf]
        %v4560 = vld [vmem:[%s4557 + $0x8] sm:$0xf]
        %v4561 = vld [vmem:[%s4557 + $0xc] sm:$0xf]
        %v4562 = vld [vmem:[#allocation2 + $0x13] sm:$0x1]
        %v4563 = vlaneseq
        %v4564 = vshrl.u32 %v4563, 7
        %v4565 = vsub.s32 0, %v4564
        %v4566 = vrot.slane %v4562, %v4565
        %v4571 = vunpack.c.l.b16 %v4558
        %v4572 = vunpack.c.l.b16 %v4559
        %v4573 = vunpack.c.l.b16 %v4560
        %v4574 = vunpack.c.l.b16 %v4561
        %v4575 = vpack.c.b16 %v4572, %v4571
        %v4576 = vpack.c.b16 %v4574, %v4573
        %v4580 = vsel %vm382, %v4556, 0
        %4582 = vmatprep.subr.bf16.mxu0 0
        %4583 = vmatpush1.bf16.msra.mxu0 0
        %4584 = vmatprep.subr.bf16.mxu0 0
        %4585 = vmatpush1.bf16.msra.mxu0 0
        %4586 = vmatprep.subr.bf16.mxu0 0
        %4587 = vmatpush1.bf16.msra.mxu0 0
        %4588 = vmatprep.subr.bf16.mxu0 0
        %4589 = vmatpush1.bf16.msra.mxu0 0
        %4590 = vmatprep.subr.bf16.mxu0 0
        %4591 = vmatpush1.bf16.msra.mxu0 0
        %4592 = vmatprep.subr.bf16.mxu0 0
        %4593 = vmatpush1.bf16.msra.mxu0 0
        %4594 = vmatprep.subr.bf16.mxu0 0
        %4595 = vmatpush1.bf16.msra.mxu0 %v4576
        %4596 = vmatprep.subr.bf16.mxu0 0
        %4597 = vmatpush1.bf16.msra.mxu0 %v4575
        %4598 = vmatprep.subr.bf16.mxu0 0
        %4599 = vmatpush2.bf16.msra.mxu0 0
        %4600 = vmatprep.subr.bf16.mxu0 0
        %4601 = vmatpush2.bf16.msra.mxu0 0
        %4602 = vmatprep.subr.bf16.mxu0 0
        %4603 = vmatpush2.bf16.msra.mxu0 0
        %4604 = vmatprep.subr.bf16.mxu0 0
        %4605 = vmatpush2.bf16.msra.mxu0 0
        %4606 = vmatprep.subr.bf16.mxu0 0
        %4607 = vmatpush2.bf16.msra.mxu0 0
        %4608 = vmatprep.subr.bf16.mxu0 0
        %4609 = vmatpush2.bf16.msra.mxu0 0
        %4610 = vmatprep.subr.bf16.mxu0 0
        %4611 = vmatpush2.bf16.msra.mxu0 0
        %4612 = vmatprep.subr.bf16.mxu0 0
        %4613 = vmatpush2.bf16.msra.mxu0 0
        %4614 = vmatprep.mubr.bf16.mxu0 0
        %4615 = vmatmul.mubr.bf16.gmra.mxu0 %v4580
        %v4616 = vpop.f32.mrf.mxu0
        %v4617 = vadd.f32 %v4566, %v4616
        %v4618 = vpop.f32.mrf.mxu0
        %v4619 = vpop.f32.mrf.mxu0
        %v4620 = vpop.f32.mrf.mxu0
        %4621 = vdwg.mxu0
        %v4622 = vmax.f32 %v4617, 0.0
        %v4623 = vpack.c.bf16 %v4622, %v4622
        %s4624 = scalar_lea.vmem %s6, 32
        %v4625 = vld [vmem:[%s4624] sm:$0xf]
        %v4626 = vld [vmem:[%s4624 + $0x4] sm:$0xf]
        %v4627 = vld [vmem:[%s4624 + $0x8] sm:$0xf]
        %v4628 = vld [vmem:[%s4624 + $0xc] sm:$0xf]
        %v4629 = vld [vmem:[%s4624 + $0x10] sm:$0xf]
        %v4630 = vld [vmem:[%s4624 + $0x14] sm:$0xf]
        %v4631 = vld [vmem:[%s4624 + $0x18] sm:$0xf]
        %v4632 = vld [vmem:[%s4624 + $0x1c] sm:$0xf]
        %v4633 = vld [vmem:[#allocation2 + $0x14] sm:$0x1]
        %v4634 = vlaneseq
        %v4635 = vshrl.u32 %v4634, 7
        %v4636 = vsub.s32 0, %v4635
        %v4637 = vrot.slane %v4633, %v4636
        %v4646 = vunpack.c.l.b16 %v4625
        %v4647 = vunpack.c.l.b16 %v4626
        %v4648 = vunpack.c.l.b16 %v4627
        %v4649 = vunpack.c.l.b16 %v4628
        %v4650 = vunpack.c.l.b16 %v4629
        %v4651 = vunpack.c.l.b16 %v4630
        %v4652 = vunpack.c.l.b16 %v4631
        %v4653 = vunpack.c.l.b16 %v4632
        %v4654 = vpack.c.b16 %v4647, %v4646
        %v4655 = vpack.c.b16 %v4649, %v4648
        %v4656 = vpack.c.b16 %v4651, %v4650
        %v4657 = vpack.c.b16 %v4653, %v4652
        %v4663 = vsel %vm1839, %v4623, 0
        %4665 = vmatprep.subr.bf16.mxu0 0
        %4666 = vmatpush1.bf16.msra.mxu0 0
        %4667 = vmatprep.subr.bf16.mxu0 0
        %4668 = vmatpush1.bf16.msra.mxu0 0
        %4669 = vmatprep.subr.bf16.mxu0 0
        %4670 = vmatpush1.bf16.msra.mxu0 0
        %4671 = vmatprep.subr.bf16.mxu0 0
        %4672 = vmatpush1.bf16.msra.mxu0 0
        %4673 = vmatprep.subr.bf16.mxu0 0
        %4674 = vmatpush1.bf16.msra.mxu0 %v4657
        %4675 = vmatprep.subr.bf16.mxu0 0
        %4676 = vmatpush1.bf16.msra.mxu0 %v4656
        %4677 = vmatprep.subr.bf16.mxu0 0
        %4678 = vmatpush1.bf16.msra.mxu0 %v4655
        %4679 = vmatprep.subr.bf16.mxu0 0
        %4680 = vmatpush1.bf16.msra.mxu0 %v4654
        %4681 = vmatprep.subr.bf16.mxu0 0
        %4682 = vmatpush2.bf16.msra.mxu0 0
        %4683 = vmatprep.subr.bf16.mxu0 0
        %4684 = vmatpush2.bf16.msra.mxu0 0
        %4685 = vmatprep.subr.bf16.mxu0 0
        %4686 = vmatpush2.bf16.msra.mxu0 0
        %4687 = vmatprep.subr.bf16.mxu0 0
        %4688 = vmatpush2.bf16.msra.mxu0 0
        %4689 = vmatprep.subr.bf16.mxu0 0
        %4690 = vmatpush2.bf16.msra.mxu0 0
        %4691 = vmatprep.subr.bf16.mxu0 0
        %4692 = vmatpush2.bf16.msra.mxu0 0
        %4693 = vmatprep.subr.bf16.mxu0 0
        %4694 = vmatpush2.bf16.msra.mxu0 0
        %4695 = vmatprep.subr.bf16.mxu0 0
        %4696 = vmatpush2.bf16.msra.mxu0 0
        %4697 = vmatprep.mubr.bf16.mxu0 0
        %4698 = vmatmul.mubr.bf16.gmra.mxu0 %v4663
        %v4699 = vpop.f32.mrf.mxu0
        %v4700 = vadd.f32 %v4637, %v4699
        %v4701 = vpop.f32.mrf.mxu0
        %v4702 = vpop.f32.mrf.mxu0
        %v4703 = vpop.f32.mrf.mxu0
        %4704 = vdwg.mxu0
        %v4705 = vadd.f32 %v4700, %v4555
        %v4706 = vsel %vm382, %v4705, 0.0
        %4707 = vadd.xlane.f32.xlu0 %v4706
        %v4708 = vpop.xlane.xlu0 %4707
        %v4709 = vmul.f32 %v4708, %v429
        %v4710 = vsub.f32 %v4705, %v4709
        %v4711 = vmul.f32 %v4710, %v4710
        %v4712 = vsel %vm382, %v4711, 0.0
        %4713 = vadd.xlane.f32.xlu0 %v4712
        %v4714 = vpop.xlane.xlu0 %4713
        %v4715 = vmul.f32 %v4714, %v429
        %v4716 = vadd.f32 %v4715, 1e-06
        %v4717 = vrsqrt.pop %v4716
        %v4718 = vmul.f32 %v4710, %v4717
        %v4719 = vld [vmem:[#allocation2 + $0x15] sm:$0x1]
        %v4720 = vlaneseq
        %v4721 = vshrl.u32 %v4720, 7
        %v4722 = vsub.s32 0, %v4721
        %v4723 = vrot.slane %v4719, %v4722
        %v4724 = vmul.f32 %v4718, %v4723
        %v4725 = vld [vmem:[#allocation2 + $0x16] sm:$0x1]
        %v4726 = vlaneseq
        %v4727 = vshrl.u32 %v4726, 7
        %v4728 = vsub.s32 0, %v4727
        %v4729 = vrot.slane %v4725, %v4728
        %v4730 = vadd.f32 %v4724, %v4729
        %s4731 = scalar_lea.vmem %s2, 144
        %v4732 = vld [vmem:[%s4731] sm:$0xf]
        %v4733 = vld [vmem:[%s4731 + $0x4] sm:$0xf]
        %v4734 = vld [vmem:[%s4731 + $0x8] sm:$0xf]
        %v4735 = vld [vmem:[%s4731 + $0xc] sm:$0xf]
        %v4736 = vld [vmem:[%s4731 + $0x10] sm:$0xf]
        %v4737 = vld [vmem:[%s4731 + $0x14] sm:$0xf]
        %v4738 = vld [vmem:[%s4731 + $0x18] sm:$0xf]
        %v4739 = vld [vmem:[%s4731 + $0x1c] sm:$0xf]
        %v4740 = vld [vmem:[%s4731 + $0x20] sm:$0xf]
        %v4741 = vld [vmem:[%s4731 + $0x24] sm:$0xf]
        %v4742 = vld [vmem:[%s4731 + $0x28] sm:$0xf]
        %v4743 = vld [vmem:[%s4731 + $0x2c] sm:$0xf]
        %s4744 = scalar_lea.vmem %s3, 36
        %v4745 = vld [vmem:[%s4744] sm:$0x1]
        %v4746 = vld [vmem:[%s4744 + $0x1] sm:$0x1]
        %v4747 = vld [vmem:[%s4744 + $0x2] sm:$0x1]
        %v4748 = vld [vmem:[%s4744 + $0x3] sm:$0x1]
        %v4749 = vld [vmem:[%s4744 + $0x4] sm:$0x1]
        %v4750 = vld [vmem:[%s4744 + $0x5] sm:$0x1]
        %v4751 = vld [vmem:[%s4744 + $0x6] sm:$0x1]
        %v4752 = vld [vmem:[%s4744 + $0x7] sm:$0x1]
        %v4753 = vld [vmem:[%s4744 + $0x8] sm:$0x1]
        %v4754 = vld [vmem:[%s4744 + $0x9] sm:$0x1]
        %v4755 = vld [vmem:[%s4744 + $0xa] sm:$0x1]
        %v4756 = vld [vmem:[%s4744 + $0xb] sm:$0x1]
        %v4757 = vpack.c.bf16 %v4730, %v4730
        %v4770 = vlaneseq
        %v4771 = vshrl.u32 %v4770, 7
        %v4772 = vsub.s32 0, %v4771
        %v4773 = vrot.slane %v4745, %v4772
        %v4774 = vlaneseq
        %v4775 = vshrl.u32 %v4774, 7
        %v4776 = vsub.s32 0, %v4775
        %v4777 = vrot.slane %v4746, %v4776
        %v4778 = vlaneseq
        %v4779 = vshrl.u32 %v4778, 7
        %v4780 = vsub.s32 0, %v4779
        %v4781 = vrot.slane %v4747, %v4780
        %v4782 = vlaneseq
        %v4783 = vshrl.u32 %v4782, 7
        %v4784 = vsub.s32 0, %v4783
        %v4785 = vrot.slane %v4748, %v4784
        %v4786 = vlaneseq
        %v4787 = vshrl.u32 %v4786, 7
        %v4788 = vsub.s32 0, %v4787
        %v4789 = vrot.slane %v4749, %v4788
        %v4790 = vlaneseq
        %v4791 = vshrl.u32 %v4790, 7
        %v4792 = vsub.s32 0, %v4791
        %v4793 = vrot.slane %v4750, %v4792
        %v4794 = vlaneseq
        %v4795 = vshrl.u32 %v4794, 7
        %v4796 = vsub.s32 0, %v4795
        %v4797 = vrot.slane %v4751, %v4796
        %v4798 = vlaneseq
        %v4799 = vshrl.u32 %v4798, 7
        %v4800 = vsub.s32 0, %v4799
        %v4801 = vrot.slane %v4752, %v4800
        %v4802 = vlaneseq
        %v4803 = vshrl.u32 %v4802, 7
        %v4804 = vsub.s32 0, %v4803
        %v4805 = vrot.slane %v4753, %v4804
        %v4806 = vlaneseq
        %v4807 = vshrl.u32 %v4806, 7
        %v4808 = vsub.s32 0, %v4807
        %v4809 = vrot.slane %v4754, %v4808
        %v4810 = vlaneseq
        %v4811 = vshrl.u32 %v4810, 7
        %v4812 = vsub.s32 0, %v4811
        %v4813 = vrot.slane %v4755, %v4812
        %v4814 = vlaneseq
        %v4815 = vshrl.u32 %v4814, 7
        %v4816 = vsub.s32 0, %v4815
        %v4817 = vrot.slane %v4756, %v4816
        %v4831 = vsel %vm382, %v4757, 0
        %v4834 = vsel %vm382, %v4732, 0
        %4836 = vmatprep.subr.bf16.mxu0 0
        %4837 = vmatpush1.bf16.xpose.msra.mxu0 0
        %4838 = vmatprep.subr.bf16.mxu0 0
        %4839 = vmatpush1.bf16.xpose.msra.mxu0 0
        %4840 = vmatprep.subr.bf16.mxu0 0
        %4841 = vmatpush1.bf16.xpose.msra.mxu0 0
        %4842 = vmatprep.subr.bf16.mxu0 0
        %4843 = vmatpush1.bf16.xpose.msra.mxu0 0
        %4844 = vmatprep.subr.bf16.mxu0 0
        %4845 = vmatpush1.bf16.xpose.msra.mxu0 0
        %4846 = vmatprep.subr.bf16.mxu0 0
        %4847 = vmatpush1.bf16.xpose.msra.mxu0 0
        %4848 = vmatprep.subr.bf16.mxu0 0
        %4849 = vmatpush1.bf16.xpose.msra.mxu0 0
        %4850 = vmatprep.subr.bf16.mxu0 0
        %4851 = vmatpush1.bf16.xpose.msra.mxu0 %v4834
        %4852 = vmatprep.subr.bf16.mxu0 0
        %4853 = vmatpush2.bf16.xpose.msra.mxu0 0
        %4854 = vmatprep.subr.bf16.mxu0 0
        %4855 = vmatpush2.bf16.xpose.msra.mxu0 0
        %4856 = vmatprep.subr.bf16.mxu0 0
        %4857 = vmatpush2.bf16.xpose.msra.mxu0 0
        %4858 = vmatprep.subr.bf16.mxu0 0
        %4859 = vmatpush2.bf16.xpose.msra.mxu0 0
        %4860 = vmatprep.subr.bf16.mxu0 0
        %4861 = vmatpush2.bf16.xpose.msra.mxu0 0
        %4862 = vmatprep.subr.bf16.mxu0 0
        %4863 = vmatpush2.bf16.xpose.msra.mxu0 0
        %4864 = vmatprep.subr.bf16.mxu0 0
        %4865 = vmatpush2.bf16.xpose.msra.mxu0 0
        %4866 = vmatprep.subr.bf16.mxu0 0
        %4867 = vmatpush2.bf16.xpose.msra.mxu0 0
        %4868 = vmatprep.mubr.bf16.mxu0 0
        %4869 = vmatmul.mubr.bf16.gmra.mxu0 %v4831
        %v4870 = vpop.f32.mrf.mxu0
        %v4871 = vadd.f32 %v4773, %v4870
        %v4872 = vpop.f32.mrf.mxu0
        %v4873 = vpop.f32.mrf.mxu0
        %v4874 = vpop.f32.mrf.mxu0
        %4875 = vdwg.mxu0
        %v4877 = vsel %vm382, %v4733, 0
        %4879 = vmatprep.subr.bf16.mxu0 0
        %4880 = vmatpush1.bf16.xpose.msra.mxu0 0
        %4881 = vmatprep.subr.bf16.mxu0 0
        %4882 = vmatpush1.bf16.xpose.msra.mxu0 0
        %4883 = vmatprep.subr.bf16.mxu0 0
        %4884 = vmatpush1.bf16.xpose.msra.mxu0 0
        %4885 = vmatprep.subr.bf16.mxu0 0
        %4886 = vmatpush1.bf16.xpose.msra.mxu0 0
        %4887 = vmatprep.subr.bf16.mxu0 0
        %4888 = vmatpush1.bf16.xpose.msra.mxu0 0
        %4889 = vmatprep.subr.bf16.mxu0 0
        %4890 = vmatpush1.bf16.xpose.msra.mxu0 0
        %4891 = vmatprep.subr.bf16.mxu0 0
        %4892 = vmatpush1.bf16.xpose.msra.mxu0 0
        %4893 = vmatprep.subr.bf16.mxu0 0
        %4894 = vmatpush1.bf16.xpose.msra.mxu0 %v4877
        %4895 = vmatprep.subr.bf16.mxu0 0
        %4896 = vmatpush2.bf16.xpose.msra.mxu0 0
        %4897 = vmatprep.subr.bf16.mxu0 0
        %4898 = vmatpush2.bf16.xpose.msra.mxu0 0
        %4899 = vmatprep.subr.bf16.mxu0 0
        %4900 = vmatpush2.bf16.xpose.msra.mxu0 0
        %4901 = vmatprep.subr.bf16.mxu0 0
        %4902 = vmatpush2.bf16.xpose.msra.mxu0 0
        %4903 = vmatprep.subr.bf16.mxu0 0
        %4904 = vmatpush2.bf16.xpose.msra.mxu0 0
        %4905 = vmatprep.subr.bf16.mxu0 0
        %4906 = vmatpush2.bf16.xpose.msra.mxu0 0
        %4907 = vmatprep.subr.bf16.mxu0 0
        %4908 = vmatpush2.bf16.xpose.msra.mxu0 0
        %4909 = vmatprep.subr.bf16.mxu0 0
        %4910 = vmatpush2.bf16.xpose.msra.mxu0 0
        %4911 = vmatprep.mubr.bf16.mxu0 0
        %4912 = vmatmul.mubr.bf16.gmra.mxu0 %v4831
        %v4913 = vpop.f32.mrf.mxu0
        %v4914 = vadd.f32 %v4777, %v4913
        %v4915 = vpop.f32.mrf.mxu0
        %v4916 = vpop.f32.mrf.mxu0
        %v4917 = vpop.f32.mrf.mxu0
        %4918 = vdwg.mxu0
        %v4920 = vsel %vm382, %v4734, 0
        %4922 = vmatprep.subr.bf16.mxu0 0
        %4923 = vmatpush1.bf16.xpose.msra.mxu0 0
        %4924 = vmatprep.subr.bf16.mxu0 0
        %4925 = vmatpush1.bf16.xpose.msra.mxu0 0
        %4926 = vmatprep.subr.bf16.mxu0 0
        %4927 = vmatpush1.bf16.xpose.msra.mxu0 0
        %4928 = vmatprep.subr.bf16.mxu0 0
        %4929 = vmatpush1.bf16.xpose.msra.mxu0 0
        %4930 = vmatprep.subr.bf16.mxu0 0
        %4931 = vmatpush1.bf16.xpose.msra.mxu0 0
        %4932 = vmatprep.subr.bf16.mxu0 0
        %4933 = vmatpush1.bf16.xpose.msra.mxu0 0
        %4934 = vmatprep.subr.bf16.mxu0 0
        %4935 = vmatpush1.bf16.xpose.msra.mxu0 0
        %4936 = vmatprep.subr.bf16.mxu0 0
        %4937 = vmatpush1.bf16.xpose.msra.mxu0 %v4920
        %4938 = vmatprep.subr.bf16.mxu0 0
        %4939 = vmatpush2.bf16.xpose.msra.mxu0 0
        %4940 = vmatprep.subr.bf16.mxu0 0
        %4941 = vmatpush2.bf16.xpose.msra.mxu0 0
        %4942 = vmatprep.subr.bf16.mxu0 0
        %4943 = vmatpush2.bf16.xpose.msra.mxu0 0
        %4944 = vmatprep.subr.bf16.mxu0 0
        %4945 = vmatpush2.bf16.xpose.msra.mxu0 0
        %4946 = vmatprep.subr.bf16.mxu0 0
        %4947 = vmatpush2.bf16.xpose.msra.mxu0 0
        %4948 = vmatprep.subr.bf16.mxu0 0
        %4949 = vmatpush2.bf16.xpose.msra.mxu0 0
        %4950 = vmatprep.subr.bf16.mxu0 0
        %4951 = vmatpush2.bf16.xpose.msra.mxu0 0
        %4952 = vmatprep.subr.bf16.mxu0 0
        %4953 = vmatpush2.bf16.xpose.msra.mxu0 0
        %4954 = vmatprep.mubr.bf16.mxu0 0
        %4955 = vmatmul.mubr.bf16.gmra.mxu0 %v4831
        %v4956 = vpop.f32.mrf.mxu0
        %v4957 = vadd.f32 %v4781, %v4956
        %v4958 = vpop.f32.mrf.mxu0
        %v4959 = vpop.f32.mrf.mxu0
        %v4960 = vpop.f32.mrf.mxu0
        %4961 = vdwg.mxu0
        %v4963 = vsel %vm382, %v4735, 0
        %4965 = vmatprep.subr.bf16.mxu0 0
        %4966 = vmatpush1.bf16.xpose.msra.mxu0 0
        %4967 = vmatprep.subr.bf16.mxu0 0
        %4968 = vmatpush1.bf16.xpose.msra.mxu0 0
        %4969 = vmatprep.subr.bf16.mxu0 0
        %4970 = vmatpush1.bf16.xpose.msra.mxu0 0
        %4971 = vmatprep.subr.bf16.mxu0 0
        %4972 = vmatpush1.bf16.xpose.msra.mxu0 0
        %4973 = vmatprep.subr.bf16.mxu0 0
        %4974 = vmatpush1.bf16.xpose.msra.mxu0 0
        %4975 = vmatprep.subr.bf16.mxu0 0
        %4976 = vmatpush1.bf16.xpose.msra.mxu0 0
        %4977 = vmatprep.subr.bf16.mxu0 0
        %4978 = vmatpush1.bf16.xpose.msra.mxu0 0
        %4979 = vmatprep.subr.bf16.mxu0 0
        %4980 = vmatpush1.bf16.xpose.msra.mxu0 %v4963
        %4981 = vmatprep.subr.bf16.mxu0 0
        %4982 = vmatpush2.bf16.xpose.msra.mxu0 0
        %4983 = vmatprep.subr.bf16.mxu0 0
        %4984 = vmatpush2.bf16.xpose.msra.mxu0 0
        %4985 = vmatprep.subr.bf16.mxu0 0
        %4986 = vmatpush2.bf16.xpose.msra.mxu0 0
        %4987 = vmatprep.subr.bf16.mxu0 0
        %4988 = vmatpush2.bf16.xpose.msra.mxu0 0
        %4989 = vmatprep.subr.bf16.mxu0 0
        %4990 = vmatpush2.bf16.xpose.msra.mxu0 0
        %4991 = vmatprep.subr.bf16.mxu0 0
        %4992 = vmatpush2.bf16.xpose.msra.mxu0 0
        %4993 = vmatprep.subr.bf16.mxu0 0
        %4994 = vmatpush2.bf16.xpose.msra.mxu0 0
        %4995 = vmatprep.subr.bf16.mxu0 0
        %4996 = vmatpush2.bf16.xpose.msra.mxu0 0
        %4997 = vmatprep.mubr.bf16.mxu0 0
        %4998 = vmatmul.mubr.bf16.gmra.mxu0 %v4831
        %v4999 = vpop.f32.mrf.mxu0
        %v5000 = vadd.f32 %v4785, %v4999
        %v5001 = vpop.f32.mrf.mxu0
        %v5002 = vpop.f32.mrf.mxu0
        %v5003 = vpop.f32.mrf.mxu0
        %5004 = vdwg.mxu0
        %v5006 = vsel %vm382, %v4736, 0
        %5008 = vmatprep.subr.bf16.mxu0 0
        %5009 = vmatpush1.bf16.xpose.msra.mxu0 0
        %5010 = vmatprep.subr.bf16.mxu0 0
        %5011 = vmatpush1.bf16.xpose.msra.mxu0 0
        %5012 = vmatprep.subr.bf16.mxu0 0
        %5013 = vmatpush1.bf16.xpose.msra.mxu0 0
        %5014 = vmatprep.subr.bf16.mxu0 0
        %5015 = vmatpush1.bf16.xpose.msra.mxu0 0
        %5016 = vmatprep.subr.bf16.mxu0 0
        %5017 = vmatpush1.bf16.xpose.msra.mxu0 0
        %5018 = vmatprep.subr.bf16.mxu0 0
        %5019 = vmatpush1.bf16.xpose.msra.mxu0 0
        %5020 = vmatprep.subr.bf16.mxu0 0
        %5021 = vmatpush1.bf16.xpose.msra.mxu0 0
        %5022 = vmatprep.subr.bf16.mxu0 0
        %5023 = vmatpush1.bf16.xpose.msra.mxu0 %v5006
        %5024 = vmatprep.subr.bf16.mxu0 0
        %5025 = vmatpush2.bf16.xpose.msra.mxu0 0
        %5026 = vmatprep.subr.bf16.mxu0 0
        %5027 = vmatpush2.bf16.xpose.msra.mxu0 0
        %5028 = vmatprep.subr.bf16.mxu0 0
        %5029 = vmatpush2.bf16.xpose.msra.mxu0 0
        %5030 = vmatprep.subr.bf16.mxu0 0
        %5031 = vmatpush2.bf16.xpose.msra.mxu0 0
        %5032 = vmatprep.subr.bf16.mxu0 0
        %5033 = vmatpush2.bf16.xpose.msra.mxu0 0
        %5034 = vmatprep.subr.bf16.mxu0 0
        %5035 = vmatpush2.bf16.xpose.msra.mxu0 0
        %5036 = vmatprep.subr.bf16.mxu0 0
        %5037 = vmatpush2.bf16.xpose.msra.mxu0 0
        %5038 = vmatprep.subr.bf16.mxu0 0
        %5039 = vmatpush2.bf16.xpose.msra.mxu0 0
        %5040 = vmatprep.mubr.bf16.mxu0 0
        %5041 = vmatmul.mubr.bf16.gmra.mxu0 %v4831
        %v5042 = vpop.f32.mrf.mxu0
        %v5043 = vadd.f32 %v4789, %v5042
        %v5044 = vpop.f32.mrf.mxu0
        %v5045 = vpop.f32.mrf.mxu0
        %v5046 = vpop.f32.mrf.mxu0
        %5047 = vdwg.mxu0
        %v5049 = vsel %vm382, %v4737, 0
        %5051 = vmatprep.subr.bf16.mxu0 0
        %5052 = vmatpush1.bf16.xpose.msra.mxu0 0
        %5053 = vmatprep.subr.bf16.mxu0 0
        %5054 = vmatpush1.bf16.xpose.msra.mxu0 0
        %5055 = vmatprep.subr.bf16.mxu0 0
        %5056 = vmatpush1.bf16.xpose.msra.mxu0 0
        %5057 = vmatprep.subr.bf16.mxu0 0
        %5058 = vmatpush1.bf16.xpose.msra.mxu0 0
        %5059 = vmatprep.subr.bf16.mxu0 0
        %5060 = vmatpush1.bf16.xpose.msra.mxu0 0
        %5061 = vmatprep.subr.bf16.mxu0 0
        %5062 = vmatpush1.bf16.xpose.msra.mxu0 0
        %5063 = vmatprep.subr.bf16.mxu0 0
        %5064 = vmatpush1.bf16.xpose.msra.mxu0 0
        %5065 = vmatprep.subr.bf16.mxu0 0
        %5066 = vmatpush1.bf16.xpose.msra.mxu0 %v5049
        %5067 = vmatprep.subr.bf16.mxu0 0
        %5068 = vmatpush2.bf16.xpose.msra.mxu0 0
        %5069 = vmatprep.subr.bf16.mxu0 0
        %5070 = vmatpush2.bf16.xpose.msra.mxu0 0
        %5071 = vmatprep.subr.bf16.mxu0 0
        %5072 = vmatpush2.bf16.xpose.msra.mxu0 0
        %5073 = vmatprep.subr.bf16.mxu0 0
        %5074 = vmatpush2.bf16.xpose.msra.mxu0 0
        %5075 = vmatprep.subr.bf16.mxu0 0
        %5076 = vmatpush2.bf16.xpose.msra.mxu0 0
        %5077 = vmatprep.subr.bf16.mxu0 0
        %5078 = vmatpush2.bf16.xpose.msra.mxu0 0
        %5079 = vmatprep.subr.bf16.mxu0 0
        %5080 = vmatpush2.bf16.xpose.msra.mxu0 0
        %5081 = vmatprep.subr.bf16.mxu0 0
        %5082 = vmatpush2.bf16.xpose.msra.mxu0 0
        %5083 = vmatprep.mubr.bf16.mxu0 0
        %5084 = vmatmul.mubr.bf16.gmra.mxu0 %v4831
        %v5085 = vpop.f32.mrf.mxu0
        %v5086 = vadd.f32 %v4793, %v5085
        %v5087 = vpop.f32.mrf.mxu0
        %v5088 = vpop.f32.mrf.mxu0
        %v5089 = vpop.f32.mrf.mxu0
        %5090 = vdwg.mxu0
        %v5092 = vsel %vm382, %v4738, 0
        %5094 = vmatprep.subr.bf16.mxu0 0
        %5095 = vmatpush1.bf16.xpose.msra.mxu0 0
        %5096 = vmatprep.subr.bf16.mxu0 0
        %5097 = vmatpush1.bf16.xpose.msra.mxu0 0
        %5098 = vmatprep.subr.bf16.mxu0 0
        %5099 = vmatpush1.bf16.xpose.msra.mxu0 0
        %5100 = vmatprep.subr.bf16.mxu0 0
        %5101 = vmatpush1.bf16.xpose.msra.mxu0 0
        %5102 = vmatprep.subr.bf16.mxu0 0
        %5103 = vmatpush1.bf16.xpose.msra.mxu0 0
        %5104 = vmatprep.subr.bf16.mxu0 0
        %5105 = vmatpush1.bf16.xpose.msra.mxu0 0
        %5106 = vmatprep.subr.bf16.mxu0 0
        %5107 = vmatpush1.bf16.xpose.msra.mxu0 0
        %5108 = vmatprep.subr.bf16.mxu0 0
        %5109 = vmatpush1.bf16.xpose.msra.mxu0 %v5092
        %5110 = vmatprep.subr.bf16.mxu0 0
        %5111 = vmatpush2.bf16.xpose.msra.mxu0 0
        %5112 = vmatprep.subr.bf16.mxu0 0
        %5113 = vmatpush2.bf16.xpose.msra.mxu0 0
        %5114 = vmatprep.subr.bf16.mxu0 0
        %5115 = vmatpush2.bf16.xpose.msra.mxu0 0
        %5116 = vmatprep.subr.bf16.mxu0 0
        %5117 = vmatpush2.bf16.xpose.msra.mxu0 0
        %5118 = vmatprep.subr.bf16.mxu0 0
        %5119 = vmatpush2.bf16.xpose.msra.mxu0 0
        %5120 = vmatprep.subr.bf16.mxu0 0
        %5121 = vmatpush2.bf16.xpose.msra.mxu0 0
        %5122 = vmatprep.subr.bf16.mxu0 0
        %5123 = vmatpush2.bf16.xpose.msra.mxu0 0
        %5124 = vmatprep.subr.bf16.mxu0 0
        %5125 = vmatpush2.bf16.xpose.msra.mxu0 0
        %5126 = vmatprep.mubr.bf16.mxu0 0
        %5127 = vmatmul.mubr.bf16.gmra.mxu0 %v4831
        %v5128 = vpop.f32.mrf.mxu0
        %v5129 = vadd.f32 %v4797, %v5128
        %v5130 = vpop.f32.mrf.mxu0
        %v5131 = vpop.f32.mrf.mxu0
        %v5132 = vpop.f32.mrf.mxu0
        %5133 = vdwg.mxu0
        %v5135 = vsel %vm382, %v4739, 0
        %5137 = vmatprep.subr.bf16.mxu0 0
        %5138 = vmatpush1.bf16.xpose.msra.mxu0 0
        %5139 = vmatprep.subr.bf16.mxu0 0
        %5140 = vmatpush1.bf16.xpose.msra.mxu0 0
        %5141 = vmatprep.subr.bf16.mxu0 0
        %5142 = vmatpush1.bf16.xpose.msra.mxu0 0
        %5143 = vmatprep.subr.bf16.mxu0 0
        %5144 = vmatpush1.bf16.xpose.msra.mxu0 0
        %5145 = vmatprep.subr.bf16.mxu0 0
        %5146 = vmatpush1.bf16.xpose.msra.mxu0 0
        %5147 = vmatprep.subr.bf16.mxu0 0
        %5148 = vmatpush1.bf16.xpose.msra.mxu0 0
        %5149 = vmatprep.subr.bf16.mxu0 0
        %5150 = vmatpush1.bf16.xpose.msra.mxu0 0
        %5151 = vmatprep.subr.bf16.mxu0 0
        %5152 = vmatpush1.bf16.xpose.msra.mxu0 %v5135
        %5153 = vmatprep.subr.bf16.mxu0 0
        %5154 = vmatpush2.bf16.xpose.msra.mxu0 0
        %5155 = vmatprep.subr.bf16.mxu0 0
        %5156 = vmatpush2.bf16.xpose.msra.mxu0 0
        %5157 = vmatprep.subr.bf16.mxu0 0
        %5158 = vmatpush2.bf16.xpose.msra.mxu0 0
        %5159 = vmatprep.subr.bf16.mxu0 0
        %5160 = vmatpush2.bf16.xpose.msra.mxu0 0
        %5161 = vmatprep.subr.bf16.mxu0 0
        %5162 = vmatpush2.bf16.xpose.msra.mxu0 0
        %5163 = vmatprep.subr.bf16.mxu0 0
        %5164 = vmatpush2.bf16.xpose.msra.mxu0 0
        %5165 = vmatprep.subr.bf16.mxu0 0
        %5166 = vmatpush2.bf16.xpose.msra.mxu0 0
        %5167 = vmatprep.subr.bf16.mxu0 0
        %5168 = vmatpush2.bf16.xpose.msra.mxu0 0
        %5169 = vmatprep.mubr.bf16.mxu0 0
        %5170 = vmatmul.mubr.bf16.gmra.mxu0 %v4831
        %v5171 = vpop.f32.mrf.mxu0
        %v5172 = vadd.f32 %v4801, %v5171
        %v5173 = vpop.f32.mrf.mxu0
        %v5174 = vpop.f32.mrf.mxu0
        %v5175 = vpop.f32.mrf.mxu0
        %5176 = vdwg.mxu0
        %v5178 = vsel %vm382, %v4740, 0
        %5180 = vmatprep.subr.bf16.mxu0 0
        %5181 = vmatpush1.bf16.xpose.msra.mxu0 0
        %5182 = vmatprep.subr.bf16.mxu0 0
        %5183 = vmatpush1.bf16.xpose.msra.mxu0 0
        %5184 = vmatprep.subr.bf16.mxu0 0
        %5185 = vmatpush1.bf16.xpose.msra.mxu0 0
        %5186 = vmatprep.subr.bf16.mxu0 0
        %5187 = vmatpush1.bf16.xpose.msra.mxu0 0
        %5188 = vmatprep.subr.bf16.mxu0 0
        %5189 = vmatpush1.bf16.xpose.msra.mxu0 0
        %5190 = vmatprep.subr.bf16.mxu0 0
        %5191 = vmatpush1.bf16.xpose.msra.mxu0 0
        %5192 = vmatprep.subr.bf16.mxu0 0
        %5193 = vmatpush1.bf16.xpose.msra.mxu0 0
        %5194 = vmatprep.subr.bf16.mxu0 0
        %5195 = vmatpush1.bf16.xpose.msra.mxu0 %v5178
        %5196 = vmatprep.subr.bf16.mxu0 0
        %5197 = vmatpush2.bf16.xpose.msra.mxu0 0
        %5198 = vmatprep.subr.bf16.mxu0 0
        %5199 = vmatpush2.bf16.xpose.msra.mxu0 0
        %5200 = vmatprep.subr.bf16.mxu0 0
        %5201 = vmatpush2.bf16.xpose.msra.mxu0 0
        %5202 = vmatprep.subr.bf16.mxu0 0
        %5203 = vmatpush2.bf16.xpose.msra.mxu0 0
        %5204 = vmatprep.subr.bf16.mxu0 0
        %5205 = vmatpush2.bf16.xpose.msra.mxu0 0
        %5206 = vmatprep.subr.bf16.mxu0 0
        %5207 = vmatpush2.bf16.xpose.msra.mxu0 0
        %5208 = vmatprep.subr.bf16.mxu0 0
        %5209 = vmatpush2.bf16.xpose.msra.mxu0 0
        %5210 = vmatprep.subr.bf16.mxu0 0
        %5211 = vmatpush2.bf16.xpose.msra.mxu0 0
        %5212 = vmatprep.mubr.bf16.mxu0 0
        %5213 = vmatmul.mubr.bf16.gmra.mxu0 %v4831
        %v5214 = vpop.f32.mrf.mxu0
        %v5215 = vadd.f32 %v4805, %v5214
        %v5216 = vpop.f32.mrf.mxu0
        %v5217 = vpop.f32.mrf.mxu0
        %v5218 = vpop.f32.mrf.mxu0
        %5219 = vdwg.mxu0
        %v5221 = vsel %vm382, %v4741, 0
        %5223 = vmatprep.subr.bf16.mxu0 0
        %5224 = vmatpush1.bf16.xpose.msra.mxu0 0
        %5225 = vmatprep.subr.bf16.mxu0 0
        %5226 = vmatpush1.bf16.xpose.msra.mxu0 0
        %5227 = vmatprep.subr.bf16.mxu0 0
        %5228 = vmatpush1.bf16.xpose.msra.mxu0 0
        %5229 = vmatprep.subr.bf16.mxu0 0
        %5230 = vmatpush1.bf16.xpose.msra.mxu0 0
        %5231 = vmatprep.subr.bf16.mxu0 0
        %5232 = vmatpush1.bf16.xpose.msra.mxu0 0
        %5233 = vmatprep.subr.bf16.mxu0 0
        %5234 = vmatpush1.bf16.xpose.msra.mxu0 0
        %5235 = vmatprep.subr.bf16.mxu0 0
        %5236 = vmatpush1.bf16.xpose.msra.mxu0 0
        %5237 = vmatprep.subr.bf16.mxu0 0
        %5238 = vmatpush1.bf16.xpose.msra.mxu0 %v5221
        %5239 = vmatprep.subr.bf16.mxu0 0
        %5240 = vmatpush2.bf16.xpose.msra.mxu0 0
        %5241 = vmatprep.subr.bf16.mxu0 0
        %5242 = vmatpush2.bf16.xpose.msra.mxu0 0
        %5243 = vmatprep.subr.bf16.mxu0 0
        %5244 = vmatpush2.bf16.xpose.msra.mxu0 0
        %5245 = vmatprep.subr.bf16.mxu0 0
        %5246 = vmatpush2.bf16.xpose.msra.mxu0 0
        %5247 = vmatprep.subr.bf16.mxu0 0
        %5248 = vmatpush2.bf16.xpose.msra.mxu0 0
        %5249 = vmatprep.subr.bf16.mxu0 0
        %5250 = vmatpush2.bf16.xpose.msra.mxu0 0
        %5251 = vmatprep.subr.bf16.mxu0 0
        %5252 = vmatpush2.bf16.xpose.msra.mxu0 0
        %5253 = vmatprep.subr.bf16.mxu0 0
        %5254 = vmatpush2.bf16.xpose.msra.mxu0 0
        %5255 = vmatprep.mubr.bf16.mxu0 0
        %5256 = vmatmul.mubr.bf16.gmra.mxu0 %v4831
        %v5257 = vpop.f32.mrf.mxu0
        %v5258 = vadd.f32 %v4809, %v5257
        %v5259 = vpop.f32.mrf.mxu0
        %v5260 = vpop.f32.mrf.mxu0
        %v5261 = vpop.f32.mrf.mxu0
        %5262 = vdwg.mxu0
        %v5264 = vsel %vm382, %v4742, 0
        %5266 = vmatprep.subr.bf16.mxu0 0
        %5267 = vmatpush1.bf16.xpose.msra.mxu0 0
        %5268 = vmatprep.subr.bf16.mxu0 0
        %5269 = vmatpush1.bf16.xpose.msra.mxu0 0
        %5270 = vmatprep.subr.bf16.mxu0 0
        %5271 = vmatpush1.bf16.xpose.msra.mxu0 0
        %5272 = vmatprep.subr.bf16.mxu0 0
        %5273 = vmatpush1.bf16.xpose.msra.mxu0 0
        %5274 = vmatprep.subr.bf16.mxu0 0
        %5275 = vmatpush1.bf16.xpose.msra.mxu0 0
        %5276 = vmatprep.subr.bf16.mxu0 0
        %5277 = vmatpush1.bf16.xpose.msra.mxu0 0
        %5278 = vmatprep.subr.bf16.mxu0 0
        %5279 = vmatpush1.bf16.xpose.msra.mxu0 0
        %5280 = vmatprep.subr.bf16.mxu0 0
        %5281 = vmatpush1.bf16.xpose.msra.mxu0 %v5264
        %5282 = vmatprep.subr.bf16.mxu0 0
        %5283 = vmatpush2.bf16.xpose.msra.mxu0 0
        %5284 = vmatprep.subr.bf16.mxu0 0
        %5285 = vmatpush2.bf16.xpose.msra.mxu0 0
        %5286 = vmatprep.subr.bf16.mxu0 0
        %5287 = vmatpush2.bf16.xpose.msra.mxu0 0
        %5288 = vmatprep.subr.bf16.mxu0 0
        %5289 = vmatpush2.bf16.xpose.msra.mxu0 0
        %5290 = vmatprep.subr.bf16.mxu0 0
        %5291 = vmatpush2.bf16.xpose.msra.mxu0 0
        %5292 = vmatprep.subr.bf16.mxu0 0
        %5293 = vmatpush2.bf16.xpose.msra.mxu0 0
        %5294 = vmatprep.subr.bf16.mxu0 0
        %5295 = vmatpush2.bf16.xpose.msra.mxu0 0
        %5296 = vmatprep.subr.bf16.mxu0 0
        %5297 = vmatpush2.bf16.xpose.msra.mxu0 0
        %5298 = vmatprep.mubr.bf16.mxu0 0
        %5299 = vmatmul.mubr.bf16.gmra.mxu0 %v4831
        %v5300 = vpop.f32.mrf.mxu0
        %v5301 = vadd.f32 %v4813, %v5300
        %v5302 = vpop.f32.mrf.mxu0
        %v5303 = vpop.f32.mrf.mxu0
        %v5304 = vpop.f32.mrf.mxu0
        %5305 = vdwg.mxu0
        %v5307 = vsel %vm382, %v4743, 0
        %5309 = vmatprep.subr.bf16.mxu0 0
        %5310 = vmatpush1.bf16.xpose.msra.mxu0 0
        %5311 = vmatprep.subr.bf16.mxu0 0
        %5312 = vmatpush1.bf16.xpose.msra.mxu0 0
        %5313 = vmatprep.subr.bf16.mxu0 0
        %5314 = vmatpush1.bf16.xpose.msra.mxu0 0
        %5315 = vmatprep.subr.bf16.mxu0 0
        %5316 = vmatpush1.bf16.xpose.msra.mxu0 0
        %5317 = vmatprep.subr.bf16.mxu0 0
        %5318 = vmatpush1.bf16.xpose.msra.mxu0 0
        %5319 = vmatprep.subr.bf16.mxu0 0
        %5320 = vmatpush1.bf16.xpose.msra.mxu0 0
        %5321 = vmatprep.subr.bf16.mxu0 0
        %5322 = vmatpush1.bf16.xpose.msra.mxu0 0
        %5323 = vmatprep.subr.bf16.mxu0 0
        %5324 = vmatpush1.bf16.xpose.msra.mxu0 %v5307
        %5325 = vmatprep.subr.bf16.mxu0 0
        %5326 = vmatpush2.bf16.xpose.msra.mxu0 0
        %5327 = vmatprep.subr.bf16.mxu0 0
        %5328 = vmatpush2.bf16.xpose.msra.mxu0 0
        %5329 = vmatprep.subr.bf16.mxu0 0
        %5330 = vmatpush2.bf16.xpose.msra.mxu0 0
        %5331 = vmatprep.subr.bf16.mxu0 0
        %5332 = vmatpush2.bf16.xpose.msra.mxu0 0
        %5333 = vmatprep.subr.bf16.mxu0 0
        %5334 = vmatpush2.bf16.xpose.msra.mxu0 0
        %5335 = vmatprep.subr.bf16.mxu0 0
        %5336 = vmatpush2.bf16.xpose.msra.mxu0 0
        %5337 = vmatprep.subr.bf16.mxu0 0
        %5338 = vmatpush2.bf16.xpose.msra.mxu0 0
        %5339 = vmatprep.subr.bf16.mxu0 0
        %5340 = vmatpush2.bf16.xpose.msra.mxu0 0
        %5341 = vmatprep.mubr.bf16.mxu0 0
        %5342 = vmatmul.mubr.bf16.gmra.mxu0 %v4831
        %v5343 = vpop.f32.mrf.mxu0
        %v5344 = vadd.f32 %v4817, %v5343
        %v5345 = vpop.f32.mrf.mxu0
        %v5346 = vpop.f32.mrf.mxu0
        %v5347 = vpop.f32.mrf.mxu0
        %5348 = vdwg.mxu0
        %v5349 = vpack.c.bf16 %v4871, %v4871
        %v5350 = vpack.c.bf16 %v4914, %v4914
        %v5351 = vpack.c.bf16 %v4957, %v4957
        %v5352 = vpack.c.bf16 %v5000, %v5000
        %v5353 = vpack.c.bf16 %v5043, %v5043
        %v5354 = vpack.c.bf16 %v5086, %v5086
        %v5355 = vpack.c.bf16 %v5129, %v5129
        %v5356 = vpack.c.bf16 %v5172, %v5172
        %v5358 = vsel %vm1082, %v5349, 0
        %v5361 = vsel %vm1082, %v5353, 0
        %5363 = vmatprep.subr.bf16.mxu0 0
        %5364 = vmatpush1.bf16.xpose.msra.mxu0 0
        %5365 = vmatprep.subr.bf16.mxu0 0
        %5366 = vmatpush1.bf16.xpose.msra.mxu0 0
        %5367 = vmatprep.subr.bf16.mxu0 0
        %5368 = vmatpush1.bf16.xpose.msra.mxu0 0
        %5369 = vmatprep.subr.bf16.mxu0 0
        %5370 = vmatpush1.bf16.xpose.msra.mxu0 0
        %5371 = vmatprep.subr.bf16.mxu0 0
        %5372 = vmatpush1.bf16.xpose.msra.mxu0 0
        %5373 = vmatprep.subr.bf16.mxu0 0
        %5374 = vmatpush1.bf16.xpose.msra.mxu0 0
        %5375 = vmatprep.subr.bf16.mxu0 0
        %5376 = vmatpush1.bf16.xpose.msra.mxu0 0
        %5377 = vmatprep.subr.bf16.mxu0 0
        %5378 = vmatpush1.bf16.xpose.msra.mxu0 %v5361
        %5379 = vmatprep.subr.bf16.mxu0 0
        %5380 = vmatpush2.bf16.xpose.msra.mxu0 0
        %5381 = vmatprep.subr.bf16.mxu0 0
        %5382 = vmatpush2.bf16.xpose.msra.mxu0 0
        %5383 = vmatprep.subr.bf16.mxu0 0
        %5384 = vmatpush2.bf16.xpose.msra.mxu0 0
        %5385 = vmatprep.subr.bf16.mxu0 0
        %5386 = vmatpush2.bf16.xpose.msra.mxu0 0
        %5387 = vmatprep.subr.bf16.mxu0 0
        %5388 = vmatpush2.bf16.xpose.msra.mxu0 0
        %5389 = vmatprep.subr.bf16.mxu0 0
        %5390 = vmatpush2.bf16.xpose.msra.mxu0 0
        %5391 = vmatprep.subr.bf16.mxu0 0
        %5392 = vmatpush2.bf16.xpose.msra.mxu0 0
        %5393 = vmatprep.subr.bf16.mxu0 0
        %5394 = vmatpush2.bf16.xpose.msra.mxu0 0
        %5395 = vmatprep.mubr.bf16.mxu0 0
        %5396 = vmatmul.mubr.bf16.gmra.mxu0 %v5358
        %v5397 = vpop.f32.mrf.mxu0
        %v5398 = vadd.f32 %v1080, %v5397
        %v5399 = vpop.f32.mrf.mxu0
        %v5400 = vpop.f32.mrf.mxu0
        %v5401 = vpop.f32.mrf.mxu0
        %5402 = vdwg.mxu0
        %v5404 = vsel %vm1082, %v5350, 0
        %v5407 = vsel %vm1082, %v5354, 0
        %5409 = vmatprep.subr.bf16.mxu0 0
        %5410 = vmatpush1.bf16.xpose.msra.mxu0 0
        %5411 = vmatprep.subr.bf16.mxu0 0
        %5412 = vmatpush1.bf16.xpose.msra.mxu0 0
        %5413 = vmatprep.subr.bf16.mxu0 0
        %5414 = vmatpush1.bf16.xpose.msra.mxu0 0
        %5415 = vmatprep.subr.bf16.mxu0 0
        %5416 = vmatpush1.bf16.xpose.msra.mxu0 0
        %5417 = vmatprep.subr.bf16.mxu0 0
        %5418 = vmatpush1.bf16.xpose.msra.mxu0 0
        %5419 = vmatprep.subr.bf16.mxu0 0
        %5420 = vmatpush1.bf16.xpose.msra.mxu0 0
        %5421 = vmatprep.subr.bf16.mxu0 0
        %5422 = vmatpush1.bf16.xpose.msra.mxu0 0
        %5423 = vmatprep.subr.bf16.mxu0 0
        %5424 = vmatpush1.bf16.xpose.msra.mxu0 %v5407
        %5425 = vmatprep.subr.bf16.mxu0 0
        %5426 = vmatpush2.bf16.xpose.msra.mxu0 0
        %5427 = vmatprep.subr.bf16.mxu0 0
        %5428 = vmatpush2.bf16.xpose.msra.mxu0 0
        %5429 = vmatprep.subr.bf16.mxu0 0
        %5430 = vmatpush2.bf16.xpose.msra.mxu0 0
        %5431 = vmatprep.subr.bf16.mxu0 0
        %5432 = vmatpush2.bf16.xpose.msra.mxu0 0
        %5433 = vmatprep.subr.bf16.mxu0 0
        %5434 = vmatpush2.bf16.xpose.msra.mxu0 0
        %5435 = vmatprep.subr.bf16.mxu0 0
        %5436 = vmatpush2.bf16.xpose.msra.mxu0 0
        %5437 = vmatprep.subr.bf16.mxu0 0
        %5438 = vmatpush2.bf16.xpose.msra.mxu0 0
        %5439 = vmatprep.subr.bf16.mxu0 0
        %5440 = vmatpush2.bf16.xpose.msra.mxu0 0
        %5441 = vmatprep.mubr.bf16.mxu0 0
        %5442 = vmatmul.mubr.bf16.gmra.mxu0 %v5404
        %v5443 = vpop.f32.mrf.mxu0
        %v5444 = vadd.f32 %v1080, %v5443
        %v5445 = vpop.f32.mrf.mxu0
        %v5446 = vpop.f32.mrf.mxu0
        %v5447 = vpop.f32.mrf.mxu0
        %5448 = vdwg.mxu0
        %v5450 = vsel %vm1082, %v5351, 0
        %v5453 = vsel %vm1082, %v5355, 0
        %5455 = vmatprep.subr.bf16.mxu0 0
        %5456 = vmatpush1.bf16.xpose.msra.mxu0 0
        %5457 = vmatprep.subr.bf16.mxu0 0
        %5458 = vmatpush1.bf16.xpose.msra.mxu0 0
        %5459 = vmatprep.subr.bf16.mxu0 0
        %5460 = vmatpush1.bf16.xpose.msra.mxu0 0
        %5461 = vmatprep.subr.bf16.mxu0 0
        %5462 = vmatpush1.bf16.xpose.msra.mxu0 0
        %5463 = vmatprep.subr.bf16.mxu0 0
        %5464 = vmatpush1.bf16.xpose.msra.mxu0 0
        %5465 = vmatprep.subr.bf16.mxu0 0
        %5466 = vmatpush1.bf16.xpose.msra.mxu0 0
        %5467 = vmatprep.subr.bf16.mxu0 0
        %5468 = vmatpush1.bf16.xpose.msra.mxu0 0
        %5469 = vmatprep.subr.bf16.mxu0 0
        %5470 = vmatpush1.bf16.xpose.msra.mxu0 %v5453
        %5471 = vmatprep.subr.bf16.mxu0 0
        %5472 = vmatpush2.bf16.xpose.msra.mxu0 0
        %5473 = vmatprep.subr.bf16.mxu0 0
        %5474 = vmatpush2.bf16.xpose.msra.mxu0 0
        %5475 = vmatprep.subr.bf16.mxu0 0
        %5476 = vmatpush2.bf16.xpose.msra.mxu0 0
        %5477 = vmatprep.subr.bf16.mxu0 0
        %5478 = vmatpush2.bf16.xpose.msra.mxu0 0
        %5479 = vmatprep.subr.bf16.mxu0 0
        %5480 = vmatpush2.bf16.xpose.msra.mxu0 0
        %5481 = vmatprep.subr.bf16.mxu0 0
        %5482 = vmatpush2.bf16.xpose.msra.mxu0 0
        %5483 = vmatprep.subr.bf16.mxu0 0
        %5484 = vmatpush2.bf16.xpose.msra.mxu0 0
        %5485 = vmatprep.subr.bf16.mxu0 0
        %5486 = vmatpush2.bf16.xpose.msra.mxu0 0
        %5487 = vmatprep.mubr.bf16.mxu0 0
        %5488 = vmatmul.mubr.bf16.gmra.mxu0 %v5450
        %v5489 = vpop.f32.mrf.mxu0
        %v5490 = vadd.f32 %v1080, %v5489
        %v5491 = vpop.f32.mrf.mxu0
        %v5492 = vpop.f32.mrf.mxu0
        %v5493 = vpop.f32.mrf.mxu0
        %5494 = vdwg.mxu0
        %v5496 = vsel %vm1082, %v5352, 0
        %v5499 = vsel %vm1082, %v5356, 0
        %5501 = vmatprep.subr.bf16.mxu0 0
        %5502 = vmatpush1.bf16.xpose.msra.mxu0 0
        %5503 = vmatprep.subr.bf16.mxu0 0
        %5504 = vmatpush1.bf16.xpose.msra.mxu0 0
        %5505 = vmatprep.subr.bf16.mxu0 0
        %5506 = vmatpush1.bf16.xpose.msra.mxu0 0
        %5507 = vmatprep.subr.bf16.mxu0 0
        %5508 = vmatpush1.bf16.xpose.msra.mxu0 0
        %5509 = vmatprep.subr.bf16.mxu0 0
        %5510 = vmatpush1.bf16.xpose.msra.mxu0 0
        %5511 = vmatprep.subr.bf16.mxu0 0
        %5512 = vmatpush1.bf16.xpose.msra.mxu0 0
        %5513 = vmatprep.subr.bf16.mxu0 0
        %5514 = vmatpush1.bf16.xpose.msra.mxu0 0
        %5515 = vmatprep.subr.bf16.mxu0 0
        %5516 = vmatpush1.bf16.xpose.msra.mxu0 %v5499
        %5517 = vmatprep.subr.bf16.mxu0 0
        %5518 = vmatpush2.bf16.xpose.msra.mxu0 0
        %5519 = vmatprep.subr.bf16.mxu0 0
        %5520 = vmatpush2.bf16.xpose.msra.mxu0 0
        %5521 = vmatprep.subr.bf16.mxu0 0
        %5522 = vmatpush2.bf16.xpose.msra.mxu0 0
        %5523 = vmatprep.subr.bf16.mxu0 0
        %5524 = vmatpush2.bf16.xpose.msra.mxu0 0
        %5525 = vmatprep.subr.bf16.mxu0 0
        %5526 = vmatpush2.bf16.xpose.msra.mxu0 0
        %5527 = vmatprep.subr.bf16.mxu0 0
        %5528 = vmatpush2.bf16.xpose.msra.mxu0 0
        %5529 = vmatprep.subr.bf16.mxu0 0
        %5530 = vmatpush2.bf16.xpose.msra.mxu0 0
        %5531 = vmatprep.subr.bf16.mxu0 0
        %5532 = vmatpush2.bf16.xpose.msra.mxu0 0
        %5533 = vmatprep.mubr.bf16.mxu0 0
        %5534 = vmatmul.mubr.bf16.gmra.mxu0 %v5496
        %v5535 = vpop.f32.mrf.mxu0
        %v5536 = vadd.f32 %v1080, %v5535
        %v5537 = vpop.f32.mrf.mxu0
        %v5538 = vpop.f32.mrf.mxu0
        %v5539 = vpop.f32.mrf.mxu0
        %5540 = vdwg.mxu0
        %v5541 = vsel %vm1082, %v5398, -inf
        %5542 = vmax.xlane.f32.xlu0 %v5541
        %v5543 = vpop.xlane.xlu0 %5542
        %v5544 = vsel %vm1082, %v5444, -inf
        %5545 = vmax.xlane.f32.xlu0 %v5544
        %v5546 = vpop.xlane.xlu0 %5545
        %v5547 = vsel %vm1082, %v5490, -inf
        %5548 = vmax.xlane.f32.xlu0 %v5547
        %v5549 = vpop.xlane.xlu0 %5548
        %v5550 = vsel %vm1082, %v5536, -inf
        %5551 = vmax.xlane.f32.xlu0 %v5550
        %v5552 = vpop.xlane.xlu0 %5551
        %v5553 = vsub.f32 %v5398, %v5543
        %v5554 = vsub.f32 %v5444, %v5546
        %v5555 = vsub.f32 %v5490, %v5549
        %v5556 = vsub.f32 %v5536, %v5552
        %v5557 = vmul.f32 %v5553, 1.442695
        %v5558 = vpow.pop %v5557
        %v5559 = vmul.f32 %v5554, 1.442695
        %v5560 = vpow.pop %v5559
        %v5561 = vmul.f32 %v5555, 1.442695
        %v5562 = vpow.pop %v5561
        %v5563 = vmul.f32 %v5556, 1.442695
        %v5564 = vpow.pop %v5563
        %v5565 = vsel %vm1082, %v5558, 0.0
        %5566 = vadd.xlane.f32.xlu0 %v5565
        %v5567 = vpop.xlane.xlu0 %5566
        %v5568 = vsel %vm1082, %v5560, 0.0
        %5569 = vadd.xlane.f32.xlu0 %v5568
        %v5570 = vpop.xlane.xlu0 %5569
        %v5571 = vsel %vm1082, %v5562, 0.0
        %5572 = vadd.xlane.f32.xlu0 %v5571
        %v5573 = vpop.xlane.xlu0 %5572
        %v5574 = vsel %vm1082, %v5564, 0.0
        %5575 = vadd.xlane.f32.xlu0 %v5574
        %v5576 = vpop.xlane.xlu0 %5575
        %v5577 = vrcp.pop %v5567
        %v5578 = vrcp.pop %v5570
        %v5579 = vrcp.pop %v5573
        %v5580 = vrcp.pop %v5576
        %v5581 = vmul.f32 %v5558, %v5577
        %v5582 = vmul.f32 %v5560, %v5578
        %v5583 = vmul.f32 %v5562, %v5579
        %v5584 = vmul.f32 %v5564, %v5580
        %v5585 = vpack.c.bf16 %v5581, %v5581
        %v5586 = vpack.c.bf16 %v5582, %v5582
        %v5587 = vpack.c.bf16 %v5583, %v5583
        %v5588 = vpack.c.bf16 %v5584, %v5584
        %v5589 = vpack.c.bf16 %v5215, %v5215
        %v5590 = vpack.c.bf16 %v5258, %v5258
        %v5591 = vpack.c.bf16 %v5301, %v5301
        %v5592 = vpack.c.bf16 %v5344, %v5344
        %v5594 = vsel %vm1082, %v5585, 0
        %v5597 = vsel %vm1322, %v5589, 0
        %5599 = vmatprep.subr.bf16.mxu0 0
        %5600 = vmatpush1.bf16.msra.mxu0 0
        %5601 = vmatprep.subr.bf16.mxu0 0
        %5602 = vmatpush1.bf16.msra.mxu0 0
        %5603 = vmatprep.subr.bf16.mxu0 0
        %5604 = vmatpush1.bf16.msra.mxu0 0
        %5605 = vmatprep.subr.bf16.mxu0 0
        %5606 = vmatpush1.bf16.msra.mxu0 0
        %5607 = vmatprep.subr.bf16.mxu0 0
        %5608 = vmatpush1.bf16.msra.mxu0 0
        %5609 = vmatprep.subr.bf16.mxu0 0
        %5610 = vmatpush1.bf16.msra.mxu0 0
        %5611 = vmatprep.subr.bf16.mxu0 0
        %5612 = vmatpush1.bf16.msra.mxu0 0
        %5613 = vmatprep.subr.bf16.mxu0 0
        %5614 = vmatpush1.bf16.msra.mxu0 %v5597
        %5615 = vmatprep.subr.bf16.mxu0 0
        %5616 = vmatpush2.bf16.msra.mxu0 0
        %5617 = vmatprep.subr.bf16.mxu0 0
        %5618 = vmatpush2.bf16.msra.mxu0 0
        %5619 = vmatprep.subr.bf16.mxu0 0
        %5620 = vmatpush2.bf16.msra.mxu0 0
        %5621 = vmatprep.subr.bf16.mxu0 0
        %5622 = vmatpush2.bf16.msra.mxu0 0
        %5623 = vmatprep.subr.bf16.mxu0 0
        %5624 = vmatpush2.bf16.msra.mxu0 0
        %5625 = vmatprep.subr.bf16.mxu0 0
        %5626 = vmatpush2.bf16.msra.mxu0 0
        %5627 = vmatprep.subr.bf16.mxu0 0
        %5628 = vmatpush2.bf16.msra.mxu0 0
        %5629 = vmatprep.subr.bf16.mxu0 0
        %5630 = vmatpush2.bf16.msra.mxu0 0
        %5631 = vmatprep.mubr.bf16.mxu0 0
        %5632 = vmatmul.mubr.bf16.gmra.mxu0 %v5594
        %v5633 = vpop.f32.mrf.mxu0
        %v5634 = vadd.f32 0.0, %v5633
        %v5635 = vpop.f32.mrf.mxu0
        %v5636 = vpop.f32.mrf.mxu0
        %v5637 = vpop.f32.mrf.mxu0
        %5638 = vdwg.mxu0
        %v5640 = vsel %vm1082, %v5586, 0
        %v5643 = vsel %vm1322, %v5590, 0
        %5645 = vmatprep.subr.bf16.mxu0 0
        %5646 = vmatpush1.bf16.msra.mxu0 0
        %5647 = vmatprep.subr.bf16.mxu0 0
        %5648 = vmatpush1.bf16.msra.mxu0 0
        %5649 = vmatprep.subr.bf16.mxu0 0
        %5650 = vmatpush1.bf16.msra.mxu0 0
        %5651 = vmatprep.subr.bf16.mxu0 0
        %5652 = vmatpush1.bf16.msra.mxu0 0
        %5653 = vmatprep.subr.bf16.mxu0 0
        %5654 = vmatpush1.bf16.msra.mxu0 0
        %5655 = vmatprep.subr.bf16.mxu0 0
        %5656 = vmatpush1.bf16.msra.mxu0 0
        %5657 = vmatprep.subr.bf16.mxu0 0
        %5658 = vmatpush1.bf16.msra.mxu0 0
        %5659 = vmatprep.subr.bf16.mxu0 0
        %5660 = vmatpush1.bf16.msra.mxu0 %v5643
        %5661 = vmatprep.subr.bf16.mxu0 0
        %5662 = vmatpush2.bf16.msra.mxu0 0
        %5663 = vmatprep.subr.bf16.mxu0 0
        %5664 = vmatpush2.bf16.msra.mxu0 0
        %5665 = vmatprep.subr.bf16.mxu0 0
        %5666 = vmatpush2.bf16.msra.mxu0 0
        %5667 = vmatprep.subr.bf16.mxu0 0
        %5668 = vmatpush2.bf16.msra.mxu0 0
        %5669 = vmatprep.subr.bf16.mxu0 0
        %5670 = vmatpush2.bf16.msra.mxu0 0
        %5671 = vmatprep.subr.bf16.mxu0 0
        %5672 = vmatpush2.bf16.msra.mxu0 0
        %5673 = vmatprep.subr.bf16.mxu0 0
        %5674 = vmatpush2.bf16.msra.mxu0 0
        %5675 = vmatprep.subr.bf16.mxu0 0
        %5676 = vmatpush2.bf16.msra.mxu0 0
        %5677 = vmatprep.mubr.bf16.mxu0 0
        %5678 = vmatmul.mubr.bf16.gmra.mxu0 %v5640
        %v5679 = vpop.f32.mrf.mxu0
        %v5680 = vadd.f32 0.0, %v5679
        %v5681 = vpop.f32.mrf.mxu0
        %v5682 = vpop.f32.mrf.mxu0
        %v5683 = vpop.f32.mrf.mxu0
        %5684 = vdwg.mxu0
        %v5686 = vsel %vm1082, %v5587, 0
        %v5689 = vsel %vm1322, %v5591, 0
        %5691 = vmatprep.subr.bf16.mxu0 0
        %5692 = vmatpush1.bf16.msra.mxu0 0
        %5693 = vmatprep.subr.bf16.mxu0 0
        %5694 = vmatpush1.bf16.msra.mxu0 0
        %5695 = vmatprep.subr.bf16.mxu0 0
        %5696 = vmatpush1.bf16.msra.mxu0 0
        %5697 = vmatprep.subr.bf16.mxu0 0
        %5698 = vmatpush1.bf16.msra.mxu0 0
        %5699 = vmatprep.subr.bf16.mxu0 0
        %5700 = vmatpush1.bf16.msra.mxu0 0
        %5701 = vmatprep.subr.bf16.mxu0 0
        %5702 = vmatpush1.bf16.msra.mxu0 0
        %5703 = vmatprep.subr.bf16.mxu0 0
        %5704 = vmatpush1.bf16.msra.mxu0 0
        %5705 = vmatprep.subr.bf16.mxu0 0
        %5706 = vmatpush1.bf16.msra.mxu0 %v5689
        %5707 = vmatprep.subr.bf16.mxu0 0
        %5708 = vmatpush2.bf16.msra.mxu0 0
        %5709 = vmatprep.subr.bf16.mxu0 0
        %5710 = vmatpush2.bf16.msra.mxu0 0
        %5711 = vmatprep.subr.bf16.mxu0 0
        %5712 = vmatpush2.bf16.msra.mxu0 0
        %5713 = vmatprep.subr.bf16.mxu0 0
        %5714 = vmatpush2.bf16.msra.mxu0 0
        %5715 = vmatprep.subr.bf16.mxu0 0
        %5716 = vmatpush2.bf16.msra.mxu0 0
        %5717 = vmatprep.subr.bf16.mxu0 0
        %5718 = vmatpush2.bf16.msra.mxu0 0
        %5719 = vmatprep.subr.bf16.mxu0 0
        %5720 = vmatpush2.bf16.msra.mxu0 0
        %5721 = vmatprep.subr.bf16.mxu0 0
        %5722 = vmatpush2.bf16.msra.mxu0 0
        %5723 = vmatprep.mubr.bf16.mxu0 0
        %5724 = vmatmul.mubr.bf16.gmra.mxu0 %v5686
        %v5725 = vpop.f32.mrf.mxu0
        %v5726 = vadd.f32 0.0, %v5725
        %v5727 = vpop.f32.mrf.mxu0
        %v5728 = vpop.f32.mrf.mxu0
        %v5729 = vpop.f32.mrf.mxu0
        %5730 = vdwg.mxu0
        %v5732 = vsel %vm1082, %v5588, 0
        %v5735 = vsel %vm1322, %v5592, 0
        %5737 = vmatprep.subr.bf16.mxu0 0
        %5738 = vmatpush1.bf16.msra.mxu0 0
        %5739 = vmatprep.subr.bf16.mxu0 0
        %5740 = vmatpush1.bf16.msra.mxu0 0
        %5741 = vmatprep.subr.bf16.mxu0 0
        %5742 = vmatpush1.bf16.msra.mxu0 0
        %5743 = vmatprep.subr.bf16.mxu0 0
        %5744 = vmatpush1.bf16.msra.mxu0 0
        %5745 = vmatprep.subr.bf16.mxu0 0
        %5746 = vmatpush1.bf16.msra.mxu0 0
        %5747 = vmatprep.subr.bf16.mxu0 0
        %5748 = vmatpush1.bf16.msra.mxu0 0
        %5749 = vmatprep.subr.bf16.mxu0 0
        %5750 = vmatpush1.bf16.msra.mxu0 0
        %5751 = vmatprep.subr.bf16.mxu0 0
        %5752 = vmatpush1.bf16.msra.mxu0 %v5735
        %5753 = vmatprep.subr.bf16.mxu0 0
        %5754 = vmatpush2.bf16.msra.mxu0 0
        %5755 = vmatprep.subr.bf16.mxu0 0
        %5756 = vmatpush2.bf16.msra.mxu0 0
        %5757 = vmatprep.subr.bf16.mxu0 0
        %5758 = vmatpush2.bf16.msra.mxu0 0
        %5759 = vmatprep.subr.bf16.mxu0 0
        %5760 = vmatpush2.bf16.msra.mxu0 0
        %5761 = vmatprep.subr.bf16.mxu0 0
        %5762 = vmatpush2.bf16.msra.mxu0 0
        %5763 = vmatprep.subr.bf16.mxu0 0
        %5764 = vmatpush2.bf16.msra.mxu0 0
        %5765 = vmatprep.subr.bf16.mxu0 0
        %5766 = vmatpush2.bf16.msra.mxu0 0
        %5767 = vmatprep.subr.bf16.mxu0 0
        %5768 = vmatpush2.bf16.msra.mxu0 0
        %5769 = vmatprep.mubr.bf16.mxu0 0
        %5770 = vmatmul.mubr.bf16.gmra.mxu0 %v5732
        %v5771 = vpop.f32.mrf.mxu0
        %v5772 = vadd.f32 0.0, %v5771
        %v5773 = vpop.f32.mrf.mxu0
        %v5774 = vpop.f32.mrf.mxu0
        %v5775 = vpop.f32.mrf.mxu0
        %5776 = vdwg.mxu0
        %v5777 = vpack.c.bf16 %v5634, %v5634
        %v5778 = vpack.c.bf16 %v5680, %v5680
        %v5779 = vpack.c.bf16 %v5726, %v5726
        %v5780 = vpack.c.bf16 %v5772, %v5772
        %s5781 = scalar_lea.vmem %s4, 48
        %v5782 = vld [vmem:[%s5781] sm:$0xf]
        %v5783 = vld [vmem:[%s5781 + $0x4] sm:$0xf]
        %v5784 = vld [vmem:[%s5781 + $0x8] sm:$0xf]
        %v5785 = vld [vmem:[%s5781 + $0xc] sm:$0xf]
        %v5787 = vsel %vm1082, %v5777, 0
        %v5790 = vsel %vm1322, %v5782, 0
        %5792 = vmatprep.subr.bf16.mxu0 0
        %5793 = vmatpush1.bf16.msra.mxu0 0
        %5794 = vmatprep.subr.bf16.mxu0 0
        %5795 = vmatpush1.bf16.msra.mxu0 0
        %5796 = vmatprep.subr.bf16.mxu0 0
        %5797 = vmatpush1.bf16.msra.mxu0 0
        %5798 = vmatprep.subr.bf16.mxu0 0
        %5799 = vmatpush1.bf16.msra.mxu0 0
        %5800 = vmatprep.subr.bf16.mxu0 0
        %5801 = vmatpush1.bf16.msra.mxu0 0
        %5802 = vmatprep.subr.bf16.mxu0 0
        %5803 = vmatpush1.bf16.msra.mxu0 0
        %5804 = vmatprep.subr.bf16.mxu0 0
        %5805 = vmatpush1.bf16.msra.mxu0 0
        %5806 = vmatprep.subr.bf16.mxu0 0
        %5807 = vmatpush1.bf16.msra.mxu0 %v5790
        %5808 = vmatprep.subr.bf16.mxu0 0
        %5809 = vmatpush2.bf16.msra.mxu0 0
        %5810 = vmatprep.subr.bf16.mxu0 0
        %5811 = vmatpush2.bf16.msra.mxu0 0
        %5812 = vmatprep.subr.bf16.mxu0 0
        %5813 = vmatpush2.bf16.msra.mxu0 0
        %5814 = vmatprep.subr.bf16.mxu0 0
        %5815 = vmatpush2.bf16.msra.mxu0 0
        %5816 = vmatprep.subr.bf16.mxu0 0
        %5817 = vmatpush2.bf16.msra.mxu0 0
        %5818 = vmatprep.subr.bf16.mxu0 0
        %5819 = vmatpush2.bf16.msra.mxu0 0
        %5820 = vmatprep.subr.bf16.mxu0 0
        %5821 = vmatpush2.bf16.msra.mxu0 0
        %5822 = vmatprep.subr.bf16.mxu0 0
        %5823 = vmatpush2.bf16.msra.mxu0 0
        %5824 = vmatprep.mubr.bf16.mxu0 0
        %5825 = vmatmul.mubr.bf16.gmra.mxu0 %v5787
        %v5826 = vpop.f32.mrf.mxu0
        %v5827 = vadd.f32 0.0, %v5826
        %v5828 = vpop.f32.mrf.mxu0
        %v5829 = vpop.f32.mrf.mxu0
        %v5830 = vpop.f32.mrf.mxu0
        %5831 = vdwg.mxu0
        %v5833 = vsel %vm1082, %v5778, 0
        %v5836 = vsel %vm1322, %v5783, 0
        %5838 = vmatprep.subr.bf16.mxu0 0
        %5839 = vmatpush1.bf16.msra.mxu0 0
        %5840 = vmatprep.subr.bf16.mxu0 0
        %5841 = vmatpush1.bf16.msra.mxu0 0
        %5842 = vmatprep.subr.bf16.mxu0 0
        %5843 = vmatpush1.bf16.msra.mxu0 0
        %5844 = vmatprep.subr.bf16.mxu0 0
        %5845 = vmatpush1.bf16.msra.mxu0 0
        %5846 = vmatprep.subr.bf16.mxu0 0
        %5847 = vmatpush1.bf16.msra.mxu0 0
        %5848 = vmatprep.subr.bf16.mxu0 0
        %5849 = vmatpush1.bf16.msra.mxu0 0
        %5850 = vmatprep.subr.bf16.mxu0 0
        %5851 = vmatpush1.bf16.msra.mxu0 0
        %5852 = vmatprep.subr.bf16.mxu0 0
        %5853 = vmatpush1.bf16.msra.mxu0 %v5836
        %5854 = vmatprep.subr.bf16.mxu0 0
        %5855 = vmatpush2.bf16.msra.mxu0 0
        %5856 = vmatprep.subr.bf16.mxu0 0
        %5857 = vmatpush2.bf16.msra.mxu0 0
        %5858 = vmatprep.subr.bf16.mxu0 0
        %5859 = vmatpush2.bf16.msra.mxu0 0
        %5860 = vmatprep.subr.bf16.mxu0 0
        %5861 = vmatpush2.bf16.msra.mxu0 0
        %5862 = vmatprep.subr.bf16.mxu0 0
        %5863 = vmatpush2.bf16.msra.mxu0 0
        %5864 = vmatprep.subr.bf16.mxu0 0
        %5865 = vmatpush2.bf16.msra.mxu0 0
        %5866 = vmatprep.subr.bf16.mxu0 0
        %5867 = vmatpush2.bf16.msra.mxu0 0
        %5868 = vmatprep.subr.bf16.mxu0 0
        %5869 = vmatpush2.bf16.msra.mxu0 0
        %5870 = vmatprep.mubr.bf16.mxu0 0
        %5871 = vmatmul.mubr.bf16.gmra.mxu0 %v5833
        %v5872 = vpop.f32.mrf.mxu0
        %v5873 = vadd.f32 0.0, %v5872
        %v5874 = vpop.f32.mrf.mxu0
        %v5875 = vpop.f32.mrf.mxu0
        %v5876 = vpop.f32.mrf.mxu0
        %5877 = vdwg.mxu0
        %v5879 = vsel %vm1082, %v5779, 0
        %v5882 = vsel %vm1322, %v5784, 0
        %5884 = vmatprep.subr.bf16.mxu0 0
        %5885 = vmatpush1.bf16.msra.mxu0 0
        %5886 = vmatprep.subr.bf16.mxu0 0
        %5887 = vmatpush1.bf16.msra.mxu0 0
        %5888 = vmatprep.subr.bf16.mxu0 0
        %5889 = vmatpush1.bf16.msra.mxu0 0
        %5890 = vmatprep.subr.bf16.mxu0 0
        %5891 = vmatpush1.bf16.msra.mxu0 0
        %5892 = vmatprep.subr.bf16.mxu0 0
        %5893 = vmatpush1.bf16.msra.mxu0 0
        %5894 = vmatprep.subr.bf16.mxu0 0
        %5895 = vmatpush1.bf16.msra.mxu0 0
        %5896 = vmatprep.subr.bf16.mxu0 0
        %5897 = vmatpush1.bf16.msra.mxu0 0
        %5898 = vmatprep.subr.bf16.mxu0 0
        %5899 = vmatpush1.bf16.msra.mxu0 %v5882
        %5900 = vmatprep.subr.bf16.mxu0 0
        %5901 = vmatpush2.bf16.msra.mxu0 0
        %5902 = vmatprep.subr.bf16.mxu0 0
        %5903 = vmatpush2.bf16.msra.mxu0 0
        %5904 = vmatprep.subr.bf16.mxu0 0
        %5905 = vmatpush2.bf16.msra.mxu0 0
        %5906 = vmatprep.subr.bf16.mxu0 0
        %5907 = vmatpush2.bf16.msra.mxu0 0
        %5908 = vmatprep.subr.bf16.mxu0 0
        %5909 = vmatpush2.bf16.msra.mxu0 0
        %5910 = vmatprep.subr.bf16.mxu0 0
        %5911 = vmatpush2.bf16.msra.mxu0 0
        %5912 = vmatprep.subr.bf16.mxu0 0
        %5913 = vmatpush2.bf16.msra.mxu0 0
        %5914 = vmatprep.subr.bf16.mxu0 0
        %5915 = vmatpush2.bf16.msra.mxu0 0
        %5916 = vmatprep.mubr.bf16.mxu0 0
        %5917 = vmatmul.mubr.bf16.gmra.mxu0 %v5879
        %v5918 = vpop.f32.mrf.mxu0
        %v5919 = vadd.f32 0.0, %v5918
        %v5920 = vpop.f32.mrf.mxu0
        %v5921 = vpop.f32.mrf.mxu0
        %v5922 = vpop.f32.mrf.mxu0
        %5923 = vdwg.mxu0
        %v5925 = vsel %vm1082, %v5780, 0
        %v5928 = vsel %vm1322, %v5785, 0
        %5930 = vmatprep.subr.bf16.mxu0 0
        %5931 = vmatpush1.bf16.msra.mxu0 0
        %5932 = vmatprep.subr.bf16.mxu0 0
        %5933 = vmatpush1.bf16.msra.mxu0 0
        %5934 = vmatprep.subr.bf16.mxu0 0
        %5935 = vmatpush1.bf16.msra.mxu0 0
        %5936 = vmatprep.subr.bf16.mxu0 0
        %5937 = vmatpush1.bf16.msra.mxu0 0
        %5938 = vmatprep.subr.bf16.mxu0 0
        %5939 = vmatpush1.bf16.msra.mxu0 0
        %5940 = vmatprep.subr.bf16.mxu0 0
        %5941 = vmatpush1.bf16.msra.mxu0 0
        %5942 = vmatprep.subr.bf16.mxu0 0
        %5943 = vmatpush1.bf16.msra.mxu0 0
        %5944 = vmatprep.subr.bf16.mxu0 0
        %5945 = vmatpush1.bf16.msra.mxu0 %v5928
        %5946 = vmatprep.subr.bf16.mxu0 0
        %5947 = vmatpush2.bf16.msra.mxu0 0
        %5948 = vmatprep.subr.bf16.mxu0 0
        %5949 = vmatpush2.bf16.msra.mxu0 0
        %5950 = vmatprep.subr.bf16.mxu0 0
        %5951 = vmatpush2.bf16.msra.mxu0 0
        %5952 = vmatprep.subr.bf16.mxu0 0
        %5953 = vmatpush2.bf16.msra.mxu0 0
        %5954 = vmatprep.subr.bf16.mxu0 0
        %5955 = vmatpush2.bf16.msra.mxu0 0
        %5956 = vmatprep.subr.bf16.mxu0 0
        %5957 = vmatpush2.bf16.msra.mxu0 0
        %5958 = vmatprep.subr.bf16.mxu0 0
        %5959 = vmatpush2.bf16.msra.mxu0 0
        %5960 = vmatprep.subr.bf16.mxu0 0
        %5961 = vmatpush2.bf16.msra.mxu0 0
        %5962 = vmatprep.mubr.bf16.mxu0 0
        %5963 = vmatmul.mubr.bf16.gmra.mxu0 %v5925
        %v5964 = vpop.f32.mrf.mxu0
        %v5965 = vadd.f32 0.0, %v5964
        %v5966 = vpop.f32.mrf.mxu0
        %v5967 = vpop.f32.mrf.mxu0
        %v5968 = vpop.f32.mrf.mxu0
        %5969 = vdwg.mxu0
        %v5970 = vsel %vm382, %v5827, 0.0
        %v5971 = vsel %vm382, %v5873, 0.0
        %v5972 = vadd.f32 %v5970, %v5971
        %v5973 = vsel %vm382, %v5919, 0.0
        %v5974 = vadd.f32 %v5972, %v5973
        %v5975 = vsel %vm382, %v5965, 0.0
        %v5976 = vadd.f32 %v5974, %v5975
        %v5977 = vld [vmem:[#allocation2 + $0x9] sm:$0x1]
        %v5978 = vlaneseq
        %v5979 = vshrl.u32 %v5978, 7
        %v5980 = vsub.s32 0, %v5979
        %v5981 = vrot.slane %v5977, %v5980
        %v5982 = vadd.f32 %v5976, %v5981
        %v5983 = vadd.f32 %v5982, %v4730
        %v5984 = vsel %vm382, %v5983, 0.0
        %5985 = vadd.xlane.f32.xlu0 %v5984
        %v5986 = vpop.xlane.xlu0 %5985
        %v5987 = vmul.f32 %v5986, %v429
        %v5988 = vsub.f32 %v5983, %v5987
        %v5989 = vmul.f32 %v5988, %v5988
        %v5990 = vsel %vm382, %v5989, 0.0
        %5991 = vadd.xlane.f32.xlu0 %v5990
        %v5992 = vpop.xlane.xlu0 %5991
        %v5993 = vmul.f32 %v5992, %v429
        %v5994 = vadd.f32 %v5993, 1e-06
        %v5995 = vrsqrt.pop %v5994
        %v5996 = vmul.f32 %v5988, %v5995
        %v5997 = vld [vmem:[#allocation2 + $0xa] sm:$0x1]
        %v5998 = vlaneseq
        %v5999 = vshrl.u32 %v5998, 7
        %v6000 = vsub.s32 0, %v5999
        %v6001 = vrot.slane %v5997, %v6000
        %v6002 = vmul.f32 %v5996, %v6001
        %v6003 = vld [vmem:[#allocation2 + $0xb] sm:$0x1]
        %v6004 = vlaneseq
        %v6005 = vshrl.u32 %v6004, 7
        %v6006 = vsub.s32 0, %v6005
        %v6007 = vrot.slane %v6003, %v6006
        %v6008 = vadd.f32 %v6002, %v6007
        %s6009 = scalar_lea.vmem %s2, 192
        %v6010 = vld [vmem:[%s6009] sm:$0xf]
        %v6011 = vld [vmem:[%s6009 + $0x4] sm:$0xf]
        %v6012 = vld [vmem:[%s6009 + $0x8] sm:$0xf]
        %v6013 = vld [vmem:[%s6009 + $0xc] sm:$0xf]
        %v6014 = vld [vmem:[%s6009 + $0x10] sm:$0xf]
        %v6015 = vld [vmem:[%s6009 + $0x14] sm:$0xf]
        %v6016 = vld [vmem:[%s6009 + $0x18] sm:$0xf]
        %v6017 = vld [vmem:[%s6009 + $0x1c] sm:$0xf]
        %v6018 = vld [vmem:[%s6009 + $0x20] sm:$0xf]
        %v6019 = vld [vmem:[%s6009 + $0x24] sm:$0xf]
        %v6020 = vld [vmem:[%s6009 + $0x28] sm:$0xf]
        %v6021 = vld [vmem:[%s6009 + $0x2c] sm:$0xf]
        %s6022 = scalar_lea.vmem %s3, 48
        %v6023 = vld [vmem:[%s6022] sm:$0x1]
        %v6024 = vld [vmem:[%s6022 + $0x1] sm:$0x1]
        %v6025 = vld [vmem:[%s6022 + $0x2] sm:$0x1]
        %v6026 = vld [vmem:[%s6022 + $0x3] sm:$0x1]
        %v6027 = vld [vmem:[%s6022 + $0x4] sm:$0x1]
        %v6028 = vld [vmem:[%s6022 + $0x5] sm:$0x1]
        %v6029 = vld [vmem:[%s6022 + $0x6] sm:$0x1]
        %v6030 = vld [vmem:[%s6022 + $0x7] sm:$0x1]
        %v6031 = vld [vmem:[%s6022 + $0x8] sm:$0x1]
        %v6032 = vld [vmem:[%s6022 + $0x9] sm:$0x1]
        %v6033 = vld [vmem:[%s6022 + $0xa] sm:$0x1]
        %v6034 = vld [vmem:[%s6022 + $0xb] sm:$0x1]
        %v6035 = vpack.c.bf16 %v6008, %v6008
        %v6040 = vlaneseq
        %v6041 = vshrl.u32 %v6040, 7
        %v6042 = vsub.s32 0, %v6041
        %v6043 = vrot.slane %v6023, %v6042
        %v6044 = vlaneseq
        %v6045 = vshrl.u32 %v6044, 7
        %v6046 = vsub.s32 0, %v6045
        %v6047 = vrot.slane %v6024, %v6046
        %v6048 = vlaneseq
        %v6049 = vshrl.u32 %v6048, 7
        %v6050 = vsub.s32 0, %v6049
        %v6051 = vrot.slane %v6025, %v6050
        %v6052 = vlaneseq
        %v6053 = vshrl.u32 %v6052, 7
        %v6054 = vsub.s32 0, %v6053
        %v6055 = vrot.slane %v6026, %v6054
        %v6061 = vsel %vm382, %v6035, 0
        %v6064 = vsel %vm382, %v6010, 0
        %6066 = vmatprep.subr.bf16.mxu0 0
        %6067 = vmatpush1.bf16.xpose.msra.mxu0 0
        %6068 = vmatprep.subr.bf16.mxu0 0
        %6069 = vmatpush1.bf16.xpose.msra.mxu0 0
        %6070 = vmatprep.subr.bf16.mxu0 0
        %6071 = vmatpush1.bf16.xpose.msra.mxu0 0
        %6072 = vmatprep.subr.bf16.mxu0 0
        %6073 = vmatpush1.bf16.xpose.msra.mxu0 0
        %6074 = vmatprep.subr.bf16.mxu0 0
        %6075 = vmatpush1.bf16.xpose.msra.mxu0 0
        %6076 = vmatprep.subr.bf16.mxu0 0
        %6077 = vmatpush1.bf16.xpose.msra.mxu0 0
        %6078 = vmatprep.subr.bf16.mxu0 0
        %6079 = vmatpush1.bf16.xpose.msra.mxu0 0
        %6080 = vmatprep.subr.bf16.mxu0 0
        %6081 = vmatpush1.bf16.xpose.msra.mxu0 %v6064
        %6082 = vmatprep.subr.bf16.mxu0 0
        %6083 = vmatpush2.bf16.xpose.msra.mxu0 0
        %6084 = vmatprep.subr.bf16.mxu0 0
        %6085 = vmatpush2.bf16.xpose.msra.mxu0 0
        %6086 = vmatprep.subr.bf16.mxu0 0
        %6087 = vmatpush2.bf16.xpose.msra.mxu0 0
        %6088 = vmatprep.subr.bf16.mxu0 0
        %6089 = vmatpush2.bf16.xpose.msra.mxu0 0
        %6090 = vmatprep.subr.bf16.mxu0 0
        %6091 = vmatpush2.bf16.xpose.msra.mxu0 0
        %6092 = vmatprep.subr.bf16.mxu0 0
        %6093 = vmatpush2.bf16.xpose.msra.mxu0 0
        %6094 = vmatprep.subr.bf16.mxu0 0
        %6095 = vmatpush2.bf16.xpose.msra.mxu0 0
        %6096 = vmatprep.subr.bf16.mxu0 0
        %6097 = vmatpush2.bf16.xpose.msra.mxu0 0
        %6098 = vmatprep.mubr.bf16.mxu0 0
        %6099 = vmatmul.mubr.bf16.gmra.mxu0 %v6061
        %v6100 = vpop.f32.mrf.mxu0
        %v6101 = vadd.f32 %v6043, %v6100
        %v6102 = vpop.f32.mrf.mxu0
        %v6103 = vpop.f32.mrf.mxu0
        %v6104 = vpop.f32.mrf.mxu0
        %6105 = vdwg.mxu0
        %v6107 = vsel %vm382, %v6011, 0
        %6109 = vmatprep.subr.bf16.mxu0 0
        %6110 = vmatpush1.bf16.xpose.msra.mxu0 0
        %6111 = vmatprep.subr.bf16.mxu0 0
        %6112 = vmatpush1.bf16.xpose.msra.mxu0 0
        %6113 = vmatprep.subr.bf16.mxu0 0
        %6114 = vmatpush1.bf16.xpose.msra.mxu0 0
        %6115 = vmatprep.subr.bf16.mxu0 0
        %6116 = vmatpush1.bf16.xpose.msra.mxu0 0
        %6117 = vmatprep.subr.bf16.mxu0 0
        %6118 = vmatpush1.bf16.xpose.msra.mxu0 0
        %6119 = vmatprep.subr.bf16.mxu0 0
        %6120 = vmatpush1.bf16.xpose.msra.mxu0 0
        %6121 = vmatprep.subr.bf16.mxu0 0
        %6122 = vmatpush1.bf16.xpose.msra.mxu0 0
        %6123 = vmatprep.subr.bf16.mxu0 0
        %6124 = vmatpush1.bf16.xpose.msra.mxu0 %v6107
        %6125 = vmatprep.subr.bf16.mxu0 0
        %6126 = vmatpush2.bf16.xpose.msra.mxu0 0
        %6127 = vmatprep.subr.bf16.mxu0 0
        %6128 = vmatpush2.bf16.xpose.msra.mxu0 0
        %6129 = vmatprep.subr.bf16.mxu0 0
        %6130 = vmatpush2.bf16.xpose.msra.mxu0 0
        %6131 = vmatprep.subr.bf16.mxu0 0
        %6132 = vmatpush2.bf16.xpose.msra.mxu0 0
        %6133 = vmatprep.subr.bf16.mxu0 0
        %6134 = vmatpush2.bf16.xpose.msra.mxu0 0
        %6135 = vmatprep.subr.bf16.mxu0 0
        %6136 = vmatpush2.bf16.xpose.msra.mxu0 0
        %6137 = vmatprep.subr.bf16.mxu0 0
        %6138 = vmatpush2.bf16.xpose.msra.mxu0 0
        %6139 = vmatprep.subr.bf16.mxu0 0
        %6140 = vmatpush2.bf16.xpose.msra.mxu0 0
        %6141 = vmatprep.mubr.bf16.mxu0 0
        %6142 = vmatmul.mubr.bf16.gmra.mxu0 %v6061
        %v6143 = vpop.f32.mrf.mxu0
        %v6144 = vadd.f32 %v6047, %v6143
        %v6145 = vpop.f32.mrf.mxu0
        %v6146 = vpop.f32.mrf.mxu0
        %v6147 = vpop.f32.mrf.mxu0
        %6148 = vdwg.mxu0
        %v6150 = vsel %vm382, %v6012, 0
        %6152 = vmatprep.subr.bf16.mxu0 0
        %6153 = vmatpush1.bf16.xpose.msra.mxu0 0
        %6154 = vmatprep.subr.bf16.mxu0 0
        %6155 = vmatpush1.bf16.xpose.msra.mxu0 0
        %6156 = vmatprep.subr.bf16.mxu0 0
        %6157 = vmatpush1.bf16.xpose.msra.mxu0 0
        %6158 = vmatprep.subr.bf16.mxu0 0
        %6159 = vmatpush1.bf16.xpose.msra.mxu0 0
        %6160 = vmatprep.subr.bf16.mxu0 0
        %6161 = vmatpush1.bf16.xpose.msra.mxu0 0
        %6162 = vmatprep.subr.bf16.mxu0 0
        %6163 = vmatpush1.bf16.xpose.msra.mxu0 0
        %6164 = vmatprep.subr.bf16.mxu0 0
        %6165 = vmatpush1.bf16.xpose.msra.mxu0 0
        %6166 = vmatprep.subr.bf16.mxu0 0
        %6167 = vmatpush1.bf16.xpose.msra.mxu0 %v6150
        %6168 = vmatprep.subr.bf16.mxu0 0
        %6169 = vmatpush2.bf16.xpose.msra.mxu0 0
        %6170 = vmatprep.subr.bf16.mxu0 0
        %6171 = vmatpush2.bf16.xpose.msra.mxu0 0
        %6172 = vmatprep.subr.bf16.mxu0 0
        %6173 = vmatpush2.bf16.xpose.msra.mxu0 0
        %6174 = vmatprep.subr.bf16.mxu0 0
        %6175 = vmatpush2.bf16.xpose.msra.mxu0 0
        %6176 = vmatprep.subr.bf16.mxu0 0
        %6177 = vmatpush2.bf16.xpose.msra.mxu0 0
        %6178 = vmatprep.subr.bf16.mxu0 0
        %6179 = vmatpush2.bf16.xpose.msra.mxu0 0
        %6180 = vmatprep.subr.bf16.mxu0 0
        %6181 = vmatpush2.bf16.xpose.msra.mxu0 0
        %6182 = vmatprep.subr.bf16.mxu0 0
        %6183 = vmatpush2.bf16.xpose.msra.mxu0 0
        %6184 = vmatprep.mubr.bf16.mxu0 0
        %6185 = vmatmul.mubr.bf16.gmra.mxu0 %v6061
        %v6186 = vpop.f32.mrf.mxu0
        %v6187 = vadd.f32 %v6051, %v6186
        %v6188 = vpop.f32.mrf.mxu0
        %v6189 = vpop.f32.mrf.mxu0
        %v6190 = vpop.f32.mrf.mxu0
        %6191 = vdwg.mxu0
        %v6193 = vsel %vm382, %v6013, 0
        %6195 = vmatprep.subr.bf16.mxu0 0
        %6196 = vmatpush1.bf16.xpose.msra.mxu0 0
        %6197 = vmatprep.subr.bf16.mxu0 0
        %6198 = vmatpush1.bf16.xpose.msra.mxu0 0
        %6199 = vmatprep.subr.bf16.mxu0 0
        %6200 = vmatpush1.bf16.xpose.msra.mxu0 0
        %6201 = vmatprep.subr.bf16.mxu0 0
        %6202 = vmatpush1.bf16.xpose.msra.mxu0 0
        %6203 = vmatprep.subr.bf16.mxu0 0
        %6204 = vmatpush1.bf16.xpose.msra.mxu0 0
        %6205 = vmatprep.subr.bf16.mxu0 0
        %6206 = vmatpush1.bf16.xpose.msra.mxu0 0
        %6207 = vmatprep.subr.bf16.mxu0 0
        %6208 = vmatpush1.bf16.xpose.msra.mxu0 0
        %6209 = vmatprep.subr.bf16.mxu0 0
        %6210 = vmatpush1.bf16.xpose.msra.mxu0 %v6193
        %6211 = vmatprep.subr.bf16.mxu0 0
        %6212 = vmatpush2.bf16.xpose.msra.mxu0 0
        %6213 = vmatprep.subr.bf16.mxu0 0
        %6214 = vmatpush2.bf16.xpose.msra.mxu0 0
        %6215 = vmatprep.subr.bf16.mxu0 0
        %6216 = vmatpush2.bf16.xpose.msra.mxu0 0
        %6217 = vmatprep.subr.bf16.mxu0 0
        %6218 = vmatpush2.bf16.xpose.msra.mxu0 0
        %6219 = vmatprep.subr.bf16.mxu0 0
        %6220 = vmatpush2.bf16.xpose.msra.mxu0 0
        %6221 = vmatprep.subr.bf16.mxu0 0
        %6222 = vmatpush2.bf16.xpose.msra.mxu0 0
        %6223 = vmatprep.subr.bf16.mxu0 0
        %6224 = vmatpush2.bf16.xpose.msra.mxu0 0
        %6225 = vmatprep.subr.bf16.mxu0 0
        %6226 = vmatpush2.bf16.xpose.msra.mxu0 0
        %6227 = vmatprep.mubr.bf16.mxu0 0
        %6228 = vmatmul.mubr.bf16.gmra.mxu0 %v6061
        %v6229 = vpop.f32.mrf.mxu0
        %v6230 = vadd.f32 %v6055, %v6229
        %v6231 = vpop.f32.mrf.mxu0
        %v6232 = vpop.f32.mrf.mxu0
        %v6233 = vpop.f32.mrf.mxu0
        %6234 = vdwg.mxu0
        %v6243 = vlaneseq
        %v6244 = vshrl.u32 %v6243, 7
        %v6245 = vsub.s32 0, %v6244
        %v6246 = vrot.slane %v6027, %v6245
        %v6247 = vlaneseq
        %v6248 = vshrl.u32 %v6247, 7
        %v6249 = vsub.s32 0, %v6248
        %v6250 = vrot.slane %v6028, %v6249
        %v6251 = vlaneseq
        %v6252 = vshrl.u32 %v6251, 7
        %v6253 = vsub.s32 0, %v6252
        %v6254 = vrot.slane %v6029, %v6253
        %v6255 = vlaneseq
        %v6256 = vshrl.u32 %v6255, 7
        %v6257 = vsub.s32 0, %v6256
        %v6258 = vrot.slane %v6030, %v6257
        %v6259 = vlaneseq
        %v6260 = vshrl.u32 %v6259, 7
        %v6261 = vsub.s32 0, %v6260
        %v6262 = vrot.slane %v6031, %v6261
        %v6263 = vlaneseq
        %v6264 = vshrl.u32 %v6263, 7
        %v6265 = vsub.s32 0, %v6264
        %v6266 = vrot.slane %v6032, %v6265
        %v6267 = vlaneseq
        %v6268 = vshrl.u32 %v6267, 7
        %v6269 = vsub.s32 0, %v6268
        %v6270 = vrot.slane %v6033, %v6269
        %v6271 = vlaneseq
        %v6272 = vshrl.u32 %v6271, 7
        %v6273 = vsub.s32 0, %v6272
        %v6274 = vrot.slane %v6034, %v6273
        %v6284 = vsel %vm382, %v6014, 0
        %6286 = vmatprep.subr.bf16.mxu0 0
        %6287 = vmatpush1.bf16.xpose.msra.mxu0 0
        %6288 = vmatprep.subr.bf16.mxu0 0
        %6289 = vmatpush1.bf16.xpose.msra.mxu0 0
        %6290 = vmatprep.subr.bf16.mxu0 0
        %6291 = vmatpush1.bf16.xpose.msra.mxu0 0
        %6292 = vmatprep.subr.bf16.mxu0 0
        %6293 = vmatpush1.bf16.xpose.msra.mxu0 0
        %6294 = vmatprep.subr.bf16.mxu0 0
        %6295 = vmatpush1.bf16.xpose.msra.mxu0 0
        %6296 = vmatprep.subr.bf16.mxu0 0
        %6297 = vmatpush1.bf16.xpose.msra.mxu0 0
        %6298 = vmatprep.subr.bf16.mxu0 0
        %6299 = vmatpush1.bf16.xpose.msra.mxu0 0
        %6300 = vmatprep.subr.bf16.mxu0 0
        %6301 = vmatpush1.bf16.xpose.msra.mxu0 %v6284
        %6302 = vmatprep.subr.bf16.mxu0 0
        %6303 = vmatpush2.bf16.xpose.msra.mxu0 0
        %6304 = vmatprep.subr.bf16.mxu0 0
        %6305 = vmatpush2.bf16.xpose.msra.mxu0 0
        %6306 = vmatprep.subr.bf16.mxu0 0
        %6307 = vmatpush2.bf16.xpose.msra.mxu0 0
        %6308 = vmatprep.subr.bf16.mxu0 0
        %6309 = vmatpush2.bf16.xpose.msra.mxu0 0
        %6310 = vmatprep.subr.bf16.mxu0 0
        %6311 = vmatpush2.bf16.xpose.msra.mxu0 0
        %6312 = vmatprep.subr.bf16.mxu0 0
        %6313 = vmatpush2.bf16.xpose.msra.mxu0 0
        %6314 = vmatprep.subr.bf16.mxu0 0
        %6315 = vmatpush2.bf16.xpose.msra.mxu0 0
        %6316 = vmatprep.subr.bf16.mxu0 0
        %6317 = vmatpush2.bf16.xpose.msra.mxu0 0
        %6318 = vmatprep.mubr.bf16.mxu0 0
        %6319 = vmatmul.mubr.bf16.gmra.mxu0 %v3550
        %v6320 = vpop.f32.mrf.mxu0
        %v6321 = vadd.f32 %v6246, %v6320
        %v6322 = vpop.f32.mrf.mxu0
        %v6323 = vpop.f32.mrf.mxu0
        %v6324 = vpop.f32.mrf.mxu0
        %6325 = vdwg.mxu0
        %v6327 = vsel %vm382, %v6015, 0
        %6329 = vmatprep.subr.bf16.mxu0 0
        %6330 = vmatpush1.bf16.xpose.msra.mxu0 0
        %6331 = vmatprep.subr.bf16.mxu0 0
        %6332 = vmatpush1.bf16.xpose.msra.mxu0 0
        %6333 = vmatprep.subr.bf16.mxu0 0
        %6334 = vmatpush1.bf16.xpose.msra.mxu0 0
        %6335 = vmatprep.subr.bf16.mxu0 0
        %6336 = vmatpush1.bf16.xpose.msra.mxu0 0
        %6337 = vmatprep.subr.bf16.mxu0 0
        %6338 = vmatpush1.bf16.xpose.msra.mxu0 0
        %6339 = vmatprep.subr.bf16.mxu0 0
        %6340 = vmatpush1.bf16.xpose.msra.mxu0 0
        %6341 = vmatprep.subr.bf16.mxu0 0
        %6342 = vmatpush1.bf16.xpose.msra.mxu0 0
        %6343 = vmatprep.subr.bf16.mxu0 0
        %6344 = vmatpush1.bf16.xpose.msra.mxu0 %v6327
        %6345 = vmatprep.subr.bf16.mxu0 0
        %6346 = vmatpush2.bf16.xpose.msra.mxu0 0
        %6347 = vmatprep.subr.bf16.mxu0 0
        %6348 = vmatpush2.bf16.xpose.msra.mxu0 0
        %6349 = vmatprep.subr.bf16.mxu0 0
        %6350 = vmatpush2.bf16.xpose.msra.mxu0 0
        %6351 = vmatprep.subr.bf16.mxu0 0
        %6352 = vmatpush2.bf16.xpose.msra.mxu0 0
        %6353 = vmatprep.subr.bf16.mxu0 0
        %6354 = vmatpush2.bf16.xpose.msra.mxu0 0
        %6355 = vmatprep.subr.bf16.mxu0 0
        %6356 = vmatpush2.bf16.xpose.msra.mxu0 0
        %6357 = vmatprep.subr.bf16.mxu0 0
        %6358 = vmatpush2.bf16.xpose.msra.mxu0 0
        %6359 = vmatprep.subr.bf16.mxu0 0
        %6360 = vmatpush2.bf16.xpose.msra.mxu0 0
        %6361 = vmatprep.mubr.bf16.mxu0 0
        %6362 = vmatmul.mubr.bf16.gmra.mxu0 %v3550
        %v6363 = vpop.f32.mrf.mxu0
        %v6364 = vadd.f32 %v6250, %v6363
        %v6365 = vpop.f32.mrf.mxu0
        %v6366 = vpop.f32.mrf.mxu0
        %v6367 = vpop.f32.mrf.mxu0
        %6368 = vdwg.mxu0
        %v6370 = vsel %vm382, %v6016, 0
        %6372 = vmatprep.subr.bf16.mxu0 0
        %6373 = vmatpush1.bf16.xpose.msra.mxu0 0
        %6374 = vmatprep.subr.bf16.mxu0 0
        %6375 = vmatpush1.bf16.xpose.msra.mxu0 0
        %6376 = vmatprep.subr.bf16.mxu0 0
        %6377 = vmatpush1.bf16.xpose.msra.mxu0 0
        %6378 = vmatprep.subr.bf16.mxu0 0
        %6379 = vmatpush1.bf16.xpose.msra.mxu0 0
        %6380 = vmatprep.subr.bf16.mxu0 0
        %6381 = vmatpush1.bf16.xpose.msra.mxu0 0
        %6382 = vmatprep.subr.bf16.mxu0 0
        %6383 = vmatpush1.bf16.xpose.msra.mxu0 0
        %6384 = vmatprep.subr.bf16.mxu0 0
        %6385 = vmatpush1.bf16.xpose.msra.mxu0 0
        %6386 = vmatprep.subr.bf16.mxu0 0
        %6387 = vmatpush1.bf16.xpose.msra.mxu0 %v6370
        %6388 = vmatprep.subr.bf16.mxu0 0
        %6389 = vmatpush2.bf16.xpose.msra.mxu0 0
        %6390 = vmatprep.subr.bf16.mxu0 0
        %6391 = vmatpush2.bf16.xpose.msra.mxu0 0
        %6392 = vmatprep.subr.bf16.mxu0 0
        %6393 = vmatpush2.bf16.xpose.msra.mxu0 0
        %6394 = vmatprep.subr.bf16.mxu0 0
        %6395 = vmatpush2.bf16.xpose.msra.mxu0 0
        %6396 = vmatprep.subr.bf16.mxu0 0
        %6397 = vmatpush2.bf16.xpose.msra.mxu0 0
        %6398 = vmatprep.subr.bf16.mxu0 0
        %6399 = vmatpush2.bf16.xpose.msra.mxu0 0
        %6400 = vmatprep.subr.bf16.mxu0 0
        %6401 = vmatpush2.bf16.xpose.msra.mxu0 0
        %6402 = vmatprep.subr.bf16.mxu0 0
        %6403 = vmatpush2.bf16.xpose.msra.mxu0 0
        %6404 = vmatprep.mubr.bf16.mxu0 0
        %6405 = vmatmul.mubr.bf16.gmra.mxu0 %v3550
        %v6406 = vpop.f32.mrf.mxu0
        %v6407 = vadd.f32 %v6254, %v6406
        %v6408 = vpop.f32.mrf.mxu0
        %v6409 = vpop.f32.mrf.mxu0
        %v6410 = vpop.f32.mrf.mxu0
        %6411 = vdwg.mxu0
        %v6413 = vsel %vm382, %v6017, 0
        %6415 = vmatprep.subr.bf16.mxu0 0
        %6416 = vmatpush1.bf16.xpose.msra.mxu0 0
        %6417 = vmatprep.subr.bf16.mxu0 0
        %6418 = vmatpush1.bf16.xpose.msra.mxu0 0
        %6419 = vmatprep.subr.bf16.mxu0 0
        %6420 = vmatpush1.bf16.xpose.msra.mxu0 0
        %6421 = vmatprep.subr.bf16.mxu0 0
        %6422 = vmatpush1.bf16.xpose.msra.mxu0 0
        %6423 = vmatprep.subr.bf16.mxu0 0
        %6424 = vmatpush1.bf16.xpose.msra.mxu0 0
        %6425 = vmatprep.subr.bf16.mxu0 0
        %6426 = vmatpush1.bf16.xpose.msra.mxu0 0
        %6427 = vmatprep.subr.bf16.mxu0 0
        %6428 = vmatpush1.bf16.xpose.msra.mxu0 0
        %6429 = vmatprep.subr.bf16.mxu0 0
        %6430 = vmatpush1.bf16.xpose.msra.mxu0 %v6413
        %6431 = vmatprep.subr.bf16.mxu0 0
        %6432 = vmatpush2.bf16.xpose.msra.mxu0 0
        %6433 = vmatprep.subr.bf16.mxu0 0
        %6434 = vmatpush2.bf16.xpose.msra.mxu0 0
        %6435 = vmatprep.subr.bf16.mxu0 0
        %6436 = vmatpush2.bf16.xpose.msra.mxu0 0
        %6437 = vmatprep.subr.bf16.mxu0 0
        %6438 = vmatpush2.bf16.xpose.msra.mxu0 0
        %6439 = vmatprep.subr.bf16.mxu0 0
        %6440 = vmatpush2.bf16.xpose.msra.mxu0 0
        %6441 = vmatprep.subr.bf16.mxu0 0
        %6442 = vmatpush2.bf16.xpose.msra.mxu0 0
        %6443 = vmatprep.subr.bf16.mxu0 0
        %6444 = vmatpush2.bf16.xpose.msra.mxu0 0
        %6445 = vmatprep.subr.bf16.mxu0 0
        %6446 = vmatpush2.bf16.xpose.msra.mxu0 0
        %6447 = vmatprep.mubr.bf16.mxu0 0
        %6448 = vmatmul.mubr.bf16.gmra.mxu0 %v3550
        %v6449 = vpop.f32.mrf.mxu0
        %v6450 = vadd.f32 %v6258, %v6449
        %v6451 = vpop.f32.mrf.mxu0
        %v6452 = vpop.f32.mrf.mxu0
        %v6453 = vpop.f32.mrf.mxu0
        %6454 = vdwg.mxu0
        %v6456 = vsel %vm382, %v6018, 0
        %6458 = vmatprep.subr.bf16.mxu0 0
        %6459 = vmatpush1.bf16.xpose.msra.mxu0 0
        %6460 = vmatprep.subr.bf16.mxu0 0
        %6461 = vmatpush1.bf16.xpose.msra.mxu0 0
        %6462 = vmatprep.subr.bf16.mxu0 0
        %6463 = vmatpush1.bf16.xpose.msra.mxu0 0
        %6464 = vmatprep.subr.bf16.mxu0 0
        %6465 = vmatpush1.bf16.xpose.msra.mxu0 0
        %6466 = vmatprep.subr.bf16.mxu0 0
        %6467 = vmatpush1.bf16.xpose.msra.mxu0 0
        %6468 = vmatprep.subr.bf16.mxu0 0
        %6469 = vmatpush1.bf16.xpose.msra.mxu0 0
        %6470 = vmatprep.subr.bf16.mxu0 0
        %6471 = vmatpush1.bf16.xpose.msra.mxu0 0
        %6472 = vmatprep.subr.bf16.mxu0 0
        %6473 = vmatpush1.bf16.xpose.msra.mxu0 %v6456
        %6474 = vmatprep.subr.bf16.mxu0 0
        %6475 = vmatpush2.bf16.xpose.msra.mxu0 0
        %6476 = vmatprep.subr.bf16.mxu0 0
        %6477 = vmatpush2.bf16.xpose.msra.mxu0 0
        %6478 = vmatprep.subr.bf16.mxu0 0
        %6479 = vmatpush2.bf16.xpose.msra.mxu0 0
        %6480 = vmatprep.subr.bf16.mxu0 0
        %6481 = vmatpush2.bf16.xpose.msra.mxu0 0
        %6482 = vmatprep.subr.bf16.mxu0 0
        %6483 = vmatpush2.bf16.xpose.msra.mxu0 0
        %6484 = vmatprep.subr.bf16.mxu0 0
        %6485 = vmatpush2.bf16.xpose.msra.mxu0 0
        %6486 = vmatprep.subr.bf16.mxu0 0
        %6487 = vmatpush2.bf16.xpose.msra.mxu0 0
        %6488 = vmatprep.subr.bf16.mxu0 0
        %6489 = vmatpush2.bf16.xpose.msra.mxu0 0
        %6490 = vmatprep.mubr.bf16.mxu0 0
        %6491 = vmatmul.mubr.bf16.gmra.mxu0 %v3550
        %v6492 = vpop.f32.mrf.mxu0
        %v6493 = vadd.f32 %v6262, %v6492
        %v6494 = vpop.f32.mrf.mxu0
        %v6495 = vpop.f32.mrf.mxu0
        %v6496 = vpop.f32.mrf.mxu0
        %6497 = vdwg.mxu0
        %v6499 = vsel %vm382, %v6019, 0
        %6501 = vmatprep.subr.bf16.mxu0 0
        %6502 = vmatpush1.bf16.xpose.msra.mxu0 0
        %6503 = vmatprep.subr.bf16.mxu0 0
        %6504 = vmatpush1.bf16.xpose.msra.mxu0 0
        %6505 = vmatprep.subr.bf16.mxu0 0
        %6506 = vmatpush1.bf16.xpose.msra.mxu0 0
        %6507 = vmatprep.subr.bf16.mxu0 0
        %6508 = vmatpush1.bf16.xpose.msra.mxu0 0
        %6509 = vmatprep.subr.bf16.mxu0 0
        %6510 = vmatpush1.bf16.xpose.msra.mxu0 0
        %6511 = vmatprep.subr.bf16.mxu0 0
        %6512 = vmatpush1.bf16.xpose.msra.mxu0 0
        %6513 = vmatprep.subr.bf16.mxu0 0
        %6514 = vmatpush1.bf16.xpose.msra.mxu0 0
        %6515 = vmatprep.subr.bf16.mxu0 0
        %6516 = vmatpush1.bf16.xpose.msra.mxu0 %v6499
        %6517 = vmatprep.subr.bf16.mxu0 0
        %6518 = vmatpush2.bf16.xpose.msra.mxu0 0
        %6519 = vmatprep.subr.bf16.mxu0 0
        %6520 = vmatpush2.bf16.xpose.msra.mxu0 0
        %6521 = vmatprep.subr.bf16.mxu0 0
        %6522 = vmatpush2.bf16.xpose.msra.mxu0 0
        %6523 = vmatprep.subr.bf16.mxu0 0
        %6524 = vmatpush2.bf16.xpose.msra.mxu0 0
        %6525 = vmatprep.subr.bf16.mxu0 0
        %6526 = vmatpush2.bf16.xpose.msra.mxu0 0
        %6527 = vmatprep.subr.bf16.mxu0 0
        %6528 = vmatpush2.bf16.xpose.msra.mxu0 0
        %6529 = vmatprep.subr.bf16.mxu0 0
        %6530 = vmatpush2.bf16.xpose.msra.mxu0 0
        %6531 = vmatprep.subr.bf16.mxu0 0
        %6532 = vmatpush2.bf16.xpose.msra.mxu0 0
        %6533 = vmatprep.mubr.bf16.mxu0 0
        %6534 = vmatmul.mubr.bf16.gmra.mxu0 %v3550
        %v6535 = vpop.f32.mrf.mxu0
        %v6536 = vadd.f32 %v6266, %v6535
        %v6537 = vpop.f32.mrf.mxu0
        %v6538 = vpop.f32.mrf.mxu0
        %v6539 = vpop.f32.mrf.mxu0
        %6540 = vdwg.mxu0
        %v6542 = vsel %vm382, %v6020, 0
        %6544 = vmatprep.subr.bf16.mxu0 0
        %6545 = vmatpush1.bf16.xpose.msra.mxu0 0
        %6546 = vmatprep.subr.bf16.mxu0 0
        %6547 = vmatpush1.bf16.xpose.msra.mxu0 0
        %6548 = vmatprep.subr.bf16.mxu0 0
        %6549 = vmatpush1.bf16.xpose.msra.mxu0 0
        %6550 = vmatprep.subr.bf16.mxu0 0
        %6551 = vmatpush1.bf16.xpose.msra.mxu0 0
        %6552 = vmatprep.subr.bf16.mxu0 0
        %6553 = vmatpush1.bf16.xpose.msra.mxu0 0
        %6554 = vmatprep.subr.bf16.mxu0 0
        %6555 = vmatpush1.bf16.xpose.msra.mxu0 0
        %6556 = vmatprep.subr.bf16.mxu0 0
        %6557 = vmatpush1.bf16.xpose.msra.mxu0 0
        %6558 = vmatprep.subr.bf16.mxu0 0
        %6559 = vmatpush1.bf16.xpose.msra.mxu0 %v6542
        %6560 = vmatprep.subr.bf16.mxu0 0
        %6561 = vmatpush2.bf16.xpose.msra.mxu0 0
        %6562 = vmatprep.subr.bf16.mxu0 0
        %6563 = vmatpush2.bf16.xpose.msra.mxu0 0
        %6564 = vmatprep.subr.bf16.mxu0 0
        %6565 = vmatpush2.bf16.xpose.msra.mxu0 0
        %6566 = vmatprep.subr.bf16.mxu0 0
        %6567 = vmatpush2.bf16.xpose.msra.mxu0 0
        %6568 = vmatprep.subr.bf16.mxu0 0
        %6569 = vmatpush2.bf16.xpose.msra.mxu0 0
        %6570 = vmatprep.subr.bf16.mxu0 0
        %6571 = vmatpush2.bf16.xpose.msra.mxu0 0
        %6572 = vmatprep.subr.bf16.mxu0 0
        %6573 = vmatpush2.bf16.xpose.msra.mxu0 0
        %6574 = vmatprep.subr.bf16.mxu0 0
        %6575 = vmatpush2.bf16.xpose.msra.mxu0 0
        %6576 = vmatprep.mubr.bf16.mxu0 0
        %6577 = vmatmul.mubr.bf16.gmra.mxu0 %v3550
        %v6578 = vpop.f32.mrf.mxu0
        %v6579 = vadd.f32 %v6270, %v6578
        %v6580 = vpop.f32.mrf.mxu0
        %v6581 = vpop.f32.mrf.mxu0
        %v6582 = vpop.f32.mrf.mxu0
        %6583 = vdwg.mxu0
        %v6585 = vsel %vm382, %v6021, 0
        %6587 = vmatprep.subr.bf16.mxu0 0
        %6588 = vmatpush1.bf16.xpose.msra.mxu0 0
        %6589 = vmatprep.subr.bf16.mxu0 0
        %6590 = vmatpush1.bf16.xpose.msra.mxu0 0
        %6591 = vmatprep.subr.bf16.mxu0 0
        %6592 = vmatpush1.bf16.xpose.msra.mxu0 0
        %6593 = vmatprep.subr.bf16.mxu0 0
        %6594 = vmatpush1.bf16.xpose.msra.mxu0 0
        %6595 = vmatprep.subr.bf16.mxu0 0
        %6596 = vmatpush1.bf16.xpose.msra.mxu0 0
        %6597 = vmatprep.subr.bf16.mxu0 0
        %6598 = vmatpush1.bf16.xpose.msra.mxu0 0
        %6599 = vmatprep.subr.bf16.mxu0 0
        %6600 = vmatpush1.bf16.xpose.msra.mxu0 0
        %6601 = vmatprep.subr.bf16.mxu0 0
        %6602 = vmatpush1.bf16.xpose.msra.mxu0 %v6585
        %6603 = vmatprep.subr.bf16.mxu0 0
        %6604 = vmatpush2.bf16.xpose.msra.mxu0 0
        %6605 = vmatprep.subr.bf16.mxu0 0
        %6606 = vmatpush2.bf16.xpose.msra.mxu0 0
        %6607 = vmatprep.subr.bf16.mxu0 0
        %6608 = vmatpush2.bf16.xpose.msra.mxu0 0
        %6609 = vmatprep.subr.bf16.mxu0 0
        %6610 = vmatpush2.bf16.xpose.msra.mxu0 0
        %6611 = vmatprep.subr.bf16.mxu0 0
        %6612 = vmatpush2.bf16.xpose.msra.mxu0 0
        %6613 = vmatprep.subr.bf16.mxu0 0
        %6614 = vmatpush2.bf16.xpose.msra.mxu0 0
        %6615 = vmatprep.subr.bf16.mxu0 0
        %6616 = vmatpush2.bf16.xpose.msra.mxu0 0
        %6617 = vmatprep.subr.bf16.mxu0 0
        %6618 = vmatpush2.bf16.xpose.msra.mxu0 0
        %6619 = vmatprep.mubr.bf16.mxu0 0
        %6620 = vmatmul.mubr.bf16.gmra.mxu0 %v3550
        %v6621 = vpop.f32.mrf.mxu0
        %v6622 = vadd.f32 %v6274, %v6621
        %v6623 = vpop.f32.mrf.mxu0
        %v6624 = vpop.f32.mrf.mxu0
        %v6625 = vpop.f32.mrf.mxu0
        %6626 = vdwg.mxu0
        %v6627 = vpack.c.bf16 %v6101, %v6101
        %v6628 = vpack.c.bf16 %v6144, %v6144
        %v6629 = vpack.c.bf16 %v6187, %v6187
        %v6630 = vpack.c.bf16 %v6230, %v6230
        %v6631 = vpack.c.bf16 %v6321, %v6321
        %v6632 = vpack.c.bf16 %v6364, %v6364
        %v6633 = vpack.c.bf16 %v6407, %v6407
        %v6634 = vpack.c.bf16 %v6450, %v6450
        %v6636 = vsel %vm1082, %v6627, 0
        %v6639 = vsel %vm1082, %v6631, 0
        %6641 = vmatprep.subr.bf16.mxu0 0
        %6642 = vmatpush1.bf16.xpose.msra.mxu0 0
        %6643 = vmatprep.subr.bf16.mxu0 0
        %6644 = vmatpush1.bf16.xpose.msra.mxu0 0
        %6645 = vmatprep.subr.bf16.mxu0 0
        %6646 = vmatpush1.bf16.xpose.msra.mxu0 0
        %6647 = vmatprep.subr.bf16.mxu0 0
        %6648 = vmatpush1.bf16.xpose.msra.mxu0 0
        %6649 = vmatprep.subr.bf16.mxu0 0
        %6650 = vmatpush1.bf16.xpose.msra.mxu0 0
        %6651 = vmatprep.subr.bf16.mxu0 0
        %6652 = vmatpush1.bf16.xpose.msra.mxu0 0
        %6653 = vmatprep.subr.bf16.mxu0 0
        %6654 = vmatpush1.bf16.xpose.msra.mxu0 0
        %6655 = vmatprep.subr.bf16.mxu0 0
        %6656 = vmatpush1.bf16.xpose.msra.mxu0 %v6639
        %6657 = vmatprep.subr.bf16.mxu0 0
        %6658 = vmatpush2.bf16.xpose.msra.mxu0 0
        %6659 = vmatprep.subr.bf16.mxu0 0
        %6660 = vmatpush2.bf16.xpose.msra.mxu0 0
        %6661 = vmatprep.subr.bf16.mxu0 0
        %6662 = vmatpush2.bf16.xpose.msra.mxu0 0
        %6663 = vmatprep.subr.bf16.mxu0 0
        %6664 = vmatpush2.bf16.xpose.msra.mxu0 0
        %6665 = vmatprep.subr.bf16.mxu0 0
        %6666 = vmatpush2.bf16.xpose.msra.mxu0 0
        %6667 = vmatprep.subr.bf16.mxu0 0
        %6668 = vmatpush2.bf16.xpose.msra.mxu0 0
        %6669 = vmatprep.subr.bf16.mxu0 0
        %6670 = vmatpush2.bf16.xpose.msra.mxu0 0
        %6671 = vmatprep.subr.bf16.mxu0 0
        %6672 = vmatpush2.bf16.xpose.msra.mxu0 0
        %6673 = vmatprep.mubr.bf16.mxu0 0
        %6674 = vmatmul.mubr.bf16.gmra.mxu0 %v6636
        %v6675 = vpop.f32.mrf.mxu0
        %v6676 = vadd.f32 %v1080, %v6675
        %v6677 = vpop.f32.mrf.mxu0
        %v6678 = vpop.f32.mrf.mxu0
        %v6679 = vpop.f32.mrf.mxu0
        %6680 = vdwg.mxu0
        %v6682 = vsel %vm1082, %v6628, 0
        %v6685 = vsel %vm1082, %v6632, 0
        %6687 = vmatprep.subr.bf16.mxu0 0
        %6688 = vmatpush1.bf16.xpose.msra.mxu0 0
        %6689 = vmatprep.subr.bf16.mxu0 0
        %6690 = vmatpush1.bf16.xpose.msra.mxu0 0
        %6691 = vmatprep.subr.bf16.mxu0 0
        %6692 = vmatpush1.bf16.xpose.msra.mxu0 0
        %6693 = vmatprep.subr.bf16.mxu0 0
        %6694 = vmatpush1.bf16.xpose.msra.mxu0 0
        %6695 = vmatprep.subr.bf16.mxu0 0
        %6696 = vmatpush1.bf16.xpose.msra.mxu0 0
        %6697 = vmatprep.subr.bf16.mxu0 0
        %6698 = vmatpush1.bf16.xpose.msra.mxu0 0
        %6699 = vmatprep.subr.bf16.mxu0 0
        %6700 = vmatpush1.bf16.xpose.msra.mxu0 0
        %6701 = vmatprep.subr.bf16.mxu0 0
        %6702 = vmatpush1.bf16.xpose.msra.mxu0 %v6685
        %6703 = vmatprep.subr.bf16.mxu0 0
        %6704 = vmatpush2.bf16.xpose.msra.mxu0 0
        %6705 = vmatprep.subr.bf16.mxu0 0
        %6706 = vmatpush2.bf16.xpose.msra.mxu0 0
        %6707 = vmatprep.subr.bf16.mxu0 0
        %6708 = vmatpush2.bf16.xpose.msra.mxu0 0
        %6709 = vmatprep.subr.bf16.mxu0 0
        %6710 = vmatpush2.bf16.xpose.msra.mxu0 0
        %6711 = vmatprep.subr.bf16.mxu0 0
        %6712 = vmatpush2.bf16.xpose.msra.mxu0 0
        %6713 = vmatprep.subr.bf16.mxu0 0
        %6714 = vmatpush2.bf16.xpose.msra.mxu0 0
        %6715 = vmatprep.subr.bf16.mxu0 0
        %6716 = vmatpush2.bf16.xpose.msra.mxu0 0
        %6717 = vmatprep.subr.bf16.mxu0 0
        %6718 = vmatpush2.bf16.xpose.msra.mxu0 0
        %6719 = vmatprep.mubr.bf16.mxu0 0
        %6720 = vmatmul.mubr.bf16.gmra.mxu0 %v6682
        %v6721 = vpop.f32.mrf.mxu0
        %v6722 = vadd.f32 %v1080, %v6721
        %v6723 = vpop.f32.mrf.mxu0
        %v6724 = vpop.f32.mrf.mxu0
        %v6725 = vpop.f32.mrf.mxu0
        %6726 = vdwg.mxu0
        %v6728 = vsel %vm1082, %v6629, 0
        %v6731 = vsel %vm1082, %v6633, 0
        %6733 = vmatprep.subr.bf16.mxu0 0
        %6734 = vmatpush1.bf16.xpose.msra.mxu0 0
        %6735 = vmatprep.subr.bf16.mxu0 0
        %6736 = vmatpush1.bf16.xpose.msra.mxu0 0
        %6737 = vmatprep.subr.bf16.mxu0 0
        %6738 = vmatpush1.bf16.xpose.msra.mxu0 0
        %6739 = vmatprep.subr.bf16.mxu0 0
        %6740 = vmatpush1.bf16.xpose.msra.mxu0 0
        %6741 = vmatprep.subr.bf16.mxu0 0
        %6742 = vmatpush1.bf16.xpose.msra.mxu0 0
        %6743 = vmatprep.subr.bf16.mxu0 0
        %6744 = vmatpush1.bf16.xpose.msra.mxu0 0
        %6745 = vmatprep.subr.bf16.mxu0 0
        %6746 = vmatpush1.bf16.xpose.msra.mxu0 0
        %6747 = vmatprep.subr.bf16.mxu0 0
        %6748 = vmatpush1.bf16.xpose.msra.mxu0 %v6731
        %6749 = vmatprep.subr.bf16.mxu0 0
        %6750 = vmatpush2.bf16.xpose.msra.mxu0 0
        %6751 = vmatprep.subr.bf16.mxu0 0
        %6752 = vmatpush2.bf16.xpose.msra.mxu0 0
        %6753 = vmatprep.subr.bf16.mxu0 0
        %6754 = vmatpush2.bf16.xpose.msra.mxu0 0
        %6755 = vmatprep.subr.bf16.mxu0 0
        %6756 = vmatpush2.bf16.xpose.msra.mxu0 0
        %6757 = vmatprep.subr.bf16.mxu0 0
        %6758 = vmatpush2.bf16.xpose.msra.mxu0 0
        %6759 = vmatprep.subr.bf16.mxu0 0
        %6760 = vmatpush2.bf16.xpose.msra.mxu0 0
        %6761 = vmatprep.subr.bf16.mxu0 0
        %6762 = vmatpush2.bf16.xpose.msra.mxu0 0
        %6763 = vmatprep.subr.bf16.mxu0 0
        %6764 = vmatpush2.bf16.xpose.msra.mxu0 0
        %6765 = vmatprep.mubr.bf16.mxu0 0
        %6766 = vmatmul.mubr.bf16.gmra.mxu0 %v6728
        %v6767 = vpop.f32.mrf.mxu0
        %v6768 = vadd.f32 %v1080, %v6767
        %v6769 = vpop.f32.mrf.mxu0
        %v6770 = vpop.f32.mrf.mxu0
        %v6771 = vpop.f32.mrf.mxu0
        %6772 = vdwg.mxu0
        %v6774 = vsel %vm1082, %v6630, 0
        %v6777 = vsel %vm1082, %v6634, 0
        %6779 = vmatprep.subr.bf16.mxu0 0
        %6780 = vmatpush1.bf16.xpose.msra.mxu0 0
        %6781 = vmatprep.subr.bf16.mxu0 0
        %6782 = vmatpush1.bf16.xpose.msra.mxu0 0
        %6783 = vmatprep.subr.bf16.mxu0 0
        %6784 = vmatpush1.bf16.xpose.msra.mxu0 0
        %6785 = vmatprep.subr.bf16.mxu0 0
        %6786 = vmatpush1.bf16.xpose.msra.mxu0 0
        %6787 = vmatprep.subr.bf16.mxu0 0
        %6788 = vmatpush1.bf16.xpose.msra.mxu0 0
        %6789 = vmatprep.subr.bf16.mxu0 0
        %6790 = vmatpush1.bf16.xpose.msra.mxu0 0
        %6791 = vmatprep.subr.bf16.mxu0 0
        %6792 = vmatpush1.bf16.xpose.msra.mxu0 0
        %6793 = vmatprep.subr.bf16.mxu0 0
        %6794 = vmatpush1.bf16.xpose.msra.mxu0 %v6777
        %6795 = vmatprep.subr.bf16.mxu0 0
        %6796 = vmatpush2.bf16.xpose.msra.mxu0 0
        %6797 = vmatprep.subr.bf16.mxu0 0
        %6798 = vmatpush2.bf16.xpose.msra.mxu0 0
        %6799 = vmatprep.subr.bf16.mxu0 0
        %6800 = vmatpush2.bf16.xpose.msra.mxu0 0
        %6801 = vmatprep.subr.bf16.mxu0 0
        %6802 = vmatpush2.bf16.xpose.msra.mxu0 0
        %6803 = vmatprep.subr.bf16.mxu0 0
        %6804 = vmatpush2.bf16.xpose.msra.mxu0 0
        %6805 = vmatprep.subr.bf16.mxu0 0
        %6806 = vmatpush2.bf16.xpose.msra.mxu0 0
        %6807 = vmatprep.subr.bf16.mxu0 0
        %6808 = vmatpush2.bf16.xpose.msra.mxu0 0
        %6809 = vmatprep.subr.bf16.mxu0 0
        %6810 = vmatpush2.bf16.xpose.msra.mxu0 0
        %6811 = vmatprep.mubr.bf16.mxu0 0
        %6812 = vmatmul.mubr.bf16.gmra.mxu0 %v6774
        %v6813 = vpop.f32.mrf.mxu0
        %v6814 = vadd.f32 %v1080, %v6813
        %v6815 = vpop.f32.mrf.mxu0
        %v6816 = vpop.f32.mrf.mxu0
        %v6817 = vpop.f32.mrf.mxu0
        %6818 = vdwg.mxu0
        %v6819 = vsel %vm1082, %v6676, -inf
        %6820 = vmax.xlane.f32.xlu0 %v6819
        %v6821 = vpop.xlane.xlu0 %6820
        %v6822 = vsel %vm1082, %v6722, -inf
        %6823 = vmax.xlane.f32.xlu0 %v6822
        %v6824 = vpop.xlane.xlu0 %6823
        %v6825 = vsel %vm1082, %v6768, -inf
        %6826 = vmax.xlane.f32.xlu0 %v6825
        %v6827 = vpop.xlane.xlu0 %6826
        %v6828 = vsel %vm1082, %v6814, -inf
        %6829 = vmax.xlane.f32.xlu0 %v6828
        %v6830 = vpop.xlane.xlu0 %6829
        %v6831 = vsub.f32 %v6676, %v6821
        %v6832 = vsub.f32 %v6722, %v6824
        %v6833 = vsub.f32 %v6768, %v6827
        %v6834 = vsub.f32 %v6814, %v6830
        %v6835 = vmul.f32 %v6831, 1.442695
        %v6836 = vpow.pop %v6835
        %v6837 = vmul.f32 %v6832, 1.442695
        %v6838 = vpow.pop %v6837
        %v6839 = vmul.f32 %v6833, 1.442695
        %v6840 = vpow.pop %v6839
        %v6841 = vmul.f32 %v6834, 1.442695
        %v6842 = vpow.pop %v6841
        %v6843 = vsel %vm1082, %v6836, 0.0
        %6844 = vadd.xlane.f32.xlu0 %v6843
        %v6845 = vpop.xlane.xlu0 %6844
        %v6846 = vsel %vm1082, %v6838, 0.0
        %6847 = vadd.xlane.f32.xlu0 %v6846
        %v6848 = vpop.xlane.xlu0 %6847
        %v6849 = vsel %vm1082, %v6840, 0.0
        %6850 = vadd.xlane.f32.xlu0 %v6849
        %v6851 = vpop.xlane.xlu0 %6850
        %v6852 = vsel %vm1082, %v6842, 0.0
        %6853 = vadd.xlane.f32.xlu0 %v6852
        %v6854 = vpop.xlane.xlu0 %6853
        %v6855 = vrcp.pop %v6845
        %v6856 = vrcp.pop %v6848
        %v6857 = vrcp.pop %v6851
        %v6858 = vrcp.pop %v6854
        %v6859 = vmul.f32 %v6836, %v6855
        %v6860 = vmul.f32 %v6838, %v6856
        %v6861 = vmul.f32 %v6840, %v6857
        %v6862 = vmul.f32 %v6842, %v6858
        %v6863 = vpack.c.bf16 %v6859, %v6859
        %v6864 = vpack.c.bf16 %v6860, %v6860
        %v6865 = vpack.c.bf16 %v6861, %v6861
        %v6866 = vpack.c.bf16 %v6862, %v6862
        %v6867 = vpack.c.bf16 %v6493, %v6493
        %v6868 = vpack.c.bf16 %v6536, %v6536
        %v6869 = vpack.c.bf16 %v6579, %v6579
        %v6870 = vpack.c.bf16 %v6622, %v6622
        %v6872 = vsel %vm1082, %v6863, 0
        %v6875 = vsel %vm1322, %v6867, 0
        %6877 = vmatprep.subr.bf16.mxu0 0
        %6878 = vmatpush1.bf16.msra.mxu0 0
        %6879 = vmatprep.subr.bf16.mxu0 0
        %6880 = vmatpush1.bf16.msra.mxu0 0
        %6881 = vmatprep.subr.bf16.mxu0 0
        %6882 = vmatpush1.bf16.msra.mxu0 0
        %6883 = vmatprep.subr.bf16.mxu0 0
        %6884 = vmatpush1.bf16.msra.mxu0 0
        %6885 = vmatprep.subr.bf16.mxu0 0
        %6886 = vmatpush1.bf16.msra.mxu0 0
        %6887 = vmatprep.subr.bf16.mxu0 0
        %6888 = vmatpush1.bf16.msra.mxu0 0
        %6889 = vmatprep.subr.bf16.mxu0 0
        %6890 = vmatpush1.bf16.msra.mxu0 0
        %6891 = vmatprep.subr.bf16.mxu0 0
        %6892 = vmatpush1.bf16.msra.mxu0 %v6875
        %6893 = vmatprep.subr.bf16.mxu0 0
        %6894 = vmatpush2.bf16.msra.mxu0 0
        %6895 = vmatprep.subr.bf16.mxu0 0
        %6896 = vmatpush2.bf16.msra.mxu0 0
        %6897 = vmatprep.subr.bf16.mxu0 0
        %6898 = vmatpush2.bf16.msra.mxu0 0
        %6899 = vmatprep.subr.bf16.mxu0 0
        %6900 = vmatpush2.bf16.msra.mxu0 0
        %6901 = vmatprep.subr.bf16.mxu0 0
        %6902 = vmatpush2.bf16.msra.mxu0 0
        %6903 = vmatprep.subr.bf16.mxu0 0
        %6904 = vmatpush2.bf16.msra.mxu0 0
        %6905 = vmatprep.subr.bf16.mxu0 0
        %6906 = vmatpush2.bf16.msra.mxu0 0
        %6907 = vmatprep.subr.bf16.mxu0 0
        %6908 = vmatpush2.bf16.msra.mxu0 0
        %6909 = vmatprep.mubr.bf16.mxu0 0
        %6910 = vmatmul.mubr.bf16.gmra.mxu0 %v6872
        %v6911 = vpop.f32.mrf.mxu0
        %v6912 = vadd.f32 0.0, %v6911
        %v6913 = vpop.f32.mrf.mxu0
        %v6914 = vpop.f32.mrf.mxu0
        %v6915 = vpop.f32.mrf.mxu0
        %6916 = vdwg.mxu0
        %v6918 = vsel %vm1082, %v6864, 0
        %v6921 = vsel %vm1322, %v6868, 0
        %6923 = vmatprep.subr.bf16.mxu0 0
        %6924 = vmatpush1.bf16.msra.mxu0 0
        %6925 = vmatprep.subr.bf16.mxu0 0
        %6926 = vmatpush1.bf16.msra.mxu0 0
        %6927 = vmatprep.subr.bf16.mxu0 0
        %6928 = vmatpush1.bf16.msra.mxu0 0
        %6929 = vmatprep.subr.bf16.mxu0 0
        %6930 = vmatpush1.bf16.msra.mxu0 0
        %6931 = vmatprep.subr.bf16.mxu0 0
        %6932 = vmatpush1.bf16.msra.mxu0 0
        %6933 = vmatprep.subr.bf16.mxu0 0
        %6934 = vmatpush1.bf16.msra.mxu0 0
        %6935 = vmatprep.subr.bf16.mxu0 0
        %6936 = vmatpush1.bf16.msra.mxu0 0
        %6937 = vmatprep.subr.bf16.mxu0 0
        %6938 = vmatpush1.bf16.msra.mxu0 %v6921
        %6939 = vmatprep.subr.bf16.mxu0 0
        %6940 = vmatpush2.bf16.msra.mxu0 0
        %6941 = vmatprep.subr.bf16.mxu0 0
        %6942 = vmatpush2.bf16.msra.mxu0 0
        %6943 = vmatprep.subr.bf16.mxu0 0
        %6944 = vmatpush2.bf16.msra.mxu0 0
        %6945 = vmatprep.subr.bf16.mxu0 0
        %6946 = vmatpush2.bf16.msra.mxu0 0
        %6947 = vmatprep.subr.bf16.mxu0 0
        %6948 = vmatpush2.bf16.msra.mxu0 0
        %6949 = vmatprep.subr.bf16.mxu0 0
        %6950 = vmatpush2.bf16.msra.mxu0 0
        %6951 = vmatprep.subr.bf16.mxu0 0
        %6952 = vmatpush2.bf16.msra.mxu0 0
        %6953 = vmatprep.subr.bf16.mxu0 0
        %6954 = vmatpush2.bf16.msra.mxu0 0
        %6955 = vmatprep.mubr.bf16.mxu0 0
        %6956 = vmatmul.mubr.bf16.gmra.mxu0 %v6918
        %v6957 = vpop.f32.mrf.mxu0
        %v6958 = vadd.f32 0.0, %v6957
        %v6959 = vpop.f32.mrf.mxu0
        %v6960 = vpop.f32.mrf.mxu0
        %v6961 = vpop.f32.mrf.mxu0
        %6962 = vdwg.mxu0
        %v6964 = vsel %vm1082, %v6865, 0
        %v6967 = vsel %vm1322, %v6869, 0
        %6969 = vmatprep.subr.bf16.mxu0 0
        %6970 = vmatpush1.bf16.msra.mxu0 0
        %6971 = vmatprep.subr.bf16.mxu0 0
        %6972 = vmatpush1.bf16.msra.mxu0 0
        %6973 = vmatprep.subr.bf16.mxu0 0
        %6974 = vmatpush1.bf16.msra.mxu0 0
        %6975 = vmatprep.subr.bf16.mxu0 0
        %6976 = vmatpush1.bf16.msra.mxu0 0
        %6977 = vmatprep.subr.bf16.mxu0 0
        %6978 = vmatpush1.bf16.msra.mxu0 0
        %6979 = vmatprep.subr.bf16.mxu0 0
        %6980 = vmatpush1.bf16.msra.mxu0 0
        %6981 = vmatprep.subr.bf16.mxu0 0
        %6982 = vmatpush1.bf16.msra.mxu0 0
        %6983 = vmatprep.subr.bf16.mxu0 0
        %6984 = vmatpush1.bf16.msra.mxu0 %v6967
        %6985 = vmatprep.subr.bf16.mxu0 0
        %6986 = vmatpush2.bf16.msra.mxu0 0
        %6987 = vmatprep.subr.bf16.mxu0 0
        %6988 = vmatpush2.bf16.msra.mxu0 0
        %6989 = vmatprep.subr.bf16.mxu0 0
        %6990 = vmatpush2.bf16.msra.mxu0 0
        %6991 = vmatprep.subr.bf16.mxu0 0
        %6992 = vmatpush2.bf16.msra.mxu0 0
        %6993 = vmatprep.subr.bf16.mxu0 0
        %6994 = vmatpush2.bf16.msra.mxu0 0
        %6995 = vmatprep.subr.bf16.mxu0 0
        %6996 = vmatpush2.bf16.msra.mxu0 0
        %6997 = vmatprep.subr.bf16.mxu0 0
        %6998 = vmatpush2.bf16.msra.mxu0 0
        %6999 = vmatprep.subr.bf16.mxu0 0
        %7000 = vmatpush2.bf16.msra.mxu0 0
        %7001 = vmatprep.mubr.bf16.mxu0 0
        %7002 = vmatmul.mubr.bf16.gmra.mxu0 %v6964
        %v7003 = vpop.f32.mrf.mxu0
        %v7004 = vadd.f32 0.0, %v7003
        %v7005 = vpop.f32.mrf.mxu0
        %v7006 = vpop.f32.mrf.mxu0
        %v7007 = vpop.f32.mrf.mxu0
        %7008 = vdwg.mxu0
        %v7010 = vsel %vm1082, %v6866, 0
        %v7013 = vsel %vm1322, %v6870, 0
        %7015 = vmatprep.subr.bf16.mxu0 0
        %7016 = vmatpush1.bf16.msra.mxu0 0
        %7017 = vmatprep.subr.bf16.mxu0 0
        %7018 = vmatpush1.bf16.msra.mxu0 0
        %7019 = vmatprep.subr.bf16.mxu0 0
        %7020 = vmatpush1.bf16.msra.mxu0 0
        %7021 = vmatprep.subr.bf16.mxu0 0
        %7022 = vmatpush1.bf16.msra.mxu0 0
        %7023 = vmatprep.subr.bf16.mxu0 0
        %7024 = vmatpush1.bf16.msra.mxu0 0
        %7025 = vmatprep.subr.bf16.mxu0 0
        %7026 = vmatpush1.bf16.msra.mxu0 0
        %7027 = vmatprep.subr.bf16.mxu0 0
        %7028 = vmatpush1.bf16.msra.mxu0 0
        %7029 = vmatprep.subr.bf16.mxu0 0
        %7030 = vmatpush1.bf16.msra.mxu0 %v7013
        %7031 = vmatprep.subr.bf16.mxu0 0
        %7032 = vmatpush2.bf16.msra.mxu0 0
        %7033 = vmatprep.subr.bf16.mxu0 0
        %7034 = vmatpush2.bf16.msra.mxu0 0
        %7035 = vmatprep.subr.bf16.mxu0 0
        %7036 = vmatpush2.bf16.msra.mxu0 0
        %7037 = vmatprep.subr.bf16.mxu0 0
        %7038 = vmatpush2.bf16.msra.mxu0 0
        %7039 = vmatprep.subr.bf16.mxu0 0
        %7040 = vmatpush2.bf16.msra.mxu0 0
        %7041 = vmatprep.subr.bf16.mxu0 0
        %7042 = vmatpush2.bf16.msra.mxu0 0
        %7043 = vmatprep.subr.bf16.mxu0 0
        %7044 = vmatpush2.bf16.msra.mxu0 0
        %7045 = vmatprep.subr.bf16.mxu0 0
        %7046 = vmatpush2.bf16.msra.mxu0 0
        %7047 = vmatprep.mubr.bf16.mxu0 0
        %7048 = vmatmul.mubr.bf16.gmra.mxu0 %v7010
        %v7049 = vpop.f32.mrf.mxu0
        %v7050 = vadd.f32 0.0, %v7049
        %v7051 = vpop.f32.mrf.mxu0
        %v7052 = vpop.f32.mrf.mxu0
        %v7053 = vpop.f32.mrf.mxu0
        %7054 = vdwg.mxu0
        %v7055 = vpack.c.bf16 %v6912, %v6912
        %v7056 = vpack.c.bf16 %v6958, %v6958
        %v7057 = vpack.c.bf16 %v7004, %v7004
        %v7058 = vpack.c.bf16 %v7050, %v7050
        %s7059 = scalar_lea.vmem %s4, 64
        %v7060 = vld [vmem:[%s7059] sm:$0xf]
        %v7061 = vld [vmem:[%s7059 + $0x4] sm:$0xf]
        %v7062 = vld [vmem:[%s7059 + $0x8] sm:$0xf]
        %v7063 = vld [vmem:[%s7059 + $0xc] sm:$0xf]
        %v7065 = vsel %vm1082, %v7055, 0
        %v7068 = vsel %vm1322, %v7060, 0
        %7070 = vmatprep.subr.bf16.mxu0 0
        %7071 = vmatpush1.bf16.msra.mxu0 0
        %7072 = vmatprep.subr.bf16.mxu0 0
        %7073 = vmatpush1.bf16.msra.mxu0 0
        %7074 = vmatprep.subr.bf16.mxu0 0
        %7075 = vmatpush1.bf16.msra.mxu0 0
        %7076 = vmatprep.subr.bf16.mxu0 0
        %7077 = vmatpush1.bf16.msra.mxu0 0
        %7078 = vmatprep.subr.bf16.mxu0 0
        %7079 = vmatpush1.bf16.msra.mxu0 0
        %7080 = vmatprep.subr.bf16.mxu0 0
        %7081 = vmatpush1.bf16.msra.mxu0 0
        %7082 = vmatprep.subr.bf16.mxu0 0
        %7083 = vmatpush1.bf16.msra.mxu0 0
        %7084 = vmatprep.subr.bf16.mxu0 0
        %7085 = vmatpush1.bf16.msra.mxu0 %v7068
        %7086 = vmatprep.subr.bf16.mxu0 0
        %7087 = vmatpush2.bf16.msra.mxu0 0
        %7088 = vmatprep.subr.bf16.mxu0 0
        %7089 = vmatpush2.bf16.msra.mxu0 0
        %7090 = vmatprep.subr.bf16.mxu0 0
        %7091 = vmatpush2.bf16.msra.mxu0 0
        %7092 = vmatprep.subr.bf16.mxu0 0
        %7093 = vmatpush2.bf16.msra.mxu0 0
        %7094 = vmatprep.subr.bf16.mxu0 0
        %7095 = vmatpush2.bf16.msra.mxu0 0
        %7096 = vmatprep.subr.bf16.mxu0 0
        %7097 = vmatpush2.bf16.msra.mxu0 0
        %7098 = vmatprep.subr.bf16.mxu0 0
        %7099 = vmatpush2.bf16.msra.mxu0 0
        %7100 = vmatprep.subr.bf16.mxu0 0
        %7101 = vmatpush2.bf16.msra.mxu0 0
        %7102 = vmatprep.mubr.bf16.mxu0 0
        %7103 = vmatmul.mubr.bf16.gmra.mxu0 %v7065
        %v7104 = vpop.f32.mrf.mxu0
        %v7105 = vadd.f32 0.0, %v7104
        %v7106 = vpop.f32.mrf.mxu0
        %v7107 = vpop.f32.mrf.mxu0
        %v7108 = vpop.f32.mrf.mxu0
        %7109 = vdwg.mxu0
        %v7111 = vsel %vm1082, %v7056, 0
        %v7114 = vsel %vm1322, %v7061, 0
        %7116 = vmatprep.subr.bf16.mxu0 0
        %7117 = vmatpush1.bf16.msra.mxu0 0
        %7118 = vmatprep.subr.bf16.mxu0 0
        %7119 = vmatpush1.bf16.msra.mxu0 0
        %7120 = vmatprep.subr.bf16.mxu0 0
        %7121 = vmatpush1.bf16.msra.mxu0 0
        %7122 = vmatprep.subr.bf16.mxu0 0
        %7123 = vmatpush1.bf16.msra.mxu0 0
        %7124 = vmatprep.subr.bf16.mxu0 0
        %7125 = vmatpush1.bf16.msra.mxu0 0
        %7126 = vmatprep.subr.bf16.mxu0 0
        %7127 = vmatpush1.bf16.msra.mxu0 0
        %7128 = vmatprep.subr.bf16.mxu0 0
        %7129 = vmatpush1.bf16.msra.mxu0 0
        %7130 = vmatprep.subr.bf16.mxu0 0
        %7131 = vmatpush1.bf16.msra.mxu0 %v7114
        %7132 = vmatprep.subr.bf16.mxu0 0
        %7133 = vmatpush2.bf16.msra.mxu0 0
        %7134 = vmatprep.subr.bf16.mxu0 0
        %7135 = vmatpush2.bf16.msra.mxu0 0
        %7136 = vmatprep.subr.bf16.mxu0 0
        %7137 = vmatpush2.bf16.msra.mxu0 0
        %7138 = vmatprep.subr.bf16.mxu0 0
        %7139 = vmatpush2.bf16.msra.mxu0 0
        %7140 = vmatprep.subr.bf16.mxu0 0
        %7141 = vmatpush2.bf16.msra.mxu0 0
        %7142 = vmatprep.subr.bf16.mxu0 0
        %7143 = vmatpush2.bf16.msra.mxu0 0
        %7144 = vmatprep.subr.bf16.mxu0 0
        %7145 = vmatpush2.bf16.msra.mxu0 0
        %7146 = vmatprep.subr.bf16.mxu0 0
        %7147 = vmatpush2.bf16.msra.mxu0 0
        %7148 = vmatprep.mubr.bf16.mxu0 0
        %7149 = vmatmul.mubr.bf16.gmra.mxu0 %v7111
        %v7150 = vpop.f32.mrf.mxu0
        %v7151 = vadd.f32 0.0, %v7150
        %v7152 = vpop.f32.mrf.mxu0
        %v7153 = vpop.f32.mrf.mxu0
        %v7154 = vpop.f32.mrf.mxu0
        %7155 = vdwg.mxu0
        %v7157 = vsel %vm1082, %v7057, 0
        %v7160 = vsel %vm1322, %v7062, 0
        %7162 = vmatprep.subr.bf16.mxu0 0
        %7163 = vmatpush1.bf16.msra.mxu0 0
        %7164 = vmatprep.subr.bf16.mxu0 0
        %7165 = vmatpush1.bf16.msra.mxu0 0
        %7166 = vmatprep.subr.bf16.mxu0 0
        %7167 = vmatpush1.bf16.msra.mxu0 0
        %7168 = vmatprep.subr.bf16.mxu0 0
        %7169 = vmatpush1.bf16.msra.mxu0 0
        %7170 = vmatprep.subr.bf16.mxu0 0
        %7171 = vmatpush1.bf16.msra.mxu0 0
        %7172 = vmatprep.subr.bf16.mxu0 0
        %7173 = vmatpush1.bf16.msra.mxu0 0
        %7174 = vmatprep.subr.bf16.mxu0 0
        %7175 = vmatpush1.bf16.msra.mxu0 0
        %7176 = vmatprep.subr.bf16.mxu0 0
        %7177 = vmatpush1.bf16.msra.mxu0 %v7160
        %7178 = vmatprep.subr.bf16.mxu0 0
        %7179 = vmatpush2.bf16.msra.mxu0 0
        %7180 = vmatprep.subr.bf16.mxu0 0
        %7181 = vmatpush2.bf16.msra.mxu0 0
        %7182 = vmatprep.subr.bf16.mxu0 0
        %7183 = vmatpush2.bf16.msra.mxu0 0
        %7184 = vmatprep.subr.bf16.mxu0 0
        %7185 = vmatpush2.bf16.msra.mxu0 0
        %7186 = vmatprep.subr.bf16.mxu0 0
        %7187 = vmatpush2.bf16.msra.mxu0 0
        %7188 = vmatprep.subr.bf16.mxu0 0
        %7189 = vmatpush2.bf16.msra.mxu0 0
        %7190 = vmatprep.subr.bf16.mxu0 0
        %7191 = vmatpush2.bf16.msra.mxu0 0
        %7192 = vmatprep.subr.bf16.mxu0 0
        %7193 = vmatpush2.bf16.msra.mxu0 0
        %7194 = vmatprep.mubr.bf16.mxu0 0
        %7195 = vmatmul.mubr.bf16.gmra.mxu0 %v7157
        %v7196 = vpop.f32.mrf.mxu0
        %v7197 = vadd.f32 0.0, %v7196
        %v7198 = vpop.f32.mrf.mxu0
        %v7199 = vpop.f32.mrf.mxu0
        %v7200 = vpop.f32.mrf.mxu0
        %7201 = vdwg.mxu0
        %v7203 = vsel %vm1082, %v7058, 0
        %v7206 = vsel %vm1322, %v7063, 0
        %7208 = vmatprep.subr.bf16.mxu0 0
        %7209 = vmatpush1.bf16.msra.mxu0 0
        %7210 = vmatprep.subr.bf16.mxu0 0
        %7211 = vmatpush1.bf16.msra.mxu0 0
        %7212 = vmatprep.subr.bf16.mxu0 0
        %7213 = vmatpush1.bf16.msra.mxu0 0
        %7214 = vmatprep.subr.bf16.mxu0 0
        %7215 = vmatpush1.bf16.msra.mxu0 0
        %7216 = vmatprep.subr.bf16.mxu0 0
        %7217 = vmatpush1.bf16.msra.mxu0 0
        %7218 = vmatprep.subr.bf16.mxu0 0
        %7219 = vmatpush1.bf16.msra.mxu0 0
        %7220 = vmatprep.subr.bf16.mxu0 0
        %7221 = vmatpush1.bf16.msra.mxu0 0
        %7222 = vmatprep.subr.bf16.mxu0 0
        %7223 = vmatpush1.bf16.msra.mxu0 %v7206
        %7224 = vmatprep.subr.bf16.mxu0 0
        %7225 = vmatpush2.bf16.msra.mxu0 0
        %7226 = vmatprep.subr.bf16.mxu0 0
        %7227 = vmatpush2.bf16.msra.mxu0 0
        %7228 = vmatprep.subr.bf16.mxu0 0
        %7229 = vmatpush2.bf16.msra.mxu0 0
        %7230 = vmatprep.subr.bf16.mxu0 0
        %7231 = vmatpush2.bf16.msra.mxu0 0
        %7232 = vmatprep.subr.bf16.mxu0 0
        %7233 = vmatpush2.bf16.msra.mxu0 0
        %7234 = vmatprep.subr.bf16.mxu0 0
        %7235 = vmatpush2.bf16.msra.mxu0 0
        %7236 = vmatprep.subr.bf16.mxu0 0
        %7237 = vmatpush2.bf16.msra.mxu0 0
        %7238 = vmatprep.subr.bf16.mxu0 0
        %7239 = vmatpush2.bf16.msra.mxu0 0
        %7240 = vmatprep.mubr.bf16.mxu0 0
        %7241 = vmatmul.mubr.bf16.gmra.mxu0 %v7203
        %v7242 = vpop.f32.mrf.mxu0
        %v7243 = vadd.f32 0.0, %v7242
        %v7244 = vpop.f32.mrf.mxu0
        %v7245 = vpop.f32.mrf.mxu0
        %v7246 = vpop.f32.mrf.mxu0
        %7247 = vdwg.mxu0
        %v7248 = vsel %vm382, %v7105, 0.0
        %v7249 = vsel %vm382, %v7151, 0.0
        %v7250 = vadd.f32 %v7248, %v7249
        %v7251 = vsel %vm382, %v7197, 0.0
        %v7252 = vadd.f32 %v7250, %v7251
        %v7253 = vsel %vm382, %v7243, 0.0
        %v7254 = vadd.f32 %v7252, %v7253
        %v7255 = vld [vmem:[#allocation2 + $0xc] sm:$0x1]
        %v7256 = vlaneseq
        %v7257 = vshrl.u32 %v7256, 7
        %v7258 = vsub.s32 0, %v7257
        %v7259 = vrot.slane %v7255, %v7258
        %v7260 = vadd.f32 %v7254, %v7259
        %v7261 = vadd.f32 %v7260, %v6008
        %v7262 = vsel %vm382, %v7261, 0.0
        %7263 = vadd.xlane.f32.xlu0 %v7262
        %v7264 = vpop.xlane.xlu0 %7263
        %v7265 = vmul.f32 %v7264, %v429
        %v7266 = vsub.f32 %v7261, %v7265
        %v7267 = vmul.f32 %v7266, %v7266
        %v7268 = vsel %vm382, %v7267, 0.0
        %7269 = vadd.xlane.f32.xlu0 %v7268
        %v7270 = vpop.xlane.xlu0 %7269
        %v7271 = vmul.f32 %v7270, %v429
        %v7272 = vadd.f32 %v7271, 1e-06
        %v7273 = vrsqrt.pop %v7272
        %v7274 = vmul.f32 %v7266, %v7273
        %v7275 = vld [vmem:[#allocation2 + $0xd] sm:$0x1]
        %v7276 = vlaneseq
        %v7277 = vshrl.u32 %v7276, 7
        %v7278 = vsub.s32 0, %v7277
        %v7279 = vrot.slane %v7275, %v7278
        %v7280 = vmul.f32 %v7274, %v7279
        %v7281 = vld [vmem:[#allocation2 + $0xe] sm:$0x1]
        %v7282 = vlaneseq
        %v7283 = vshrl.u32 %v7282, 7
        %v7284 = vsub.s32 0, %v7283
        %v7285 = vrot.slane %v7281, %v7284
        %v7286 = vadd.f32 %v7280, %v7285
        %v7287 = vpack.c.bf16 %v7286, %v7286
        %s7288 = scalar_lea.vmem %s5, 32
        %v7289 = vld [vmem:[%s7288] sm:$0xf]
        %v7290 = vld [vmem:[%s7288 + $0x4] sm:$0xf]
        %v7291 = vld [vmem:[%s7288 + $0x8] sm:$0xf]
        %v7292 = vld [vmem:[%s7288 + $0xc] sm:$0xf]
        %v7293 = vld [vmem:[#allocation2 + $0x17] sm:$0x1]
        %v7294 = vlaneseq
        %v7295 = vshrl.u32 %v7294, 7
        %v7296 = vsub.s32 0, %v7295
        %v7297 = vrot.slane %v7293, %v7296
        %v7302 = vunpack.c.l.b16 %v7289
        %v7303 = vunpack.c.l.b16 %v7290
        %v7304 = vunpack.c.l.b16 %v7291
        %v7305 = vunpack.c.l.b16 %v7292
        %v7306 = vpack.c.b16 %v7303, %v7302
        %v7307 = vpack.c.b16 %v7305, %v7304
        %v7311 = vsel %vm382, %v7287, 0
        %7313 = vmatprep.subr.bf16.mxu0 0
        %7314 = vmatpush1.bf16.msra.mxu0 0
        %7315 = vmatprep.subr.bf16.mxu0 0
        %7316 = vmatpush1.bf16.msra.mxu0 0
        %7317 = vmatprep.subr.bf16.mxu0 0
        %7318 = vmatpush1.bf16.msra.mxu0 0
        %7319 = vmatprep.subr.bf16.mxu0 0
        %7320 = vmatpush1.bf16.msra.mxu0 0
        %7321 = vmatprep.subr.bf16.mxu0 0
        %7322 = vmatpush1.bf16.msra.mxu0 0
        %7323 = vmatprep.subr.bf16.mxu0 0
        %7324 = vmatpush1.bf16.msra.mxu0 0
        %7325 = vmatprep.subr.bf16.mxu0 0
        %7326 = vmatpush1.bf16.msra.mxu0 %v7307
        %7327 = vmatprep.subr.bf16.mxu0 0
        %7328 = vmatpush1.bf16.msra.mxu0 %v7306
        %7329 = vmatprep.subr.bf16.mxu0 0
        %7330 = vmatpush2.bf16.msra.mxu0 0
        %7331 = vmatprep.subr.bf16.mxu0 0
        %7332 = vmatpush2.bf16.msra.mxu0 0
        %7333 = vmatprep.subr.bf16.mxu0 0
        %7334 = vmatpush2.bf16.msra.mxu0 0
        %7335 = vmatprep.subr.bf16.mxu0 0
        %7336 = vmatpush2.bf16.msra.mxu0 0
        %7337 = vmatprep.subr.bf16.mxu0 0
        %7338 = vmatpush2.bf16.msra.mxu0 0
        %7339 = vmatprep.subr.bf16.mxu0 0
        %7340 = vmatpush2.bf16.msra.mxu0 0
        %7341 = vmatprep.subr.bf16.mxu0 0
        %7342 = vmatpush2.bf16.msra.mxu0 0
        %7343 = vmatprep.subr.bf16.mxu0 0
        %7344 = vmatpush2.bf16.msra.mxu0 0
        %7345 = vmatprep.mubr.bf16.mxu0 0
        %7346 = vmatmul.mubr.bf16.gmra.mxu0 %v7311
        %v7347 = vpop.f32.mrf.mxu0
        %v7348 = vadd.f32 %v7297, %v7347
        %v7349 = vpop.f32.mrf.mxu0
        %v7350 = vpop.f32.mrf.mxu0
        %v7351 = vpop.f32.mrf.mxu0
        %7352 = vdwg.mxu0
        %v7353 = vmax.f32 %v7348, 0.0
        %v7354 = vpack.c.bf16 %v7353, %v7353
        %s7355 = scalar_lea.vmem %s6, 64
        %v7356 = vld [vmem:[%s7355] sm:$0xf]
        %v7357 = vld [vmem:[%s7355 + $0x4] sm:$0xf]
        %v7358 = vld [vmem:[%s7355 + $0x8] sm:$0xf]
        %v7359 = vld [vmem:[%s7355 + $0xc] sm:$0xf]
        %v7360 = vld [vmem:[%s7355 + $0x10] sm:$0xf]
        %v7361 = vld [vmem:[%s7355 + $0x14] sm:$0xf]
        %v7362 = vld [vmem:[%s7355 + $0x18] sm:$0xf]
        %v7363 = vld [vmem:[%s7355 + $0x1c] sm:$0xf]
        %v7364 = vld [vmem:[#allocation2 + $0x18] sm:$0x1]
        %v7365 = vlaneseq
        %v7366 = vshrl.u32 %v7365, 7
        %v7367 = vsub.s32 0, %v7366
        %v7368 = vrot.slane %v7364, %v7367
        %v7377 = vunpack.c.l.b16 %v7356
        %v7378 = vunpack.c.l.b16 %v7357
        %v7379 = vunpack.c.l.b16 %v7358
        %v7380 = vunpack.c.l.b16 %v7359
        %v7381 = vunpack.c.l.b16 %v7360
        %v7382 = vunpack.c.l.b16 %v7361
        %v7383 = vunpack.c.l.b16 %v7362
        %v7384 = vunpack.c.l.b16 %v7363
        %v7385 = vpack.c.b16 %v7378, %v7377
        %v7386 = vpack.c.b16 %v7380, %v7379
        %v7387 = vpack.c.b16 %v7382, %v7381
        %v7388 = vpack.c.b16 %v7384, %v7383
        %v7394 = vsel %vm1839, %v7354, 0
        %7396 = vmatprep.subr.bf16.mxu0 0
        %7397 = vmatpush1.bf16.msra.mxu0 0
        %7398 = vmatprep.subr.bf16.mxu0 0
        %7399 = vmatpush1.bf16.msra.mxu0 0
        %7400 = vmatprep.subr.bf16.mxu0 0
        %7401 = vmatpush1.bf16.msra.mxu0 0
        %7402 = vmatprep.subr.bf16.mxu0 0
        %7403 = vmatpush1.bf16.msra.mxu0 0
        %7404 = vmatprep.subr.bf16.mxu0 0
        %7405 = vmatpush1.bf16.msra.mxu0 %v7388
        %7406 = vmatprep.subr.bf16.mxu0 0
        %7407 = vmatpush1.bf16.msra.mxu0 %v7387
        %7408 = vmatprep.subr.bf16.mxu0 0
        %7409 = vmatpush1.bf16.msra.mxu0 %v7386
        %7410 = vmatprep.subr.bf16.mxu0 0
        %7411 = vmatpush1.bf16.msra.mxu0 %v7385
        %7412 = vmatprep.subr.bf16.mxu0 0
        %7413 = vmatpush2.bf16.msra.mxu0 0
        %7414 = vmatprep.subr.bf16.mxu0 0
        %7415 = vmatpush2.bf16.msra.mxu0 0
        %7416 = vmatprep.subr.bf16.mxu0 0
        %7417 = vmatpush2.bf16.msra.mxu0 0
        %7418 = vmatprep.subr.bf16.mxu0 0
        %7419 = vmatpush2.bf16.msra.mxu0 0
        %7420 = vmatprep.subr.bf16.mxu0 0
        %7421 = vmatpush2.bf16.msra.mxu0 0
        %7422 = vmatprep.subr.bf16.mxu0 0
        %7423 = vmatpush2.bf16.msra.mxu0 0
        %7424 = vmatprep.subr.bf16.mxu0 0
        %7425 = vmatpush2.bf16.msra.mxu0 0
        %7426 = vmatprep.subr.bf16.mxu0 0
        %7427 = vmatpush2.bf16.msra.mxu0 0
        %7428 = vmatprep.mubr.bf16.mxu0 0
        %7429 = vmatmul.mubr.bf16.gmra.mxu0 %v7394
        %v7430 = vpop.f32.mrf.mxu0
        %v7431 = vadd.f32 %v7368, %v7430
        %v7432 = vpop.f32.mrf.mxu0
        %v7433 = vpop.f32.mrf.mxu0
        %v7434 = vpop.f32.mrf.mxu0
        %7435 = vdwg.mxu0
        %v7436 = vadd.f32 %v7431, %v7286
        %v7437 = vsel %vm382, %v7436, 0.0
        %7438 = vadd.xlane.f32.xlu0 %v7437
        %v7439 = vpop.xlane.xlu0 %7438
        %v7440 = vmul.f32 %v7439, %v429
        %v7441 = vsub.f32 %v7436, %v7440
        %v7442 = vmul.f32 %v7441, %v7441
        %v7443 = vsel %vm382, %v7442, 0.0
        %7444 = vadd.xlane.f32.xlu0 %v7443
        %v7445 = vpop.xlane.xlu0 %7444
        %v7446 = vmul.f32 %v7445, %v429
        %v7447 = vadd.f32 %v7446, 1e-06
        %v7448 = vrsqrt.pop %v7447
        %v7449 = vmul.f32 %v7441, %v7448
        %v7450 = vld [vmem:[#allocation2 + $0x19] sm:$0x1]
        %v7451 = vlaneseq
        %v7452 = vshrl.u32 %v7451, 7
        %v7453 = vsub.s32 0, %v7452
        %v7454 = vrot.slane %v7450, %v7453
        %v7455 = vmul.f32 %v7449, %v7454
        %v7456 = vld [vmem:[#allocation2 + $0x1a] sm:$0x1]
        %v7457 = vlaneseq
        %v7458 = vshrl.u32 %v7457, 7
        %v7459 = vsub.s32 0, %v7458
        %v7460 = vrot.slane %v7456, %v7459
        %v7461 = vadd.f32 %v7455, %v7460
        %v7463 = vsel %vm382, %v7461, 0
        %v7466 = vsel %vm382, %v1908, 0
        %7468 = vmatprep.subr.mxu0 0.0
        %7469 = vmatpush1.xpose.msra.mxu0 0.0
        %7470 = vmatprep.subr.mxu0 0.0
        %7471 = vmatpush1.xpose.msra.mxu0 0.0
        %7472 = vmatprep.subr.mxu0 0.0
        %7473 = vmatpush1.xpose.msra.mxu0 0.0
        %7474 = vmatprep.subr.mxu0 0.0
        %7475 = vmatpush1.xpose.msra.mxu0 0.0
        %7476 = vmatprep.subr.mxu0 0.0
        %7477 = vmatpush1.xpose.msra.mxu0 0.0
        %7478 = vmatprep.subr.mxu0 0.0
        %7479 = vmatpush1.xpose.msra.mxu0 0.0
        %7480 = vmatprep.subr.mxu0 0.0
        %7481 = vmatpush1.xpose.msra.mxu0 0.0
        %7482 = vmatprep.subr.mxu0 0.0
        %7483 = vmatpush1.xpose.msra.mxu0 0.0
        %7484 = vmatprep.subr.mxu0 0.0
        %7485 = vmatpush1.xpose.msra.mxu0 0.0
        %7486 = vmatprep.subr.mxu0 0.0
        %7487 = vmatpush1.xpose.msra.mxu0 0.0
        %7488 = vmatprep.subr.mxu0 0.0
        %7489 = vmatpush1.xpose.msra.mxu0 0.0
        %7490 = vmatprep.subr.mxu0 0.0
        %7491 = vmatpush1.xpose.msra.mxu0 0.0
        %7492 = vmatprep.subr.mxu0 0.0
        %7493 = vmatpush1.xpose.msra.mxu0 0.0
        %7494 = vmatprep.subr.mxu0 0.0
        %7495 = vmatpush1.xpose.msra.mxu0 0.0
        %7496 = vmatprep.subr.mxu0 0.0
        %7497 = vmatpush1.xpose.msra.mxu0 0.0
        %7498 = vmatprep.subr.mxu0 0.0
        %7499 = vmatpush1.xpose.msra.mxu0 %v7466
        %7500 = vmatprep.subr.mxu0 0.0
        %7501 = vmatpush2.xpose.msra.mxu0 0.0
        %7502 = vmatprep.subr.mxu0 0.0
        %7503 = vmatpush2.xpose.msra.mxu0 0.0
        %7504 = vmatprep.subr.mxu0 0.0
        %7505 = vmatpush2.xpose.msra.mxu0 0.0
        %7506 = vmatprep.subr.mxu0 0.0
        %7507 = vmatpush2.xpose.msra.mxu0 0.0
        %7508 = vmatprep.subr.mxu0 0.0
        %7509 = vmatpush2.xpose.msra.mxu0 0.0
        %7510 = vmatprep.subr.mxu0 0.0
        %7511 = vmatpush2.xpose.msra.mxu0 0.0
        %7512 = vmatprep.subr.mxu0 0.0
        %7513 = vmatpush2.xpose.msra.mxu0 0.0
        %7514 = vmatprep.subr.mxu0 0.0
        %7515 = vmatpush2.xpose.msra.mxu0 0.0
        %7516 = vmatprep.subr.mxu0 0.0
        %7517 = vmatpush2.xpose.msra.mxu0 0.0
        %7518 = vmatprep.subr.mxu0 0.0
        %7519 = vmatpush2.xpose.msra.mxu0 0.0
        %7520 = vmatprep.subr.mxu0 0.0
        %7521 = vmatpush2.xpose.msra.mxu0 0.0
        %7522 = vmatprep.subr.mxu0 0.0
        %7523 = vmatpush2.xpose.msra.mxu0 0.0
        %7524 = vmatprep.subr.mxu0 0.0
        %7525 = vmatpush2.xpose.msra.mxu0 0.0
        %7526 = vmatprep.subr.mxu0 0.0
        %7527 = vmatpush2.xpose.msra.mxu0 0.0
        %7528 = vmatprep.subr.mxu0 0.0
        %7529 = vmatpush2.xpose.msra.mxu0 0.0
        %7530 = vmatprep.subr.mxu0 0.0
        %7531 = vmatpush2.xpose.msra.mxu0 0.0
        %7532 = vmatprep.mubr.f32.mxu0 0.0
        %7533 = vmatmul.mubr.f32.gmra.mxu0 %v7463
        %v7534 = vpop.f32.mrf.mxu0
        %v7535 = vadd.f32 0.0, %v7534
        %v7536 = vpop.f32.mrf.mxu0
        %7537 = vdwg.mxu0
        %v7538 = vxor.u32 %v7535, 2147483648
        %v7539 = vmul.f32 %v7538, 1.442695
        %v7540 = vpow.pop %v7539
        %v7541 = vadd.f32 %v7540, 1.0
        %v7542 = vrcp.pop %v7541
        %v7543 = vmul.f32 1.0, %v7542
        %7544 = vst.msk [vmem:[%s349] sm:$0xff] %vm1082, %v7543
        %s7545 = sand.u32 %s231, 1
        %s7546 = scalar_lea.sflag [#allocation4], %s7545
        %s7547 = sand.u32 %s231, 1
        %s7548 = smul.addr %s7547, 8
        %s7549 = scalar_lea.vmem [#allocation5], %s7548
        // Predicated region
        $region61: #{transform_jointer_forward.1} parent=55 // pred_check
          %p7550 = pneg %p241
        $region62: #{transform_jointer_forward.1} parent=55 // pred_check_branch
          %7552 = sbr.rel (%p7550) target = $region64
        $region63: #{transform_jointer_forward.1} parent=55 // pred_region
          %s7554 = ssub.s32 128, 128
          %7555 = vsyncadd %s7546, %s7554
          %s7556 = smul.addr %s24, 128
          %s7557 = scalar_lea.hbm %s9, %s7556
          %s7559 = sshll.u32 %s7549, 4
          %s7560 = int_to_ptr.vmem [resolvable:$true] %s7559
          %7562 = dma.vmem_to_hbm [thread:$0]  %s7560, 128, %s7557, %s7546
        $region64: #{transform_jointer_forward.1} parent=55 // pred_fallthru
          _
      $region56: #{transform_jointer_forward.1} parent=5 // pred_fallthru
        _
      %p7563 = scmp.le.s32.totalorder 2, %s19
      // Predicated region
      $region65: #{transform_jointer_forward.1} parent=5 // pred_check
        %p7564 = pneg %p7563
      $region66: #{transform_jointer_forward.1} parent=5 // pred_check_branch
        %7566 = sbr.rel (%p7564) target = $region68
      $region67: #{transform_jointer_forward.1} parent=5 // pred_region
        %s7567 = ssub.s32 %s19, 2
        // Predicated region
        $region69: #{transform_jointer_forward.1} parent=67 // pred_check
          %p7568 = pneg %p247
        $region70: #{transform_jointer_forward.1} parent=67 // pred_check_branch
          %7570 = sbr.rel (%p7568) target = $region72
        $region71: #{transform_jointer_forward.1} parent=67 // pred_region
          %s7571 = sand.u32 %s232, 1
          %s7572 = scalar_lea.sflag [#allocation4], %s7571
          %s7573 = sand.u32 %s232, 1
          %s7574 = smul.addr %s7573, 8
          %s7575 = scalar_lea.vmem [#allocation5], %s7574
          %7576 = dma.done %s7572, 128
        $region72: #{transform_jointer_forward.1} parent=67 // pred_fallthru
          _
      $region68: #{transform_jointer_forward.1} parent=5 // pred_fallthru
        _
    $region6: #{transform_jointer_forward.1} parent=1 // loop_footer
      %s23 = sadd.s32 1, %s19
    $region7: #{transform_jointer_forward.1} parent=1 // loop_footer_branch
      %18 = sbr.rel target = $region3
    $region8: #{transform_jointer_forward.1} parent=1 // loop_exit
      _
    %7577 = vsyncpa [#allocation3], 1
    %s7578 = scalar_lea.sflag [#allocation3], 1
    %7579 = vsyncpa %s7578, 1
    %7580 = vsyncpa [#allocation4], 1
    %s7581 = scalar_lea.sflag [#allocation4], 1
    %7582 = vsyncpa %s7581, 1

</llo_original>
